<compile_context>
chip_gen: v5e
topology: v5e:2x2
jax: 0.10.0
libtpu: 0.0.40
codegen_flags: <defaults>
</compile_context>

<pallas_src>
import functools

import jax
import jax.numpy as jnp
from jax import lax
from jax.experimental import pallas as pl
from jax.experimental.pallas import tpu as pltpu


def _round_up(x, m):
    return (x + m - 1) // m * m


def _cdiv(a, b):
    return -(-a // b)


def make_char_embedding_kernel(word_len, vocab_size, ftot, kmax, n_highways):
    def kernel(ids_ref, ecw_ref, tmask_ref, cb_ref, hww_ref, hwb_ref,
               pw_ref, pb_ref, out_ref):
        ids = ids_ref[...]                                   # (TM*W, 1) int32
        tmw = ids.shape[0]
        tm = tmw // word_len

        # --- char gather + all conv taps as ONE lane-dense MXU matmul ---
        iota = lax.broadcasted_iota(jnp.int32, (tmw, vocab_size), 1)
        onehot = (ids == iota).astype(jnp.bfloat16)          # (TM*W, V)
        taps = jnp.dot(onehot, ecw_ref[...],
                       preferred_element_type=jnp.float32)   # (TM*W, kmax*Ftot)
        taps = taps.reshape(tm, word_len, kmax * ftot)       # W==8 -> layout no-op

        # --- combine taps with sublane rotations (XLU), then max over time ---
        # Wrapped-around rows only hit time positions that are invalid for the
        # corresponding filter; those get -1e30 from tmask before the max.
        acc = taps[:, :, 0:ftot]
        for j in range(1, kmax):
            blk = taps[:, :, j * ftot:(j + 1) * ftot]
            acc = acc + pltpu.roll(blk, shift=word_len - j, axis=1)

        acc = acc + tmask_ref[...]                           # (TM, W, Ftot)
        pooled = jnp.max(acc, axis=1)                        # (TM, Ftot)
        # bias is time-invariant, so adding it after the max is exact
        x = jnp.maximum(pooled + cb_ref[...], 0.0)

        # --- highway layers: fused [T | H] matmul, gated combine ---
        for l in range(n_highways):
            z = (jnp.dot(x.astype(jnp.bfloat16), hww_ref[l],
                         preferred_element_type=jnp.float32) + hwb_ref[l])
            g = jax.nn.sigmoid(z[:, :ftot])
            h = jnp.maximum(z[:, ftot:], 0.0)
            x = x + g * (h - x)

        # --- final projection (lane-dense 128-wide output block) ---
        out_ref[...] = (jnp.dot(x.astype(jnp.bfloat16), pw_ref[...],
                                preferred_element_type=jnp.float32)
                        + pb_ref[...]).astype(out_ref.dtype)

    return kernel


def char_embedding_forward(x, params, conv_filters, n_highways, *, tm=256):
    """x: (B, S, W) int char ids -> (B, S, projection_size) float32."""
    B, S, W = x.shape
    N = B * S
    V, KF = params["emb_conv_w"].shape
    Ftot = params["conv_b"].shape[1]
    kmax = KF // Ftot
    P = params["proj_w"].shape[1]

    # Word tile: always >= 2 grid steps (keeps both v7x TensorCores busy),
    # prefer >= 4 steps as long as the tile stays >= 128 (MXU M dimension).
    tile = _round_up(min(tm, _round_up(N, 8)), 8)
    while tile > 128 and _cdiv(N, tile) < 4:
        tile = _round_up(tile // 2, 8)
    while tile > 8 and _cdiv(N, tile) < 2:
        tile = _round_up(tile // 2, 8)
    n_pad = _round_up(N, tile)

    # ids pre-flattened to (N*W, 1): sublane-major layout for the in-kernel
    # one-hot compare (no relayout needed).  Pad rows use id 0 (a valid row);
    # they are computed and sliced off below.
    ids = x.reshape(N, W).astype(jnp.int32)
    if n_pad != N:
        ids = jnp.pad(ids, ((0, n_pad - N), (0, 0)))
    ids = ids.reshape(n_pad * W, 1)

    # Additive mask: -1e30 at time positions where a filter of size k can't
    # start (t > W - k); constant-folded under jit.
    t_iota = jnp.arange(W, dtype=jnp.int32)[:, None]
    mask_cols = []
    for (k, f) in conv_filters:
        col = jnp.where(t_iota < (W - k + 1), 0.0, -1e30).astype(jnp.float32)
        mask_cols.append(jnp.broadcast_to(col, (W, f)))
    time_mask = jnp.concatenate(mask_cols, axis=1)           # (W, Ftot) f32

    kernel = make_char_embedding_kernel(W, V, Ftot, kmax, n_highways)

    weight_args = (params["emb_conv_w"], time_mask, params["conv_b"],
                   params["hw_w"], params["hw_b"],
                   params["proj_w"], params["proj_b"])

    def const_spec(a):
        zeros = (0,) * a.ndim
        return pl.BlockSpec(a.shape, lambda i, _z=zeros: _z)

    in_specs = ([pl.BlockSpec((tile * W, 1), lambda i: (i, 0))]
                + [const_spec(a) for a in weight_args])

    out = pl.pallas_call(
        kernel,
        out_shape=jax.ShapeDtypeStruct((n_pad, P), jnp.float32),
        grid_spec=pltpu.PrefetchScalarGridSpec(
            num_scalar_prefetch=0,
            grid=(n_pad // tile,),
            in_specs=in_specs,
            out_specs=pl.BlockSpec((tile, P), lambda i: (i, 0)),
        ),
        compiler_params=pltpu.CompilerParams(
            dimension_semantics=("parallel",),
            vmem_limit_bytes=32 * 1024 * 1024),
    )(ids, *weight_args)

    return out[:N].reshape(B, S, P)


def init_params(key, num_embeddings, embedding_dim, conv_filters,
                n_highways, projection_size):
    """Deterministic synthetic init matching the module's init distributions."""
    ftot = sum(f for _, f in conv_filters)
    kmax = max(k for k, _ in conv_filters)
    n_keys = 1 + len(conv_filters) + 2 * n_highways + 1
    kit = iter(jax.random.split(key, n_keys))

    emb_table = jax.random.uniform(next(kit), (num_embeddings, embedding_dim),
                                   jnp.float32, -1.0, 1.0)

    conv_w_oiw, conv_b = [], []
    for (k, f) in conv_filters:
        conv_w_oiw.append(jax.random.uniform(next(kit), (f, embedding_dim, k),
                                             jnp.float32, -0.05, 0.05))
        conv_b.append(jnp.zeros((f,), jnp.float32))

    std = (1.0 / ftot) ** 0.5
    hw_t, hw_h = [], []
    for _ in range(n_highways):
        wt = jax.random.normal(next(kit), (ftot, ftot), jnp.float32) * std
        hw_t.append((wt, jnp.full((ftot,), -2.0, jnp.float32)))
    for _ in range(n_highways):
        wh = jax.random.normal(next(kit), (ftot, ftot), jnp.float32) * std
        hw_h.append((wh, jnp.zeros((ftot,), jnp.float32)))

    proj_w = jax.random.normal(next(kit), (projection_size, ftot), jnp.float32) * std
    proj_b = jnp.zeros((projection_size,), jnp.float32)

    torch_layout = dict(embedding=emb_table, conv_w=conv_w_oiw, conv_b=conv_b,
                        hw_t=hw_t, hw_h=hw_h, proj_w=proj_w, proj_b=proj_b)

    # Kernel layout: embedding table folded into a single tap-major
    # (V, kmax*Ftot) bf16 matrix (fold done in f32, cast once); fused per-layer
    # [T | H] highway weights; f32 biases.
    tap_blocks = []
    for j in range(kmax):
        cols = []
        for (k, f), w in zip(conv_filters, conv_w_oiw):
            if j < k:
                cols.append(emb_table @ w[:, :, j].T)            # (V, f) f32
            else:
                cols.append(jnp.zeros((num_embeddings, f), jnp.float32))
        tap_blocks.append(jnp.concatenate(cols, axis=1))         # (V, Ftot)

    kl = {
        "emb_conv_w": jnp.concatenate(tap_blocks, axis=1).astype(jnp.bfloat16),
        "conv_b": jnp.concatenate(conv_b).reshape(1, ftot),
        "hw_w": jnp.stack(
            [jnp.concatenate([wt.T, wh.T], axis=1)
             for (wt, _), (wh, _) in zip(hw_t, hw_h)]).astype(jnp.bfloat16),
        "hw_b": jnp.stack(
            [jnp.concatenate([bt, bh]).reshape(1, 2 * ftot)
             for (_, bt), (_, bh) in zip(hw_t, hw_h)]),
        "proj_w": proj_w.T.astype(jnp.bfloat16),                 # (Ftot, P)
        "proj_b": proj_b.reshape(1, -1),                         # (1, P)
    }
    return torch_layout, kl


def ref_forward(x, p, conv_filters):
    """Pure-JAX f32 reference mirroring the PyTorch forward (NCW conv layout)."""
    emb = p["embedding"][x]                                  # (B, S, W, E)
    B, S, W, E = emb.shape
    inp = jnp.transpose(emb.reshape(B * S, W, E), (0, 2, 1))  # NCW
    feats = []
    for (k, f), w, b in zip(conv_filters, p["conv_w"], p["conv_b"]):
        out = lax.conv_general_dilated(inp, w, (1,), "VALID",
                                       dimension_numbers=("NCH", "OIH", "NCH"))
        out = out + b[None, :, None]
        feats.append(jax.nn.relu(jnp.max(out, axis=-1)))
    h = jnp.concatenate(feats, axis=-1)
    for (wt, bt), (wh, bh) in zip(p["hw_t"], p["hw_h"]):
        g = jax.nn.sigmoid(h @ wt.T + bt)
        y = jax.nn.relu(h @ wh.T + bh)
        h = g * y + (1.0 - g) * h
    out = h @ p["proj_w"].T + p["proj_b"]
    return out.reshape(B, S, -1)


if __name__ == "__main__":
    # Module config (small, shapes consistent with the PyTorch __init__/forward,
    # chosen so Ftot and projection_size are lane-dense multiples of 128).
    num_embeddings = 128
    embedding_dim = 16
    padding_idx = 0
    conv_filters = [(2, 32), (3, 64), (4, 32)]   # sum of filters = 128
    n_highways = 2
    projection_size = 128

    B, S, W = 8, 64, 8                            # N = 512 words -> 4 grid steps

    key = jax.random.PRNGKey(0)
    pkey, xkey = jax.random.split(key)
    torch_params, kernel_params = init_params(
        pkey, num_embeddings, embedding_dim, conv_filters, n_highways,
        projection_size)

    # PyTorch input is int64 char ids; int32 is the natural TPU index dtype.
    x = jax.random.randint(xkey, (B, S, W), 0, num_embeddings, dtype=jnp.int32)

    fwd = jax.jit(functools.partial(char_embedding_forward,
                                    conv_filters=conv_filters,
                                    n_highways=n_highways, tm=256))
    out = jax.block_until_ready(fwd(x, kernel_params))

    ref = ref_forward(x, torch_params, conv_filters)

    assert out.shape == (B, S, projection_size), out.shape
    assert out.dtype == jnp.float32
    # bf16 MXU operands vs a pure-f32 reference -> modest tolerance.
    max_err = float(jnp.max(jnp.abs(out - ref)))
    assert jnp.allclose(out, ref, atol=3e-2, rtol=3e-2), max_err

    print("KERNEL_OK")
</pallas_src>

<mosaic_0001>
module attributes {stable_mosaic.version = 11 : i64} {
  func.func @kernel(%arg0: i32, %arg1: memref<1024x1xi32, #tpu.memory_space<vmem>>, %arg2: memref<128x512xbf16, #tpu.memory_space<vmem>>, %arg3: memref<8x128xf32, #tpu.memory_space<vmem>>, %arg4: memref<1x128xf32, #tpu.memory_space<vmem>>, %arg5: memref<2x128x256xbf16, #tpu.memory_space<vmem>>, %arg6: memref<2x1x256xf32, #tpu.memory_space<vmem>>, %arg7: memref<128x128xbf16, #tpu.memory_space<vmem>>, %arg8: memref<1x128xf32, #tpu.memory_space<vmem>>, %arg9: memref<128x128xf32, #tpu.memory_space<vmem>>) attributes {dimension_semantics = [#tpu.dimension_semantics<parallel>], iteration_bounds = array<i64: 4>, scalar_prefetch = 0 : i64, scratch_operands = 0 : i64, tpu.core_type = #tpu.core_type<tc>, window_params = [{transform_indices = @transform_0, window_bounds = array<i64: 1024, 1>}, {pipeline_mode = #tpu.pipeline_mode<synchronous>, transform_indices = @transform_1, window_bounds = array<i64: 128, 512>}, {pipeline_mode = #tpu.pipeline_mode<synchronous>, transform_indices = @transform_2, window_bounds = array<i64: 8, 128>}, {pipeline_mode = #tpu.pipeline_mode<synchronous>, transform_indices = @transform_3, window_bounds = array<i64: 1, 128>}, {pipeline_mode = #tpu.pipeline_mode<synchronous>, transform_indices = @transform_4, window_bounds = array<i64: 2, 128, 256>}, {pipeline_mode = #tpu.pipeline_mode<synchronous>, transform_indices = @transform_5, window_bounds = array<i64: 2, 1, 256>}, {pipeline_mode = #tpu.pipeline_mode<synchronous>, transform_indices = @transform_6, window_bounds = array<i64: 128, 128>}, {pipeline_mode = #tpu.pipeline_mode<synchronous>, transform_indices = @transform_7, window_bounds = array<i64: 1, 128>}, {transform_indices = @transform_8, window_bounds = array<i64: 128, 128>}]} {
    %c0 = arith.constant 0 : index
    %c0_0 = arith.constant 0 : index
    %0 = vector.load %arg1[%c0, %c0_0] : memref<1024x1xi32, #tpu.memory_space<vmem>>, vector<1024x1xi32>
    %1 = tpu.iota {dimensions = array<i32: 1>} : vector<1024x128xi32>
    %2 = vector.broadcast %0 : vector<1024x1xi32> to vector<1024x128xi32>
    %3 = arith.cmpi eq, %2, %1 : vector<1024x128xi32>
    %4 = arith.extui %3 : vector<1024x128xi1> to vector<1024x128xi32>
    %5 = arith.sitofp %4 : vector<1024x128xi32> to vector<1024x128xf32>
    %6 = arith.truncf %5 : vector<1024x128xf32> to vector<1024x128xbf16>
    %c0_1 = arith.constant 0 : index
    %c0_2 = arith.constant 0 : index
    %7 = vector.load %arg2[%c0_1, %c0_2] : memref<128x512xbf16, #tpu.memory_space<vmem>>, vector<128x512xbf16>
    %cst = arith.constant dense<0.000000e+00> : vector<1024x512xf32>
    %8 = tpu.matmul %6, %7, %cst {dimension_numbers = #tpu.dot_dimension_numbers<[1], [0], [0], [1], [0, 0, 1, 1], [], []>} : vector<1024x128xbf16>, vector<128x512xbf16>, vector<1024x512xf32> -> vector<1024x512xf32>
    %9 = vector.shape_cast %8 : vector<1024x512xf32> to vector<128x8x512xf32>
    %10 = vector.extract_strided_slice %9 {offsets = [0, 0, 0], sizes = [128, 8, 128], strides = [1, 1, 1]} : vector<128x8x512xf32> to vector<128x8x128xf32>
    %11 = vector.extract_strided_slice %9 {offsets = [0, 0, 128], sizes = [128, 8, 128], strides = [1, 1, 1]} : vector<128x8x512xf32> to vector<128x8x128xf32>
    %c7_i32 = arith.constant 7 : i32
    %12 = tpu.dynamic_rotate %11 by %c7_i32 dim 1 : vector<128x8x128xf32>, i32 -> vector<128x8x128xf32>
    %13 = arith.addf %10, %12 : vector<128x8x128xf32>
    %14 = vector.extract_strided_slice %9 {offsets = [0, 0, 256], sizes = [128, 8, 128], strides = [1, 1, 1]} : vector<128x8x512xf32> to vector<128x8x128xf32>
    %c6_i32 = arith.constant 6 : i32
    %15 = tpu.dynamic_rotate %14 by %c6_i32 dim 1 : vector<128x8x128xf32>, i32 -> vector<128x8x128xf32>
    %16 = arith.addf %13, %15 : vector<128x8x128xf32>
    %17 = vector.extract_strided_slice %9 {offsets = [0, 0, 384], sizes = [128, 8, 128], strides = [1, 1, 1]} : vector<128x8x512xf32> to vector<128x8x128xf32>
    %c5_i32 = arith.constant 5 : i32
    %18 = tpu.dynamic_rotate %17 by %c5_i32 dim 1 : vector<128x8x128xf32>, i32 -> vector<128x8x128xf32>
    %19 = arith.addf %16, %18 : vector<128x8x128xf32>
    %c0_3 = arith.constant 0 : index
    %c0_4 = arith.constant 0 : index
    %20 = vector.load %arg3[%c0_3, %c0_4] : memref<8x128xf32, #tpu.memory_space<vmem>>, vector<8x128xf32>
    %21 = vector.shape_cast %20 : vector<8x128xf32> to vector<1x8x128xf32>
    %22 = vector.broadcast %21 : vector<1x8x128xf32> to vector<128x8x128xf32>
    %23 = arith.addf %19, %22 : vector<128x8x128xf32>
    %cst_5 = arith.constant dense<0xFF800000> : vector<128x128xf32>
    %24 = vector.multi_reduction <maximumf>, %23, %cst_5 [1] : vector<128x8x128xf32> to vector<128x128xf32>
    %c0_6 = arith.constant 0 : index
    %c0_7 = arith.constant 0 : index
    %25 = vector.load %arg4[%c0_6, %c0_7] : memref<1x128xf32, #tpu.memory_space<vmem>>, vector<1x128xf32>
    %26 = vector.broadcast %25 : vector<1x128xf32> to vector<128x128xf32>
    %27 = arith.addf %24, %26 : vector<128x128xf32>
    %cst_8 = arith.constant 0.000000e+00 : f32
    %28 = vector.broadcast %cst_8 : f32 to vector<128x128xf32>
    %29 = arith.maximumf %27, %28 : vector<128x128xf32>
    %30 = arith.truncf %29 : vector<128x128xf32> to vector<128x128xbf16>
    %c0_9 = arith.constant 0 : index
    %c0_10 = arith.constant 0 : index
    %c0_11 = arith.constant 0 : index
    %31 = vector.load %arg5[%c0_9, %c0_10, %c0_11] : memref<2x128x256xbf16, #tpu.memory_space<vmem>>, vector<1x128x256xbf16>
    %32 = vector.shape_cast %31 : vector<1x128x256xbf16> to vector<128x256xbf16>
    %cst_12 = arith.constant dense<0.000000e+00> : vector<128x256xf32>
    %33 = tpu.matmul %30, %32, %cst_12 {dimension_numbers = #tpu.dot_dimension_numbers<[1], [0], [0], [1], [0, 0, 1, 1], [], []>} : vector<128x128xbf16>, vector<128x256xbf16>, vector<128x256xf32> -> vector<128x256xf32>
    %c0_13 = arith.constant 0 : index
    %c0_14 = arith.constant 0 : index
    %c0_15 = arith.constant 0 : index
    %34 = vector.load %arg6[%c0_13, %c0_14, %c0_15] : memref<2x1x256xf32, #tpu.memory_space<vmem>>, vector<1x1x256xf32>
    %35 = vector.shape_cast %34 : vector<1x1x256xf32> to vector<1x256xf32>
    %36 = vector.broadcast %35 : vector<1x256xf32> to vector<128x256xf32>
    %37 = arith.addf %33, %36 : vector<128x256xf32>
    %38 = vector.extract_strided_slice %37 {offsets = [0, 0], sizes = [128, 128], strides = [1, 1]} : vector<128x256xf32> to vector<128x128xf32>
    %39 = arith.negf %38 : vector<128x128xf32>
    %40 = math.exp %39 : vector<128x128xf32>
    %cst_16 = arith.constant 1.000000e+00 : f32
    %41 = vector.broadcast %cst_16 : f32 to vector<128x128xf32>
    %42 = arith.addf %41, %40 : vector<128x128xf32>
    %43 = arith.divf %41, %42 : vector<128x128xf32>
    %44 = vector.extract_strided_slice %37 {offsets = [0, 128], sizes = [128, 128], strides = [1, 1]} : vector<128x256xf32> to vector<128x128xf32>
    %cst_17 = arith.constant 0.000000e+00 : f32
    %45 = vector.broadcast %cst_17 : f32 to vector<128x128xf32>
    %46 = arith.maximumf %44, %45 : vector<128x128xf32>
    %47 = arith.subf %46, %29 : vector<128x128xf32>
    %48 = arith.mulf %43, %47 : vector<128x128xf32>
    %49 = arith.addf %29, %48 : vector<128x128xf32>
    %50 = arith.truncf %49 : vector<128x128xf32> to vector<128x128xbf16>
    %c1 = arith.constant 1 : index
    %c0_18 = arith.constant 0 : index
    %c0_19 = arith.constant 0 : index
    %51 = vector.load %arg5[%c1, %c0_18, %c0_19] : memref<2x128x256xbf16, #tpu.memory_space<vmem>>, vector<1x128x256xbf16>
    %52 = vector.shape_cast %51 : vector<1x128x256xbf16> to vector<128x256xbf16>
    %cst_20 = arith.constant dense<0.000000e+00> : vector<128x256xf32>
    %53 = tpu.matmul %50, %52, %cst_20 {dimension_numbers = #tpu.dot_dimension_numbers<[1], [0], [0], [1], [0, 0, 1, 1], [], []>} : vector<128x128xbf16>, vector<128x256xbf16>, vector<128x256xf32> -> vector<128x256xf32>
    %c1_21 = arith.constant 1 : index
    %c0_22 = arith.constant 0 : index
    %c0_23 = arith.constant 0 : index
    %54 = vector.load %arg6[%c1_21, %c0_22, %c0_23] : memref<2x1x256xf32, #tpu.memory_space<vmem>>, vector<1x1x256xf32>
    %55 = vector.shape_cast %54 : vector<1x1x256xf32> to vector<1x256xf32>
    %56 = vector.broadcast %55 : vector<1x256xf32> to vector<128x256xf32>
    %57 = arith.addf %53, %56 : vector<128x256xf32>
    %58 = vector.extract_strided_slice %57 {offsets = [0, 0], sizes = [128, 128], strides = [1, 1]} : vector<128x256xf32> to vector<128x128xf32>
    %59 = arith.negf %58 : vector<128x128xf32>
    %60 = math.exp %59 : vector<128x128xf32>
    %cst_24 = arith.constant 1.000000e+00 : f32
    %61 = vector.broadcast %cst_24 : f32 to vector<128x128xf32>
    %62 = arith.addf %61, %60 : vector<128x128xf32>
    %63 = arith.divf %61, %62 : vector<128x128xf32>
    %64 = vector.extract_strided_slice %57 {offsets = [0, 128], sizes = [128, 128], strides = [1, 1]} : vector<128x256xf32> to vector<128x128xf32>
    %cst_25 = arith.constant 0.000000e+00 : f32
    %65 = vector.broadcast %cst_25 : f32 to vector<128x128xf32>
    %66 = arith.maximumf %64, %65 : vector<128x128xf32>
    %67 = arith.subf %66, %49 : vector<128x128xf32>
    %68 = arith.mulf %63, %67 : vector<128x128xf32>
    %69 = arith.addf %49, %68 : vector<128x128xf32>
    %70 = arith.truncf %69 : vector<128x128xf32> to vector<128x128xbf16>
    %c0_26 = arith.constant 0 : index
    %c0_27 = arith.constant 0 : index
    %71 = vector.load %arg7[%c0_26, %c0_27] : memref<128x128xbf16, #tpu.memory_space<vmem>>, vector<128x128xbf16>
    %cst_28 = arith.constant dense<0.000000e+00> : vector<128x128xf32>
    %72 = tpu.matmul %70, %71, %cst_28 {dimension_numbers = #tpu.dot_dimension_numbers<[1], [0], [0], [1], [0, 0, 1, 1], [], []>} : vector<128x128xbf16>, vector<128x128xbf16>, vector<128x128xf32> -> vector<128x128xf32>
    %c0_29 = arith.constant 0 : index
    %c0_30 = arith.constant 0 : index
    %73 = vector.load %arg8[%c0_29, %c0_30] : memref<1x128xf32, #tpu.memory_space<vmem>>, vector<1x128xf32>
    %74 = vector.broadcast %73 : vector<1x128xf32> to vector<128x128xf32>
    %75 = arith.addf %72, %74 : vector<128x128xf32>
    %c0_31 = arith.constant 0 : index
    %c0_32 = arith.constant 0 : index
    %76 = vector.load %arg9[%c0_31, %c0_32] : memref<128x128xf32, #tpu.memory_space<vmem>>, vector<128x128xf32>
    tpu.vector_store %arg9[%c0_31, %c0_32], %75 {strides = array<i32>} : memref<128x128xf32, #tpu.memory_space<vmem>>, vector<128x128xf32>,
    return
  }
  func.func @transform_0(%arg0: i32) -> (i32, i32) {
    %c0_i32 = arith.constant 0 : i32
    %c0_i32_0 = arith.constant 0 : i32
    return %arg0, %c0_i32 : i32, i32
  }
  func.func @transform_1(%arg0: i32) -> (i32, i32) {
    %c0_i32 = arith.constant 0 : i32
    %c0_i32_0 = arith.constant 0 : i32
    %c0_i32_1 = arith.constant 0 : i32
    return %c0_i32, %c0_i32_0 : i32, i32
  }
  func.func @transform_2(%arg0: i32) -> (i32, i32) {
    %c0_i32 = arith.constant 0 : i32
    %c0_i32_0 = arith.constant 0 : i32
    %c0_i32_1 = arith.constant 0 : i32
    return %c0_i32, %c0_i32_0 : i32, i32
  }
  func.func @transform_3(%arg0: i32) -> (i32, i32) {
    %c0_i32 = arith.constant 0 : i32
    %c0_i32_0 = arith.constant 0 : i32
    %c0_i32_1 = arith.constant 0 : i32
    return %c0_i32, %c0_i32_0 : i32, i32
  }
  func.func @transform_4(%arg0: i32) -> (i32, i32, i32) {
    %c0_i32 = arith.constant 0 : i32
    %c0_i32_0 = arith.constant 0 : i32
    %c0_i32_1 = arith.constant 0 : i32
    %c0_i32_2 = arith.constant 0 : i32
    return %c0_i32, %c0_i32_0, %c0_i32_1 : i32, i32, i32
  }
  func.func @transform_5(%arg0: i32) -> (i32, i32, i32) {
    %c0_i32 = arith.constant 0 : i32
    %c0_i32_0 = arith.constant 0 : i32
    %c0_i32_1 = arith.constant 0 : i32
    %c0_i32_2 = arith.constant 0 : i32
    return %c0_i32, %c0_i32_0, %c0_i32_1 : i32, i32, i32
  }
  func.func @transform_6(%arg0: i32) -> (i32, i32) {
    %c0_i32 = arith.constant 0 : i32
    %c0_i32_0 = arith.constant 0 : i32
    %c0_i32_1 = arith.constant 0 : i32
    return %c0_i32, %c0_i32_0 : i32, i32
  }
  func.func @transform_7(%arg0: i32) -> (i32, i32) {
    %c0_i32 = arith.constant 0 : i32
    %c0_i32_0 = arith.constant 0 : i32
    %c0_i32_1 = arith.constant 0 : i32
    return %c0_i32, %c0_i32_0 : i32, i32
  }
  func.func @transform_8(%arg0: i32) -> (i32, i32) {
    %c0_i32 = arith.constant 0 : i32
    %c0_i32_0 = arith.constant 0 : i32
    return %arg0, %c0_i32 : i32, i32
  }
}

</mosaic_0001>

<llo_original>
// kernel: char_embedding_forward.1
$region0: #{char_embedding_forward.1}
  #allocation0 [shape = 'u32[]', space=smem, size = 0x4, offset = 0x4, fixed_abs, tag = 'smem constant byte address 0x4 - core index']
  #allocation1 [shape = 'u32[72,128]{1,0:T(1,128)}', space=vmem, size = 0x9000, scoped, tag = 'internal scratch']
  %s0 = inlined_call_operand.vmem [shape: s32[4096,1], index: 0, kind: input, shape index: {}]
  %s1 = inlined_call_operand.vmem [shape: bf16[128,512], index: 1, kind: input, shape index: {}]
  %s2 = inlined_call_operand.vmem [shape: f32[8,128], index: 2, kind: input, shape index: {}]
  %s3 = inlined_call_operand.vmem [shape: f32[1,128], index: 3, kind: input, shape index: {}]
  %s4 = inlined_call_operand.vmem [shape: bf16[2,128,256], index: 4, kind: input, shape index: {}]
  %s5 = inlined_call_operand.vmem [shape: f32[2,1,256], index: 5, kind: input, shape index: {}]
  %s6 = inlined_call_operand.vmem [shape: bf16[128,128], index: 6, kind: input, shape index: {}]
  %s7 = inlined_call_operand.vmem [shape: f32[1,128], index: 7, kind: input, shape index: {}]
  %s8 = inlined_call_operand.hbm [shape: f32[512,128], index: 8, kind: output, shape index: {}]
  %s9 = sld [smem:[#allocation0]]
  $region65: #{char_embedding_forward.1} parent=0
    _
  %s11 = ssub.s32 1, %s9
  %s12 = scalar_select 0, %s11, %s9
  $region1: #{char_embedding_forward.1} parent=0
    #allocation2 [shape = 'u8[131072]{0}', space=vmem, size = 0x20000, scoped, tag = 'output window, operand 0']
    #allocation3 [shape = 's32[2]{0}', space=sflag, size = 0x8, scoped, tag = 'scoped memory for char_embedding_forward.1']
    %13 = vsyncpa [#allocation3], 0
    %s14 = scalar_lea.sflag [#allocation3], 1
    %15 = vsyncpa %s14, 0
    loop: start=0, step=1, limit=6
    $region2: #{char_embedding_forward.1} parent=1 // loop_pre_header
      _
    $region3: #{char_embedding_forward.1} parent=1 // loop_header
      %s17 = sphi 0, %s21
      %p18 = scmp.ge.s32.totalorder %s17, 6
      %s27 = sphi 0, %s29
      %s30 = sphi 0, %s27
      %s31 = sphi 0, %s30
      %s47 = sphi 0, %s31
      %s51 = sphi 0, %s51
      %s53 = sphi 0, %s51
      %s54 = sphi 0, %s53
      %s68 = sphi 0, %s54
      %s72 = sphi 0, %s72
      %s74 = sphi 0, %s72
      %s75 = sphi 0, %s74
      %s89 = sphi 0, %s75
      %s93 = sphi 0, %s93
      %s95 = sphi 0, %s93
      %s96 = sphi 0, %s95
      %s110 = sphi 0, %s96
      %s114 = sphi 0, %s114
      %s116 = sphi 0, %s114
      %s117 = sphi 0, %s116
      %s131 = sphi 0, %s117
      %s135 = sphi 0, %s135
      %s137 = sphi 0, %s135
      %s138 = sphi 0, %s137
      %s152 = sphi 0, %s138
      %s156 = sphi 0, %s156
      %s158 = sphi 0, %s156
      %s159 = sphi 0, %s158
      %s173 = sphi 0, %s159
      %s177 = sphi 0, %s177
      %s179 = sphi 0, %s177
      %s180 = sphi 0, %s179
      %s194 = sphi 0, %s180
      %s200 = sphi 0, %s202
      %s203 = sphi 0, %s200
      %s204 = sphi 0, %s203
      %s220 = sphi 0, %s204
    $region4: #{char_embedding_forward.1} parent=1 // loop_header_branch
      %20 = sbr.rel (%p18) target = $region8
    $region5: #{char_embedding_forward.1} parent=1 // loop_body
      %s22 = ssub.s32 %s17, 1
      %s23 = ssub.s32 %s17, 2
      %s24 = sadd.s32 %s17, 1
      %s25 = ssub.s32 %s17, %s24
      %p26 = scmp.eq.s32.totalorder %s25, 0
      %s28 = sadd.s32 %s27, 1
      %s29 = scalar_select %p26, %s27, %s28
      %p32 = pneg %p26
      %p33 = scmp.eq.s32.totalorder %s17, 3
      %p34 = por %p32, %p33
      %p35 = scmp.ne.s32.totalorder %s27, %s30
      %p36 = scmp.eq.s32.totalorder %s17, 0
      %p37 = por %p35, %p36
      %p38 = scmp.ne.s32.totalorder %s27, %s30
      %p39 = scmp.eq.s32.totalorder %s22, 3
      %p40 = por %p38, %p39
      %p41 = scmp.ne.s32.totalorder %s30, %s31
      %p42 = scmp.eq.s32.totalorder %s22, 0
      %p43 = por %p41, %p42
      %p44 = scmp.ne.s32.totalorder %s30, %s31
      %p45 = scmp.eq.s32.totalorder %s23, 3
      %p46 = por %p44, %p45
      %p48 = scmp.ne.s32.totalorder %s31, %s47
      %p49 = scmp.eq.s32.totalorder %s23, 0
      %p50 = por %p48, %p49
      %s52 = sadd.s32 %s51, 1
      %p55 = scmp.eq.s32.totalorder %s17, 3
      %p56 = scmp.ne.s32.totalorder %s51, %s53
      %p57 = scmp.eq.s32.totalorder %s17, 0
      %p58 = por %p56, %p57
      %p59 = scmp.ne.s32.totalorder %s51, %s53
      %p60 = scmp.eq.s32.totalorder %s22, 3
      %p61 = por %p59, %p60
      %p62 = scmp.ne.s32.totalorder %s53, %s54
      %p63 = scmp.eq.s32.totalorder %s22, 0
      %p64 = por %p62, %p63
      %p65 = scmp.ne.s32.totalorder %s53, %s54
      %p66 = scmp.eq.s32.totalorder %s23, 3
      %p67 = por %p65, %p66
      %p69 = scmp.ne.s32.totalorder %s54, %s68
      %p70 = scmp.eq.s32.totalorder %s23, 0
      %p71 = por %p69, %p70
      %s73 = sadd.s32 %s72, 1
      %p76 = scmp.eq.s32.totalorder %s17, 3
      %p77 = scmp.ne.s32.totalorder %s72, %s74
      %p78 = scmp.eq.s32.totalorder %s17, 0
      %p79 = por %p77, %p78
      %p80 = scmp.ne.s32.totalorder %s72, %s74
      %p81 = scmp.eq.s32.totalorder %s22, 3
      %p82 = por %p80, %p81
      %p83 = scmp.ne.s32.totalorder %s74, %s75
      %p84 = scmp.eq.s32.totalorder %s22, 0
      %p85 = por %p83, %p84
      %p86 = scmp.ne.s32.totalorder %s74, %s75
      %p87 = scmp.eq.s32.totalorder %s23, 3
      %p88 = por %p86, %p87
      %p90 = scmp.ne.s32.totalorder %s75, %s89
      %p91 = scmp.eq.s32.totalorder %s23, 0
      %p92 = por %p90, %p91
      %s94 = sadd.s32 %s93, 1
      %p97 = scmp.eq.s32.totalorder %s17, 3
      %p98 = scmp.ne.s32.totalorder %s93, %s95
      %p99 = scmp.eq.s32.totalorder %s17, 0
      %p100 = por %p98, %p99
      %p101 = scmp.ne.s32.totalorder %s93, %s95
      %p102 = scmp.eq.s32.totalorder %s22, 3
      %p103 = por %p101, %p102
      %p104 = scmp.ne.s32.totalorder %s95, %s96
      %p105 = scmp.eq.s32.totalorder %s22, 0
      %p106 = por %p104, %p105
      %p107 = scmp.ne.s32.totalorder %s95, %s96
      %p108 = scmp.eq.s32.totalorder %s23, 3
      %p109 = por %p107, %p108
      %p111 = scmp.ne.s32.totalorder %s96, %s110
      %p112 = scmp.eq.s32.totalorder %s23, 0
      %p113 = por %p111, %p112
      %s115 = sadd.s32 %s114, 1
      %p118 = scmp.eq.s32.totalorder %s17, 3
      %p119 = scmp.ne.s32.totalorder %s114, %s116
      %p120 = scmp.eq.s32.totalorder %s17, 0
      %p121 = por %p119, %p120
      %p122 = scmp.ne.s32.totalorder %s114, %s116
      %p123 = scmp.eq.s32.totalorder %s22, 3
      %p124 = por %p122, %p123
      %p125 = scmp.ne.s32.totalorder %s116, %s117
      %p126 = scmp.eq.s32.totalorder %s22, 0
      %p127 = por %p125, %p126
      %p128 = scmp.ne.s32.totalorder %s116, %s117
      %p129 = scmp.eq.s32.totalorder %s23, 3
      %p130 = por %p128, %p129
      %p132 = scmp.ne.s32.totalorder %s117, %s131
      %p133 = scmp.eq.s32.totalorder %s23, 0
      %p134 = por %p132, %p133
      %s136 = sadd.s32 %s135, 1
      %p139 = scmp.eq.s32.totalorder %s17, 3
      %p140 = scmp.ne.s32.totalorder %s135, %s137
      %p141 = scmp.eq.s32.totalorder %s17, 0
      %p142 = por %p140, %p141
      %p143 = scmp.ne.s32.totalorder %s135, %s137
      %p144 = scmp.eq.s32.totalorder %s22, 3
      %p145 = por %p143, %p144
      %p146 = scmp.ne.s32.totalorder %s137, %s138
      %p147 = scmp.eq.s32.totalorder %s22, 0
      %p148 = por %p146, %p147
      %p149 = scmp.ne.s32.totalorder %s137, %s138
      %p150 = scmp.eq.s32.totalorder %s23, 3
      %p151 = por %p149, %p150
      %p153 = scmp.ne.s32.totalorder %s138, %s152
      %p154 = scmp.eq.s32.totalorder %s23, 0
      %p155 = por %p153, %p154
      %s157 = sadd.s32 %s156, 1
      %p160 = scmp.eq.s32.totalorder %s17, 3
      %p161 = scmp.ne.s32.totalorder %s156, %s158
      %p162 = scmp.eq.s32.totalorder %s17, 0
      %p163 = por %p161, %p162
      %p164 = scmp.ne.s32.totalorder %s156, %s158
      %p165 = scmp.eq.s32.totalorder %s22, 3
      %p166 = por %p164, %p165
      %p167 = scmp.ne.s32.totalorder %s158, %s159
      %p168 = scmp.eq.s32.totalorder %s22, 0
      %p169 = por %p167, %p168
      %p170 = scmp.ne.s32.totalorder %s158, %s159
      %p171 = scmp.eq.s32.totalorder %s23, 3
      %p172 = por %p170, %p171
      %p174 = scmp.ne.s32.totalorder %s159, %s173
      %p175 = scmp.eq.s32.totalorder %s23, 0
      %p176 = por %p174, %p175
      %s178 = sadd.s32 %s177, 1
      %p181 = scmp.eq.s32.totalorder %s17, 3
      %p182 = scmp.ne.s32.totalorder %s177, %s179
      %p183 = scmp.eq.s32.totalorder %s17, 0
      %p184 = por %p182, %p183
      %p185 = scmp.ne.s32.totalorder %s177, %s179
      %p186 = scmp.eq.s32.totalorder %s22, 3
      %p187 = por %p185, %p186
      %p188 = scmp.ne.s32.totalorder %s179, %s180
      %p189 = scmp.eq.s32.totalorder %s22, 0
      %p190 = por %p188, %p189
      %p191 = scmp.ne.s32.totalorder %s179, %s180
      %p192 = scmp.eq.s32.totalorder %s23, 3
      %p193 = por %p191, %p192
      %p195 = scmp.ne.s32.totalorder %s180, %s194
      %p196 = scmp.eq.s32.totalorder %s23, 0
      %p197 = por %p195, %p196
      %s198 = ssub.s32 %s17, %s24
      %p199 = scmp.eq.s32.totalorder %s198, 0
      %s201 = sadd.s32 %s200, 1
      %s202 = scalar_select %p199, %s200, %s201
      %p205 = pneg %p199
      %p206 = scmp.eq.s32.totalorder %s17, 3
      %p207 = por %p205, %p206
      %p208 = scmp.ne.s32.totalorder %s200, %s203
      %p209 = scmp.eq.s32.totalorder %s17, 0
      %p210 = por %p208, %p209
      %p211 = scmp.ne.s32.totalorder %s200, %s203
      %p212 = scmp.eq.s32.totalorder %s22, 3
      %p213 = por %p211, %p212
      %p214 = scmp.ne.s32.totalorder %s203, %s204
      %p215 = scmp.eq.s32.totalorder %s22, 0
      %p216 = por %p214, %p215
      %p217 = scmp.ne.s32.totalorder %s203, %s204
      %p218 = scmp.eq.s32.totalorder %s23, 3
      %p219 = por %p217, %p218
      %p221 = scmp.ne.s32.totalorder %s204, %s220
      %p222 = scmp.eq.s32.totalorder %s23, 0
      %p223 = por %p221, %p222
      %p224 = scmp.le.s32.totalorder 1, %s17
      %p225 = scmp.lt.s32.totalorder %s17, 5
      %p226 = pnand %p224, %p225
      %p227 = pneg %p226
      // Predicated region
      $region9: #{char_embedding_forward.1} parent=5 // pred_check
        _
      $region10: #{char_embedding_forward.1} parent=5 // pred_check_branch
        %229 = sbr.rel (%p226) target = $region12
      $region11: #{char_embedding_forward.1} parent=5 // pred_region
        %s230 = ssub.s32 %s17, 1
        // Predicated region
        $region13: #{char_embedding_forward.1} parent=11 // pred_check
          %p231 = pneg %p64
        $region14: #{char_embedding_forward.1} parent=11 // pred_check_branch
          %233 = sbr.rel (%p231) target = $region16
        $region15: #{char_embedding_forward.1} parent=11 // pred_region
          _
        $region16: #{char_embedding_forward.1} parent=11 // pred_fallthru
          _
        // Predicated region
        $region17: #{char_embedding_forward.1} parent=11 // pred_check
          %p234 = pneg %p85
        $region18: #{char_embedding_forward.1} parent=11 // pred_check_branch
          %236 = sbr.rel (%p234) target = $region20
        $region19: #{char_embedding_forward.1} parent=11 // pred_region
          _
        $region20: #{char_embedding_forward.1} parent=11 // pred_fallthru
          _
        // Predicated region
        $region21: #{char_embedding_forward.1} parent=11 // pred_check
          %p237 = pneg %p106
        $region22: #{char_embedding_forward.1} parent=11 // pred_check_branch
          %239 = sbr.rel (%p237) target = $region24
        $region23: #{char_embedding_forward.1} parent=11 // pred_region
          _
        $region24: #{char_embedding_forward.1} parent=11 // pred_fallthru
          _
        // Predicated region
        $region25: #{char_embedding_forward.1} parent=11 // pred_check
          %p240 = pneg %p127
        $region26: #{char_embedding_forward.1} parent=11 // pred_check_branch
          %242 = sbr.rel (%p240) target = $region28
        $region27: #{char_embedding_forward.1} parent=11 // pred_region
          _
        $region28: #{char_embedding_forward.1} parent=11 // pred_fallthru
          _
        // Predicated region
        $region29: #{char_embedding_forward.1} parent=11 // pred_check
          %p243 = pneg %p148
        $region30: #{char_embedding_forward.1} parent=11 // pred_check_branch
          %245 = sbr.rel (%p243) target = $region32
        $region31: #{char_embedding_forward.1} parent=11 // pred_region
          _
        $region32: #{char_embedding_forward.1} parent=11 // pred_fallthru
          _
        // Predicated region
        $region33: #{char_embedding_forward.1} parent=11 // pred_check
          %p246 = pneg %p169
        $region34: #{char_embedding_forward.1} parent=11 // pred_check_branch
          %248 = sbr.rel (%p246) target = $region36
        $region35: #{char_embedding_forward.1} parent=11 // pred_region
          _
        $region36: #{char_embedding_forward.1} parent=11 // pred_fallthru
          _
        // Predicated region
        $region37: #{char_embedding_forward.1} parent=11 // pred_check
          %p249 = pneg %p190
        $region38: #{char_embedding_forward.1} parent=11 // pred_check_branch
          %251 = sbr.rel (%p249) target = $region40
        $region39: #{char_embedding_forward.1} parent=11 // pred_region
          _
        $region40: #{char_embedding_forward.1} parent=11 // pred_fallthru
          _
      $region12: #{char_embedding_forward.1} parent=5 // pred_fallthru
        _
      %p252 = scmp.lt.s32.totalorder %s17, 4
      // Predicated region
      $region41: #{char_embedding_forward.1} parent=5 // pred_check
        %p253 = pneg %p252
      $region42: #{char_embedding_forward.1} parent=5 // pred_check_branch
        %255 = sbr.rel (%p253) target = $region44
      $region43: #{char_embedding_forward.1} parent=5 // pred_region
        // Predicated region
        $region45: #{char_embedding_forward.1} parent=43 // pred_check
          %p256 = pneg %p37
        $region46: #{char_embedding_forward.1} parent=43 // pred_check_branch
          %258 = sbr.rel (%p256) target = $region48
        $region47: #{char_embedding_forward.1} parent=43 // pred_region
          %s259 = smul.u32 128, %s17
          %p260 = scmp.lt.s32.totalorder %s259, 511
          %s261 = scalar_select %p260, %s259, 511
          %s262 = smul.addr %s261, 8
          %s263 = scalar_lea.vmem %s0, %s262
          %s264 = smul.u32 128, %s17
        $region48: #{char_embedding_forward.1} parent=43 // pred_fallthru
          _
      $region44: #{char_embedding_forward.1} parent=5 // pred_fallthru
        _
      %p265 = scmp.le.s32.totalorder 1, %s17
      %p266 = scmp.lt.s32.totalorder %s17, 5
      %p267 = pnand %p265, %p266
      %p268 = pneg %p267
      // Predicated region
      $region49: #{char_embedding_forward.1} parent=5 // pred_check
        _
      $region50: #{char_embedding_forward.1} parent=5 // pred_check_branch
        %270 = sbr.rel (%p267) target = $region52
      $region51: #{char_embedding_forward.1} parent=5 // pred_region
        %s271 = ssub.s32 %s17, 1
        %s272 = smul.u32 128, %s22
        %p273 = scmp.lt.s32.totalorder %s272, 511
        %s274 = scalar_select %p273, %s272, 511
        %s275 = smul.addr %s274, 8
        %s276 = scalar_lea.vmem %s0, %s275
        %p277 = pneg %p43
        %p278 = pneg %p40
        %p279 = pneg %p64
        %p280 = pneg %p61
        %p281 = pneg %p85
        %p282 = pneg %p82
        %p283 = pneg %p106
        %p284 = pneg %p103
        %p285 = pneg %p127
        %p286 = pneg %p124
        %p287 = pneg %p148
        %p288 = pneg %p145
        %p289 = pneg %p169
        %p290 = pneg %p166
        %p291 = pneg %p190
        %p292 = pneg %p187
        %p293 = pneg %p216
        %p294 = pneg %p213
        %s295 = sand.u32 %s203, 1
        %s296 = scalar_lea.sflag [#allocation3], %s295
        %s297 = sand.u32 %s203, 1
        %s298 = smul.addr %s297, 128
        %s299 = scalar_lea.vmem [#allocation2], %s298
        %s300 = smul.u32 128, %s22
        %p301 = scmp.lt.s32.totalorder %s300, 511
        %s302 = scalar_select %p301, %s300, 511
        %s303 = smul.addr %s302, 8
        %s304 = scalar_lea.vmem %s0, %s303
        %s305 = smul.u32 128, %s22
        %s306 = smul.u32 16, %s22
        %v307 = vld [vmem:[%s304] sm:$0xff]
        %v308 = vld [vmem:[%s304 + $0x8] sm:$0xff]
        %v309 = vld [vmem:[%s304 + $0x10] sm:$0xff]
        %v310 = vld [vmem:[%s304 + $0x18] sm:$0xff]
        %v311 = vld [vmem:[%s304 + $0x20] sm:$0xff]
        %v312 = vld [vmem:[%s304 + $0x28] sm:$0xff]
        %v313 = vld [vmem:[%s304 + $0x30] sm:$0xff]
        %v314 = vld [vmem:[%s304 + $0x38] sm:$0xff]
        %v315 = vld [vmem:[%s304 + $0x40] sm:$0xff]
        %v316 = vld [vmem:[%s304 + $0x48] sm:$0xff]
        %v317 = vld [vmem:[%s304 + $0x50] sm:$0xff]
        %v318 = vld [vmem:[%s304 + $0x58] sm:$0xff]
        %v319 = vld [vmem:[%s304 + $0x60] sm:$0xff]
        %v320 = vld [vmem:[%s304 + $0x68] sm:$0xff]
        %v321 = vld [vmem:[%s304 + $0x70] sm:$0xff]
        %v322 = vld [vmem:[%s304 + $0x78] sm:$0xff]
        %v323 = vld [vmem:[%s304 + $0x80] sm:$0xff]
        %v324 = vld [vmem:[%s304 + $0x88] sm:$0xff]
        %v325 = vld [vmem:[%s304 + $0x90] sm:$0xff]
        %v326 = vld [vmem:[%s304 + $0x98] sm:$0xff]
        %v327 = vld [vmem:[%s304 + $0xa0] sm:$0xff]
        %v328 = vld [vmem:[%s304 + $0xa8] sm:$0xff]
        %v329 = vld [vmem:[%s304 + $0xb0] sm:$0xff]
        %v330 = vld [vmem:[%s304 + $0xb8] sm:$0xff]
        %v331 = vld [vmem:[%s304 + $0xc0] sm:$0xff]
        %v332 = vld [vmem:[%s304 + $0xc8] sm:$0xff]
        %v333 = vld [vmem:[%s304 + $0xd0] sm:$0xff]
        %v334 = vld [vmem:[%s304 + $0xd8] sm:$0xff]
        %v335 = vld [vmem:[%s304 + $0xe0] sm:$0xff]
        %v336 = vld [vmem:[%s304 + $0xe8] sm:$0xff]
        %v337 = vld [vmem:[%s304 + $0xf0] sm:$0xff]
        %v338 = vld [vmem:[%s304 + $0xf8] sm:$0xff]
        %v339 = vld [vmem:[%s304 + $0x100] sm:$0xff]
        %v340 = vld [vmem:[%s304 + $0x108] sm:$0xff]
        %v341 = vld [vmem:[%s304 + $0x110] sm:$0xff]
        %v342 = vld [vmem:[%s304 + $0x118] sm:$0xff]
        %v343 = vld [vmem:[%s304 + $0x120] sm:$0xff]
        %v344 = vld [vmem:[%s304 + $0x128] sm:$0xff]
        %v345 = vld [vmem:[%s304 + $0x130] sm:$0xff]
        %v346 = vld [vmem:[%s304 + $0x138] sm:$0xff]
        %v347 = vld [vmem:[%s304 + $0x140] sm:$0xff]
        %v348 = vld [vmem:[%s304 + $0x148] sm:$0xff]
        %v349 = vld [vmem:[%s304 + $0x150] sm:$0xff]
        %v350 = vld [vmem:[%s304 + $0x158] sm:$0xff]
        %v351 = vld [vmem:[%s304 + $0x160] sm:$0xff]
        %v352 = vld [vmem:[%s304 + $0x168] sm:$0xff]
        %v353 = vld [vmem:[%s304 + $0x170] sm:$0xff]
        %v354 = vld [vmem:[%s304 + $0x178] sm:$0xff]
        %v355 = vld [vmem:[%s304 + $0x180] sm:$0xff]
        %v356 = vld [vmem:[%s304 + $0x188] sm:$0xff]
        %v357 = vld [vmem:[%s304 + $0x190] sm:$0xff]
        %v358 = vld [vmem:[%s304 + $0x198] sm:$0xff]
        %v359 = vld [vmem:[%s304 + $0x1a0] sm:$0xff]
        %v360 = vld [vmem:[%s304 + $0x1a8] sm:$0xff]
        %v361 = vld [vmem:[%s304 + $0x1b0] sm:$0xff]
        %v362 = vld [vmem:[%s304 + $0x1b8] sm:$0xff]
        %v363 = vld [vmem:[%s304 + $0x1c0] sm:$0xff]
        %v364 = vld [vmem:[%s304 + $0x1c8] sm:$0xff]
        %v365 = vld [vmem:[%s304 + $0x1d0] sm:$0xff]
        %v366 = vld [vmem:[%s304 + $0x1d8] sm:$0xff]
        %v367 = vld [vmem:[%s304 + $0x1e0] sm:$0xff]
        %v368 = vld [vmem:[%s304 + $0x1e8] sm:$0xff]
        %v369 = vld [vmem:[%s304 + $0x1f0] sm:$0xff]
        %v370 = vld [vmem:[%s304 + $0x1f8] sm:$0xff]
        %v371 = vld [vmem:[%s304 + $0x200] sm:$0xff]
        %v372 = vld [vmem:[%s304 + $0x208] sm:$0xff]
        %v373 = vld [vmem:[%s304 + $0x210] sm:$0xff]
        %v374 = vld [vmem:[%s304 + $0x218] sm:$0xff]
        %v375 = vld [vmem:[%s304 + $0x220] sm:$0xff]
        %v376 = vld [vmem:[%s304 + $0x228] sm:$0xff]
        %v377 = vld [vmem:[%s304 + $0x230] sm:$0xff]
        %v378 = vld [vmem:[%s304 + $0x238] sm:$0xff]
        %v379 = vld [vmem:[%s304 + $0x240] sm:$0xff]
        %v380 = vld [vmem:[%s304 + $0x248] sm:$0xff]
        %v381 = vld [vmem:[%s304 + $0x250] sm:$0xff]
        %v382 = vld [vmem:[%s304 + $0x258] sm:$0xff]
        %v383 = vld [vmem:[%s304 + $0x260] sm:$0xff]
        %v384 = vld [vmem:[%s304 + $0x268] sm:$0xff]
        %v385 = vld [vmem:[%s304 + $0x270] sm:$0xff]
        %v386 = vld [vmem:[%s304 + $0x278] sm:$0xff]
        %v387 = vld [vmem:[%s304 + $0x280] sm:$0xff]
        %v388 = vld [vmem:[%s304 + $0x288] sm:$0xff]
        %v389 = vld [vmem:[%s304 + $0x290] sm:$0xff]
        %v390 = vld [vmem:[%s304 + $0x298] sm:$0xff]
        %v391 = vld [vmem:[%s304 + $0x2a0] sm:$0xff]
        %v392 = vld [vmem:[%s304 + $0x2a8] sm:$0xff]
        %v393 = vld [vmem:[%s304 + $0x2b0] sm:$0xff]
        %v394 = vld [vmem:[%s304 + $0x2b8] sm:$0xff]
        %v395 = vld [vmem:[%s304 + $0x2c0] sm:$0xff]
        %v396 = vld [vmem:[%s304 + $0x2c8] sm:$0xff]
        %v397 = vld [vmem:[%s304 + $0x2d0] sm:$0xff]
        %v398 = vld [vmem:[%s304 + $0x2d8] sm:$0xff]
        %v399 = vld [vmem:[%s304 + $0x2e0] sm:$0xff]
        %v400 = vld [vmem:[%s304 + $0x2e8] sm:$0xff]
        %v401 = vld [vmem:[%s304 + $0x2f0] sm:$0xff]
        %v402 = vld [vmem:[%s304 + $0x2f8] sm:$0xff]
        %v403 = vld [vmem:[%s304 + $0x300] sm:$0xff]
        %v404 = vld [vmem:[%s304 + $0x308] sm:$0xff]
        %v405 = vld [vmem:[%s304 + $0x310] sm:$0xff]
        %v406 = vld [vmem:[%s304 + $0x318] sm:$0xff]
        %v407 = vld [vmem:[%s304 + $0x320] sm:$0xff]
        %v408 = vld [vmem:[%s304 + $0x328] sm:$0xff]
        %v409 = vld [vmem:[%s304 + $0x330] sm:$0xff]
        %v410 = vld [vmem:[%s304 + $0x338] sm:$0xff]
        %v411 = vld [vmem:[%s304 + $0x340] sm:$0xff]
        %v412 = vld [vmem:[%s304 + $0x348] sm:$0xff]
        %v413 = vld [vmem:[%s304 + $0x350] sm:$0xff]
        %v414 = vld [vmem:[%s304 + $0x358] sm:$0xff]
        %v415 = vld [vmem:[%s304 + $0x360] sm:$0xff]
        %v416 = vld [vmem:[%s304 + $0x368] sm:$0xff]
        %v417 = vld [vmem:[%s304 + $0x370] sm:$0xff]
        %v418 = vld [vmem:[%s304 + $0x378] sm:$0xff]
        %v419 = vld [vmem:[%s304 + $0x380] sm:$0xff]
        %v420 = vld [vmem:[%s304 + $0x388] sm:$0xff]
        %v421 = vld [vmem:[%s304 + $0x390] sm:$0xff]
        %v422 = vld [vmem:[%s304 + $0x398] sm:$0xff]
        %v423 = vld [vmem:[%s304 + $0x3a0] sm:$0xff]
        %v424 = vld [vmem:[%s304 + $0x3a8] sm:$0xff]
        %v425 = vld [vmem:[%s304 + $0x3b0] sm:$0xff]
        %v426 = vld [vmem:[%s304 + $0x3b8] sm:$0xff]
        %v427 = vld [vmem:[%s304 + $0x3c0] sm:$0xff]
        %v428 = vld [vmem:[%s304 + $0x3c8] sm:$0xff]
        %v429 = vld [vmem:[%s304 + $0x3d0] sm:$0xff]
        %v430 = vld [vmem:[%s304 + $0x3d8] sm:$0xff]
        %v431 = vld [vmem:[%s304 + $0x3e0] sm:$0xff]
        %v432 = vld [vmem:[%s304 + $0x3e8] sm:$0xff]
        %v433 = vld [vmem:[%s304 + $0x3f0] sm:$0xff]
        %v434 = vld [vmem:[%s304 + $0x3f8] sm:$0xff]
        %v435 = vlaneseq
        %v436 = vand.u32 %v435, 127
        %437 = vset.pattern.permute.xlu0 0
        %438 = vperm.xlu0 %437, %v307
        %v439 = vpop.permute.xlu0 %438
        %440 = vset.pattern.permute.xlu0 0
        %441 = vperm.xlu0 %440, %v308
        %v442 = vpop.permute.xlu0 %441
        %443 = vset.pattern.permute.xlu0 0
        %444 = vperm.xlu0 %443, %v309
        %v445 = vpop.permute.xlu0 %444
        %446 = vset.pattern.permute.xlu0 0
        %447 = vperm.xlu0 %446, %v310
        %v448 = vpop.permute.xlu0 %447
        %449 = vset.pattern.permute.xlu0 0
        %450 = vperm.xlu0 %449, %v311
        %v451 = vpop.permute.xlu0 %450
        %452 = vset.pattern.permute.xlu0 0
        %453 = vperm.xlu0 %452, %v312
        %v454 = vpop.permute.xlu0 %453
        %455 = vset.pattern.permute.xlu0 0
        %456 = vperm.xlu0 %455, %v313
        %v457 = vpop.permute.xlu0 %456
        %458 = vset.pattern.permute.xlu0 0
        %459 = vperm.xlu0 %458, %v314
        %v460 = vpop.permute.xlu0 %459
        %461 = vset.pattern.permute.xlu0 0
        %462 = vperm.xlu0 %461, %v315
        %v463 = vpop.permute.xlu0 %462
        %464 = vset.pattern.permute.xlu0 0
        %465 = vperm.xlu0 %464, %v316
        %v466 = vpop.permute.xlu0 %465
        %467 = vset.pattern.permute.xlu0 0
        %468 = vperm.xlu0 %467, %v317
        %v469 = vpop.permute.xlu0 %468
        %470 = vset.pattern.permute.xlu0 0
        %471 = vperm.xlu0 %470, %v318
        %v472 = vpop.permute.xlu0 %471
        %473 = vset.pattern.permute.xlu0 0
        %474 = vperm.xlu0 %473, %v319
        %v475 = vpop.permute.xlu0 %474
        %476 = vset.pattern.permute.xlu0 0
        %477 = vperm.xlu0 %476, %v320
        %v478 = vpop.permute.xlu0 %477
        %479 = vset.pattern.permute.xlu0 0
        %480 = vperm.xlu0 %479, %v321
        %v481 = vpop.permute.xlu0 %480
        %482 = vset.pattern.permute.xlu0 0
        %483 = vperm.xlu0 %482, %v322
        %v484 = vpop.permute.xlu0 %483
        %485 = vset.pattern.permute.xlu0 0
        %486 = vperm.xlu0 %485, %v323
        %v487 = vpop.permute.xlu0 %486
        %488 = vset.pattern.permute.xlu0 0
        %489 = vperm.xlu0 %488, %v324
        %v490 = vpop.permute.xlu0 %489
        %491 = vset.pattern.permute.xlu0 0
        %492 = vperm.xlu0 %491, %v325
        %v493 = vpop.permute.xlu0 %492
        %494 = vset.pattern.permute.xlu0 0
        %495 = vperm.xlu0 %494, %v326
        %v496 = vpop.permute.xlu0 %495
        %497 = vset.pattern.permute.xlu0 0
        %498 = vperm.xlu0 %497, %v327
        %v499 = vpop.permute.xlu0 %498
        %500 = vset.pattern.permute.xlu0 0
        %501 = vperm.xlu0 %500, %v328
        %v502 = vpop.permute.xlu0 %501
        %503 = vset.pattern.permute.xlu0 0
        %504 = vperm.xlu0 %503, %v329
        %v505 = vpop.permute.xlu0 %504
        %506 = vset.pattern.permute.xlu0 0
        %507 = vperm.xlu0 %506, %v330
        %v508 = vpop.permute.xlu0 %507
        %509 = vset.pattern.permute.xlu0 0
        %510 = vperm.xlu0 %509, %v331
        %v511 = vpop.permute.xlu0 %510
        %512 = vset.pattern.permute.xlu0 0
        %513 = vperm.xlu0 %512, %v332
        %v514 = vpop.permute.xlu0 %513
        %515 = vset.pattern.permute.xlu0 0
        %516 = vperm.xlu0 %515, %v333
        %v517 = vpop.permute.xlu0 %516
        %518 = vset.pattern.permute.xlu0 0
        %519 = vperm.xlu0 %518, %v334
        %v520 = vpop.permute.xlu0 %519
        %521 = vset.pattern.permute.xlu0 0
        %522 = vperm.xlu0 %521, %v335
        %v523 = vpop.permute.xlu0 %522
        %524 = vset.pattern.permute.xlu0 0
        %525 = vperm.xlu0 %524, %v336
        %v526 = vpop.permute.xlu0 %525
        %527 = vset.pattern.permute.xlu0 0
        %528 = vperm.xlu0 %527, %v337
        %v529 = vpop.permute.xlu0 %528
        %530 = vset.pattern.permute.xlu0 0
        %531 = vperm.xlu0 %530, %v338
        %v532 = vpop.permute.xlu0 %531
        %533 = vset.pattern.permute.xlu0 0
        %534 = vperm.xlu0 %533, %v339
        %v535 = vpop.permute.xlu0 %534
        %536 = vset.pattern.permute.xlu0 0
        %537 = vperm.xlu0 %536, %v340
        %v538 = vpop.permute.xlu0 %537
        %539 = vset.pattern.permute.xlu0 0
        %540 = vperm.xlu0 %539, %v341
        %v541 = vpop.permute.xlu0 %540
        %542 = vset.pattern.permute.xlu0 0
        %543 = vperm.xlu0 %542, %v342
        %v544 = vpop.permute.xlu0 %543
        %545 = vset.pattern.permute.xlu0 0
        %546 = vperm.xlu0 %545, %v343
        %v547 = vpop.permute.xlu0 %546
        %548 = vset.pattern.permute.xlu0 0
        %549 = vperm.xlu0 %548, %v344
        %v550 = vpop.permute.xlu0 %549
        %551 = vset.pattern.permute.xlu0 0
        %552 = vperm.xlu0 %551, %v345
        %v553 = vpop.permute.xlu0 %552
        %554 = vset.pattern.permute.xlu0 0
        %555 = vperm.xlu0 %554, %v346
        %v556 = vpop.permute.xlu0 %555
        %557 = vset.pattern.permute.xlu0 0
        %558 = vperm.xlu0 %557, %v347
        %v559 = vpop.permute.xlu0 %558
        %560 = vset.pattern.permute.xlu0 0
        %561 = vperm.xlu0 %560, %v348
        %v562 = vpop.permute.xlu0 %561
        %563 = vset.pattern.permute.xlu0 0
        %564 = vperm.xlu0 %563, %v349
        %v565 = vpop.permute.xlu0 %564
        %566 = vset.pattern.permute.xlu0 0
        %567 = vperm.xlu0 %566, %v350
        %v568 = vpop.permute.xlu0 %567
        %569 = vset.pattern.permute.xlu0 0
        %570 = vperm.xlu0 %569, %v351
        %v571 = vpop.permute.xlu0 %570
        %572 = vset.pattern.permute.xlu0 0
        %573 = vperm.xlu0 %572, %v352
        %v574 = vpop.permute.xlu0 %573
        %575 = vset.pattern.permute.xlu0 0
        %576 = vperm.xlu0 %575, %v353
        %v577 = vpop.permute.xlu0 %576
        %578 = vset.pattern.permute.xlu0 0
        %579 = vperm.xlu0 %578, %v354
        %v580 = vpop.permute.xlu0 %579
        %581 = vset.pattern.permute.xlu0 0
        %582 = vperm.xlu0 %581, %v355
        %v583 = vpop.permute.xlu0 %582
        %584 = vset.pattern.permute.xlu0 0
        %585 = vperm.xlu0 %584, %v356
        %v586 = vpop.permute.xlu0 %585
        %587 = vset.pattern.permute.xlu0 0
        %588 = vperm.xlu0 %587, %v357
        %v589 = vpop.permute.xlu0 %588
        %590 = vset.pattern.permute.xlu0 0
        %591 = vperm.xlu0 %590, %v358
        %v592 = vpop.permute.xlu0 %591
        %593 = vset.pattern.permute.xlu0 0
        %594 = vperm.xlu0 %593, %v359
        %v595 = vpop.permute.xlu0 %594
        %596 = vset.pattern.permute.xlu0 0
        %597 = vperm.xlu0 %596, %v360
        %v598 = vpop.permute.xlu0 %597
        %599 = vset.pattern.permute.xlu0 0
        %600 = vperm.xlu0 %599, %v361
        %v601 = vpop.permute.xlu0 %600
        %602 = vset.pattern.permute.xlu0 0
        %603 = vperm.xlu0 %602, %v362
        %v604 = vpop.permute.xlu0 %603
        %605 = vset.pattern.permute.xlu0 0
        %606 = vperm.xlu0 %605, %v363
        %v607 = vpop.permute.xlu0 %606
        %608 = vset.pattern.permute.xlu0 0
        %609 = vperm.xlu0 %608, %v364
        %v610 = vpop.permute.xlu0 %609
        %611 = vset.pattern.permute.xlu0 0
        %612 = vperm.xlu0 %611, %v365
        %v613 = vpop.permute.xlu0 %612
        %614 = vset.pattern.permute.xlu0 0
        %615 = vperm.xlu0 %614, %v366
        %v616 = vpop.permute.xlu0 %615
        %617 = vset.pattern.permute.xlu0 0
        %618 = vperm.xlu0 %617, %v367
        %v619 = vpop.permute.xlu0 %618
        %620 = vset.pattern.permute.xlu0 0
        %621 = vperm.xlu0 %620, %v368
        %v622 = vpop.permute.xlu0 %621
        %623 = vset.pattern.permute.xlu0 0
        %624 = vperm.xlu0 %623, %v369
        %v625 = vpop.permute.xlu0 %624
        %626 = vset.pattern.permute.xlu0 0
        %627 = vperm.xlu0 %626, %v370
        %v628 = vpop.permute.xlu0 %627
        %629 = vset.pattern.permute.xlu0 0
        %630 = vperm.xlu0 %629, %v371
        %v631 = vpop.permute.xlu0 %630
        %632 = vset.pattern.permute.xlu0 0
        %633 = vperm.xlu0 %632, %v372
        %v634 = vpop.permute.xlu0 %633
        %635 = vset.pattern.permute.xlu0 0
        %636 = vperm.xlu0 %635, %v373
        %v637 = vpop.permute.xlu0 %636
        %638 = vset.pattern.permute.xlu0 0
        %639 = vperm.xlu0 %638, %v374
        %v640 = vpop.permute.xlu0 %639
        %641 = vset.pattern.permute.xlu0 0
        %642 = vperm.xlu0 %641, %v375
        %v643 = vpop.permute.xlu0 %642
        %644 = vset.pattern.permute.xlu0 0
        %645 = vperm.xlu0 %644, %v376
        %v646 = vpop.permute.xlu0 %645
        %647 = vset.pattern.permute.xlu0 0
        %648 = vperm.xlu0 %647, %v377
        %v649 = vpop.permute.xlu0 %648
        %650 = vset.pattern.permute.xlu0 0
        %651 = vperm.xlu0 %650, %v378
        %v652 = vpop.permute.xlu0 %651
        %653 = vset.pattern.permute.xlu0 0
        %654 = vperm.xlu0 %653, %v379
        %v655 = vpop.permute.xlu0 %654
        %656 = vset.pattern.permute.xlu0 0
        %657 = vperm.xlu0 %656, %v380
        %v658 = vpop.permute.xlu0 %657
        %659 = vset.pattern.permute.xlu0 0
        %660 = vperm.xlu0 %659, %v381
        %v661 = vpop.permute.xlu0 %660
        %662 = vset.pattern.permute.xlu0 0
        %663 = vperm.xlu0 %662, %v382
        %v664 = vpop.permute.xlu0 %663
        %665 = vset.pattern.permute.xlu0 0
        %666 = vperm.xlu0 %665, %v383
        %v667 = vpop.permute.xlu0 %666
        %668 = vset.pattern.permute.xlu0 0
        %669 = vperm.xlu0 %668, %v384
        %v670 = vpop.permute.xlu0 %669
        %671 = vset.pattern.permute.xlu0 0
        %672 = vperm.xlu0 %671, %v385
        %v673 = vpop.permute.xlu0 %672
        %674 = vset.pattern.permute.xlu0 0
        %675 = vperm.xlu0 %674, %v386
        %v676 = vpop.permute.xlu0 %675
        %677 = vset.pattern.permute.xlu0 0
        %678 = vperm.xlu0 %677, %v387
        %v679 = vpop.permute.xlu0 %678
        %680 = vset.pattern.permute.xlu0 0
        %681 = vperm.xlu0 %680, %v388
        %v682 = vpop.permute.xlu0 %681
        %683 = vset.pattern.permute.xlu0 0
        %684 = vperm.xlu0 %683, %v389
        %v685 = vpop.permute.xlu0 %684
        %686 = vset.pattern.permute.xlu0 0
        %687 = vperm.xlu0 %686, %v390
        %v688 = vpop.permute.xlu0 %687
        %689 = vset.pattern.permute.xlu0 0
        %690 = vperm.xlu0 %689, %v391
        %v691 = vpop.permute.xlu0 %690
        %692 = vset.pattern.permute.xlu0 0
        %693 = vperm.xlu0 %692, %v392
        %v694 = vpop.permute.xlu0 %693
        %695 = vset.pattern.permute.xlu0 0
        %696 = vperm.xlu0 %695, %v393
        %v697 = vpop.permute.xlu0 %696
        %698 = vset.pattern.permute.xlu0 0
        %699 = vperm.xlu0 %698, %v394
        %v700 = vpop.permute.xlu0 %699
        %701 = vset.pattern.permute.xlu0 0
        %702 = vperm.xlu0 %701, %v395
        %v703 = vpop.permute.xlu0 %702
        %704 = vset.pattern.permute.xlu0 0
        %705 = vperm.xlu0 %704, %v396
        %v706 = vpop.permute.xlu0 %705
        %707 = vset.pattern.permute.xlu0 0
        %708 = vperm.xlu0 %707, %v397
        %v709 = vpop.permute.xlu0 %708
        %710 = vset.pattern.permute.xlu0 0
        %711 = vperm.xlu0 %710, %v398
        %v712 = vpop.permute.xlu0 %711
        %713 = vset.pattern.permute.xlu0 0
        %714 = vperm.xlu0 %713, %v399
        %v715 = vpop.permute.xlu0 %714
        %716 = vset.pattern.permute.xlu0 0
        %717 = vperm.xlu0 %716, %v400
        %v718 = vpop.permute.xlu0 %717
        %719 = vset.pattern.permute.xlu0 0
        %720 = vperm.xlu0 %719, %v401
        %v721 = vpop.permute.xlu0 %720
        %722 = vset.pattern.permute.xlu0 0
        %723 = vperm.xlu0 %722, %v402
        %v724 = vpop.permute.xlu0 %723
        %725 = vset.pattern.permute.xlu0 0
        %726 = vperm.xlu0 %725, %v403
        %v727 = vpop.permute.xlu0 %726
        %728 = vset.pattern.permute.xlu0 0
        %729 = vperm.xlu0 %728, %v404
        %v730 = vpop.permute.xlu0 %729
        %731 = vset.pattern.permute.xlu0 0
        %732 = vperm.xlu0 %731, %v405
        %v733 = vpop.permute.xlu0 %732
        %734 = vset.pattern.permute.xlu0 0
        %735 = vperm.xlu0 %734, %v406
        %v736 = vpop.permute.xlu0 %735
        %737 = vset.pattern.permute.xlu0 0
        %738 = vperm.xlu0 %737, %v407
        %v739 = vpop.permute.xlu0 %738
        %740 = vset.pattern.permute.xlu0 0
        %741 = vperm.xlu0 %740, %v408
        %v742 = vpop.permute.xlu0 %741
        %743 = vset.pattern.permute.xlu0 0
        %744 = vperm.xlu0 %743, %v409
        %v745 = vpop.permute.xlu0 %744
        %746 = vset.pattern.permute.xlu0 0
        %747 = vperm.xlu0 %746, %v410
        %v748 = vpop.permute.xlu0 %747
        %749 = vset.pattern.permute.xlu0 0
        %750 = vperm.xlu0 %749, %v411
        %v751 = vpop.permute.xlu0 %750
        %752 = vset.pattern.permute.xlu0 0
        %753 = vperm.xlu0 %752, %v412
        %v754 = vpop.permute.xlu0 %753
        %755 = vset.pattern.permute.xlu0 0
        %756 = vperm.xlu0 %755, %v413
        %v757 = vpop.permute.xlu0 %756
        %758 = vset.pattern.permute.xlu0 0
        %759 = vperm.xlu0 %758, %v414
        %v760 = vpop.permute.xlu0 %759
        %761 = vset.pattern.permute.xlu0 0
        %762 = vperm.xlu0 %761, %v415
        %v763 = vpop.permute.xlu0 %762
        %764 = vset.pattern.permute.xlu0 0
        %765 = vperm.xlu0 %764, %v416
        %v766 = vpop.permute.xlu0 %765
        %767 = vset.pattern.permute.xlu0 0
        %768 = vperm.xlu0 %767, %v417
        %v769 = vpop.permute.xlu0 %768
        %770 = vset.pattern.permute.xlu0 0
        %771 = vperm.xlu0 %770, %v418
        %v772 = vpop.permute.xlu0 %771
        %773 = vset.pattern.permute.xlu0 0
        %774 = vperm.xlu0 %773, %v419
        %v775 = vpop.permute.xlu0 %774
        %776 = vset.pattern.permute.xlu0 0
        %777 = vperm.xlu0 %776, %v420
        %v778 = vpop.permute.xlu0 %777
        %779 = vset.pattern.permute.xlu0 0
        %780 = vperm.xlu0 %779, %v421
        %v781 = vpop.permute.xlu0 %780
        %782 = vset.pattern.permute.xlu0 0
        %783 = vperm.xlu0 %782, %v422
        %v784 = vpop.permute.xlu0 %783
        %785 = vset.pattern.permute.xlu0 0
        %786 = vperm.xlu0 %785, %v423
        %v787 = vpop.permute.xlu0 %786
        %788 = vset.pattern.permute.xlu0 0
        %789 = vperm.xlu0 %788, %v424
        %v790 = vpop.permute.xlu0 %789
        %791 = vset.pattern.permute.xlu0 0
        %792 = vperm.xlu0 %791, %v425
        %v793 = vpop.permute.xlu0 %792
        %794 = vset.pattern.permute.xlu0 0
        %795 = vperm.xlu0 %794, %v426
        %v796 = vpop.permute.xlu0 %795
        %797 = vset.pattern.permute.xlu0 0
        %798 = vperm.xlu0 %797, %v427
        %v799 = vpop.permute.xlu0 %798
        %800 = vset.pattern.permute.xlu0 0
        %801 = vperm.xlu0 %800, %v428
        %v802 = vpop.permute.xlu0 %801
        %803 = vset.pattern.permute.xlu0 0
        %804 = vperm.xlu0 %803, %v429
        %v805 = vpop.permute.xlu0 %804
        %806 = vset.pattern.permute.xlu0 0
        %807 = vperm.xlu0 %806, %v430
        %v808 = vpop.permute.xlu0 %807
        %809 = vset.pattern.permute.xlu0 0
        %810 = vperm.xlu0 %809, %v431
        %v811 = vpop.permute.xlu0 %810
        %812 = vset.pattern.permute.xlu0 0
        %813 = vperm.xlu0 %812, %v432
        %v814 = vpop.permute.xlu0 %813
        %815 = vset.pattern.permute.xlu0 0
        %816 = vperm.xlu0 %815, %v433
        %v817 = vpop.permute.xlu0 %816
        %818 = vset.pattern.permute.xlu0 0
        %819 = vperm.xlu0 %818, %v434
        %v820 = vpop.permute.xlu0 %819
        %vm821 = vcmp.eq.s32.totalorder %v439, %v436
        %vm822 = vcmp.eq.s32.totalorder %v442, %v436
        %vm823 = vcmp.eq.s32.totalorder %v445, %v436
        %vm824 = vcmp.eq.s32.totalorder %v448, %v436
        %vm825 = vcmp.eq.s32.totalorder %v451, %v436
        %vm826 = vcmp.eq.s32.totalorder %v454, %v436
        %vm827 = vcmp.eq.s32.totalorder %v457, %v436
        %vm828 = vcmp.eq.s32.totalorder %v460, %v436
        %vm829 = vcmp.eq.s32.totalorder %v463, %v436
        %vm830 = vcmp.eq.s32.totalorder %v466, %v436
        %vm831 = vcmp.eq.s32.totalorder %v469, %v436
        %vm832 = vcmp.eq.s32.totalorder %v472, %v436
        %vm833 = vcmp.eq.s32.totalorder %v475, %v436
        %vm834 = vcmp.eq.s32.totalorder %v478, %v436
        %vm835 = vcmp.eq.s32.totalorder %v481, %v436
        %vm836 = vcmp.eq.s32.totalorder %v484, %v436
        %vm837 = vcmp.eq.s32.totalorder %v487, %v436
        %vm838 = vcmp.eq.s32.totalorder %v490, %v436
        %vm839 = vcmp.eq.s32.totalorder %v493, %v436
        %vm840 = vcmp.eq.s32.totalorder %v496, %v436
        %vm841 = vcmp.eq.s32.totalorder %v499, %v436
        %vm842 = vcmp.eq.s32.totalorder %v502, %v436
        %vm843 = vcmp.eq.s32.totalorder %v505, %v436
        %vm844 = vcmp.eq.s32.totalorder %v508, %v436
        %vm845 = vcmp.eq.s32.totalorder %v511, %v436
        %vm846 = vcmp.eq.s32.totalorder %v514, %v436
        %vm847 = vcmp.eq.s32.totalorder %v517, %v436
        %vm848 = vcmp.eq.s32.totalorder %v520, %v436
        %vm849 = vcmp.eq.s32.totalorder %v523, %v436
        %vm850 = vcmp.eq.s32.totalorder %v526, %v436
        %vm851 = vcmp.eq.s32.totalorder %v529, %v436
        %vm852 = vcmp.eq.s32.totalorder %v532, %v436
        %vm853 = vcmp.eq.s32.totalorder %v535, %v436
        %vm854 = vcmp.eq.s32.totalorder %v538, %v436
        %vm855 = vcmp.eq.s32.totalorder %v541, %v436
        %vm856 = vcmp.eq.s32.totalorder %v544, %v436
        %vm857 = vcmp.eq.s32.totalorder %v547, %v436
        %vm858 = vcmp.eq.s32.totalorder %v550, %v436
        %vm859 = vcmp.eq.s32.totalorder %v553, %v436
        %vm860 = vcmp.eq.s32.totalorder %v556, %v436
        %vm861 = vcmp.eq.s32.totalorder %v559, %v436
        %vm862 = vcmp.eq.s32.totalorder %v562, %v436
        %vm863 = vcmp.eq.s32.totalorder %v565, %v436
        %vm864 = vcmp.eq.s32.totalorder %v568, %v436
        %vm865 = vcmp.eq.s32.totalorder %v571, %v436
        %vm866 = vcmp.eq.s32.totalorder %v574, %v436
        %vm867 = vcmp.eq.s32.totalorder %v577, %v436
        %vm868 = vcmp.eq.s32.totalorder %v580, %v436
        %vm869 = vcmp.eq.s32.totalorder %v583, %v436
        %vm870 = vcmp.eq.s32.totalorder %v586, %v436
        %vm871 = vcmp.eq.s32.totalorder %v589, %v436
        %vm872 = vcmp.eq.s32.totalorder %v592, %v436
        %vm873 = vcmp.eq.s32.totalorder %v595, %v436
        %vm874 = vcmp.eq.s32.totalorder %v598, %v436
        %vm875 = vcmp.eq.s32.totalorder %v601, %v436
        %vm876 = vcmp.eq.s32.totalorder %v604, %v436
        %vm877 = vcmp.eq.s32.totalorder %v607, %v436
        %vm878 = vcmp.eq.s32.totalorder %v610, %v436
        %vm879 = vcmp.eq.s32.totalorder %v613, %v436
        %vm880 = vcmp.eq.s32.totalorder %v616, %v436
        %vm881 = vcmp.eq.s32.totalorder %v619, %v436
        %vm882 = vcmp.eq.s32.totalorder %v622, %v436
        %vm883 = vcmp.eq.s32.totalorder %v625, %v436
        %vm884 = vcmp.eq.s32.totalorder %v628, %v436
        %vm885 = vcmp.eq.s32.totalorder %v631, %v436
        %vm886 = vcmp.eq.s32.totalorder %v634, %v436
        %vm887 = vcmp.eq.s32.totalorder %v637, %v436
        %vm888 = vcmp.eq.s32.totalorder %v640, %v436
        %vm889 = vcmp.eq.s32.totalorder %v643, %v436
        %vm890 = vcmp.eq.s32.totalorder %v646, %v436
        %vm891 = vcmp.eq.s32.totalorder %v649, %v436
        %vm892 = vcmp.eq.s32.totalorder %v652, %v436
        %vm893 = vcmp.eq.s32.totalorder %v655, %v436
        %vm894 = vcmp.eq.s32.totalorder %v658, %v436
        %vm895 = vcmp.eq.s32.totalorder %v661, %v436
        %vm896 = vcmp.eq.s32.totalorder %v664, %v436
        %vm897 = vcmp.eq.s32.totalorder %v667, %v436
        %vm898 = vcmp.eq.s32.totalorder %v670, %v436
        %vm899 = vcmp.eq.s32.totalorder %v673, %v436
        %vm900 = vcmp.eq.s32.totalorder %v676, %v436
        %vm901 = vcmp.eq.s32.totalorder %v679, %v436
        %vm902 = vcmp.eq.s32.totalorder %v682, %v436
        %vm903 = vcmp.eq.s32.totalorder %v685, %v436
        %vm904 = vcmp.eq.s32.totalorder %v688, %v436
        %vm905 = vcmp.eq.s32.totalorder %v691, %v436
        %vm906 = vcmp.eq.s32.totalorder %v694, %v436
        %vm907 = vcmp.eq.s32.totalorder %v697, %v436
        %vm908 = vcmp.eq.s32.totalorder %v700, %v436
        %vm909 = vcmp.eq.s32.totalorder %v703, %v436
        %vm910 = vcmp.eq.s32.totalorder %v706, %v436
        %vm911 = vcmp.eq.s32.totalorder %v709, %v436
        %vm912 = vcmp.eq.s32.totalorder %v712, %v436
        %vm913 = vcmp.eq.s32.totalorder %v715, %v436
        %vm914 = vcmp.eq.s32.totalorder %v718, %v436
        %vm915 = vcmp.eq.s32.totalorder %v721, %v436
        %vm916 = vcmp.eq.s32.totalorder %v724, %v436
        %vm917 = vcmp.eq.s32.totalorder %v727, %v436
        %vm918 = vcmp.eq.s32.totalorder %v730, %v436
        %vm919 = vcmp.eq.s32.totalorder %v733, %v436
        %vm920 = vcmp.eq.s32.totalorder %v736, %v436
        %vm921 = vcmp.eq.s32.totalorder %v739, %v436
        %vm922 = vcmp.eq.s32.totalorder %v742, %v436
        %vm923 = vcmp.eq.s32.totalorder %v745, %v436
        %vm924 = vcmp.eq.s32.totalorder %v748, %v436
        %vm925 = vcmp.eq.s32.totalorder %v751, %v436
        %vm926 = vcmp.eq.s32.totalorder %v754, %v436
        %vm927 = vcmp.eq.s32.totalorder %v757, %v436
        %vm928 = vcmp.eq.s32.totalorder %v760, %v436
        %vm929 = vcmp.eq.s32.totalorder %v763, %v436
        %vm930 = vcmp.eq.s32.totalorder %v766, %v436
        %vm931 = vcmp.eq.s32.totalorder %v769, %v436
        %vm932 = vcmp.eq.s32.totalorder %v772, %v436
        %vm933 = vcmp.eq.s32.totalorder %v775, %v436
        %vm934 = vcmp.eq.s32.totalorder %v778, %v436
        %vm935 = vcmp.eq.s32.totalorder %v781, %v436
        %vm936 = vcmp.eq.s32.totalorder %v784, %v436
        %vm937 = vcmp.eq.s32.totalorder %v787, %v436
        %vm938 = vcmp.eq.s32.totalorder %v790, %v436
        %vm939 = vcmp.eq.s32.totalorder %v793, %v436
        %vm940 = vcmp.eq.s32.totalorder %v796, %v436
        %vm941 = vcmp.eq.s32.totalorder %v799, %v436
        %vm942 = vcmp.eq.s32.totalorder %v802, %v436
        %vm943 = vcmp.eq.s32.totalorder %v805, %v436
        %vm944 = vcmp.eq.s32.totalorder %v808, %v436
        %vm945 = vcmp.eq.s32.totalorder %v811, %v436
        %vm946 = vcmp.eq.s32.totalorder %v814, %v436
        %vm947 = vcmp.eq.s32.totalorder %v817, %v436
        %vm948 = vcmp.eq.s32.totalorder %v820, %v436
        %v949 = vsel %vm821, 1, 0
        %v950 = vsel %vm822, 1, 0
        %v951 = vsel %vm823, 1, 0
        %v952 = vsel %vm824, 1, 0
        %v953 = vsel %vm825, 1, 0
        %v954 = vsel %vm826, 1, 0
        %v955 = vsel %vm827, 1, 0
        %v956 = vsel %vm828, 1, 0
        %v957 = vsel %vm829, 1, 0
        %v958 = vsel %vm830, 1, 0
        %v959 = vsel %vm831, 1, 0
        %v960 = vsel %vm832, 1, 0
        %v961 = vsel %vm833, 1, 0
        %v962 = vsel %vm834, 1, 0
        %v963 = vsel %vm835, 1, 0
        %v964 = vsel %vm836, 1, 0
        %v965 = vsel %vm837, 1, 0
        %v966 = vsel %vm838, 1, 0
        %v967 = vsel %vm839, 1, 0
        %v968 = vsel %vm840, 1, 0
        %v969 = vsel %vm841, 1, 0
        %v970 = vsel %vm842, 1, 0
        %v971 = vsel %vm843, 1, 0
        %v972 = vsel %vm844, 1, 0
        %v973 = vsel %vm845, 1, 0
        %v974 = vsel %vm846, 1, 0
        %v975 = vsel %vm847, 1, 0
        %v976 = vsel %vm848, 1, 0
        %v977 = vsel %vm849, 1, 0
        %v978 = vsel %vm850, 1, 0
        %v979 = vsel %vm851, 1, 0
        %v980 = vsel %vm852, 1, 0
        %v981 = vsel %vm853, 1, 0
        %v982 = vsel %vm854, 1, 0
        %v983 = vsel %vm855, 1, 0
        %v984 = vsel %vm856, 1, 0
        %v985 = vsel %vm857, 1, 0
        %v986 = vsel %vm858, 1, 0
        %v987 = vsel %vm859, 1, 0
        %v988 = vsel %vm860, 1, 0
        %v989 = vsel %vm861, 1, 0
        %v990 = vsel %vm862, 1, 0
        %v991 = vsel %vm863, 1, 0
        %v992 = vsel %vm864, 1, 0
        %v993 = vsel %vm865, 1, 0
        %v994 = vsel %vm866, 1, 0
        %v995 = vsel %vm867, 1, 0
        %v996 = vsel %vm868, 1, 0
        %v997 = vsel %vm869, 1, 0
        %v998 = vsel %vm870, 1, 0
        %v999 = vsel %vm871, 1, 0
        %v1000 = vsel %vm872, 1, 0
        %v1001 = vsel %vm873, 1, 0
        %v1002 = vsel %vm874, 1, 0
        %v1003 = vsel %vm875, 1, 0
        %v1004 = vsel %vm876, 1, 0
        %v1005 = vsel %vm877, 1, 0
        %v1006 = vsel %vm878, 1, 0
        %v1007 = vsel %vm879, 1, 0
        %v1008 = vsel %vm880, 1, 0
        %v1009 = vsel %vm881, 1, 0
        %v1010 = vsel %vm882, 1, 0
        %v1011 = vsel %vm883, 1, 0
        %v1012 = vsel %vm884, 1, 0
        %v1013 = vsel %vm885, 1, 0
        %v1014 = vsel %vm886, 1, 0
        %v1015 = vsel %vm887, 1, 0
        %v1016 = vsel %vm888, 1, 0
        %v1017 = vsel %vm889, 1, 0
        %v1018 = vsel %vm890, 1, 0
        %v1019 = vsel %vm891, 1, 0
        %v1020 = vsel %vm892, 1, 0
        %v1021 = vsel %vm893, 1, 0
        %v1022 = vsel %vm894, 1, 0
        %v1023 = vsel %vm895, 1, 0
        %v1024 = vsel %vm896, 1, 0
        %v1025 = vsel %vm897, 1, 0
        %v1026 = vsel %vm898, 1, 0
        %v1027 = vsel %vm899, 1, 0
        %v1028 = vsel %vm900, 1, 0
        %v1029 = vsel %vm901, 1, 0
        %v1030 = vsel %vm902, 1, 0
        %v1031 = vsel %vm903, 1, 0
        %v1032 = vsel %vm904, 1, 0
        %v1033 = vsel %vm905, 1, 0
        %v1034 = vsel %vm906, 1, 0
        %v1035 = vsel %vm907, 1, 0
        %v1036 = vsel %vm908, 1, 0
        %v1037 = vsel %vm909, 1, 0
        %v1038 = vsel %vm910, 1, 0
        %v1039 = vsel %vm911, 1, 0
        %v1040 = vsel %vm912, 1, 0
        %v1041 = vsel %vm913, 1, 0
        %v1042 = vsel %vm914, 1, 0
        %v1043 = vsel %vm915, 1, 0
        %v1044 = vsel %vm916, 1, 0
        %v1045 = vsel %vm917, 1, 0
        %v1046 = vsel %vm918, 1, 0
        %v1047 = vsel %vm919, 1, 0
        %v1048 = vsel %vm920, 1, 0
        %v1049 = vsel %vm921, 1, 0
        %v1050 = vsel %vm922, 1, 0
        %v1051 = vsel %vm923, 1, 0
        %v1052 = vsel %vm924, 1, 0
        %v1053 = vsel %vm925, 1, 0
        %v1054 = vsel %vm926, 1, 0
        %v1055 = vsel %vm927, 1, 0
        %v1056 = vsel %vm928, 1, 0
        %v1057 = vsel %vm929, 1, 0
        %v1058 = vsel %vm930, 1, 0
        %v1059 = vsel %vm931, 1, 0
        %v1060 = vsel %vm932, 1, 0
        %v1061 = vsel %vm933, 1, 0
        %v1062 = vsel %vm934, 1, 0
        %v1063 = vsel %vm935, 1, 0
        %v1064 = vsel %vm936, 1, 0
        %v1065 = vsel %vm937, 1, 0
        %v1066 = vsel %vm938, 1, 0
        %v1067 = vsel %vm939, 1, 0
        %v1068 = vsel %vm940, 1, 0
        %v1069 = vsel %vm941, 1, 0
        %v1070 = vsel %vm942, 1, 0
        %v1071 = vsel %vm943, 1, 0
        %v1072 = vsel %vm944, 1, 0
        %v1073 = vsel %vm945, 1, 0
        %v1074 = vsel %vm946, 1, 0
        %v1075 = vsel %vm947, 1, 0
        %v1076 = vsel %vm948, 1, 0
        %v1077 = vcvt.s32.f32 %v949
        %v1078 = vcvt.s32.f32 %v950
        %v1079 = vcvt.s32.f32 %v951
        %v1080 = vcvt.s32.f32 %v952
        %v1081 = vcvt.s32.f32 %v953
        %v1082 = vcvt.s32.f32 %v954
        %v1083 = vcvt.s32.f32 %v955
        %v1084 = vcvt.s32.f32 %v956
        %v1085 = vcvt.s32.f32 %v957
        %v1086 = vcvt.s32.f32 %v958
        %v1087 = vcvt.s32.f32 %v959
        %v1088 = vcvt.s32.f32 %v960
        %v1089 = vcvt.s32.f32 %v961
        %v1090 = vcvt.s32.f32 %v962
        %v1091 = vcvt.s32.f32 %v963
        %v1092 = vcvt.s32.f32 %v964
        %v1093 = vcvt.s32.f32 %v965
        %v1094 = vcvt.s32.f32 %v966
        %v1095 = vcvt.s32.f32 %v967
        %v1096 = vcvt.s32.f32 %v968
        %v1097 = vcvt.s32.f32 %v969
        %v1098 = vcvt.s32.f32 %v970
        %v1099 = vcvt.s32.f32 %v971
        %v1100 = vcvt.s32.f32 %v972
        %v1101 = vcvt.s32.f32 %v973
        %v1102 = vcvt.s32.f32 %v974
        %v1103 = vcvt.s32.f32 %v975
        %v1104 = vcvt.s32.f32 %v976
        %v1105 = vcvt.s32.f32 %v977
        %v1106 = vcvt.s32.f32 %v978
        %v1107 = vcvt.s32.f32 %v979
        %v1108 = vcvt.s32.f32 %v980
        %v1109 = vcvt.s32.f32 %v981
        %v1110 = vcvt.s32.f32 %v982
        %v1111 = vcvt.s32.f32 %v983
        %v1112 = vcvt.s32.f32 %v984
        %v1113 = vcvt.s32.f32 %v985
        %v1114 = vcvt.s32.f32 %v986
        %v1115 = vcvt.s32.f32 %v987
        %v1116 = vcvt.s32.f32 %v988
        %v1117 = vcvt.s32.f32 %v989
        %v1118 = vcvt.s32.f32 %v990
        %v1119 = vcvt.s32.f32 %v991
        %v1120 = vcvt.s32.f32 %v992
        %v1121 = vcvt.s32.f32 %v993
        %v1122 = vcvt.s32.f32 %v994
        %v1123 = vcvt.s32.f32 %v995
        %v1124 = vcvt.s32.f32 %v996
        %v1125 = vcvt.s32.f32 %v997
        %v1126 = vcvt.s32.f32 %v998
        %v1127 = vcvt.s32.f32 %v999
        %v1128 = vcvt.s32.f32 %v1000
        %v1129 = vcvt.s32.f32 %v1001
        %v1130 = vcvt.s32.f32 %v1002
        %v1131 = vcvt.s32.f32 %v1003
        %v1132 = vcvt.s32.f32 %v1004
        %v1133 = vcvt.s32.f32 %v1005
        %v1134 = vcvt.s32.f32 %v1006
        %v1135 = vcvt.s32.f32 %v1007
        %v1136 = vcvt.s32.f32 %v1008
        %v1137 = vcvt.s32.f32 %v1009
        %v1138 = vcvt.s32.f32 %v1010
        %v1139 = vcvt.s32.f32 %v1011
        %v1140 = vcvt.s32.f32 %v1012
        %v1141 = vcvt.s32.f32 %v1013
        %v1142 = vcvt.s32.f32 %v1014
        %v1143 = vcvt.s32.f32 %v1015
        %v1144 = vcvt.s32.f32 %v1016
        %v1145 = vcvt.s32.f32 %v1017
        %v1146 = vcvt.s32.f32 %v1018
        %v1147 = vcvt.s32.f32 %v1019
        %v1148 = vcvt.s32.f32 %v1020
        %v1149 = vcvt.s32.f32 %v1021
        %v1150 = vcvt.s32.f32 %v1022
        %v1151 = vcvt.s32.f32 %v1023
        %v1152 = vcvt.s32.f32 %v1024
        %v1153 = vcvt.s32.f32 %v1025
        %v1154 = vcvt.s32.f32 %v1026
        %v1155 = vcvt.s32.f32 %v1027
        %v1156 = vcvt.s32.f32 %v1028
        %v1157 = vcvt.s32.f32 %v1029
        %v1158 = vcvt.s32.f32 %v1030
        %v1159 = vcvt.s32.f32 %v1031
        %v1160 = vcvt.s32.f32 %v1032
        %v1161 = vcvt.s32.f32 %v1033
        %v1162 = vcvt.s32.f32 %v1034
        %v1163 = vcvt.s32.f32 %v1035
        %v1164 = vcvt.s32.f32 %v1036
        %v1165 = vcvt.s32.f32 %v1037
        %v1166 = vcvt.s32.f32 %v1038
        %v1167 = vcvt.s32.f32 %v1039
        %v1168 = vcvt.s32.f32 %v1040
        %v1169 = vcvt.s32.f32 %v1041
        %v1170 = vcvt.s32.f32 %v1042
        %v1171 = vcvt.s32.f32 %v1043
        %v1172 = vcvt.s32.f32 %v1044
        %v1173 = vcvt.s32.f32 %v1045
        %v1174 = vcvt.s32.f32 %v1046
        %v1175 = vcvt.s32.f32 %v1047
        %v1176 = vcvt.s32.f32 %v1048
        %v1177 = vcvt.s32.f32 %v1049
        %v1178 = vcvt.s32.f32 %v1050
        %v1179 = vcvt.s32.f32 %v1051
        %v1180 = vcvt.s32.f32 %v1052
        %v1181 = vcvt.s32.f32 %v1053
        %v1182 = vcvt.s32.f32 %v1054
        %v1183 = vcvt.s32.f32 %v1055
        %v1184 = vcvt.s32.f32 %v1056
        %v1185 = vcvt.s32.f32 %v1057
        %v1186 = vcvt.s32.f32 %v1058
        %v1187 = vcvt.s32.f32 %v1059
        %v1188 = vcvt.s32.f32 %v1060
        %v1189 = vcvt.s32.f32 %v1061
        %v1190 = vcvt.s32.f32 %v1062
        %v1191 = vcvt.s32.f32 %v1063
        %v1192 = vcvt.s32.f32 %v1064
        %v1193 = vcvt.s32.f32 %v1065
        %v1194 = vcvt.s32.f32 %v1066
        %v1195 = vcvt.s32.f32 %v1067
        %v1196 = vcvt.s32.f32 %v1068
        %v1197 = vcvt.s32.f32 %v1069
        %v1198 = vcvt.s32.f32 %v1070
        %v1199 = vcvt.s32.f32 %v1071
        %v1200 = vcvt.s32.f32 %v1072
        %v1201 = vcvt.s32.f32 %v1073
        %v1202 = vcvt.s32.f32 %v1074
        %v1203 = vcvt.s32.f32 %v1075
        %v1204 = vcvt.s32.f32 %v1076
        %v1205 = vpack.c.bf16 %v1078, %v1077
        %v1206 = vpack.c.bf16 %v1080, %v1079
        %v1207 = vpack.c.bf16 %v1082, %v1081
        %v1208 = vpack.c.bf16 %v1084, %v1083
        %v1209 = vpack.c.bf16 %v1086, %v1085
        %v1210 = vpack.c.bf16 %v1088, %v1087
        %v1211 = vpack.c.bf16 %v1090, %v1089
        %v1212 = vpack.c.bf16 %v1092, %v1091
        %v1213 = vpack.c.bf16 %v1094, %v1093
        %v1214 = vpack.c.bf16 %v1096, %v1095
        %v1215 = vpack.c.bf16 %v1098, %v1097
        %v1216 = vpack.c.bf16 %v1100, %v1099
        %v1217 = vpack.c.bf16 %v1102, %v1101
        %v1218 = vpack.c.bf16 %v1104, %v1103
        %v1219 = vpack.c.bf16 %v1106, %v1105
        %v1220 = vpack.c.bf16 %v1108, %v1107
        %v1221 = vpack.c.bf16 %v1110, %v1109
        %v1222 = vpack.c.bf16 %v1112, %v1111
        %v1223 = vpack.c.bf16 %v1114, %v1113
        %v1224 = vpack.c.bf16 %v1116, %v1115
        %v1225 = vpack.c.bf16 %v1118, %v1117
        %v1226 = vpack.c.bf16 %v1120, %v1119
        %v1227 = vpack.c.bf16 %v1122, %v1121
        %v1228 = vpack.c.bf16 %v1124, %v1123
        %v1229 = vpack.c.bf16 %v1126, %v1125
        %v1230 = vpack.c.bf16 %v1128, %v1127
        %v1231 = vpack.c.bf16 %v1130, %v1129
        %v1232 = vpack.c.bf16 %v1132, %v1131
        %v1233 = vpack.c.bf16 %v1134, %v1133
        %v1234 = vpack.c.bf16 %v1136, %v1135
        %v1235 = vpack.c.bf16 %v1138, %v1137
        %v1236 = vpack.c.bf16 %v1140, %v1139
        %v1237 = vpack.c.bf16 %v1142, %v1141
        %v1238 = vpack.c.bf16 %v1144, %v1143
        %v1239 = vpack.c.bf16 %v1146, %v1145
        %v1240 = vpack.c.bf16 %v1148, %v1147
        %v1241 = vpack.c.bf16 %v1150, %v1149
        %v1242 = vpack.c.bf16 %v1152, %v1151
        %v1243 = vpack.c.bf16 %v1154, %v1153
        %v1244 = vpack.c.bf16 %v1156, %v1155
        %v1245 = vpack.c.bf16 %v1158, %v1157
        %v1246 = vpack.c.bf16 %v1160, %v1159
        %v1247 = vpack.c.bf16 %v1162, %v1161
        %v1248 = vpack.c.bf16 %v1164, %v1163
        %v1249 = vpack.c.bf16 %v1166, %v1165
        %v1250 = vpack.c.bf16 %v1168, %v1167
        %v1251 = vpack.c.bf16 %v1170, %v1169
        %v1252 = vpack.c.bf16 %v1172, %v1171
        %v1253 = vpack.c.bf16 %v1174, %v1173
        %v1254 = vpack.c.bf16 %v1176, %v1175
        %v1255 = vpack.c.bf16 %v1178, %v1177
        %v1256 = vpack.c.bf16 %v1180, %v1179
        %v1257 = vpack.c.bf16 %v1182, %v1181
        %v1258 = vpack.c.bf16 %v1184, %v1183
        %v1259 = vpack.c.bf16 %v1186, %v1185
        %v1260 = vpack.c.bf16 %v1188, %v1187
        %v1261 = vpack.c.bf16 %v1190, %v1189
        %v1262 = vpack.c.bf16 %v1192, %v1191
        %v1263 = vpack.c.bf16 %v1194, %v1193
        %v1264 = vpack.c.bf16 %v1196, %v1195
        %v1265 = vpack.c.bf16 %v1198, %v1197
        %v1266 = vpack.c.bf16 %v1200, %v1199
        %v1267 = vpack.c.bf16 %v1202, %v1201
        %v1268 = vpack.c.bf16 %v1204, %v1203
        %v1269 = vld [vmem:[%s1] sm:$0xff]
        %v1270 = vld [vmem:[%s1 + $0x8] sm:$0xff]
        %v1271 = vld [vmem:[%s1 + $0x10] sm:$0xff]
        %v1272 = vld [vmem:[%s1 + $0x18] sm:$0xff]
        %v1273 = vld [vmem:[%s1 + $0x20] sm:$0xff]
        %v1274 = vld [vmem:[%s1 + $0x28] sm:$0xff]
        %v1275 = vld [vmem:[%s1 + $0x30] sm:$0xff]
        %v1276 = vld [vmem:[%s1 + $0x38] sm:$0xff]
        %v1277 = vld [vmem:[%s1 + $0x40] sm:$0xff]
        %v1278 = vld [vmem:[%s1 + $0x48] sm:$0xff]
        %v1279 = vld [vmem:[%s1 + $0x50] sm:$0xff]
        %v1280 = vld [vmem:[%s1 + $0x58] sm:$0xff]
        %v1281 = vld [vmem:[%s1 + $0x60] sm:$0xff]
        %v1282 = vld [vmem:[%s1 + $0x68] sm:$0xff]
        %v1283 = vld [vmem:[%s1 + $0x70] sm:$0xff]
        %v1284 = vld [vmem:[%s1 + $0x78] sm:$0xff]
        %v1285 = vld [vmem:[%s1 + $0x80] sm:$0xff]
        %v1286 = vld [vmem:[%s1 + $0x88] sm:$0xff]
        %v1287 = vld [vmem:[%s1 + $0x90] sm:$0xff]
        %v1288 = vld [vmem:[%s1 + $0x98] sm:$0xff]
        %v1289 = vld [vmem:[%s1 + $0xa0] sm:$0xff]
        %v1290 = vld [vmem:[%s1 + $0xa8] sm:$0xff]
        %v1291 = vld [vmem:[%s1 + $0xb0] sm:$0xff]
        %v1292 = vld [vmem:[%s1 + $0xb8] sm:$0xff]
        %v1293 = vld [vmem:[%s1 + $0xc0] sm:$0xff]
        %v1294 = vld [vmem:[%s1 + $0xc8] sm:$0xff]
        %v1295 = vld [vmem:[%s1 + $0xd0] sm:$0xff]
        %v1296 = vld [vmem:[%s1 + $0xd8] sm:$0xff]
        %v1297 = vld [vmem:[%s1 + $0xe0] sm:$0xff]
        %v1298 = vld [vmem:[%s1 + $0xe8] sm:$0xff]
        %v1299 = vld [vmem:[%s1 + $0xf0] sm:$0xff]
        %v1300 = vld [vmem:[%s1 + $0xf8] sm:$0xff]
        %v1333 = vunpack.c.l.b16 %v1269
        %v1334 = vunpack.c.h.b16 %v1269
        %v1335 = vunpack.c.l.b16 %v1270
        %v1336 = vunpack.c.h.b16 %v1270
        %v1337 = vunpack.c.l.b16 %v1271
        %v1338 = vunpack.c.h.b16 %v1271
        %v1339 = vunpack.c.l.b16 %v1272
        %v1340 = vunpack.c.h.b16 %v1272
        %v1341 = vunpack.c.l.b16 %v1273
        %v1342 = vunpack.c.h.b16 %v1273
        %v1343 = vunpack.c.l.b16 %v1274
        %v1344 = vunpack.c.h.b16 %v1274
        %v1345 = vunpack.c.l.b16 %v1275
        %v1346 = vunpack.c.h.b16 %v1275
        %v1347 = vunpack.c.l.b16 %v1276
        %v1348 = vunpack.c.h.b16 %v1276
        %v1349 = vunpack.c.l.b16 %v1277
        %v1350 = vunpack.c.h.b16 %v1277
        %v1351 = vunpack.c.l.b16 %v1278
        %v1352 = vunpack.c.h.b16 %v1278
        %v1353 = vunpack.c.l.b16 %v1279
        %v1354 = vunpack.c.h.b16 %v1279
        %v1355 = vunpack.c.l.b16 %v1280
        %v1356 = vunpack.c.h.b16 %v1280
        %v1357 = vunpack.c.l.b16 %v1281
        %v1358 = vunpack.c.h.b16 %v1281
        %v1359 = vunpack.c.l.b16 %v1282
        %v1360 = vunpack.c.h.b16 %v1282
        %v1361 = vunpack.c.l.b16 %v1283
        %v1362 = vunpack.c.h.b16 %v1283
        %v1363 = vunpack.c.l.b16 %v1284
        %v1364 = vunpack.c.h.b16 %v1284
        %v1365 = vunpack.c.l.b16 %v1285
        %v1366 = vunpack.c.h.b16 %v1285
        %v1367 = vunpack.c.l.b16 %v1286
        %v1368 = vunpack.c.h.b16 %v1286
        %v1369 = vunpack.c.l.b16 %v1287
        %v1370 = vunpack.c.h.b16 %v1287
        %v1371 = vunpack.c.l.b16 %v1288
        %v1372 = vunpack.c.h.b16 %v1288
        %v1373 = vunpack.c.l.b16 %v1289
        %v1374 = vunpack.c.h.b16 %v1289
        %v1375 = vunpack.c.l.b16 %v1290
        %v1376 = vunpack.c.h.b16 %v1290
        %v1377 = vunpack.c.l.b16 %v1291
        %v1378 = vunpack.c.h.b16 %v1291
        %v1379 = vunpack.c.l.b16 %v1292
        %v1380 = vunpack.c.h.b16 %v1292
        %v1381 = vunpack.c.l.b16 %v1293
        %v1382 = vunpack.c.h.b16 %v1293
        %v1383 = vunpack.c.l.b16 %v1294
        %v1384 = vunpack.c.h.b16 %v1294
        %v1385 = vunpack.c.l.b16 %v1295
        %v1386 = vunpack.c.h.b16 %v1295
        %v1387 = vunpack.c.l.b16 %v1296
        %v1388 = vunpack.c.h.b16 %v1296
        %v1389 = vunpack.c.l.b16 %v1297
        %v1390 = vunpack.c.h.b16 %v1297
        %v1391 = vunpack.c.l.b16 %v1298
        %v1392 = vunpack.c.h.b16 %v1298
        %v1393 = vunpack.c.l.b16 %v1299
        %v1394 = vunpack.c.h.b16 %v1299
        %v1395 = vunpack.c.l.b16 %v1300
        %v1396 = vunpack.c.h.b16 %v1300
        %v1397 = vpack.c.b16 %v1337, %v1333
        %v1398 = vpack.c.b16 %v1338, %v1334
        %v1399 = vpack.c.b16 %v1339, %v1335
        %v1400 = vpack.c.b16 %v1340, %v1336
        %v1401 = vpack.c.b16 %v1345, %v1341
        %v1402 = vpack.c.b16 %v1346, %v1342
        %v1403 = vpack.c.b16 %v1347, %v1343
        %v1404 = vpack.c.b16 %v1348, %v1344
        %v1405 = vpack.c.b16 %v1353, %v1349
        %v1406 = vpack.c.b16 %v1354, %v1350
        %v1407 = vpack.c.b16 %v1355, %v1351
        %v1408 = vpack.c.b16 %v1356, %v1352
        %v1409 = vpack.c.b16 %v1361, %v1357
        %v1410 = vpack.c.b16 %v1362, %v1358
        %v1411 = vpack.c.b16 %v1363, %v1359
        %v1412 = vpack.c.b16 %v1364, %v1360
        %v1413 = vpack.c.b16 %v1369, %v1365
        %v1414 = vpack.c.b16 %v1370, %v1366
        %v1415 = vpack.c.b16 %v1371, %v1367
        %v1416 = vpack.c.b16 %v1372, %v1368
        %v1417 = vpack.c.b16 %v1377, %v1373
        %v1418 = vpack.c.b16 %v1378, %v1374
        %v1419 = vpack.c.b16 %v1379, %v1375
        %v1420 = vpack.c.b16 %v1380, %v1376
        %v1421 = vpack.c.b16 %v1385, %v1381
        %v1422 = vpack.c.b16 %v1386, %v1382
        %v1423 = vpack.c.b16 %v1387, %v1383
        %v1424 = vpack.c.b16 %v1388, %v1384
        %v1425 = vpack.c.b16 %v1393, %v1389
        %v1426 = vpack.c.b16 %v1394, %v1390
        %v1427 = vpack.c.b16 %v1395, %v1391
        %v1428 = vpack.c.b16 %v1396, %v1392
        %1461 = vmatpush.bf16.msra.mxu0 %v1425
        %1462 = vmatpush.bf16.msra.mxu0 %v1421
        %1463 = vmatpush.bf16.msra.mxu0 %v1417
        %1464 = vmatpush.bf16.msra.mxu0 %v1413
        %1465 = vmatpush.bf16.msra.mxu0 %v1409
        %1466 = vmatpush.bf16.msra.mxu0 %v1405
        %1467 = vmatpush.bf16.msra.mxu0 %v1401
        %1468 = vmatpush.bf16.msra.mxu0 %v1397
        %1469 = vmatmul.bf16.gmra.mxu0 %v1205
        %v1470 = vpop.f32.mrf.mxu0
        %v1471 = vadd.f32 0.0, %v1470
        %v1472 = vpop.f32.mrf.mxu0
        %v1473 = vadd.f32 0.0, %v1472
        %1474 = vmatmul.bf16.gmra.mxu0 %v1206
        %v1475 = vpop.f32.mrf.mxu0
        %v1476 = vadd.f32 0.0, %v1475
        %v1477 = vpop.f32.mrf.mxu0
        %v1478 = vadd.f32 0.0, %v1477
        %1479 = vmatmul.bf16.gmra.mxu0 %v1207
        %v1480 = vpop.f32.mrf.mxu0
        %v1481 = vadd.f32 0.0, %v1480
        %v1482 = vpop.f32.mrf.mxu0
        %v1483 = vadd.f32 0.0, %v1482
        %1484 = vmatmul.bf16.gmra.mxu0 %v1208
        %v1485 = vpop.f32.mrf.mxu0
        %v1486 = vadd.f32 0.0, %v1485
        %v1487 = vpop.f32.mrf.mxu0
        %v1488 = vadd.f32 0.0, %v1487
        %1489 = vmatmul.bf16.gmra.mxu0 %v1209
        %v1490 = vpop.f32.mrf.mxu0
        %v1491 = vadd.f32 0.0, %v1490
        %v1492 = vpop.f32.mrf.mxu0
        %v1493 = vadd.f32 0.0, %v1492
        %1494 = vmatmul.bf16.gmra.mxu0 %v1210
        %v1495 = vpop.f32.mrf.mxu0
        %v1496 = vadd.f32 0.0, %v1495
        %v1497 = vpop.f32.mrf.mxu0
        %v1498 = vadd.f32 0.0, %v1497
        %1499 = vmatmul.bf16.gmra.mxu0 %v1211
        %v1500 = vpop.f32.mrf.mxu0
        %v1501 = vadd.f32 0.0, %v1500
        %v1502 = vpop.f32.mrf.mxu0
        %v1503 = vadd.f32 0.0, %v1502
        %1504 = vmatmul.bf16.gmra.mxu0 %v1212
        %v1505 = vpop.f32.mrf.mxu0
        %v1506 = vadd.f32 0.0, %v1505
        %v1507 = vpop.f32.mrf.mxu0
        %v1508 = vadd.f32 0.0, %v1507
        %1509 = vmatmul.bf16.gmra.mxu0 %v1213
        %v1510 = vpop.f32.mrf.mxu0
        %v1511 = vadd.f32 0.0, %v1510
        %v1512 = vpop.f32.mrf.mxu0
        %v1513 = vadd.f32 0.0, %v1512
        %1514 = vmatmul.bf16.gmra.mxu0 %v1214
        %v1515 = vpop.f32.mrf.mxu0
        %v1516 = vadd.f32 0.0, %v1515
        %v1517 = vpop.f32.mrf.mxu0
        %v1518 = vadd.f32 0.0, %v1517
        %1519 = vmatmul.bf16.gmra.mxu0 %v1215
        %v1520 = vpop.f32.mrf.mxu0
        %v1521 = vadd.f32 0.0, %v1520
        %v1522 = vpop.f32.mrf.mxu0
        %v1523 = vadd.f32 0.0, %v1522
        %1524 = vmatmul.bf16.gmra.mxu0 %v1216
        %v1525 = vpop.f32.mrf.mxu0
        %v1526 = vadd.f32 0.0, %v1525
        %v1527 = vpop.f32.mrf.mxu0
        %v1528 = vadd.f32 0.0, %v1527
        %1529 = vmatmul.bf16.gmra.mxu0 %v1217
        %v1530 = vpop.f32.mrf.mxu0
        %v1531 = vadd.f32 0.0, %v1530
        %v1532 = vpop.f32.mrf.mxu0
        %v1533 = vadd.f32 0.0, %v1532
        %1534 = vmatmul.bf16.gmra.mxu0 %v1218
        %v1535 = vpop.f32.mrf.mxu0
        %v1536 = vadd.f32 0.0, %v1535
        %v1537 = vpop.f32.mrf.mxu0
        %v1538 = vadd.f32 0.0, %v1537
        %1539 = vmatmul.bf16.gmra.mxu0 %v1219
        %v1540 = vpop.f32.mrf.mxu0
        %v1541 = vadd.f32 0.0, %v1540
        %v1542 = vpop.f32.mrf.mxu0
        %v1543 = vadd.f32 0.0, %v1542
        %1544 = vmatmul.bf16.gmra.mxu0 %v1220
        %v1545 = vpop.f32.mrf.mxu0
        %v1546 = vadd.f32 0.0, %v1545
        %v1547 = vpop.f32.mrf.mxu0
        %v1548 = vadd.f32 0.0, %v1547
        %1549 = vmatmul.bf16.gmra.mxu0 %v1221
        %v1550 = vpop.f32.mrf.mxu0
        %v1551 = vadd.f32 0.0, %v1550
        %v1552 = vpop.f32.mrf.mxu0
        %v1553 = vadd.f32 0.0, %v1552
        %1554 = vmatmul.bf16.gmra.mxu0 %v1222
        %v1555 = vpop.f32.mrf.mxu0
        %v1556 = vadd.f32 0.0, %v1555
        %v1557 = vpop.f32.mrf.mxu0
        %v1558 = vadd.f32 0.0, %v1557
        %1559 = vmatmul.bf16.gmra.mxu0 %v1223
        %v1560 = vpop.f32.mrf.mxu0
        %v1561 = vadd.f32 0.0, %v1560
        %v1562 = vpop.f32.mrf.mxu0
        %v1563 = vadd.f32 0.0, %v1562
        %1564 = vmatmul.bf16.gmra.mxu0 %v1224
        %v1565 = vpop.f32.mrf.mxu0
        %v1566 = vadd.f32 0.0, %v1565
        %v1567 = vpop.f32.mrf.mxu0
        %v1568 = vadd.f32 0.0, %v1567
        %1569 = vmatmul.bf16.gmra.mxu0 %v1225
        %v1570 = vpop.f32.mrf.mxu0
        %v1571 = vadd.f32 0.0, %v1570
        %v1572 = vpop.f32.mrf.mxu0
        %v1573 = vadd.f32 0.0, %v1572
        %1574 = vmatmul.bf16.gmra.mxu0 %v1226
        %v1575 = vpop.f32.mrf.mxu0
        %v1576 = vadd.f32 0.0, %v1575
        %v1577 = vpop.f32.mrf.mxu0
        %v1578 = vadd.f32 0.0, %v1577
        %1579 = vmatmul.bf16.gmra.mxu0 %v1227
        %v1580 = vpop.f32.mrf.mxu0
        %v1581 = vadd.f32 0.0, %v1580
        %v1582 = vpop.f32.mrf.mxu0
        %v1583 = vadd.f32 0.0, %v1582
        %1584 = vmatmul.bf16.gmra.mxu0 %v1228
        %v1585 = vpop.f32.mrf.mxu0
        %v1586 = vadd.f32 0.0, %v1585
        %v1587 = vpop.f32.mrf.mxu0
        %v1588 = vadd.f32 0.0, %v1587
        %1589 = vmatmul.bf16.gmra.mxu0 %v1229
        %v1590 = vpop.f32.mrf.mxu0
        %v1591 = vadd.f32 0.0, %v1590
        %v1592 = vpop.f32.mrf.mxu0
        %v1593 = vadd.f32 0.0, %v1592
        %1594 = vmatmul.bf16.gmra.mxu0 %v1230
        %v1595 = vpop.f32.mrf.mxu0
        %v1596 = vadd.f32 0.0, %v1595
        %v1597 = vpop.f32.mrf.mxu0
        %v1598 = vadd.f32 0.0, %v1597
        %1599 = vmatmul.bf16.gmra.mxu0 %v1231
        %v1600 = vpop.f32.mrf.mxu0
        %v1601 = vadd.f32 0.0, %v1600
        %v1602 = vpop.f32.mrf.mxu0
        %v1603 = vadd.f32 0.0, %v1602
        %1604 = vmatmul.bf16.gmra.mxu0 %v1232
        %v1605 = vpop.f32.mrf.mxu0
        %v1606 = vadd.f32 0.0, %v1605
        %v1607 = vpop.f32.mrf.mxu0
        %v1608 = vadd.f32 0.0, %v1607
        %1609 = vmatmul.bf16.gmra.mxu0 %v1233
        %v1610 = vpop.f32.mrf.mxu0
        %v1611 = vadd.f32 0.0, %v1610
        %v1612 = vpop.f32.mrf.mxu0
        %v1613 = vadd.f32 0.0, %v1612
        %1614 = vmatmul.bf16.gmra.mxu0 %v1234
        %v1615 = vpop.f32.mrf.mxu0
        %v1616 = vadd.f32 0.0, %v1615
        %v1617 = vpop.f32.mrf.mxu0
        %v1618 = vadd.f32 0.0, %v1617
        %1619 = vmatmul.bf16.gmra.mxu0 %v1235
        %v1620 = vpop.f32.mrf.mxu0
        %v1621 = vadd.f32 0.0, %v1620
        %v1622 = vpop.f32.mrf.mxu0
        %v1623 = vadd.f32 0.0, %v1622
        %1624 = vmatmul.bf16.gmra.mxu0 %v1236
        %v1625 = vpop.f32.mrf.mxu0
        %v1626 = vadd.f32 0.0, %v1625
        %v1627 = vpop.f32.mrf.mxu0
        %v1628 = vadd.f32 0.0, %v1627
        %1629 = vmatmul.bf16.gmra.mxu0 %v1237
        %v1630 = vpop.f32.mrf.mxu0
        %v1631 = vadd.f32 0.0, %v1630
        %v1632 = vpop.f32.mrf.mxu0
        %v1633 = vadd.f32 0.0, %v1632
        %1634 = vmatmul.bf16.gmra.mxu0 %v1238
        %v1635 = vpop.f32.mrf.mxu0
        %v1636 = vadd.f32 0.0, %v1635
        %v1637 = vpop.f32.mrf.mxu0
        %v1638 = vadd.f32 0.0, %v1637
        %1639 = vmatmul.bf16.gmra.mxu0 %v1239
        %v1640 = vpop.f32.mrf.mxu0
        %v1641 = vadd.f32 0.0, %v1640
        %v1642 = vpop.f32.mrf.mxu0
        %v1643 = vadd.f32 0.0, %v1642
        %1644 = vmatmul.bf16.gmra.mxu0 %v1240
        %v1645 = vpop.f32.mrf.mxu0
        %v1646 = vadd.f32 0.0, %v1645
        %v1647 = vpop.f32.mrf.mxu0
        %v1648 = vadd.f32 0.0, %v1647
        %1649 = vmatmul.bf16.gmra.mxu0 %v1241
        %v1650 = vpop.f32.mrf.mxu0
        %v1651 = vadd.f32 0.0, %v1650
        %v1652 = vpop.f32.mrf.mxu0
        %v1653 = vadd.f32 0.0, %v1652
        %1654 = vmatmul.bf16.gmra.mxu0 %v1242
        %v1655 = vpop.f32.mrf.mxu0
        %v1656 = vadd.f32 0.0, %v1655
        %v1657 = vpop.f32.mrf.mxu0
        %v1658 = vadd.f32 0.0, %v1657
        %1659 = vmatmul.bf16.gmra.mxu0 %v1243
        %v1660 = vpop.f32.mrf.mxu0
        %v1661 = vadd.f32 0.0, %v1660
        %v1662 = vpop.f32.mrf.mxu0
        %v1663 = vadd.f32 0.0, %v1662
        %1664 = vmatmul.bf16.gmra.mxu0 %v1244
        %v1665 = vpop.f32.mrf.mxu0
        %v1666 = vadd.f32 0.0, %v1665
        %v1667 = vpop.f32.mrf.mxu0
        %v1668 = vadd.f32 0.0, %v1667
        %1669 = vmatmul.bf16.gmra.mxu0 %v1245
        %v1670 = vpop.f32.mrf.mxu0
        %v1671 = vadd.f32 0.0, %v1670
        %v1672 = vpop.f32.mrf.mxu0
        %v1673 = vadd.f32 0.0, %v1672
        %1674 = vmatmul.bf16.gmra.mxu0 %v1246
        %v1675 = vpop.f32.mrf.mxu0
        %v1676 = vadd.f32 0.0, %v1675
        %v1677 = vpop.f32.mrf.mxu0
        %v1678 = vadd.f32 0.0, %v1677
        %1679 = vmatmul.bf16.gmra.mxu0 %v1247
        %v1680 = vpop.f32.mrf.mxu0
        %v1681 = vadd.f32 0.0, %v1680
        %v1682 = vpop.f32.mrf.mxu0
        %v1683 = vadd.f32 0.0, %v1682
        %1684 = vmatmul.bf16.gmra.mxu0 %v1248
        %v1685 = vpop.f32.mrf.mxu0
        %v1686 = vadd.f32 0.0, %v1685
        %v1687 = vpop.f32.mrf.mxu0
        %v1688 = vadd.f32 0.0, %v1687
        %1689 = vmatmul.bf16.gmra.mxu0 %v1249
        %v1690 = vpop.f32.mrf.mxu0
        %v1691 = vadd.f32 0.0, %v1690
        %v1692 = vpop.f32.mrf.mxu0
        %v1693 = vadd.f32 0.0, %v1692
        %1694 = vmatmul.bf16.gmra.mxu0 %v1250
        %v1695 = vpop.f32.mrf.mxu0
        %v1696 = vadd.f32 0.0, %v1695
        %v1697 = vpop.f32.mrf.mxu0
        %v1698 = vadd.f32 0.0, %v1697
        %1699 = vmatmul.bf16.gmra.mxu0 %v1251
        %v1700 = vpop.f32.mrf.mxu0
        %v1701 = vadd.f32 0.0, %v1700
        %v1702 = vpop.f32.mrf.mxu0
        %v1703 = vadd.f32 0.0, %v1702
        %1704 = vmatmul.bf16.gmra.mxu0 %v1252
        %v1705 = vpop.f32.mrf.mxu0
        %v1706 = vadd.f32 0.0, %v1705
        %v1707 = vpop.f32.mrf.mxu0
        %v1708 = vadd.f32 0.0, %v1707
        %1709 = vmatmul.bf16.gmra.mxu0 %v1253
        %v1710 = vpop.f32.mrf.mxu0
        %v1711 = vadd.f32 0.0, %v1710
        %v1712 = vpop.f32.mrf.mxu0
        %v1713 = vadd.f32 0.0, %v1712
        %1714 = vmatmul.bf16.gmra.mxu0 %v1254
        %v1715 = vpop.f32.mrf.mxu0
        %v1716 = vadd.f32 0.0, %v1715
        %v1717 = vpop.f32.mrf.mxu0
        %v1718 = vadd.f32 0.0, %v1717
        %1719 = vmatmul.bf16.gmra.mxu0 %v1255
        %v1720 = vpop.f32.mrf.mxu0
        %v1721 = vadd.f32 0.0, %v1720
        %v1722 = vpop.f32.mrf.mxu0
        %v1723 = vadd.f32 0.0, %v1722
        %1724 = vmatmul.bf16.gmra.mxu0 %v1256
        %v1725 = vpop.f32.mrf.mxu0
        %v1726 = vadd.f32 0.0, %v1725
        %v1727 = vpop.f32.mrf.mxu0
        %v1728 = vadd.f32 0.0, %v1727
        %1729 = vmatmul.bf16.gmra.mxu0 %v1257
        %v1730 = vpop.f32.mrf.mxu0
        %v1731 = vadd.f32 0.0, %v1730
        %v1732 = vpop.f32.mrf.mxu0
        %v1733 = vadd.f32 0.0, %v1732
        %1734 = vmatmul.bf16.gmra.mxu0 %v1258
        %v1735 = vpop.f32.mrf.mxu0
        %v1736 = vadd.f32 0.0, %v1735
        %v1737 = vpop.f32.mrf.mxu0
        %v1738 = vadd.f32 0.0, %v1737
        %1739 = vmatmul.bf16.gmra.mxu0 %v1259
        %v1740 = vpop.f32.mrf.mxu0
        %v1741 = vadd.f32 0.0, %v1740
        %v1742 = vpop.f32.mrf.mxu0
        %v1743 = vadd.f32 0.0, %v1742
        %1744 = vmatmul.bf16.gmra.mxu0 %v1260
        %v1745 = vpop.f32.mrf.mxu0
        %v1746 = vadd.f32 0.0, %v1745
        %v1747 = vpop.f32.mrf.mxu0
        %v1748 = vadd.f32 0.0, %v1747
        %1749 = vmatmul.bf16.gmra.mxu0 %v1261
        %v1750 = vpop.f32.mrf.mxu0
        %v1751 = vadd.f32 0.0, %v1750
        %v1752 = vpop.f32.mrf.mxu0
        %v1753 = vadd.f32 0.0, %v1752
        %1754 = vmatmul.bf16.gmra.mxu0 %v1262
        %v1755 = vpop.f32.mrf.mxu0
        %v1756 = vadd.f32 0.0, %v1755
        %v1757 = vpop.f32.mrf.mxu0
        %v1758 = vadd.f32 0.0, %v1757
        %1759 = vmatmul.bf16.gmra.mxu0 %v1263
        %v1760 = vpop.f32.mrf.mxu0
        %v1761 = vadd.f32 0.0, %v1760
        %v1762 = vpop.f32.mrf.mxu0
        %v1763 = vadd.f32 0.0, %v1762
        %1764 = vmatmul.bf16.gmra.mxu0 %v1264
        %v1765 = vpop.f32.mrf.mxu0
        %v1766 = vadd.f32 0.0, %v1765
        %v1767 = vpop.f32.mrf.mxu0
        %v1768 = vadd.f32 0.0, %v1767
        %1769 = vmatmul.bf16.gmra.mxu0 %v1265
        %v1770 = vpop.f32.mrf.mxu0
        %v1771 = vadd.f32 0.0, %v1770
        %v1772 = vpop.f32.mrf.mxu0
        %v1773 = vadd.f32 0.0, %v1772
        %1774 = vmatmul.bf16.gmra.mxu0 %v1266
        %v1775 = vpop.f32.mrf.mxu0
        %v1776 = vadd.f32 0.0, %v1775
        %v1777 = vpop.f32.mrf.mxu0
        %v1778 = vadd.f32 0.0, %v1777
        %1779 = vmatmul.bf16.gmra.mxu0 %v1267
        %v1780 = vpop.f32.mrf.mxu0
        %v1781 = vadd.f32 0.0, %v1780
        %v1782 = vpop.f32.mrf.mxu0
        %v1783 = vadd.f32 0.0, %v1782
        %1784 = vmatmul.bf16.gmra.mxu0 %v1268
        %v1785 = vpop.f32.mrf.mxu0
        %v1786 = vadd.f32 0.0, %v1785
        %v1787 = vpop.f32.mrf.mxu0
        %v1788 = vadd.f32 0.0, %v1787
        %1789 = vdwg.mxu0
        %1790 = vmatpush.bf16.msra.mxu0 %v1426
        %1791 = vmatpush.bf16.msra.mxu0 %v1422
        %1792 = vmatpush.bf16.msra.mxu0 %v1418
        %1793 = vmatpush.bf16.msra.mxu0 %v1414
        %1794 = vmatpush.bf16.msra.mxu0 %v1410
        %1795 = vmatpush.bf16.msra.mxu0 %v1406
        %1796 = vmatpush.bf16.msra.mxu0 %v1402
        %1797 = vmatpush.bf16.msra.mxu0 %v1398
        %1798 = vmatmul.bf16.gmra.mxu0 %v1205
        %v1799 = vpop.f32.mrf.mxu0
        %v1800 = vadd.f32 0.0, %v1799
        %v1801 = vpop.f32.mrf.mxu0
        %v1802 = vadd.f32 0.0, %v1801
        %1803 = vmatmul.bf16.gmra.mxu0 %v1206
        %v1804 = vpop.f32.mrf.mxu0
        %v1805 = vadd.f32 0.0, %v1804
        %v1806 = vpop.f32.mrf.mxu0
        %v1807 = vadd.f32 0.0, %v1806
        %1808 = vmatmul.bf16.gmra.mxu0 %v1207
        %v1809 = vpop.f32.mrf.mxu0
        %v1810 = vadd.f32 0.0, %v1809
        %v1811 = vpop.f32.mrf.mxu0
        %v1812 = vadd.f32 0.0, %v1811
        %1813 = vmatmul.bf16.gmra.mxu0 %v1208
        %v1814 = vpop.f32.mrf.mxu0
        %v1815 = vadd.f32 0.0, %v1814
        %v1816 = vpop.f32.mrf.mxu0
        %v1817 = vadd.f32 0.0, %v1816
        %1818 = vmatmul.bf16.gmra.mxu0 %v1209
        %v1819 = vpop.f32.mrf.mxu0
        %v1820 = vadd.f32 0.0, %v1819
        %v1821 = vpop.f32.mrf.mxu0
        %v1822 = vadd.f32 0.0, %v1821
        %1823 = vmatmul.bf16.gmra.mxu0 %v1210
        %v1824 = vpop.f32.mrf.mxu0
        %v1825 = vadd.f32 0.0, %v1824
        %v1826 = vpop.f32.mrf.mxu0
        %v1827 = vadd.f32 0.0, %v1826
        %1828 = vmatmul.bf16.gmra.mxu0 %v1211
        %v1829 = vpop.f32.mrf.mxu0
        %v1830 = vadd.f32 0.0, %v1829
        %v1831 = vpop.f32.mrf.mxu0
        %v1832 = vadd.f32 0.0, %v1831
        %1833 = vmatmul.bf16.gmra.mxu0 %v1212
        %v1834 = vpop.f32.mrf.mxu0
        %v1835 = vadd.f32 0.0, %v1834
        %v1836 = vpop.f32.mrf.mxu0
        %v1837 = vadd.f32 0.0, %v1836
        %1838 = vmatmul.bf16.gmra.mxu0 %v1213
        %v1839 = vpop.f32.mrf.mxu0
        %v1840 = vadd.f32 0.0, %v1839
        %v1841 = vpop.f32.mrf.mxu0
        %v1842 = vadd.f32 0.0, %v1841
        %1843 = vmatmul.bf16.gmra.mxu0 %v1214
        %v1844 = vpop.f32.mrf.mxu0
        %v1845 = vadd.f32 0.0, %v1844
        %v1846 = vpop.f32.mrf.mxu0
        %v1847 = vadd.f32 0.0, %v1846
        %1848 = vmatmul.bf16.gmra.mxu0 %v1215
        %v1849 = vpop.f32.mrf.mxu0
        %v1850 = vadd.f32 0.0, %v1849
        %v1851 = vpop.f32.mrf.mxu0
        %v1852 = vadd.f32 0.0, %v1851
        %1853 = vmatmul.bf16.gmra.mxu0 %v1216
        %v1854 = vpop.f32.mrf.mxu0
        %v1855 = vadd.f32 0.0, %v1854
        %v1856 = vpop.f32.mrf.mxu0
        %v1857 = vadd.f32 0.0, %v1856
        %1858 = vmatmul.bf16.gmra.mxu0 %v1217
        %v1859 = vpop.f32.mrf.mxu0
        %v1860 = vadd.f32 0.0, %v1859
        %v1861 = vpop.f32.mrf.mxu0
        %v1862 = vadd.f32 0.0, %v1861
        %1863 = vmatmul.bf16.gmra.mxu0 %v1218
        %v1864 = vpop.f32.mrf.mxu0
        %v1865 = vadd.f32 0.0, %v1864
        %v1866 = vpop.f32.mrf.mxu0
        %v1867 = vadd.f32 0.0, %v1866
        %1868 = vmatmul.bf16.gmra.mxu0 %v1219
        %v1869 = vpop.f32.mrf.mxu0
        %v1870 = vadd.f32 0.0, %v1869
        %v1871 = vpop.f32.mrf.mxu0
        %v1872 = vadd.f32 0.0, %v1871
        %1873 = vmatmul.bf16.gmra.mxu0 %v1220
        %v1874 = vpop.f32.mrf.mxu0
        %v1875 = vadd.f32 0.0, %v1874
        %v1876 = vpop.f32.mrf.mxu0
        %v1877 = vadd.f32 0.0, %v1876
        %1878 = vmatmul.bf16.gmra.mxu0 %v1221
        %v1879 = vpop.f32.mrf.mxu0
        %v1880 = vadd.f32 0.0, %v1879
        %v1881 = vpop.f32.mrf.mxu0
        %v1882 = vadd.f32 0.0, %v1881
        %1883 = vmatmul.bf16.gmra.mxu0 %v1222
        %v1884 = vpop.f32.mrf.mxu0
        %v1885 = vadd.f32 0.0, %v1884
        %v1886 = vpop.f32.mrf.mxu0
        %v1887 = vadd.f32 0.0, %v1886
        %1888 = vmatmul.bf16.gmra.mxu0 %v1223
        %v1889 = vpop.f32.mrf.mxu0
        %v1890 = vadd.f32 0.0, %v1889
        %v1891 = vpop.f32.mrf.mxu0
        %v1892 = vadd.f32 0.0, %v1891
        %1893 = vmatmul.bf16.gmra.mxu0 %v1224
        %v1894 = vpop.f32.mrf.mxu0
        %v1895 = vadd.f32 0.0, %v1894
        %v1896 = vpop.f32.mrf.mxu0
        %v1897 = vadd.f32 0.0, %v1896
        %1898 = vmatmul.bf16.gmra.mxu0 %v1225
        %v1899 = vpop.f32.mrf.mxu0
        %v1900 = vadd.f32 0.0, %v1899
        %v1901 = vpop.f32.mrf.mxu0
        %v1902 = vadd.f32 0.0, %v1901
        %1903 = vmatmul.bf16.gmra.mxu0 %v1226
        %v1904 = vpop.f32.mrf.mxu0
        %v1905 = vadd.f32 0.0, %v1904
        %v1906 = vpop.f32.mrf.mxu0
        %v1907 = vadd.f32 0.0, %v1906
        %1908 = vmatmul.bf16.gmra.mxu0 %v1227
        %v1909 = vpop.f32.mrf.mxu0
        %v1910 = vadd.f32 0.0, %v1909
        %v1911 = vpop.f32.mrf.mxu0
        %v1912 = vadd.f32 0.0, %v1911
        %1913 = vmatmul.bf16.gmra.mxu0 %v1228
        %v1914 = vpop.f32.mrf.mxu0
        %v1915 = vadd.f32 0.0, %v1914
        %v1916 = vpop.f32.mrf.mxu0
        %v1917 = vadd.f32 0.0, %v1916
        %1918 = vmatmul.bf16.gmra.mxu0 %v1229
        %v1919 = vpop.f32.mrf.mxu0
        %v1920 = vadd.f32 0.0, %v1919
        %v1921 = vpop.f32.mrf.mxu0
        %v1922 = vadd.f32 0.0, %v1921
        %1923 = vmatmul.bf16.gmra.mxu0 %v1230
        %v1924 = vpop.f32.mrf.mxu0
        %v1925 = vadd.f32 0.0, %v1924
        %v1926 = vpop.f32.mrf.mxu0
        %v1927 = vadd.f32 0.0, %v1926
        %1928 = vmatmul.bf16.gmra.mxu0 %v1231
        %v1929 = vpop.f32.mrf.mxu0
        %v1930 = vadd.f32 0.0, %v1929
        %v1931 = vpop.f32.mrf.mxu0
        %v1932 = vadd.f32 0.0, %v1931
        %1933 = vmatmul.bf16.gmra.mxu0 %v1232
        %v1934 = vpop.f32.mrf.mxu0
        %v1935 = vadd.f32 0.0, %v1934
        %v1936 = vpop.f32.mrf.mxu0
        %v1937 = vadd.f32 0.0, %v1936
        %1938 = vmatmul.bf16.gmra.mxu0 %v1233
        %v1939 = vpop.f32.mrf.mxu0
        %v1940 = vadd.f32 0.0, %v1939
        %v1941 = vpop.f32.mrf.mxu0
        %v1942 = vadd.f32 0.0, %v1941
        %1943 = vmatmul.bf16.gmra.mxu0 %v1234
        %v1944 = vpop.f32.mrf.mxu0
        %v1945 = vadd.f32 0.0, %v1944
        %v1946 = vpop.f32.mrf.mxu0
        %v1947 = vadd.f32 0.0, %v1946
        %1948 = vmatmul.bf16.gmra.mxu0 %v1235
        %v1949 = vpop.f32.mrf.mxu0
        %v1950 = vadd.f32 0.0, %v1949
        %v1951 = vpop.f32.mrf.mxu0
        %v1952 = vadd.f32 0.0, %v1951
        %1953 = vmatmul.bf16.gmra.mxu0 %v1236
        %v1954 = vpop.f32.mrf.mxu0
        %v1955 = vadd.f32 0.0, %v1954
        %v1956 = vpop.f32.mrf.mxu0
        %v1957 = vadd.f32 0.0, %v1956
        %1958 = vmatmul.bf16.gmra.mxu0 %v1237
        %v1959 = vpop.f32.mrf.mxu0
        %v1960 = vadd.f32 0.0, %v1959
        %v1961 = vpop.f32.mrf.mxu0
        %v1962 = vadd.f32 0.0, %v1961
        %1963 = vmatmul.bf16.gmra.mxu0 %v1238
        %v1964 = vpop.f32.mrf.mxu0
        %v1965 = vadd.f32 0.0, %v1964
        %v1966 = vpop.f32.mrf.mxu0
        %v1967 = vadd.f32 0.0, %v1966
        %1968 = vmatmul.bf16.gmra.mxu0 %v1239
        %v1969 = vpop.f32.mrf.mxu0
        %v1970 = vadd.f32 0.0, %v1969
        %v1971 = vpop.f32.mrf.mxu0
        %v1972 = vadd.f32 0.0, %v1971
        %1973 = vmatmul.bf16.gmra.mxu0 %v1240
        %v1974 = vpop.f32.mrf.mxu0
        %v1975 = vadd.f32 0.0, %v1974
        %v1976 = vpop.f32.mrf.mxu0
        %v1977 = vadd.f32 0.0, %v1976
        %1978 = vmatmul.bf16.gmra.mxu0 %v1241
        %v1979 = vpop.f32.mrf.mxu0
        %v1980 = vadd.f32 0.0, %v1979
        %v1981 = vpop.f32.mrf.mxu0
        %v1982 = vadd.f32 0.0, %v1981
        %1983 = vmatmul.bf16.gmra.mxu0 %v1242
        %v1984 = vpop.f32.mrf.mxu0
        %v1985 = vadd.f32 0.0, %v1984
        %v1986 = vpop.f32.mrf.mxu0
        %v1987 = vadd.f32 0.0, %v1986
        %1988 = vmatmul.bf16.gmra.mxu0 %v1243
        %v1989 = vpop.f32.mrf.mxu0
        %v1990 = vadd.f32 0.0, %v1989
        %v1991 = vpop.f32.mrf.mxu0
        %v1992 = vadd.f32 0.0, %v1991
        %1993 = vmatmul.bf16.gmra.mxu0 %v1244
        %v1994 = vpop.f32.mrf.mxu0
        %v1995 = vadd.f32 0.0, %v1994
        %v1996 = vpop.f32.mrf.mxu0
        %v1997 = vadd.f32 0.0, %v1996
        %1998 = vmatmul.bf16.gmra.mxu0 %v1245
        %v1999 = vpop.f32.mrf.mxu0
        %v2000 = vadd.f32 0.0, %v1999
        %v2001 = vpop.f32.mrf.mxu0
        %v2002 = vadd.f32 0.0, %v2001
        %2003 = vmatmul.bf16.gmra.mxu0 %v1246
        %v2004 = vpop.f32.mrf.mxu0
        %v2005 = vadd.f32 0.0, %v2004
        %v2006 = vpop.f32.mrf.mxu0
        %v2007 = vadd.f32 0.0, %v2006
        %2008 = vmatmul.bf16.gmra.mxu0 %v1247
        %v2009 = vpop.f32.mrf.mxu0
        %v2010 = vadd.f32 0.0, %v2009
        %v2011 = vpop.f32.mrf.mxu0
        %v2012 = vadd.f32 0.0, %v2011
        %2013 = vmatmul.bf16.gmra.mxu0 %v1248
        %v2014 = vpop.f32.mrf.mxu0
        %v2015 = vadd.f32 0.0, %v2014
        %v2016 = vpop.f32.mrf.mxu0
        %v2017 = vadd.f32 0.0, %v2016
        %2018 = vmatmul.bf16.gmra.mxu0 %v1249
        %v2019 = vpop.f32.mrf.mxu0
        %v2020 = vadd.f32 0.0, %v2019
        %v2021 = vpop.f32.mrf.mxu0
        %v2022 = vadd.f32 0.0, %v2021
        %2023 = vmatmul.bf16.gmra.mxu0 %v1250
        %v2024 = vpop.f32.mrf.mxu0
        %v2025 = vadd.f32 0.0, %v2024
        %v2026 = vpop.f32.mrf.mxu0
        %v2027 = vadd.f32 0.0, %v2026
        %2028 = vmatmul.bf16.gmra.mxu0 %v1251
        %v2029 = vpop.f32.mrf.mxu0
        %v2030 = vadd.f32 0.0, %v2029
        %v2031 = vpop.f32.mrf.mxu0
        %v2032 = vadd.f32 0.0, %v2031
        %2033 = vmatmul.bf16.gmra.mxu0 %v1252
        %v2034 = vpop.f32.mrf.mxu0
        %v2035 = vadd.f32 0.0, %v2034
        %v2036 = vpop.f32.mrf.mxu0
        %v2037 = vadd.f32 0.0, %v2036
        %2038 = vmatmul.bf16.gmra.mxu0 %v1253
        %v2039 = vpop.f32.mrf.mxu0
        %v2040 = vadd.f32 0.0, %v2039
        %v2041 = vpop.f32.mrf.mxu0
        %v2042 = vadd.f32 0.0, %v2041
        %2043 = vmatmul.bf16.gmra.mxu0 %v1254
        %v2044 = vpop.f32.mrf.mxu0
        %v2045 = vadd.f32 0.0, %v2044
        %v2046 = vpop.f32.mrf.mxu0
        %v2047 = vadd.f32 0.0, %v2046
        %2048 = vmatmul.bf16.gmra.mxu0 %v1255
        %v2049 = vpop.f32.mrf.mxu0
        %v2050 = vadd.f32 0.0, %v2049
        %v2051 = vpop.f32.mrf.mxu0
        %v2052 = vadd.f32 0.0, %v2051
        %2053 = vmatmul.bf16.gmra.mxu0 %v1256
        %v2054 = vpop.f32.mrf.mxu0
        %v2055 = vadd.f32 0.0, %v2054
        %v2056 = vpop.f32.mrf.mxu0
        %v2057 = vadd.f32 0.0, %v2056
        %2058 = vmatmul.bf16.gmra.mxu0 %v1257
        %v2059 = vpop.f32.mrf.mxu0
        %v2060 = vadd.f32 0.0, %v2059
        %v2061 = vpop.f32.mrf.mxu0
        %v2062 = vadd.f32 0.0, %v2061
        %2063 = vmatmul.bf16.gmra.mxu0 %v1258
        %v2064 = vpop.f32.mrf.mxu0
        %v2065 = vadd.f32 0.0, %v2064
        %v2066 = vpop.f32.mrf.mxu0
        %v2067 = vadd.f32 0.0, %v2066
        %2068 = vmatmul.bf16.gmra.mxu0 %v1259
        %v2069 = vpop.f32.mrf.mxu0
        %v2070 = vadd.f32 0.0, %v2069
        %v2071 = vpop.f32.mrf.mxu0
        %v2072 = vadd.f32 0.0, %v2071
        %2073 = vmatmul.bf16.gmra.mxu0 %v1260
        %v2074 = vpop.f32.mrf.mxu0
        %v2075 = vadd.f32 0.0, %v2074
        %v2076 = vpop.f32.mrf.mxu0
        %v2077 = vadd.f32 0.0, %v2076
        %2078 = vmatmul.bf16.gmra.mxu0 %v1261
        %v2079 = vpop.f32.mrf.mxu0
        %v2080 = vadd.f32 0.0, %v2079
        %v2081 = vpop.f32.mrf.mxu0
        %v2082 = vadd.f32 0.0, %v2081
        %2083 = vmatmul.bf16.gmra.mxu0 %v1262
        %v2084 = vpop.f32.mrf.mxu0
        %v2085 = vadd.f32 0.0, %v2084
        %v2086 = vpop.f32.mrf.mxu0
        %v2087 = vadd.f32 0.0, %v2086
        %2088 = vmatmul.bf16.gmra.mxu0 %v1263
        %v2089 = vpop.f32.mrf.mxu0
        %v2090 = vadd.f32 0.0, %v2089
        %v2091 = vpop.f32.mrf.mxu0
        %v2092 = vadd.f32 0.0, %v2091
        %2093 = vmatmul.bf16.gmra.mxu0 %v1264
        %v2094 = vpop.f32.mrf.mxu0
        %v2095 = vadd.f32 0.0, %v2094
        %v2096 = vpop.f32.mrf.mxu0
        %v2097 = vadd.f32 0.0, %v2096
        %2098 = vmatmul.bf16.gmra.mxu0 %v1265
        %v2099 = vpop.f32.mrf.mxu0
        %v2100 = vadd.f32 0.0, %v2099
        %v2101 = vpop.f32.mrf.mxu0
        %v2102 = vadd.f32 0.0, %v2101
        %2103 = vmatmul.bf16.gmra.mxu0 %v1266
        %v2104 = vpop.f32.mrf.mxu0
        %v2105 = vadd.f32 0.0, %v2104
        %v2106 = vpop.f32.mrf.mxu0
        %v2107 = vadd.f32 0.0, %v2106
        %2108 = vmatmul.bf16.gmra.mxu0 %v1267
        %v2109 = vpop.f32.mrf.mxu0
        %v2110 = vadd.f32 0.0, %v2109
        %v2111 = vpop.f32.mrf.mxu0
        %v2112 = vadd.f32 0.0, %v2111
        %2113 = vmatmul.bf16.gmra.mxu0 %v1268
        %v2114 = vpop.f32.mrf.mxu0
        %v2115 = vadd.f32 0.0, %v2114
        %v2116 = vpop.f32.mrf.mxu0
        %v2117 = vadd.f32 0.0, %v2116
        %2118 = vdwg.mxu0
        %2119 = vmatpush.bf16.msra.mxu0 %v1427
        %2120 = vmatpush.bf16.msra.mxu0 %v1423
        %2121 = vmatpush.bf16.msra.mxu0 %v1419
        %2122 = vmatpush.bf16.msra.mxu0 %v1415
        %2123 = vmatpush.bf16.msra.mxu0 %v1411
        %2124 = vmatpush.bf16.msra.mxu0 %v1407
        %2125 = vmatpush.bf16.msra.mxu0 %v1403
        %2126 = vmatpush.bf16.msra.mxu0 %v1399
        %2127 = vmatmul.bf16.gmra.mxu0 %v1205
        %v2128 = vpop.f32.mrf.mxu0
        %v2129 = vadd.f32 0.0, %v2128
        %v2130 = vpop.f32.mrf.mxu0
        %v2131 = vadd.f32 0.0, %v2130
        %2132 = vmatmul.bf16.gmra.mxu0 %v1206
        %v2133 = vpop.f32.mrf.mxu0
        %v2134 = vadd.f32 0.0, %v2133
        %v2135 = vpop.f32.mrf.mxu0
        %v2136 = vadd.f32 0.0, %v2135
        %2137 = vmatmul.bf16.gmra.mxu0 %v1207
        %v2138 = vpop.f32.mrf.mxu0
        %v2139 = vadd.f32 0.0, %v2138
        %v2140 = vpop.f32.mrf.mxu0
        %v2141 = vadd.f32 0.0, %v2140
        %2142 = vmatmul.bf16.gmra.mxu0 %v1208
        %v2143 = vpop.f32.mrf.mxu0
        %v2144 = vadd.f32 0.0, %v2143
        %v2145 = vpop.f32.mrf.mxu0
        %v2146 = vadd.f32 0.0, %v2145
        %2147 = vmatmul.bf16.gmra.mxu0 %v1209
        %v2148 = vpop.f32.mrf.mxu0
        %v2149 = vadd.f32 0.0, %v2148
        %v2150 = vpop.f32.mrf.mxu0
        %v2151 = vadd.f32 0.0, %v2150
        %2152 = vmatmul.bf16.gmra.mxu0 %v1210
        %v2153 = vpop.f32.mrf.mxu0
        %v2154 = vadd.f32 0.0, %v2153
        %v2155 = vpop.f32.mrf.mxu0
        %v2156 = vadd.f32 0.0, %v2155
        %2157 = vmatmul.bf16.gmra.mxu0 %v1211
        %v2158 = vpop.f32.mrf.mxu0
        %v2159 = vadd.f32 0.0, %v2158
        %v2160 = vpop.f32.mrf.mxu0
        %v2161 = vadd.f32 0.0, %v2160
        %2162 = vmatmul.bf16.gmra.mxu0 %v1212
        %v2163 = vpop.f32.mrf.mxu0
        %v2164 = vadd.f32 0.0, %v2163
        %v2165 = vpop.f32.mrf.mxu0
        %v2166 = vadd.f32 0.0, %v2165
        %2167 = vmatmul.bf16.gmra.mxu0 %v1213
        %v2168 = vpop.f32.mrf.mxu0
        %v2169 = vadd.f32 0.0, %v2168
        %v2170 = vpop.f32.mrf.mxu0
        %v2171 = vadd.f32 0.0, %v2170
        %2172 = vmatmul.bf16.gmra.mxu0 %v1214
        %v2173 = vpop.f32.mrf.mxu0
        %v2174 = vadd.f32 0.0, %v2173
        %v2175 = vpop.f32.mrf.mxu0
        %v2176 = vadd.f32 0.0, %v2175
        %2177 = vmatmul.bf16.gmra.mxu0 %v1215
        %v2178 = vpop.f32.mrf.mxu0
        %v2179 = vadd.f32 0.0, %v2178
        %v2180 = vpop.f32.mrf.mxu0
        %v2181 = vadd.f32 0.0, %v2180
        %2182 = vmatmul.bf16.gmra.mxu0 %v1216
        %v2183 = vpop.f32.mrf.mxu0
        %v2184 = vadd.f32 0.0, %v2183
        %v2185 = vpop.f32.mrf.mxu0
        %v2186 = vadd.f32 0.0, %v2185
        %2187 = vmatmul.bf16.gmra.mxu0 %v1217
        %v2188 = vpop.f32.mrf.mxu0
        %v2189 = vadd.f32 0.0, %v2188
        %v2190 = vpop.f32.mrf.mxu0
        %v2191 = vadd.f32 0.0, %v2190
        %2192 = vmatmul.bf16.gmra.mxu0 %v1218
        %v2193 = vpop.f32.mrf.mxu0
        %v2194 = vadd.f32 0.0, %v2193
        %v2195 = vpop.f32.mrf.mxu0
        %v2196 = vadd.f32 0.0, %v2195
        %2197 = vmatmul.bf16.gmra.mxu0 %v1219
        %v2198 = vpop.f32.mrf.mxu0
        %v2199 = vadd.f32 0.0, %v2198
        %v2200 = vpop.f32.mrf.mxu0
        %v2201 = vadd.f32 0.0, %v2200
        %2202 = vmatmul.bf16.gmra.mxu0 %v1220
        %v2203 = vpop.f32.mrf.mxu0
        %v2204 = vadd.f32 0.0, %v2203
        %v2205 = vpop.f32.mrf.mxu0
        %v2206 = vadd.f32 0.0, %v2205
        %2207 = vmatmul.bf16.gmra.mxu0 %v1221
        %v2208 = vpop.f32.mrf.mxu0
        %v2209 = vadd.f32 0.0, %v2208
        %v2210 = vpop.f32.mrf.mxu0
        %v2211 = vadd.f32 0.0, %v2210
        %2212 = vmatmul.bf16.gmra.mxu0 %v1222
        %v2213 = vpop.f32.mrf.mxu0
        %v2214 = vadd.f32 0.0, %v2213
        %v2215 = vpop.f32.mrf.mxu0
        %v2216 = vadd.f32 0.0, %v2215
        %2217 = vmatmul.bf16.gmra.mxu0 %v1223
        %v2218 = vpop.f32.mrf.mxu0
        %v2219 = vadd.f32 0.0, %v2218
        %v2220 = vpop.f32.mrf.mxu0
        %v2221 = vadd.f32 0.0, %v2220
        %2222 = vmatmul.bf16.gmra.mxu0 %v1224
        %v2223 = vpop.f32.mrf.mxu0
        %v2224 = vadd.f32 0.0, %v2223
        %v2225 = vpop.f32.mrf.mxu0
        %v2226 = vadd.f32 0.0, %v2225
        %2227 = vmatmul.bf16.gmra.mxu0 %v1225
        %v2228 = vpop.f32.mrf.mxu0
        %v2229 = vadd.f32 0.0, %v2228
        %v2230 = vpop.f32.mrf.mxu0
        %v2231 = vadd.f32 0.0, %v2230
        %2232 = vmatmul.bf16.gmra.mxu0 %v1226
        %v2233 = vpop.f32.mrf.mxu0
        %v2234 = vadd.f32 0.0, %v2233
        %v2235 = vpop.f32.mrf.mxu0
        %v2236 = vadd.f32 0.0, %v2235
        %2237 = vmatmul.bf16.gmra.mxu0 %v1227
        %v2238 = vpop.f32.mrf.mxu0
        %v2239 = vadd.f32 0.0, %v2238
        %v2240 = vpop.f32.mrf.mxu0
        %v2241 = vadd.f32 0.0, %v2240
        %2242 = vmatmul.bf16.gmra.mxu0 %v1228
        %v2243 = vpop.f32.mrf.mxu0
        %v2244 = vadd.f32 0.0, %v2243
        %v2245 = vpop.f32.mrf.mxu0
        %v2246 = vadd.f32 0.0, %v2245
        %2247 = vmatmul.bf16.gmra.mxu0 %v1229
        %v2248 = vpop.f32.mrf.mxu0
        %v2249 = vadd.f32 0.0, %v2248
        %v2250 = vpop.f32.mrf.mxu0
        %v2251 = vadd.f32 0.0, %v2250
        %2252 = vmatmul.bf16.gmra.mxu0 %v1230
        %v2253 = vpop.f32.mrf.mxu0
        %v2254 = vadd.f32 0.0, %v2253
        %v2255 = vpop.f32.mrf.mxu0
        %v2256 = vadd.f32 0.0, %v2255
        %2257 = vmatmul.bf16.gmra.mxu0 %v1231
        %v2258 = vpop.f32.mrf.mxu0
        %v2259 = vadd.f32 0.0, %v2258
        %v2260 = vpop.f32.mrf.mxu0
        %v2261 = vadd.f32 0.0, %v2260
        %2262 = vmatmul.bf16.gmra.mxu0 %v1232
        %v2263 = vpop.f32.mrf.mxu0
        %v2264 = vadd.f32 0.0, %v2263
        %v2265 = vpop.f32.mrf.mxu0
        %v2266 = vadd.f32 0.0, %v2265
        %2267 = vmatmul.bf16.gmra.mxu0 %v1233
        %v2268 = vpop.f32.mrf.mxu0
        %v2269 = vadd.f32 0.0, %v2268
        %v2270 = vpop.f32.mrf.mxu0
        %v2271 = vadd.f32 0.0, %v2270
        %2272 = vmatmul.bf16.gmra.mxu0 %v1234
        %v2273 = vpop.f32.mrf.mxu0
        %v2274 = vadd.f32 0.0, %v2273
        %v2275 = vpop.f32.mrf.mxu0
        %v2276 = vadd.f32 0.0, %v2275
        %2277 = vmatmul.bf16.gmra.mxu0 %v1235
        %v2278 = vpop.f32.mrf.mxu0
        %v2279 = vadd.f32 0.0, %v2278
        %v2280 = vpop.f32.mrf.mxu0
        %v2281 = vadd.f32 0.0, %v2280
        %2282 = vmatmul.bf16.gmra.mxu0 %v1236
        %v2283 = vpop.f32.mrf.mxu0
        %v2284 = vadd.f32 0.0, %v2283
        %v2285 = vpop.f32.mrf.mxu0
        %v2286 = vadd.f32 0.0, %v2285
        %2287 = vmatmul.bf16.gmra.mxu0 %v1237
        %v2288 = vpop.f32.mrf.mxu0
        %v2289 = vadd.f32 0.0, %v2288
        %v2290 = vpop.f32.mrf.mxu0
        %v2291 = vadd.f32 0.0, %v2290
        %2292 = vmatmul.bf16.gmra.mxu0 %v1238
        %v2293 = vpop.f32.mrf.mxu0
        %v2294 = vadd.f32 0.0, %v2293
        %v2295 = vpop.f32.mrf.mxu0
        %v2296 = vadd.f32 0.0, %v2295
        %2297 = vmatmul.bf16.gmra.mxu0 %v1239
        %v2298 = vpop.f32.mrf.mxu0
        %v2299 = vadd.f32 0.0, %v2298
        %v2300 = vpop.f32.mrf.mxu0
        %v2301 = vadd.f32 0.0, %v2300
        %2302 = vmatmul.bf16.gmra.mxu0 %v1240
        %v2303 = vpop.f32.mrf.mxu0
        %v2304 = vadd.f32 0.0, %v2303
        %v2305 = vpop.f32.mrf.mxu0
        %v2306 = vadd.f32 0.0, %v2305
        %2307 = vmatmul.bf16.gmra.mxu0 %v1241
        %v2308 = vpop.f32.mrf.mxu0
        %v2309 = vadd.f32 0.0, %v2308
        %v2310 = vpop.f32.mrf.mxu0
        %v2311 = vadd.f32 0.0, %v2310
        %2312 = vmatmul.bf16.gmra.mxu0 %v1242
        %v2313 = vpop.f32.mrf.mxu0
        %v2314 = vadd.f32 0.0, %v2313
        %v2315 = vpop.f32.mrf.mxu0
        %v2316 = vadd.f32 0.0, %v2315
        %2317 = vmatmul.bf16.gmra.mxu0 %v1243
        %v2318 = vpop.f32.mrf.mxu0
        %v2319 = vadd.f32 0.0, %v2318
        %v2320 = vpop.f32.mrf.mxu0
        %v2321 = vadd.f32 0.0, %v2320
        %2322 = vmatmul.bf16.gmra.mxu0 %v1244
        %v2323 = vpop.f32.mrf.mxu0
        %v2324 = vadd.f32 0.0, %v2323
        %v2325 = vpop.f32.mrf.mxu0
        %v2326 = vadd.f32 0.0, %v2325
        %2327 = vmatmul.bf16.gmra.mxu0 %v1245
        %v2328 = vpop.f32.mrf.mxu0
        %v2329 = vadd.f32 0.0, %v2328
        %v2330 = vpop.f32.mrf.mxu0
        %v2331 = vadd.f32 0.0, %v2330
        %2332 = vmatmul.bf16.gmra.mxu0 %v1246
        %v2333 = vpop.f32.mrf.mxu0
        %v2334 = vadd.f32 0.0, %v2333
        %v2335 = vpop.f32.mrf.mxu0
        %v2336 = vadd.f32 0.0, %v2335
        %2337 = vmatmul.bf16.gmra.mxu0 %v1247
        %v2338 = vpop.f32.mrf.mxu0
        %v2339 = vadd.f32 0.0, %v2338
        %v2340 = vpop.f32.mrf.mxu0
        %v2341 = vadd.f32 0.0, %v2340
        %2342 = vmatmul.bf16.gmra.mxu0 %v1248
        %v2343 = vpop.f32.mrf.mxu0
        %v2344 = vadd.f32 0.0, %v2343
        %v2345 = vpop.f32.mrf.mxu0
        %v2346 = vadd.f32 0.0, %v2345
        %2347 = vmatmul.bf16.gmra.mxu0 %v1249
        %v2348 = vpop.f32.mrf.mxu0
        %v2349 = vadd.f32 0.0, %v2348
        %v2350 = vpop.f32.mrf.mxu0
        %v2351 = vadd.f32 0.0, %v2350
        %2352 = vmatmul.bf16.gmra.mxu0 %v1250
        %v2353 = vpop.f32.mrf.mxu0
        %v2354 = vadd.f32 0.0, %v2353
        %v2355 = vpop.f32.mrf.mxu0
        %v2356 = vadd.f32 0.0, %v2355
        %2357 = vmatmul.bf16.gmra.mxu0 %v1251
        %v2358 = vpop.f32.mrf.mxu0
        %v2359 = vadd.f32 0.0, %v2358
        %v2360 = vpop.f32.mrf.mxu0
        %v2361 = vadd.f32 0.0, %v2360
        %2362 = vmatmul.bf16.gmra.mxu0 %v1252
        %v2363 = vpop.f32.mrf.mxu0
        %v2364 = vadd.f32 0.0, %v2363
        %v2365 = vpop.f32.mrf.mxu0
        %v2366 = vadd.f32 0.0, %v2365
        %2367 = vmatmul.bf16.gmra.mxu0 %v1253
        %v2368 = vpop.f32.mrf.mxu0
        %v2369 = vadd.f32 0.0, %v2368
        %v2370 = vpop.f32.mrf.mxu0
        %v2371 = vadd.f32 0.0, %v2370
        %2372 = vmatmul.bf16.gmra.mxu0 %v1254
        %v2373 = vpop.f32.mrf.mxu0
        %v2374 = vadd.f32 0.0, %v2373
        %v2375 = vpop.f32.mrf.mxu0
        %v2376 = vadd.f32 0.0, %v2375
        %2377 = vmatmul.bf16.gmra.mxu0 %v1255
        %v2378 = vpop.f32.mrf.mxu0
        %v2379 = vadd.f32 0.0, %v2378
        %v2380 = vpop.f32.mrf.mxu0
        %v2381 = vadd.f32 0.0, %v2380
        %2382 = vmatmul.bf16.gmra.mxu0 %v1256
        %v2383 = vpop.f32.mrf.mxu0
        %v2384 = vadd.f32 0.0, %v2383
        %v2385 = vpop.f32.mrf.mxu0
        %v2386 = vadd.f32 0.0, %v2385
        %2387 = vmatmul.bf16.gmra.mxu0 %v1257
        %v2388 = vpop.f32.mrf.mxu0
        %v2389 = vadd.f32 0.0, %v2388
        %v2390 = vpop.f32.mrf.mxu0
        %v2391 = vadd.f32 0.0, %v2390
        %2392 = vmatmul.bf16.gmra.mxu0 %v1258
        %v2393 = vpop.f32.mrf.mxu0
        %v2394 = vadd.f32 0.0, %v2393
        %v2395 = vpop.f32.mrf.mxu0
        %v2396 = vadd.f32 0.0, %v2395
        %2397 = vmatmul.bf16.gmra.mxu0 %v1259
        %v2398 = vpop.f32.mrf.mxu0
        %v2399 = vadd.f32 0.0, %v2398
        %v2400 = vpop.f32.mrf.mxu0
        %v2401 = vadd.f32 0.0, %v2400
        %2402 = vmatmul.bf16.gmra.mxu0 %v1260
        %v2403 = vpop.f32.mrf.mxu0
        %v2404 = vadd.f32 0.0, %v2403
        %v2405 = vpop.f32.mrf.mxu0
        %v2406 = vadd.f32 0.0, %v2405
        %2407 = vmatmul.bf16.gmra.mxu0 %v1261
        %v2408 = vpop.f32.mrf.mxu0
        %v2409 = vadd.f32 0.0, %v2408
        %v2410 = vpop.f32.mrf.mxu0
        %v2411 = vadd.f32 0.0, %v2410
        %2412 = vmatmul.bf16.gmra.mxu0 %v1262
        %v2413 = vpop.f32.mrf.mxu0
        %v2414 = vadd.f32 0.0, %v2413
        %v2415 = vpop.f32.mrf.mxu0
        %v2416 = vadd.f32 0.0, %v2415
        %2417 = vmatmul.bf16.gmra.mxu0 %v1263
        %v2418 = vpop.f32.mrf.mxu0
        %v2419 = vadd.f32 0.0, %v2418
        %v2420 = vpop.f32.mrf.mxu0
        %v2421 = vadd.f32 0.0, %v2420
        %2422 = vmatmul.bf16.gmra.mxu0 %v1264
        %v2423 = vpop.f32.mrf.mxu0
        %v2424 = vadd.f32 0.0, %v2423
        %v2425 = vpop.f32.mrf.mxu0
        %v2426 = vadd.f32 0.0, %v2425
        %2427 = vmatmul.bf16.gmra.mxu0 %v1265
        %v2428 = vpop.f32.mrf.mxu0
        %v2429 = vadd.f32 0.0, %v2428
        %v2430 = vpop.f32.mrf.mxu0
        %v2431 = vadd.f32 0.0, %v2430
        %2432 = vmatmul.bf16.gmra.mxu0 %v1266
        %v2433 = vpop.f32.mrf.mxu0
        %v2434 = vadd.f32 0.0, %v2433
        %v2435 = vpop.f32.mrf.mxu0
        %v2436 = vadd.f32 0.0, %v2435
        %2437 = vmatmul.bf16.gmra.mxu0 %v1267
        %v2438 = vpop.f32.mrf.mxu0
        %v2439 = vadd.f32 0.0, %v2438
        %v2440 = vpop.f32.mrf.mxu0
        %v2441 = vadd.f32 0.0, %v2440
        %2442 = vmatmul.bf16.gmra.mxu0 %v1268
        %v2443 = vpop.f32.mrf.mxu0
        %v2444 = vadd.f32 0.0, %v2443
        %v2445 = vpop.f32.mrf.mxu0
        %v2446 = vadd.f32 0.0, %v2445
        %2447 = vdwg.mxu0
        %2448 = vmatpush.bf16.msra.mxu0 %v1428
        %2449 = vmatpush.bf16.msra.mxu0 %v1424
        %2450 = vmatpush.bf16.msra.mxu0 %v1420
        %2451 = vmatpush.bf16.msra.mxu0 %v1416
        %2452 = vmatpush.bf16.msra.mxu0 %v1412
        %2453 = vmatpush.bf16.msra.mxu0 %v1408
        %2454 = vmatpush.bf16.msra.mxu0 %v1404
        %2455 = vmatpush.bf16.msra.mxu0 %v1400
        %2456 = vmatmul.bf16.gmra.mxu0 %v1205
        %v2457 = vpop.f32.mrf.mxu0
        %v2458 = vadd.f32 0.0, %v2457
        %v2459 = vpop.f32.mrf.mxu0
        %v2460 = vadd.f32 0.0, %v2459
        %2461 = vmatmul.bf16.gmra.mxu0 %v1206
        %v2462 = vpop.f32.mrf.mxu0
        %v2463 = vadd.f32 0.0, %v2462
        %v2464 = vpop.f32.mrf.mxu0
        %v2465 = vadd.f32 0.0, %v2464
        %2466 = vmatmul.bf16.gmra.mxu0 %v1207
        %v2467 = vpop.f32.mrf.mxu0
        %v2468 = vadd.f32 0.0, %v2467
        %v2469 = vpop.f32.mrf.mxu0
        %v2470 = vadd.f32 0.0, %v2469
        %2471 = vmatmul.bf16.gmra.mxu0 %v1208
        %v2472 = vpop.f32.mrf.mxu0
        %v2473 = vadd.f32 0.0, %v2472
        %v2474 = vpop.f32.mrf.mxu0
        %v2475 = vadd.f32 0.0, %v2474
        %2476 = vmatmul.bf16.gmra.mxu0 %v1209
        %v2477 = vpop.f32.mrf.mxu0
        %v2478 = vadd.f32 0.0, %v2477
        %v2479 = vpop.f32.mrf.mxu0
        %v2480 = vadd.f32 0.0, %v2479
        %2481 = vmatmul.bf16.gmra.mxu0 %v1210
        %v2482 = vpop.f32.mrf.mxu0
        %v2483 = vadd.f32 0.0, %v2482
        %v2484 = vpop.f32.mrf.mxu0
        %v2485 = vadd.f32 0.0, %v2484
        %2486 = vmatmul.bf16.gmra.mxu0 %v1211
        %v2487 = vpop.f32.mrf.mxu0
        %v2488 = vadd.f32 0.0, %v2487
        %v2489 = vpop.f32.mrf.mxu0
        %v2490 = vadd.f32 0.0, %v2489
        %2491 = vmatmul.bf16.gmra.mxu0 %v1212
        %v2492 = vpop.f32.mrf.mxu0
        %v2493 = vadd.f32 0.0, %v2492
        %v2494 = vpop.f32.mrf.mxu0
        %v2495 = vadd.f32 0.0, %v2494
        %2496 = vmatmul.bf16.gmra.mxu0 %v1213
        %v2497 = vpop.f32.mrf.mxu0
        %v2498 = vadd.f32 0.0, %v2497
        %v2499 = vpop.f32.mrf.mxu0
        %v2500 = vadd.f32 0.0, %v2499
        %2501 = vmatmul.bf16.gmra.mxu0 %v1214
        %v2502 = vpop.f32.mrf.mxu0
        %v2503 = vadd.f32 0.0, %v2502
        %v2504 = vpop.f32.mrf.mxu0
        %v2505 = vadd.f32 0.0, %v2504
        %2506 = vmatmul.bf16.gmra.mxu0 %v1215
        %v2507 = vpop.f32.mrf.mxu0
        %v2508 = vadd.f32 0.0, %v2507
        %v2509 = vpop.f32.mrf.mxu0
        %v2510 = vadd.f32 0.0, %v2509
        %2511 = vmatmul.bf16.gmra.mxu0 %v1216
        %v2512 = vpop.f32.mrf.mxu0
        %v2513 = vadd.f32 0.0, %v2512
        %v2514 = vpop.f32.mrf.mxu0
        %v2515 = vadd.f32 0.0, %v2514
        %2516 = vmatmul.bf16.gmra.mxu0 %v1217
        %v2517 = vpop.f32.mrf.mxu0
        %v2518 = vadd.f32 0.0, %v2517
        %v2519 = vpop.f32.mrf.mxu0
        %v2520 = vadd.f32 0.0, %v2519
        %2521 = vmatmul.bf16.gmra.mxu0 %v1218
        %v2522 = vpop.f32.mrf.mxu0
        %v2523 = vadd.f32 0.0, %v2522
        %v2524 = vpop.f32.mrf.mxu0
        %v2525 = vadd.f32 0.0, %v2524
        %2526 = vmatmul.bf16.gmra.mxu0 %v1219
        %v2527 = vpop.f32.mrf.mxu0
        %v2528 = vadd.f32 0.0, %v2527
        %v2529 = vpop.f32.mrf.mxu0
        %v2530 = vadd.f32 0.0, %v2529
        %2531 = vmatmul.bf16.gmra.mxu0 %v1220
        %v2532 = vpop.f32.mrf.mxu0
        %v2533 = vadd.f32 0.0, %v2532
        %v2534 = vpop.f32.mrf.mxu0
        %v2535 = vadd.f32 0.0, %v2534
        %2536 = vmatmul.bf16.gmra.mxu0 %v1221
        %v2537 = vpop.f32.mrf.mxu0
        %v2538 = vadd.f32 0.0, %v2537
        %v2539 = vpop.f32.mrf.mxu0
        %v2540 = vadd.f32 0.0, %v2539
        %2541 = vmatmul.bf16.gmra.mxu0 %v1222
        %v2542 = vpop.f32.mrf.mxu0
        %v2543 = vadd.f32 0.0, %v2542
        %v2544 = vpop.f32.mrf.mxu0
        %v2545 = vadd.f32 0.0, %v2544
        %2546 = vmatmul.bf16.gmra.mxu0 %v1223
        %v2547 = vpop.f32.mrf.mxu0
        %v2548 = vadd.f32 0.0, %v2547
        %v2549 = vpop.f32.mrf.mxu0
        %v2550 = vadd.f32 0.0, %v2549
        %2551 = vmatmul.bf16.gmra.mxu0 %v1224
        %v2552 = vpop.f32.mrf.mxu0
        %v2553 = vadd.f32 0.0, %v2552
        %v2554 = vpop.f32.mrf.mxu0
        %v2555 = vadd.f32 0.0, %v2554
        %2556 = vmatmul.bf16.gmra.mxu0 %v1225
        %v2557 = vpop.f32.mrf.mxu0
        %v2558 = vadd.f32 0.0, %v2557
        %v2559 = vpop.f32.mrf.mxu0
        %v2560 = vadd.f32 0.0, %v2559
        %2561 = vmatmul.bf16.gmra.mxu0 %v1226
        %v2562 = vpop.f32.mrf.mxu0
        %v2563 = vadd.f32 0.0, %v2562
        %v2564 = vpop.f32.mrf.mxu0
        %v2565 = vadd.f32 0.0, %v2564
        %2566 = vmatmul.bf16.gmra.mxu0 %v1227
        %v2567 = vpop.f32.mrf.mxu0
        %v2568 = vadd.f32 0.0, %v2567
        %v2569 = vpop.f32.mrf.mxu0
        %v2570 = vadd.f32 0.0, %v2569
        %2571 = vmatmul.bf16.gmra.mxu0 %v1228
        %v2572 = vpop.f32.mrf.mxu0
        %v2573 = vadd.f32 0.0, %v2572
        %v2574 = vpop.f32.mrf.mxu0
        %v2575 = vadd.f32 0.0, %v2574
        %2576 = vmatmul.bf16.gmra.mxu0 %v1229
        %v2577 = vpop.f32.mrf.mxu0
        %v2578 = vadd.f32 0.0, %v2577
        %v2579 = vpop.f32.mrf.mxu0
        %v2580 = vadd.f32 0.0, %v2579
        %2581 = vmatmul.bf16.gmra.mxu0 %v1230
        %v2582 = vpop.f32.mrf.mxu0
        %v2583 = vadd.f32 0.0, %v2582
        %v2584 = vpop.f32.mrf.mxu0
        %v2585 = vadd.f32 0.0, %v2584
        %2586 = vmatmul.bf16.gmra.mxu0 %v1231
        %v2587 = vpop.f32.mrf.mxu0
        %v2588 = vadd.f32 0.0, %v2587
        %v2589 = vpop.f32.mrf.mxu0
        %v2590 = vadd.f32 0.0, %v2589
        %2591 = vmatmul.bf16.gmra.mxu0 %v1232
        %v2592 = vpop.f32.mrf.mxu0
        %v2593 = vadd.f32 0.0, %v2592
        %v2594 = vpop.f32.mrf.mxu0
        %v2595 = vadd.f32 0.0, %v2594
        %2596 = vmatmul.bf16.gmra.mxu0 %v1233
        %v2597 = vpop.f32.mrf.mxu0
        %v2598 = vadd.f32 0.0, %v2597
        %v2599 = vpop.f32.mrf.mxu0
        %v2600 = vadd.f32 0.0, %v2599
        %2601 = vmatmul.bf16.gmra.mxu0 %v1234
        %v2602 = vpop.f32.mrf.mxu0
        %v2603 = vadd.f32 0.0, %v2602
        %v2604 = vpop.f32.mrf.mxu0
        %v2605 = vadd.f32 0.0, %v2604
        %2606 = vmatmul.bf16.gmra.mxu0 %v1235
        %v2607 = vpop.f32.mrf.mxu0
        %v2608 = vadd.f32 0.0, %v2607
        %v2609 = vpop.f32.mrf.mxu0
        %v2610 = vadd.f32 0.0, %v2609
        %2611 = vmatmul.bf16.gmra.mxu0 %v1236
        %v2612 = vpop.f32.mrf.mxu0
        %v2613 = vadd.f32 0.0, %v2612
        %v2614 = vpop.f32.mrf.mxu0
        %v2615 = vadd.f32 0.0, %v2614
        %2616 = vmatmul.bf16.gmra.mxu0 %v1237
        %v2617 = vpop.f32.mrf.mxu0
        %v2618 = vadd.f32 0.0, %v2617
        %v2619 = vpop.f32.mrf.mxu0
        %v2620 = vadd.f32 0.0, %v2619
        %2621 = vmatmul.bf16.gmra.mxu0 %v1238
        %v2622 = vpop.f32.mrf.mxu0
        %v2623 = vadd.f32 0.0, %v2622
        %v2624 = vpop.f32.mrf.mxu0
        %v2625 = vadd.f32 0.0, %v2624
        %2626 = vmatmul.bf16.gmra.mxu0 %v1239
        %v2627 = vpop.f32.mrf.mxu0
        %v2628 = vadd.f32 0.0, %v2627
        %v2629 = vpop.f32.mrf.mxu0
        %v2630 = vadd.f32 0.0, %v2629
        %2631 = vmatmul.bf16.gmra.mxu0 %v1240
        %v2632 = vpop.f32.mrf.mxu0
        %v2633 = vadd.f32 0.0, %v2632
        %v2634 = vpop.f32.mrf.mxu0
        %v2635 = vadd.f32 0.0, %v2634
        %2636 = vmatmul.bf16.gmra.mxu0 %v1241
        %v2637 = vpop.f32.mrf.mxu0
        %v2638 = vadd.f32 0.0, %v2637
        %v2639 = vpop.f32.mrf.mxu0
        %v2640 = vadd.f32 0.0, %v2639
        %2641 = vmatmul.bf16.gmra.mxu0 %v1242
        %v2642 = vpop.f32.mrf.mxu0
        %v2643 = vadd.f32 0.0, %v2642
        %v2644 = vpop.f32.mrf.mxu0
        %v2645 = vadd.f32 0.0, %v2644
        %2646 = vmatmul.bf16.gmra.mxu0 %v1243
        %v2647 = vpop.f32.mrf.mxu0
        %v2648 = vadd.f32 0.0, %v2647
        %v2649 = vpop.f32.mrf.mxu0
        %v2650 = vadd.f32 0.0, %v2649
        %2651 = vmatmul.bf16.gmra.mxu0 %v1244
        %v2652 = vpop.f32.mrf.mxu0
        %v2653 = vadd.f32 0.0, %v2652
        %v2654 = vpop.f32.mrf.mxu0
        %v2655 = vadd.f32 0.0, %v2654
        %2656 = vmatmul.bf16.gmra.mxu0 %v1245
        %v2657 = vpop.f32.mrf.mxu0
        %v2658 = vadd.f32 0.0, %v2657
        %v2659 = vpop.f32.mrf.mxu0
        %v2660 = vadd.f32 0.0, %v2659
        %2661 = vmatmul.bf16.gmra.mxu0 %v1246
        %v2662 = vpop.f32.mrf.mxu0
        %v2663 = vadd.f32 0.0, %v2662
        %v2664 = vpop.f32.mrf.mxu0
        %v2665 = vadd.f32 0.0, %v2664
        %2666 = vmatmul.bf16.gmra.mxu0 %v1247
        %v2667 = vpop.f32.mrf.mxu0
        %v2668 = vadd.f32 0.0, %v2667
        %v2669 = vpop.f32.mrf.mxu0
        %v2670 = vadd.f32 0.0, %v2669
        %2671 = vmatmul.bf16.gmra.mxu0 %v1248
        %v2672 = vpop.f32.mrf.mxu0
        %v2673 = vadd.f32 0.0, %v2672
        %v2674 = vpop.f32.mrf.mxu0
        %v2675 = vadd.f32 0.0, %v2674
        %2676 = vmatmul.bf16.gmra.mxu0 %v1249
        %v2677 = vpop.f32.mrf.mxu0
        %v2678 = vadd.f32 0.0, %v2677
        %v2679 = vpop.f32.mrf.mxu0
        %v2680 = vadd.f32 0.0, %v2679
        %2681 = vmatmul.bf16.gmra.mxu0 %v1250
        %v2682 = vpop.f32.mrf.mxu0
        %v2683 = vadd.f32 0.0, %v2682
        %v2684 = vpop.f32.mrf.mxu0
        %v2685 = vadd.f32 0.0, %v2684
        %2686 = vmatmul.bf16.gmra.mxu0 %v1251
        %v2687 = vpop.f32.mrf.mxu0
        %v2688 = vadd.f32 0.0, %v2687
        %v2689 = vpop.f32.mrf.mxu0
        %v2690 = vadd.f32 0.0, %v2689
        %2691 = vmatmul.bf16.gmra.mxu0 %v1252
        %v2692 = vpop.f32.mrf.mxu0
        %v2693 = vadd.f32 0.0, %v2692
        %v2694 = vpop.f32.mrf.mxu0
        %v2695 = vadd.f32 0.0, %v2694
        %2696 = vmatmul.bf16.gmra.mxu0 %v1253
        %v2697 = vpop.f32.mrf.mxu0
        %v2698 = vadd.f32 0.0, %v2697
        %v2699 = vpop.f32.mrf.mxu0
        %v2700 = vadd.f32 0.0, %v2699
        %2701 = vmatmul.bf16.gmra.mxu0 %v1254
        %v2702 = vpop.f32.mrf.mxu0
        %v2703 = vadd.f32 0.0, %v2702
        %v2704 = vpop.f32.mrf.mxu0
        %v2705 = vadd.f32 0.0, %v2704
        %2706 = vmatmul.bf16.gmra.mxu0 %v1255
        %v2707 = vpop.f32.mrf.mxu0
        %v2708 = vadd.f32 0.0, %v2707
        %v2709 = vpop.f32.mrf.mxu0
        %v2710 = vadd.f32 0.0, %v2709
        %2711 = vmatmul.bf16.gmra.mxu0 %v1256
        %v2712 = vpop.f32.mrf.mxu0
        %v2713 = vadd.f32 0.0, %v2712
        %v2714 = vpop.f32.mrf.mxu0
        %v2715 = vadd.f32 0.0, %v2714
        %2716 = vmatmul.bf16.gmra.mxu0 %v1257
        %v2717 = vpop.f32.mrf.mxu0
        %v2718 = vadd.f32 0.0, %v2717
        %v2719 = vpop.f32.mrf.mxu0
        %v2720 = vadd.f32 0.0, %v2719
        %2721 = vmatmul.bf16.gmra.mxu0 %v1258
        %v2722 = vpop.f32.mrf.mxu0
        %v2723 = vadd.f32 0.0, %v2722
        %v2724 = vpop.f32.mrf.mxu0
        %v2725 = vadd.f32 0.0, %v2724
        %2726 = vmatmul.bf16.gmra.mxu0 %v1259
        %v2727 = vpop.f32.mrf.mxu0
        %v2728 = vadd.f32 0.0, %v2727
        %v2729 = vpop.f32.mrf.mxu0
        %v2730 = vadd.f32 0.0, %v2729
        %2731 = vmatmul.bf16.gmra.mxu0 %v1260
        %v2732 = vpop.f32.mrf.mxu0
        %v2733 = vadd.f32 0.0, %v2732
        %v2734 = vpop.f32.mrf.mxu0
        %v2735 = vadd.f32 0.0, %v2734
        %2736 = vmatmul.bf16.gmra.mxu0 %v1261
        %v2737 = vpop.f32.mrf.mxu0
        %v2738 = vadd.f32 0.0, %v2737
        %v2739 = vpop.f32.mrf.mxu0
        %v2740 = vadd.f32 0.0, %v2739
        %2741 = vmatmul.bf16.gmra.mxu0 %v1262
        %v2742 = vpop.f32.mrf.mxu0
        %v2743 = vadd.f32 0.0, %v2742
        %v2744 = vpop.f32.mrf.mxu0
        %v2745 = vadd.f32 0.0, %v2744
        %2746 = vmatmul.bf16.gmra.mxu0 %v1263
        %v2747 = vpop.f32.mrf.mxu0
        %v2748 = vadd.f32 0.0, %v2747
        %v2749 = vpop.f32.mrf.mxu0
        %v2750 = vadd.f32 0.0, %v2749
        %2751 = vmatmul.bf16.gmra.mxu0 %v1264
        %v2752 = vpop.f32.mrf.mxu0
        %v2753 = vadd.f32 0.0, %v2752
        %v2754 = vpop.f32.mrf.mxu0
        %v2755 = vadd.f32 0.0, %v2754
        %2756 = vmatmul.bf16.gmra.mxu0 %v1265
        %v2757 = vpop.f32.mrf.mxu0
        %v2758 = vadd.f32 0.0, %v2757
        %v2759 = vpop.f32.mrf.mxu0
        %v2760 = vadd.f32 0.0, %v2759
        %2761 = vmatmul.bf16.gmra.mxu0 %v1266
        %v2762 = vpop.f32.mrf.mxu0
        %v2763 = vadd.f32 0.0, %v2762
        %v2764 = vpop.f32.mrf.mxu0
        %v2765 = vadd.f32 0.0, %v2764
        %2766 = vmatmul.bf16.gmra.mxu0 %v1267
        %v2767 = vpop.f32.mrf.mxu0
        %v2768 = vadd.f32 0.0, %v2767
        %v2769 = vpop.f32.mrf.mxu0
        %v2770 = vadd.f32 0.0, %v2769
        %2771 = vmatmul.bf16.gmra.mxu0 %v1268
        %v2772 = vpop.f32.mrf.mxu0
        %v2773 = vadd.f32 0.0, %v2772
        %v2774 = vpop.f32.mrf.mxu0
        %v2775 = vadd.f32 0.0, %v2774
        %2776 = vdwg.mxu0
        %v2777 = vrot.slane %v1800, 1
        %v2778 = vrot.slane %v1802, 1
        %v2779 = vrot.slane %v1805, 1
        %v2780 = vrot.slane %v1807, 1
        %v2781 = vrot.slane %v1810, 1
        %v2782 = vrot.slane %v1812, 1
        %v2783 = vrot.slane %v1815, 1
        %v2784 = vrot.slane %v1817, 1
        %v2785 = vrot.slane %v1820, 1
        %v2786 = vrot.slane %v1822, 1
        %v2787 = vrot.slane %v1825, 1
        %v2788 = vrot.slane %v1827, 1
        %v2789 = vrot.slane %v1830, 1
        %v2790 = vrot.slane %v1832, 1
        %v2791 = vrot.slane %v1835, 1
        %v2792 = vrot.slane %v1837, 1
        %v2793 = vrot.slane %v1840, 1
        %v2794 = vrot.slane %v1842, 1
        %v2795 = vrot.slane %v1845, 1
        %v2796 = vrot.slane %v1847, 1
        %v2797 = vrot.slane %v1850, 1
        %v2798 = vrot.slane %v1852, 1
        %v2799 = vrot.slane %v1855, 1
        %v2800 = vrot.slane %v1857, 1
        %v2801 = vrot.slane %v1860, 1
        %v2802 = vrot.slane %v1862, 1
        %v2803 = vrot.slane %v1865, 1
        %v2804 = vrot.slane %v1867, 1
        %v2805 = vrot.slane %v1870, 1
        %v2806 = vrot.slane %v1872, 1
        %v2807 = vrot.slane %v1875, 1
        %v2808 = vrot.slane %v1877, 1
        %v2809 = vrot.slane %v1880, 1
        %v2810 = vrot.slane %v1882, 1
        %v2811 = vrot.slane %v1885, 1
        %v2812 = vrot.slane %v1887, 1
        %v2813 = vrot.slane %v1890, 1
        %v2814 = vrot.slane %v1892, 1
        %v2815 = vrot.slane %v1895, 1
        %v2816 = vrot.slane %v1897, 1
        %v2817 = vrot.slane %v1900, 1
        %v2818 = vrot.slane %v1902, 1
        %v2819 = vrot.slane %v1905, 1
        %v2820 = vrot.slane %v1907, 1
        %v2821 = vrot.slane %v1910, 1
        %v2822 = vrot.slane %v1912, 1
        %v2823 = vrot.slane %v1915, 1
        %v2824 = vrot.slane %v1917, 1
        %v2825 = vrot.slane %v1920, 1
        %v2826 = vrot.slane %v1922, 1
        %v2827 = vrot.slane %v1925, 1
        %v2828 = vrot.slane %v1927, 1
        %v2829 = vrot.slane %v1930, 1
        %v2830 = vrot.slane %v1932, 1
        %v2831 = vrot.slane %v1935, 1
        %v2832 = vrot.slane %v1937, 1
        %v2833 = vrot.slane %v1940, 1
        %v2834 = vrot.slane %v1942, 1
        %v2835 = vrot.slane %v1945, 1
        %v2836 = vrot.slane %v1947, 1
        %v2837 = vrot.slane %v1950, 1
        %v2838 = vrot.slane %v1952, 1
        %v2839 = vrot.slane %v1955, 1
        %v2840 = vrot.slane %v1957, 1
        %v2841 = vrot.slane %v1960, 1
        %v2842 = vrot.slane %v1962, 1
        %v2843 = vrot.slane %v1965, 1
        %v2844 = vrot.slane %v1967, 1
        %v2845 = vrot.slane %v1970, 1
        %v2846 = vrot.slane %v1972, 1
        %v2847 = vrot.slane %v1975, 1
        %v2848 = vrot.slane %v1977, 1
        %v2849 = vrot.slane %v1980, 1
        %v2850 = vrot.slane %v1982, 1
        %v2851 = vrot.slane %v1985, 1
        %v2852 = vrot.slane %v1987, 1
        %v2853 = vrot.slane %v1990, 1
        %v2854 = vrot.slane %v1992, 1
        %v2855 = vrot.slane %v1995, 1
        %v2856 = vrot.slane %v1997, 1
        %v2857 = vrot.slane %v2000, 1
        %v2858 = vrot.slane %v2002, 1
        %v2859 = vrot.slane %v2005, 1
        %v2860 = vrot.slane %v2007, 1
        %v2861 = vrot.slane %v2010, 1
        %v2862 = vrot.slane %v2012, 1
        %v2863 = vrot.slane %v2015, 1
        %v2864 = vrot.slane %v2017, 1
        %v2865 = vrot.slane %v2020, 1
        %v2866 = vrot.slane %v2022, 1
        %v2867 = vrot.slane %v2025, 1
        %v2868 = vrot.slane %v2027, 1
        %v2869 = vrot.slane %v2030, 1
        %v2870 = vrot.slane %v2032, 1
        %v2871 = vrot.slane %v2035, 1
        %v2872 = vrot.slane %v2037, 1
        %v2873 = vrot.slane %v2040, 1
        %v2874 = vrot.slane %v2042, 1
        %v2875 = vrot.slane %v2045, 1
        %v2876 = vrot.slane %v2047, 1
        %v2877 = vrot.slane %v2050, 1
        %v2878 = vrot.slane %v2052, 1
        %v2879 = vrot.slane %v2055, 1
        %v2880 = vrot.slane %v2057, 1
        %v2881 = vrot.slane %v2060, 1
        %v2882 = vrot.slane %v2062, 1
        %v2883 = vrot.slane %v2065, 1
        %v2884 = vrot.slane %v2067, 1
        %v2885 = vrot.slane %v2070, 1
        %v2886 = vrot.slane %v2072, 1
        %v2887 = vrot.slane %v2075, 1
        %v2888 = vrot.slane %v2077, 1
        %v2889 = vrot.slane %v2080, 1
        %v2890 = vrot.slane %v2082, 1
        %v2891 = vrot.slane %v2085, 1
        %v2892 = vrot.slane %v2087, 1
        %v2893 = vrot.slane %v2090, 1
        %v2894 = vrot.slane %v2092, 1
        %v2895 = vrot.slane %v2095, 1
        %v2896 = vrot.slane %v2097, 1
        %v2897 = vrot.slane %v2100, 1
        %v2898 = vrot.slane %v2102, 1
        %v2899 = vrot.slane %v2105, 1
        %v2900 = vrot.slane %v2107, 1
        %v2901 = vrot.slane %v2110, 1
        %v2902 = vrot.slane %v2112, 1
        %v2903 = vrot.slane %v2115, 1
        %v2904 = vrot.slane %v2117, 1
        %v2905 = vadd.f32 %v1471, %v2777
        %v2906 = vadd.f32 %v1473, %v2778
        %v2907 = vadd.f32 %v1476, %v2779
        %v2908 = vadd.f32 %v1478, %v2780
        %v2909 = vadd.f32 %v1481, %v2781
        %v2910 = vadd.f32 %v1483, %v2782
        %v2911 = vadd.f32 %v1486, %v2783
        %v2912 = vadd.f32 %v1488, %v2784
        %v2913 = vadd.f32 %v1491, %v2785
        %v2914 = vadd.f32 %v1493, %v2786
        %v2915 = vadd.f32 %v1496, %v2787
        %v2916 = vadd.f32 %v1498, %v2788
        %v2917 = vadd.f32 %v1501, %v2789
        %v2918 = vadd.f32 %v1503, %v2790
        %v2919 = vadd.f32 %v1506, %v2791
        %v2920 = vadd.f32 %v1508, %v2792
        %v2921 = vadd.f32 %v1511, %v2793
        %v2922 = vadd.f32 %v1513, %v2794
        %v2923 = vadd.f32 %v1516, %v2795
        %v2924 = vadd.f32 %v1518, %v2796
        %v2925 = vadd.f32 %v1521, %v2797
        %v2926 = vadd.f32 %v1523, %v2798
        %v2927 = vadd.f32 %v1526, %v2799
        %v2928 = vadd.f32 %v1528, %v2800
        %v2929 = vadd.f32 %v1531, %v2801
        %v2930 = vadd.f32 %v1533, %v2802
        %v2931 = vadd.f32 %v1536, %v2803
        %v2932 = vadd.f32 %v1538, %v2804
        %v2933 = vadd.f32 %v1541, %v2805
        %v2934 = vadd.f32 %v1543, %v2806
        %v2935 = vadd.f32 %v1546, %v2807
        %v2936 = vadd.f32 %v1548, %v2808
        %v2937 = vadd.f32 %v1551, %v2809
        %v2938 = vadd.f32 %v1553, %v2810
        %v2939 = vadd.f32 %v1556, %v2811
        %v2940 = vadd.f32 %v1558, %v2812
        %v2941 = vadd.f32 %v1561, %v2813
        %v2942 = vadd.f32 %v1563, %v2814
        %v2943 = vadd.f32 %v1566, %v2815
        %v2944 = vadd.f32 %v1568, %v2816
        %v2945 = vadd.f32 %v1571, %v2817
        %v2946 = vadd.f32 %v1573, %v2818
        %v2947 = vadd.f32 %v1576, %v2819
        %v2948 = vadd.f32 %v1578, %v2820
        %v2949 = vadd.f32 %v1581, %v2821
        %v2950 = vadd.f32 %v1583, %v2822
        %v2951 = vadd.f32 %v1586, %v2823
        %v2952 = vadd.f32 %v1588, %v2824
        %v2953 = vadd.f32 %v1591, %v2825
        %v2954 = vadd.f32 %v1593, %v2826
        %v2955 = vadd.f32 %v1596, %v2827
        %v2956 = vadd.f32 %v1598, %v2828
        %v2957 = vadd.f32 %v1601, %v2829
        %v2958 = vadd.f32 %v1603, %v2830
        %v2959 = vadd.f32 %v1606, %v2831
        %v2960 = vadd.f32 %v1608, %v2832
        %v2961 = vadd.f32 %v1611, %v2833
        %v2962 = vadd.f32 %v1613, %v2834
        %v2963 = vadd.f32 %v1616, %v2835
        %v2964 = vadd.f32 %v1618, %v2836
        %v2965 = vadd.f32 %v1621, %v2837
        %v2966 = vadd.f32 %v1623, %v2838
        %v2967 = vadd.f32 %v1626, %v2839
        %v2968 = vadd.f32 %v1628, %v2840
        %v2969 = vadd.f32 %v1631, %v2841
        %v2970 = vadd.f32 %v1633, %v2842
        %v2971 = vadd.f32 %v1636, %v2843
        %v2972 = vadd.f32 %v1638, %v2844
        %v2973 = vadd.f32 %v1641, %v2845
        %v2974 = vadd.f32 %v1643, %v2846
        %v2975 = vadd.f32 %v1646, %v2847
        %v2976 = vadd.f32 %v1648, %v2848
        %v2977 = vadd.f32 %v1651, %v2849
        %v2978 = vadd.f32 %v1653, %v2850
        %v2979 = vadd.f32 %v1656, %v2851
        %v2980 = vadd.f32 %v1658, %v2852
        %v2981 = vadd.f32 %v1661, %v2853
        %v2982 = vadd.f32 %v1663, %v2854
        %v2983 = vadd.f32 %v1666, %v2855
        %v2984 = vadd.f32 %v1668, %v2856
        %v2985 = vadd.f32 %v1671, %v2857
        %v2986 = vadd.f32 %v1673, %v2858
        %v2987 = vadd.f32 %v1676, %v2859
        %v2988 = vadd.f32 %v1678, %v2860
        %v2989 = vadd.f32 %v1681, %v2861
        %v2990 = vadd.f32 %v1683, %v2862
        %v2991 = vadd.f32 %v1686, %v2863
        %v2992 = vadd.f32 %v1688, %v2864
        %v2993 = vadd.f32 %v1691, %v2865
        %v2994 = vadd.f32 %v1693, %v2866
        %v2995 = vadd.f32 %v1696, %v2867
        %v2996 = vadd.f32 %v1698, %v2868
        %v2997 = vadd.f32 %v1701, %v2869
        %v2998 = vadd.f32 %v1703, %v2870
        %v2999 = vadd.f32 %v1706, %v2871
        %v3000 = vadd.f32 %v1708, %v2872
        %v3001 = vadd.f32 %v1711, %v2873
        %v3002 = vadd.f32 %v1713, %v2874
        %v3003 = vadd.f32 %v1716, %v2875
        %v3004 = vadd.f32 %v1718, %v2876
        %v3005 = vadd.f32 %v1721, %v2877
        %v3006 = vadd.f32 %v1723, %v2878
        %v3007 = vadd.f32 %v1726, %v2879
        %v3008 = vadd.f32 %v1728, %v2880
        %v3009 = vadd.f32 %v1731, %v2881
        %v3010 = vadd.f32 %v1733, %v2882
        %v3011 = vadd.f32 %v1736, %v2883
        %v3012 = vadd.f32 %v1738, %v2884
        %v3013 = vadd.f32 %v1741, %v2885
        %v3014 = vadd.f32 %v1743, %v2886
        %v3015 = vadd.f32 %v1746, %v2887
        %v3016 = vadd.f32 %v1748, %v2888
        %v3017 = vadd.f32 %v1751, %v2889
        %v3018 = vadd.f32 %v1753, %v2890
        %v3019 = vadd.f32 %v1756, %v2891
        %v3020 = vadd.f32 %v1758, %v2892
        %v3021 = vadd.f32 %v1761, %v2893
        %v3022 = vadd.f32 %v1763, %v2894
        %v3023 = vadd.f32 %v1766, %v2895
        %v3024 = vadd.f32 %v1768, %v2896
        %v3025 = vadd.f32 %v1771, %v2897
        %v3026 = vadd.f32 %v1773, %v2898
        %v3027 = vadd.f32 %v1776, %v2899
        %v3028 = vadd.f32 %v1778, %v2900
        %v3029 = vadd.f32 %v1781, %v2901
        %v3030 = vadd.f32 %v1783, %v2902
        %v3031 = vadd.f32 %v1786, %v2903
        %v3032 = vadd.f32 %v1788, %v2904
        %v3033 = vrot.slane %v2129, 2
        %v3034 = vrot.slane %v2131, 2
        %v3035 = vrot.slane %v2134, 2
        %v3036 = vrot.slane %v2136, 2
        %v3037 = vrot.slane %v2139, 2
        %v3038 = vrot.slane %v2141, 2
        %v3039 = vrot.slane %v2144, 2
        %v3040 = vrot.slane %v2146, 2
        %v3041 = vrot.slane %v2149, 2
        %v3042 = vrot.slane %v2151, 2
        %v3043 = vrot.slane %v2154, 2
        %v3044 = vrot.slane %v2156, 2
        %v3045 = vrot.slane %v2159, 2
        %v3046 = vrot.slane %v2161, 2
        %v3047 = vrot.slane %v2164, 2
        %v3048 = vrot.slane %v2166, 2
        %v3049 = vrot.slane %v2169, 2
        %v3050 = vrot.slane %v2171, 2
        %v3051 = vrot.slane %v2174, 2
        %v3052 = vrot.slane %v2176, 2
        %v3053 = vrot.slane %v2179, 2
        %v3054 = vrot.slane %v2181, 2
        %v3055 = vrot.slane %v2184, 2
        %v3056 = vrot.slane %v2186, 2
        %v3057 = vrot.slane %v2189, 2
        %v3058 = vrot.slane %v2191, 2
        %v3059 = vrot.slane %v2194, 2
        %v3060 = vrot.slane %v2196, 2
        %v3061 = vrot.slane %v2199, 2
        %v3062 = vrot.slane %v2201, 2
        %v3063 = vrot.slane %v2204, 2
        %v3064 = vrot.slane %v2206, 2
        %v3065 = vrot.slane %v2209, 2
        %v3066 = vrot.slane %v2211, 2
        %v3067 = vrot.slane %v2214, 2
        %v3068 = vrot.slane %v2216, 2
        %v3069 = vrot.slane %v2219, 2
        %v3070 = vrot.slane %v2221, 2
        %v3071 = vrot.slane %v2224, 2
        %v3072 = vrot.slane %v2226, 2
        %v3073 = vrot.slane %v2229, 2
        %v3074 = vrot.slane %v2231, 2
        %v3075 = vrot.slane %v2234, 2
        %v3076 = vrot.slane %v2236, 2
        %v3077 = vrot.slane %v2239, 2
        %v3078 = vrot.slane %v2241, 2
        %v3079 = vrot.slane %v2244, 2
        %v3080 = vrot.slane %v2246, 2
        %v3081 = vrot.slane %v2249, 2
        %v3082 = vrot.slane %v2251, 2
        %v3083 = vrot.slane %v2254, 2
        %v3084 = vrot.slane %v2256, 2
        %v3085 = vrot.slane %v2259, 2
        %v3086 = vrot.slane %v2261, 2
        %v3087 = vrot.slane %v2264, 2
        %v3088 = vrot.slane %v2266, 2
        %v3089 = vrot.slane %v2269, 2
        %v3090 = vrot.slane %v2271, 2
        %v3091 = vrot.slane %v2274, 2
        %v3092 = vrot.slane %v2276, 2
        %v3093 = vrot.slane %v2279, 2
        %v3094 = vrot.slane %v2281, 2
        %v3095 = vrot.slane %v2284, 2
        %v3096 = vrot.slane %v2286, 2
        %v3097 = vrot.slane %v2289, 2
        %v3098 = vrot.slane %v2291, 2
        %v3099 = vrot.slane %v2294, 2
        %v3100 = vrot.slane %v2296, 2
        %v3101 = vrot.slane %v2299, 2
        %v3102 = vrot.slane %v2301, 2
        %v3103 = vrot.slane %v2304, 2
        %v3104 = vrot.slane %v2306, 2
        %v3105 = vrot.slane %v2309, 2
        %v3106 = vrot.slane %v2311, 2
        %v3107 = vrot.slane %v2314, 2
        %v3108 = vrot.slane %v2316, 2
        %v3109 = vrot.slane %v2319, 2
        %v3110 = vrot.slane %v2321, 2
        %v3111 = vrot.slane %v2324, 2
        %v3112 = vrot.slane %v2326, 2
        %v3113 = vrot.slane %v2329, 2
        %v3114 = vrot.slane %v2331, 2
        %v3115 = vrot.slane %v2334, 2
        %v3116 = vrot.slane %v2336, 2
        %v3117 = vrot.slane %v2339, 2
        %v3118 = vrot.slane %v2341, 2
        %v3119 = vrot.slane %v2344, 2
        %v3120 = vrot.slane %v2346, 2
        %v3121 = vrot.slane %v2349, 2
        %v3122 = vrot.slane %v2351, 2
        %v3123 = vrot.slane %v2354, 2
        %v3124 = vrot.slane %v2356, 2
        %v3125 = vrot.slane %v2359, 2
        %v3126 = vrot.slane %v2361, 2
        %v3127 = vrot.slane %v2364, 2
        %v3128 = vrot.slane %v2366, 2
        %v3129 = vrot.slane %v2369, 2
        %v3130 = vrot.slane %v2371, 2
        %v3131 = vrot.slane %v2374, 2
        %v3132 = vrot.slane %v2376, 2
        %v3133 = vrot.slane %v2379, 2
        %v3134 = vrot.slane %v2381, 2
        %v3135 = vrot.slane %v2384, 2
        %v3136 = vrot.slane %v2386, 2
        %v3137 = vrot.slane %v2389, 2
        %v3138 = vrot.slane %v2391, 2
        %v3139 = vrot.slane %v2394, 2
        %v3140 = vrot.slane %v2396, 2
        %v3141 = vrot.slane %v2399, 2
        %v3142 = vrot.slane %v2401, 2
        %v3143 = vrot.slane %v2404, 2
        %v3144 = vrot.slane %v2406, 2
        %v3145 = vrot.slane %v2409, 2
        %v3146 = vrot.slane %v2411, 2
        %v3147 = vrot.slane %v2414, 2
        %v3148 = vrot.slane %v2416, 2
        %v3149 = vrot.slane %v2419, 2
        %v3150 = vrot.slane %v2421, 2
        %v3151 = vrot.slane %v2424, 2
        %v3152 = vrot.slane %v2426, 2
        %v3153 = vrot.slane %v2429, 2
        %v3154 = vrot.slane %v2431, 2
        %v3155 = vrot.slane %v2434, 2
        %v3156 = vrot.slane %v2436, 2
        %v3157 = vrot.slane %v2439, 2
        %v3158 = vrot.slane %v2441, 2
        %v3159 = vrot.slane %v2444, 2
        %v3160 = vrot.slane %v2446, 2
        %v3161 = vadd.f32 %v2905, %v3033
        %v3162 = vadd.f32 %v2906, %v3034
        %v3163 = vadd.f32 %v2907, %v3035
        %v3164 = vadd.f32 %v2908, %v3036
        %v3165 = vadd.f32 %v2909, %v3037
        %v3166 = vadd.f32 %v2910, %v3038
        %v3167 = vadd.f32 %v2911, %v3039
        %v3168 = vadd.f32 %v2912, %v3040
        %v3169 = vadd.f32 %v2913, %v3041
        %v3170 = vadd.f32 %v2914, %v3042
        %v3171 = vadd.f32 %v2915, %v3043
        %v3172 = vadd.f32 %v2916, %v3044
        %v3173 = vadd.f32 %v2917, %v3045
        %v3174 = vadd.f32 %v2918, %v3046
        %v3175 = vadd.f32 %v2919, %v3047
        %v3176 = vadd.f32 %v2920, %v3048
        %v3177 = vadd.f32 %v2921, %v3049
        %v3178 = vadd.f32 %v2922, %v3050
        %v3179 = vadd.f32 %v2923, %v3051
        %v3180 = vadd.f32 %v2924, %v3052
        %v3181 = vadd.f32 %v2925, %v3053
        %v3182 = vadd.f32 %v2926, %v3054
        %v3183 = vadd.f32 %v2927, %v3055
        %v3184 = vadd.f32 %v2928, %v3056
        %v3185 = vadd.f32 %v2929, %v3057
        %v3186 = vadd.f32 %v2930, %v3058
        %v3187 = vadd.f32 %v2931, %v3059
        %v3188 = vadd.f32 %v2932, %v3060
        %v3189 = vadd.f32 %v2933, %v3061
        %v3190 = vadd.f32 %v2934, %v3062
        %v3191 = vadd.f32 %v2935, %v3063
        %v3192 = vadd.f32 %v2936, %v3064
        %v3193 = vadd.f32 %v2937, %v3065
        %v3194 = vadd.f32 %v2938, %v3066
        %v3195 = vadd.f32 %v2939, %v3067
        %v3196 = vadd.f32 %v2940, %v3068
        %v3197 = vadd.f32 %v2941, %v3069
        %v3198 = vadd.f32 %v2942, %v3070
        %v3199 = vadd.f32 %v2943, %v3071
        %v3200 = vadd.f32 %v2944, %v3072
        %v3201 = vadd.f32 %v2945, %v3073
        %v3202 = vadd.f32 %v2946, %v3074
        %v3203 = vadd.f32 %v2947, %v3075
        %v3204 = vadd.f32 %v2948, %v3076
        %v3205 = vadd.f32 %v2949, %v3077
        %v3206 = vadd.f32 %v2950, %v3078
        %v3207 = vadd.f32 %v2951, %v3079
        %v3208 = vadd.f32 %v2952, %v3080
        %v3209 = vadd.f32 %v2953, %v3081
        %v3210 = vadd.f32 %v2954, %v3082
        %v3211 = vadd.f32 %v2955, %v3083
        %v3212 = vadd.f32 %v2956, %v3084
        %v3213 = vadd.f32 %v2957, %v3085
        %v3214 = vadd.f32 %v2958, %v3086
        %v3215 = vadd.f32 %v2959, %v3087
        %v3216 = vadd.f32 %v2960, %v3088
        %v3217 = vadd.f32 %v2961, %v3089
        %v3218 = vadd.f32 %v2962, %v3090
        %v3219 = vadd.f32 %v2963, %v3091
        %v3220 = vadd.f32 %v2964, %v3092
        %v3221 = vadd.f32 %v2965, %v3093
        %v3222 = vadd.f32 %v2966, %v3094
        %v3223 = vadd.f32 %v2967, %v3095
        %v3224 = vadd.f32 %v2968, %v3096
        %v3225 = vadd.f32 %v2969, %v3097
        %v3226 = vadd.f32 %v2970, %v3098
        %v3227 = vadd.f32 %v2971, %v3099
        %v3228 = vadd.f32 %v2972, %v3100
        %v3229 = vadd.f32 %v2973, %v3101
        %v3230 = vadd.f32 %v2974, %v3102
        %v3231 = vadd.f32 %v2975, %v3103
        %v3232 = vadd.f32 %v2976, %v3104
        %v3233 = vadd.f32 %v2977, %v3105
        %v3234 = vadd.f32 %v2978, %v3106
        %v3235 = vadd.f32 %v2979, %v3107
        %v3236 = vadd.f32 %v2980, %v3108
        %v3237 = vadd.f32 %v2981, %v3109
        %v3238 = vadd.f32 %v2982, %v3110
        %v3239 = vadd.f32 %v2983, %v3111
        %v3240 = vadd.f32 %v2984, %v3112
        %v3241 = vadd.f32 %v2985, %v3113
        %v3242 = vadd.f32 %v2986, %v3114
        %v3243 = vadd.f32 %v2987, %v3115
        %v3244 = vadd.f32 %v2988, %v3116
        %v3245 = vadd.f32 %v2989, %v3117
        %v3246 = vadd.f32 %v2990, %v3118
        %v3247 = vadd.f32 %v2991, %v3119
        %v3248 = vadd.f32 %v2992, %v3120
        %v3249 = vadd.f32 %v2993, %v3121
        %v3250 = vadd.f32 %v2994, %v3122
        %v3251 = vadd.f32 %v2995, %v3123
        %v3252 = vadd.f32 %v2996, %v3124
        %v3253 = vadd.f32 %v2997, %v3125
        %v3254 = vadd.f32 %v2998, %v3126
        %v3255 = vadd.f32 %v2999, %v3127
        %v3256 = vadd.f32 %v3000, %v3128
        %v3257 = vadd.f32 %v3001, %v3129
        %v3258 = vadd.f32 %v3002, %v3130
        %v3259 = vadd.f32 %v3003, %v3131
        %v3260 = vadd.f32 %v3004, %v3132
        %v3261 = vadd.f32 %v3005, %v3133
        %v3262 = vadd.f32 %v3006, %v3134
        %v3263 = vadd.f32 %v3007, %v3135
        %v3264 = vadd.f32 %v3008, %v3136
        %v3265 = vadd.f32 %v3009, %v3137
        %v3266 = vadd.f32 %v3010, %v3138
        %v3267 = vadd.f32 %v3011, %v3139
        %v3268 = vadd.f32 %v3012, %v3140
        %v3269 = vadd.f32 %v3013, %v3141
        %v3270 = vadd.f32 %v3014, %v3142
        %v3271 = vadd.f32 %v3015, %v3143
        %v3272 = vadd.f32 %v3016, %v3144
        %v3273 = vadd.f32 %v3017, %v3145
        %v3274 = vadd.f32 %v3018, %v3146
        %v3275 = vadd.f32 %v3019, %v3147
        %v3276 = vadd.f32 %v3020, %v3148
        %v3277 = vadd.f32 %v3021, %v3149
        %v3278 = vadd.f32 %v3022, %v3150
        %v3279 = vadd.f32 %v3023, %v3151
        %v3280 = vadd.f32 %v3024, %v3152
        %v3281 = vadd.f32 %v3025, %v3153
        %v3282 = vadd.f32 %v3026, %v3154
        %v3283 = vadd.f32 %v3027, %v3155
        %v3284 = vadd.f32 %v3028, %v3156
        %v3285 = vadd.f32 %v3029, %v3157
        %v3286 = vadd.f32 %v3030, %v3158
        %v3287 = vadd.f32 %v3031, %v3159
        %v3288 = vadd.f32 %v3032, %v3160
        %v3289 = vrot.slane %v2458, 3
        %v3290 = vrot.slane %v2460, 3
        %v3291 = vrot.slane %v2463, 3
        %v3292 = vrot.slane %v2465, 3
        %v3293 = vrot.slane %v2468, 3
        %v3294 = vrot.slane %v2470, 3
        %v3295 = vrot.slane %v2473, 3
        %v3296 = vrot.slane %v2475, 3
        %v3297 = vrot.slane %v2478, 3
        %v3298 = vrot.slane %v2480, 3
        %v3299 = vrot.slane %v2483, 3
        %v3300 = vrot.slane %v2485, 3
        %v3301 = vrot.slane %v2488, 3
        %v3302 = vrot.slane %v2490, 3
        %v3303 = vrot.slane %v2493, 3
        %v3304 = vrot.slane %v2495, 3
        %v3305 = vrot.slane %v2498, 3
        %v3306 = vrot.slane %v2500, 3
        %v3307 = vrot.slane %v2503, 3
        %v3308 = vrot.slane %v2505, 3
        %v3309 = vrot.slane %v2508, 3
        %v3310 = vrot.slane %v2510, 3
        %v3311 = vrot.slane %v2513, 3
        %v3312 = vrot.slane %v2515, 3
        %v3313 = vrot.slane %v2518, 3
        %v3314 = vrot.slane %v2520, 3
        %v3315 = vrot.slane %v2523, 3
        %v3316 = vrot.slane %v2525, 3
        %v3317 = vrot.slane %v2528, 3
        %v3318 = vrot.slane %v2530, 3
        %v3319 = vrot.slane %v2533, 3
        %v3320 = vrot.slane %v2535, 3
        %v3321 = vrot.slane %v2538, 3
        %v3322 = vrot.slane %v2540, 3
        %v3323 = vrot.slane %v2543, 3
        %v3324 = vrot.slane %v2545, 3
        %v3325 = vrot.slane %v2548, 3
        %v3326 = vrot.slane %v2550, 3
        %v3327 = vrot.slane %v2553, 3
        %v3328 = vrot.slane %v2555, 3
        %v3329 = vrot.slane %v2558, 3
        %v3330 = vrot.slane %v2560, 3
        %v3331 = vrot.slane %v2563, 3
        %v3332 = vrot.slane %v2565, 3
        %v3333 = vrot.slane %v2568, 3
        %v3334 = vrot.slane %v2570, 3
        %v3335 = vrot.slane %v2573, 3
        %v3336 = vrot.slane %v2575, 3
        %v3337 = vrot.slane %v2578, 3
        %v3338 = vrot.slane %v2580, 3
        %v3339 = vrot.slane %v2583, 3
        %v3340 = vrot.slane %v2585, 3
        %v3341 = vrot.slane %v2588, 3
        %v3342 = vrot.slane %v2590, 3
        %v3343 = vrot.slane %v2593, 3
        %v3344 = vrot.slane %v2595, 3
        %v3345 = vrot.slane %v2598, 3
        %v3346 = vrot.slane %v2600, 3
        %v3347 = vrot.slane %v2603, 3
        %v3348 = vrot.slane %v2605, 3
        %v3349 = vrot.slane %v2608, 3
        %v3350 = vrot.slane %v2610, 3
        %v3351 = vrot.slane %v2613, 3
        %v3352 = vrot.slane %v2615, 3
        %v3353 = vrot.slane %v2618, 3
        %v3354 = vrot.slane %v2620, 3
        %v3355 = vrot.slane %v2623, 3
        %v3356 = vrot.slane %v2625, 3
        %v3357 = vrot.slane %v2628, 3
        %v3358 = vrot.slane %v2630, 3
        %v3359 = vrot.slane %v2633, 3
        %v3360 = vrot.slane %v2635, 3
        %v3361 = vrot.slane %v2638, 3
        %v3362 = vrot.slane %v2640, 3
        %v3363 = vrot.slane %v2643, 3
        %v3364 = vrot.slane %v2645, 3
        %v3365 = vrot.slane %v2648, 3
        %v3366 = vrot.slane %v2650, 3
        %v3367 = vrot.slane %v2653, 3
        %v3368 = vrot.slane %v2655, 3
        %v3369 = vrot.slane %v2658, 3
        %v3370 = vrot.slane %v2660, 3
        %v3371 = vrot.slane %v2663, 3
        %v3372 = vrot.slane %v2665, 3
        %v3373 = vrot.slane %v2668, 3
        %v3374 = vrot.slane %v2670, 3
        %v3375 = vrot.slane %v2673, 3
        %v3376 = vrot.slane %v2675, 3
        %v3377 = vrot.slane %v2678, 3
        %v3378 = vrot.slane %v2680, 3
        %v3379 = vrot.slane %v2683, 3
        %v3380 = vrot.slane %v2685, 3
        %v3381 = vrot.slane %v2688, 3
        %v3382 = vrot.slane %v2690, 3
        %v3383 = vrot.slane %v2693, 3
        %v3384 = vrot.slane %v2695, 3
        %v3385 = vrot.slane %v2698, 3
        %v3386 = vrot.slane %v2700, 3
        %v3387 = vrot.slane %v2703, 3
        %v3388 = vrot.slane %v2705, 3
        %v3389 = vrot.slane %v2708, 3
        %v3390 = vrot.slane %v2710, 3
        %v3391 = vrot.slane %v2713, 3
        %v3392 = vrot.slane %v2715, 3
        %v3393 = vrot.slane %v2718, 3
        %v3394 = vrot.slane %v2720, 3
        %v3395 = vrot.slane %v2723, 3
        %v3396 = vrot.slane %v2725, 3
        %v3397 = vrot.slane %v2728, 3
        %v3398 = vrot.slane %v2730, 3
        %v3399 = vrot.slane %v2733, 3
        %v3400 = vrot.slane %v2735, 3
        %v3401 = vrot.slane %v2738, 3
        %v3402 = vrot.slane %v2740, 3
        %v3403 = vrot.slane %v2743, 3
        %v3404 = vrot.slane %v2745, 3
        %v3405 = vrot.slane %v2748, 3
        %v3406 = vrot.slane %v2750, 3
        %v3407 = vrot.slane %v2753, 3
        %v3408 = vrot.slane %v2755, 3
        %v3409 = vrot.slane %v2758, 3
        %v3410 = vrot.slane %v2760, 3
        %v3411 = vrot.slane %v2763, 3
        %v3412 = vrot.slane %v2765, 3
        %v3413 = vrot.slane %v2768, 3
        %v3414 = vrot.slane %v2770, 3
        %v3415 = vrot.slane %v2773, 3
        %v3416 = vrot.slane %v2775, 3
        %v3417 = vadd.f32 %v3161, %v3289
        %v3418 = vadd.f32 %v3162, %v3290
        %v3419 = vadd.f32 %v3163, %v3291
        %v3420 = vadd.f32 %v3164, %v3292
        %v3421 = vadd.f32 %v3165, %v3293
        %v3422 = vadd.f32 %v3166, %v3294
        %v3423 = vadd.f32 %v3167, %v3295
        %v3424 = vadd.f32 %v3168, %v3296
        %v3425 = vadd.f32 %v3169, %v3297
        %v3426 = vadd.f32 %v3170, %v3298
        %v3427 = vadd.f32 %v3171, %v3299
        %v3428 = vadd.f32 %v3172, %v3300
        %v3429 = vadd.f32 %v3173, %v3301
        %v3430 = vadd.f32 %v3174, %v3302
        %v3431 = vadd.f32 %v3175, %v3303
        %v3432 = vadd.f32 %v3176, %v3304
        %v3433 = vadd.f32 %v3177, %v3305
        %v3434 = vadd.f32 %v3178, %v3306
        %v3435 = vadd.f32 %v3179, %v3307
        %v3436 = vadd.f32 %v3180, %v3308
        %v3437 = vadd.f32 %v3181, %v3309
        %v3438 = vadd.f32 %v3182, %v3310
        %v3439 = vadd.f32 %v3183, %v3311
        %v3440 = vadd.f32 %v3184, %v3312
        %v3441 = vadd.f32 %v3185, %v3313
        %v3442 = vadd.f32 %v3186, %v3314
        %v3443 = vadd.f32 %v3187, %v3315
        %v3444 = vadd.f32 %v3188, %v3316
        %v3445 = vadd.f32 %v3189, %v3317
        %v3446 = vadd.f32 %v3190, %v3318
        %v3447 = vadd.f32 %v3191, %v3319
        %v3448 = vadd.f32 %v3192, %v3320
        %v3449 = vadd.f32 %v3193, %v3321
        %v3450 = vadd.f32 %v3194, %v3322
        %v3451 = vadd.f32 %v3195, %v3323
        %v3452 = vadd.f32 %v3196, %v3324
        %v3453 = vadd.f32 %v3197, %v3325
        %v3454 = vadd.f32 %v3198, %v3326
        %v3455 = vadd.f32 %v3199, %v3327
        %v3456 = vadd.f32 %v3200, %v3328
        %v3457 = vadd.f32 %v3201, %v3329
        %v3458 = vadd.f32 %v3202, %v3330
        %v3459 = vadd.f32 %v3203, %v3331
        %v3460 = vadd.f32 %v3204, %v3332
        %v3461 = vadd.f32 %v3205, %v3333
        %v3462 = vadd.f32 %v3206, %v3334
        %v3463 = vadd.f32 %v3207, %v3335
        %v3464 = vadd.f32 %v3208, %v3336
        %v3465 = vadd.f32 %v3209, %v3337
        %v3466 = vadd.f32 %v3210, %v3338
        %v3467 = vadd.f32 %v3211, %v3339
        %v3468 = vadd.f32 %v3212, %v3340
        %v3469 = vadd.f32 %v3213, %v3341
        %v3470 = vadd.f32 %v3214, %v3342
        %v3471 = vadd.f32 %v3215, %v3343
        %v3472 = vadd.f32 %v3216, %v3344
        %v3473 = vadd.f32 %v3217, %v3345
        %v3474 = vadd.f32 %v3218, %v3346
        %v3475 = vadd.f32 %v3219, %v3347
        %v3476 = vadd.f32 %v3220, %v3348
        %v3477 = vadd.f32 %v3221, %v3349
        %v3478 = vadd.f32 %v3222, %v3350
        %v3479 = vadd.f32 %v3223, %v3351
        %v3480 = vadd.f32 %v3224, %v3352
        %v3481 = vadd.f32 %v3225, %v3353
        %v3482 = vadd.f32 %v3226, %v3354
        %v3483 = vadd.f32 %v3227, %v3355
        %v3484 = vadd.f32 %v3228, %v3356
        %v3485 = vadd.f32 %v3229, %v3357
        %v3486 = vadd.f32 %v3230, %v3358
        %v3487 = vadd.f32 %v3231, %v3359
        %v3488 = vadd.f32 %v3232, %v3360
        %v3489 = vadd.f32 %v3233, %v3361
        %v3490 = vadd.f32 %v3234, %v3362
        %v3491 = vadd.f32 %v3235, %v3363
        %v3492 = vadd.f32 %v3236, %v3364
        %v3493 = vadd.f32 %v3237, %v3365
        %v3494 = vadd.f32 %v3238, %v3366
        %v3495 = vadd.f32 %v3239, %v3367
        %v3496 = vadd.f32 %v3240, %v3368
        %v3497 = vadd.f32 %v3241, %v3369
        %v3498 = vadd.f32 %v3242, %v3370
        %v3499 = vadd.f32 %v3243, %v3371
        %v3500 = vadd.f32 %v3244, %v3372
        %v3501 = vadd.f32 %v3245, %v3373
        %v3502 = vadd.f32 %v3246, %v3374
        %v3503 = vadd.f32 %v3247, %v3375
        %v3504 = vadd.f32 %v3248, %v3376
        %v3505 = vadd.f32 %v3249, %v3377
        %v3506 = vadd.f32 %v3250, %v3378
        %v3507 = vadd.f32 %v3251, %v3379
        %v3508 = vadd.f32 %v3252, %v3380
        %v3509 = vadd.f32 %v3253, %v3381
        %v3510 = vadd.f32 %v3254, %v3382
        %v3511 = vadd.f32 %v3255, %v3383
        %v3512 = vadd.f32 %v3256, %v3384
        %v3513 = vadd.f32 %v3257, %v3385
        %v3514 = vadd.f32 %v3258, %v3386
        %v3515 = vadd.f32 %v3259, %v3387
        %v3516 = vadd.f32 %v3260, %v3388
        %v3517 = vadd.f32 %v3261, %v3389
        %v3518 = vadd.f32 %v3262, %v3390
        %v3519 = vadd.f32 %v3263, %v3391
        %v3520 = vadd.f32 %v3264, %v3392
        %v3521 = vadd.f32 %v3265, %v3393
        %v3522 = vadd.f32 %v3266, %v3394
        %v3523 = vadd.f32 %v3267, %v3395
        %v3524 = vadd.f32 %v3268, %v3396
        %v3525 = vadd.f32 %v3269, %v3397
        %v3526 = vadd.f32 %v3270, %v3398
        %v3527 = vadd.f32 %v3271, %v3399
        %v3528 = vadd.f32 %v3272, %v3400
        %v3529 = vadd.f32 %v3273, %v3401
        %v3530 = vadd.f32 %v3274, %v3402
        %v3531 = vadd.f32 %v3275, %v3403
        %v3532 = vadd.f32 %v3276, %v3404
        %v3533 = vadd.f32 %v3277, %v3405
        %v3534 = vadd.f32 %v3278, %v3406
        %v3535 = vadd.f32 %v3279, %v3407
        %v3536 = vadd.f32 %v3280, %v3408
        %v3537 = vadd.f32 %v3281, %v3409
        %v3538 = vadd.f32 %v3282, %v3410
        %v3539 = vadd.f32 %v3283, %v3411
        %v3540 = vadd.f32 %v3284, %v3412
        %v3541 = vadd.f32 %v3285, %v3413
        %v3542 = vadd.f32 %v3286, %v3414
        %v3543 = vadd.f32 %v3287, %v3415
        %v3544 = vadd.f32 %v3288, %v3416
        %v3545 = vld [vmem:[%s2] sm:$0xff]
        %v3546 = vadd.f32 %v3417, %v3545
        %v3547 = vadd.f32 %v3418, %v3545
        %v3548 = vadd.f32 %v3419, %v3545
        %v3549 = vadd.f32 %v3420, %v3545
        %v3550 = vadd.f32 %v3421, %v3545
        %v3551 = vadd.f32 %v3422, %v3545
        %v3552 = vadd.f32 %v3423, %v3545
        %v3553 = vadd.f32 %v3424, %v3545
        %v3554 = vadd.f32 %v3425, %v3545
        %v3555 = vadd.f32 %v3426, %v3545
        %v3556 = vadd.f32 %v3427, %v3545
        %v3557 = vadd.f32 %v3428, %v3545
        %v3558 = vadd.f32 %v3429, %v3545
        %v3559 = vadd.f32 %v3430, %v3545
        %v3560 = vadd.f32 %v3431, %v3545
        %v3561 = vadd.f32 %v3432, %v3545
        %v3562 = vadd.f32 %v3433, %v3545
        %v3563 = vadd.f32 %v3434, %v3545
        %v3564 = vadd.f32 %v3435, %v3545
        %v3565 = vadd.f32 %v3436, %v3545
        %v3566 = vadd.f32 %v3437, %v3545
        %v3567 = vadd.f32 %v3438, %v3545
        %v3568 = vadd.f32 %v3439, %v3545
        %v3569 = vadd.f32 %v3440, %v3545
        %v3570 = vadd.f32 %v3441, %v3545
        %v3571 = vadd.f32 %v3442, %v3545
        %v3572 = vadd.f32 %v3443, %v3545
        %v3573 = vadd.f32 %v3444, %v3545
        %v3574 = vadd.f32 %v3445, %v3545
        %v3575 = vadd.f32 %v3446, %v3545
        %v3576 = vadd.f32 %v3447, %v3545
        %v3577 = vadd.f32 %v3448, %v3545
        %v3578 = vadd.f32 %v3449, %v3545
        %v3579 = vadd.f32 %v3450, %v3545
        %v3580 = vadd.f32 %v3451, %v3545
        %v3581 = vadd.f32 %v3452, %v3545
        %v3582 = vadd.f32 %v3453, %v3545
        %v3583 = vadd.f32 %v3454, %v3545
        %v3584 = vadd.f32 %v3455, %v3545
        %v3585 = vadd.f32 %v3456, %v3545
        %v3586 = vadd.f32 %v3457, %v3545
        %v3587 = vadd.f32 %v3458, %v3545
        %v3588 = vadd.f32 %v3459, %v3545
        %v3589 = vadd.f32 %v3460, %v3545
        %v3590 = vadd.f32 %v3461, %v3545
        %v3591 = vadd.f32 %v3462, %v3545
        %v3592 = vadd.f32 %v3463, %v3545
        %v3593 = vadd.f32 %v3464, %v3545
        %v3594 = vadd.f32 %v3465, %v3545
        %v3595 = vadd.f32 %v3466, %v3545
        %v3596 = vadd.f32 %v3467, %v3545
        %v3597 = vadd.f32 %v3468, %v3545
        %v3598 = vadd.f32 %v3469, %v3545
        %v3599 = vadd.f32 %v3470, %v3545
        %v3600 = vadd.f32 %v3471, %v3545
        %v3601 = vadd.f32 %v3472, %v3545
        %v3602 = vadd.f32 %v3473, %v3545
        %v3603 = vadd.f32 %v3474, %v3545
        %v3604 = vadd.f32 %v3475, %v3545
        %v3605 = vadd.f32 %v3476, %v3545
        %v3606 = vadd.f32 %v3477, %v3545
        %v3607 = vadd.f32 %v3478, %v3545
        %v3608 = vadd.f32 %v3479, %v3545
        %v3609 = vadd.f32 %v3480, %v3545
        %v3610 = vadd.f32 %v3481, %v3545
        %v3611 = vadd.f32 %v3482, %v3545
        %v3612 = vadd.f32 %v3483, %v3545
        %v3613 = vadd.f32 %v3484, %v3545
        %v3614 = vadd.f32 %v3485, %v3545
        %v3615 = vadd.f32 %v3486, %v3545
        %v3616 = vadd.f32 %v3487, %v3545
        %v3617 = vadd.f32 %v3488, %v3545
        %v3618 = vadd.f32 %v3489, %v3545
        %v3619 = vadd.f32 %v3490, %v3545
        %v3620 = vadd.f32 %v3491, %v3545
        %v3621 = vadd.f32 %v3492, %v3545
        %v3622 = vadd.f32 %v3493, %v3545
        %v3623 = vadd.f32 %v3494, %v3545
        %v3624 = vadd.f32 %v3495, %v3545
        %v3625 = vadd.f32 %v3496, %v3545
        %v3626 = vadd.f32 %v3497, %v3545
        %v3627 = vadd.f32 %v3498, %v3545
        %v3628 = vadd.f32 %v3499, %v3545
        %v3629 = vadd.f32 %v3500, %v3545
        %v3630 = vadd.f32 %v3501, %v3545
        %v3631 = vadd.f32 %v3502, %v3545
        %v3632 = vadd.f32 %v3503, %v3545
        %v3633 = vadd.f32 %v3504, %v3545
        %v3634 = vadd.f32 %v3505, %v3545
        %v3635 = vadd.f32 %v3506, %v3545
        %v3636 = vadd.f32 %v3507, %v3545
        %v3637 = vadd.f32 %v3508, %v3545
        %v3638 = vadd.f32 %v3509, %v3545
        %v3639 = vadd.f32 %v3510, %v3545
        %v3640 = vadd.f32 %v3511, %v3545
        %v3641 = vadd.f32 %v3512, %v3545
        %v3642 = vadd.f32 %v3513, %v3545
        %v3643 = vadd.f32 %v3514, %v3545
        %v3644 = vadd.f32 %v3515, %v3545
        %v3645 = vadd.f32 %v3516, %v3545
        %v3646 = vadd.f32 %v3517, %v3545
        %v3647 = vadd.f32 %v3518, %v3545
        %v3648 = vadd.f32 %v3519, %v3545
        %v3649 = vadd.f32 %v3520, %v3545
        %v3650 = vadd.f32 %v3521, %v3545
        %v3651 = vadd.f32 %v3522, %v3545
        %v3652 = vadd.f32 %v3523, %v3545
        %v3653 = vadd.f32 %v3524, %v3545
        %v3654 = vadd.f32 %v3525, %v3545
        %v3655 = vadd.f32 %v3526, %v3545
        %v3656 = vadd.f32 %v3527, %v3545
        %v3657 = vadd.f32 %v3528, %v3545
        %v3658 = vadd.f32 %v3529, %v3545
        %v3659 = vadd.f32 %v3530, %v3545
        %v3660 = vadd.f32 %v3531, %v3545
        %v3661 = vadd.f32 %v3532, %v3545
        %v3662 = vadd.f32 %v3533, %v3545
        %v3663 = vadd.f32 %v3534, %v3545
        %v3664 = vadd.f32 %v3535, %v3545
        %v3665 = vadd.f32 %v3536, %v3545
        %v3666 = vadd.f32 %v3537, %v3545
        %v3667 = vadd.f32 %v3538, %v3545
        %v3668 = vadd.f32 %v3539, %v3545
        %v3669 = vadd.f32 %v3540, %v3545
        %v3670 = vadd.f32 %v3541, %v3545
        %v3671 = vadd.f32 %v3542, %v3545
        %v3672 = vadd.f32 %v3543, %v3545
        %v3673 = vadd.f32 %v3544, %v3545
        %v3674 = vrot.slane %v3546, 4
        %v3675 = vmax.f32 %v3546, %v3674
        %v3676 = vrot.slane %v3675, 2
        %v3677 = vmax.f32 %v3675, %v3676
        %v3678 = vrot.slane %v3677, 1
        %v3679 = vmax.f32 %v3677, %v3678
        %v3680 = vrot.slane %v3547, 4
        %v3681 = vmax.f32 %v3547, %v3680
        %v3682 = vrot.slane %v3681, 2
        %v3683 = vmax.f32 %v3681, %v3682
        %v3684 = vrot.slane %v3683, 1
        %v3685 = vmax.f32 %v3683, %v3684
        %v3686 = vrot.slane %v3548, 4
        %v3687 = vmax.f32 %v3548, %v3686
        %v3688 = vrot.slane %v3687, 2
        %v3689 = vmax.f32 %v3687, %v3688
        %v3690 = vrot.slane %v3689, 1
        %v3691 = vmax.f32 %v3689, %v3690
        %v3692 = vrot.slane %v3549, 4
        %v3693 = vmax.f32 %v3549, %v3692
        %v3694 = vrot.slane %v3693, 2
        %v3695 = vmax.f32 %v3693, %v3694
        %v3696 = vrot.slane %v3695, 1
        %v3697 = vmax.f32 %v3695, %v3696
        %v3698 = vrot.slane %v3550, 4
        %v3699 = vmax.f32 %v3550, %v3698
        %v3700 = vrot.slane %v3699, 2
        %v3701 = vmax.f32 %v3699, %v3700
        %v3702 = vrot.slane %v3701, 1
        %v3703 = vmax.f32 %v3701, %v3702
        %v3704 = vrot.slane %v3551, 4
        %v3705 = vmax.f32 %v3551, %v3704
        %v3706 = vrot.slane %v3705, 2
        %v3707 = vmax.f32 %v3705, %v3706
        %v3708 = vrot.slane %v3707, 1
        %v3709 = vmax.f32 %v3707, %v3708
        %v3710 = vrot.slane %v3552, 4
        %v3711 = vmax.f32 %v3552, %v3710
        %v3712 = vrot.slane %v3711, 2
        %v3713 = vmax.f32 %v3711, %v3712
        %v3714 = vrot.slane %v3713, 1
        %v3715 = vmax.f32 %v3713, %v3714
        %v3716 = vrot.slane %v3553, 4
        %v3717 = vmax.f32 %v3553, %v3716
        %v3718 = vrot.slane %v3717, 2
        %v3719 = vmax.f32 %v3717, %v3718
        %v3720 = vrot.slane %v3719, 1
        %v3721 = vmax.f32 %v3719, %v3720
        %v3722 = vrot.slane %v3554, 4
        %v3723 = vmax.f32 %v3554, %v3722
        %v3724 = vrot.slane %v3723, 2
        %v3725 = vmax.f32 %v3723, %v3724
        %v3726 = vrot.slane %v3725, 1
        %v3727 = vmax.f32 %v3725, %v3726
        %v3728 = vrot.slane %v3555, 4
        %v3729 = vmax.f32 %v3555, %v3728
        %v3730 = vrot.slane %v3729, 2
        %v3731 = vmax.f32 %v3729, %v3730
        %v3732 = vrot.slane %v3731, 1
        %v3733 = vmax.f32 %v3731, %v3732
        %v3734 = vrot.slane %v3556, 4
        %v3735 = vmax.f32 %v3556, %v3734
        %v3736 = vrot.slane %v3735, 2
        %v3737 = vmax.f32 %v3735, %v3736
        %v3738 = vrot.slane %v3737, 1
        %v3739 = vmax.f32 %v3737, %v3738
        %v3740 = vrot.slane %v3557, 4
        %v3741 = vmax.f32 %v3557, %v3740
        %v3742 = vrot.slane %v3741, 2
        %v3743 = vmax.f32 %v3741, %v3742
        %v3744 = vrot.slane %v3743, 1
        %v3745 = vmax.f32 %v3743, %v3744
        %v3746 = vrot.slane %v3558, 4
        %v3747 = vmax.f32 %v3558, %v3746
        %v3748 = vrot.slane %v3747, 2
        %v3749 = vmax.f32 %v3747, %v3748
        %v3750 = vrot.slane %v3749, 1
        %v3751 = vmax.f32 %v3749, %v3750
        %v3752 = vrot.slane %v3559, 4
        %v3753 = vmax.f32 %v3559, %v3752
        %v3754 = vrot.slane %v3753, 2
        %v3755 = vmax.f32 %v3753, %v3754
        %v3756 = vrot.slane %v3755, 1
        %v3757 = vmax.f32 %v3755, %v3756
        %v3758 = vrot.slane %v3560, 4
        %v3759 = vmax.f32 %v3560, %v3758
        %v3760 = vrot.slane %v3759, 2
        %v3761 = vmax.f32 %v3759, %v3760
        %v3762 = vrot.slane %v3761, 1
        %v3763 = vmax.f32 %v3761, %v3762
        %v3764 = vrot.slane %v3561, 4
        %v3765 = vmax.f32 %v3561, %v3764
        %v3766 = vrot.slane %v3765, 2
        %v3767 = vmax.f32 %v3765, %v3766
        %v3768 = vrot.slane %v3767, 1
        %v3769 = vmax.f32 %v3767, %v3768
        %v3770 = vrot.slane %v3562, 4
        %v3771 = vmax.f32 %v3562, %v3770
        %v3772 = vrot.slane %v3771, 2
        %v3773 = vmax.f32 %v3771, %v3772
        %v3774 = vrot.slane %v3773, 1
        %v3775 = vmax.f32 %v3773, %v3774
        %v3776 = vrot.slane %v3563, 4
        %v3777 = vmax.f32 %v3563, %v3776
        %v3778 = vrot.slane %v3777, 2
        %v3779 = vmax.f32 %v3777, %v3778
        %v3780 = vrot.slane %v3779, 1
        %v3781 = vmax.f32 %v3779, %v3780
        %v3782 = vrot.slane %v3564, 4
        %v3783 = vmax.f32 %v3564, %v3782
        %v3784 = vrot.slane %v3783, 2
        %v3785 = vmax.f32 %v3783, %v3784
        %v3786 = vrot.slane %v3785, 1
        %v3787 = vmax.f32 %v3785, %v3786
        %v3788 = vrot.slane %v3565, 4
        %v3789 = vmax.f32 %v3565, %v3788
        %v3790 = vrot.slane %v3789, 2
        %v3791 = vmax.f32 %v3789, %v3790
        %v3792 = vrot.slane %v3791, 1
        %v3793 = vmax.f32 %v3791, %v3792
        %v3794 = vrot.slane %v3566, 4
        %v3795 = vmax.f32 %v3566, %v3794
        %v3796 = vrot.slane %v3795, 2
        %v3797 = vmax.f32 %v3795, %v3796
        %v3798 = vrot.slane %v3797, 1
        %v3799 = vmax.f32 %v3797, %v3798
        %v3800 = vrot.slane %v3567, 4
        %v3801 = vmax.f32 %v3567, %v3800
        %v3802 = vrot.slane %v3801, 2
        %v3803 = vmax.f32 %v3801, %v3802
        %v3804 = vrot.slane %v3803, 1
        %v3805 = vmax.f32 %v3803, %v3804
        %v3806 = vrot.slane %v3568, 4
        %v3807 = vmax.f32 %v3568, %v3806
        %v3808 = vrot.slane %v3807, 2
        %v3809 = vmax.f32 %v3807, %v3808
        %v3810 = vrot.slane %v3809, 1
        %v3811 = vmax.f32 %v3809, %v3810
        %v3812 = vrot.slane %v3569, 4
        %v3813 = vmax.f32 %v3569, %v3812
        %v3814 = vrot.slane %v3813, 2
        %v3815 = vmax.f32 %v3813, %v3814
        %v3816 = vrot.slane %v3815, 1
        %v3817 = vmax.f32 %v3815, %v3816
        %v3818 = vrot.slane %v3570, 4
        %v3819 = vmax.f32 %v3570, %v3818
        %v3820 = vrot.slane %v3819, 2
        %v3821 = vmax.f32 %v3819, %v3820
        %v3822 = vrot.slane %v3821, 1
        %v3823 = vmax.f32 %v3821, %v3822
        %v3824 = vrot.slane %v3571, 4
        %v3825 = vmax.f32 %v3571, %v3824
        %v3826 = vrot.slane %v3825, 2
        %v3827 = vmax.f32 %v3825, %v3826
        %v3828 = vrot.slane %v3827, 1
        %v3829 = vmax.f32 %v3827, %v3828
        %v3830 = vrot.slane %v3572, 4
        %v3831 = vmax.f32 %v3572, %v3830
        %v3832 = vrot.slane %v3831, 2
        %v3833 = vmax.f32 %v3831, %v3832
        %v3834 = vrot.slane %v3833, 1
        %v3835 = vmax.f32 %v3833, %v3834
        %v3836 = vrot.slane %v3573, 4
        %v3837 = vmax.f32 %v3573, %v3836
        %v3838 = vrot.slane %v3837, 2
        %v3839 = vmax.f32 %v3837, %v3838
        %v3840 = vrot.slane %v3839, 1
        %v3841 = vmax.f32 %v3839, %v3840
        %v3842 = vrot.slane %v3574, 4
        %v3843 = vmax.f32 %v3574, %v3842
        %v3844 = vrot.slane %v3843, 2
        %v3845 = vmax.f32 %v3843, %v3844
        %v3846 = vrot.slane %v3845, 1
        %v3847 = vmax.f32 %v3845, %v3846
        %v3848 = vrot.slane %v3575, 4
        %v3849 = vmax.f32 %v3575, %v3848
        %v3850 = vrot.slane %v3849, 2
        %v3851 = vmax.f32 %v3849, %v3850
        %v3852 = vrot.slane %v3851, 1
        %v3853 = vmax.f32 %v3851, %v3852
        %v3854 = vrot.slane %v3576, 4
        %v3855 = vmax.f32 %v3576, %v3854
        %v3856 = vrot.slane %v3855, 2
        %v3857 = vmax.f32 %v3855, %v3856
        %v3858 = vrot.slane %v3857, 1
        %v3859 = vmax.f32 %v3857, %v3858
        %v3860 = vrot.slane %v3577, 4
        %v3861 = vmax.f32 %v3577, %v3860
        %v3862 = vrot.slane %v3861, 2
        %v3863 = vmax.f32 %v3861, %v3862
        %v3864 = vrot.slane %v3863, 1
        %v3865 = vmax.f32 %v3863, %v3864
        %v3866 = vrot.slane %v3578, 4
        %v3867 = vmax.f32 %v3578, %v3866
        %v3868 = vrot.slane %v3867, 2
        %v3869 = vmax.f32 %v3867, %v3868
        %v3870 = vrot.slane %v3869, 1
        %v3871 = vmax.f32 %v3869, %v3870
        %v3872 = vrot.slane %v3579, 4
        %v3873 = vmax.f32 %v3579, %v3872
        %v3874 = vrot.slane %v3873, 2
        %v3875 = vmax.f32 %v3873, %v3874
        %v3876 = vrot.slane %v3875, 1
        %v3877 = vmax.f32 %v3875, %v3876
        %v3878 = vrot.slane %v3580, 4
        %v3879 = vmax.f32 %v3580, %v3878
        %v3880 = vrot.slane %v3879, 2
        %v3881 = vmax.f32 %v3879, %v3880
        %v3882 = vrot.slane %v3881, 1
        %v3883 = vmax.f32 %v3881, %v3882
        %v3884 = vrot.slane %v3581, 4
        %v3885 = vmax.f32 %v3581, %v3884
        %v3886 = vrot.slane %v3885, 2
        %v3887 = vmax.f32 %v3885, %v3886
        %v3888 = vrot.slane %v3887, 1
        %v3889 = vmax.f32 %v3887, %v3888
        %v3890 = vrot.slane %v3582, 4
        %v3891 = vmax.f32 %v3582, %v3890
        %v3892 = vrot.slane %v3891, 2
        %v3893 = vmax.f32 %v3891, %v3892
        %v3894 = vrot.slane %v3893, 1
        %v3895 = vmax.f32 %v3893, %v3894
        %v3896 = vrot.slane %v3583, 4
        %v3897 = vmax.f32 %v3583, %v3896
        %v3898 = vrot.slane %v3897, 2
        %v3899 = vmax.f32 %v3897, %v3898
        %v3900 = vrot.slane %v3899, 1
        %v3901 = vmax.f32 %v3899, %v3900
        %v3902 = vrot.slane %v3584, 4
        %v3903 = vmax.f32 %v3584, %v3902
        %v3904 = vrot.slane %v3903, 2
        %v3905 = vmax.f32 %v3903, %v3904
        %v3906 = vrot.slane %v3905, 1
        %v3907 = vmax.f32 %v3905, %v3906
        %v3908 = vrot.slane %v3585, 4
        %v3909 = vmax.f32 %v3585, %v3908
        %v3910 = vrot.slane %v3909, 2
        %v3911 = vmax.f32 %v3909, %v3910
        %v3912 = vrot.slane %v3911, 1
        %v3913 = vmax.f32 %v3911, %v3912
        %v3914 = vrot.slane %v3586, 4
        %v3915 = vmax.f32 %v3586, %v3914
        %v3916 = vrot.slane %v3915, 2
        %v3917 = vmax.f32 %v3915, %v3916
        %v3918 = vrot.slane %v3917, 1
        %v3919 = vmax.f32 %v3917, %v3918
        %v3920 = vrot.slane %v3587, 4
        %v3921 = vmax.f32 %v3587, %v3920
        %v3922 = vrot.slane %v3921, 2
        %v3923 = vmax.f32 %v3921, %v3922
        %v3924 = vrot.slane %v3923, 1
        %v3925 = vmax.f32 %v3923, %v3924
        %v3926 = vrot.slane %v3588, 4
        %v3927 = vmax.f32 %v3588, %v3926
        %v3928 = vrot.slane %v3927, 2
        %v3929 = vmax.f32 %v3927, %v3928
        %v3930 = vrot.slane %v3929, 1
        %v3931 = vmax.f32 %v3929, %v3930
        %v3932 = vrot.slane %v3589, 4
        %v3933 = vmax.f32 %v3589, %v3932
        %v3934 = vrot.slane %v3933, 2
        %v3935 = vmax.f32 %v3933, %v3934
        %v3936 = vrot.slane %v3935, 1
        %v3937 = vmax.f32 %v3935, %v3936
        %v3938 = vrot.slane %v3590, 4
        %v3939 = vmax.f32 %v3590, %v3938
        %v3940 = vrot.slane %v3939, 2
        %v3941 = vmax.f32 %v3939, %v3940
        %v3942 = vrot.slane %v3941, 1
        %v3943 = vmax.f32 %v3941, %v3942
        %v3944 = vrot.slane %v3591, 4
        %v3945 = vmax.f32 %v3591, %v3944
        %v3946 = vrot.slane %v3945, 2
        %v3947 = vmax.f32 %v3945, %v3946
        %v3948 = vrot.slane %v3947, 1
        %v3949 = vmax.f32 %v3947, %v3948
        %v3950 = vrot.slane %v3592, 4
        %v3951 = vmax.f32 %v3592, %v3950
        %v3952 = vrot.slane %v3951, 2
        %v3953 = vmax.f32 %v3951, %v3952
        %v3954 = vrot.slane %v3953, 1
        %v3955 = vmax.f32 %v3953, %v3954
        %v3956 = vrot.slane %v3593, 4
        %v3957 = vmax.f32 %v3593, %v3956
        %v3958 = vrot.slane %v3957, 2
        %v3959 = vmax.f32 %v3957, %v3958
        %v3960 = vrot.slane %v3959, 1
        %v3961 = vmax.f32 %v3959, %v3960
        %v3962 = vrot.slane %v3594, 4
        %v3963 = vmax.f32 %v3594, %v3962
        %v3964 = vrot.slane %v3963, 2
        %v3965 = vmax.f32 %v3963, %v3964
        %v3966 = vrot.slane %v3965, 1
        %v3967 = vmax.f32 %v3965, %v3966
        %v3968 = vrot.slane %v3595, 4
        %v3969 = vmax.f32 %v3595, %v3968
        %v3970 = vrot.slane %v3969, 2
        %v3971 = vmax.f32 %v3969, %v3970
        %v3972 = vrot.slane %v3971, 1
        %v3973 = vmax.f32 %v3971, %v3972
        %v3974 = vrot.slane %v3596, 4
        %v3975 = vmax.f32 %v3596, %v3974
        %v3976 = vrot.slane %v3975, 2
        %v3977 = vmax.f32 %v3975, %v3976
        %v3978 = vrot.slane %v3977, 1
        %v3979 = vmax.f32 %v3977, %v3978
        %v3980 = vrot.slane %v3597, 4
        %v3981 = vmax.f32 %v3597, %v3980
        %v3982 = vrot.slane %v3981, 2
        %v3983 = vmax.f32 %v3981, %v3982
        %v3984 = vrot.slane %v3983, 1
        %v3985 = vmax.f32 %v3983, %v3984
        %v3986 = vrot.slane %v3598, 4
        %v3987 = vmax.f32 %v3598, %v3986
        %v3988 = vrot.slane %v3987, 2
        %v3989 = vmax.f32 %v3987, %v3988
        %v3990 = vrot.slane %v3989, 1
        %v3991 = vmax.f32 %v3989, %v3990
        %v3992 = vrot.slane %v3599, 4
        %v3993 = vmax.f32 %v3599, %v3992
        %v3994 = vrot.slane %v3993, 2
        %v3995 = vmax.f32 %v3993, %v3994
        %v3996 = vrot.slane %v3995, 1
        %v3997 = vmax.f32 %v3995, %v3996
        %v3998 = vrot.slane %v3600, 4
        %v3999 = vmax.f32 %v3600, %v3998
        %v4000 = vrot.slane %v3999, 2
        %v4001 = vmax.f32 %v3999, %v4000
        %v4002 = vrot.slane %v4001, 1
        %v4003 = vmax.f32 %v4001, %v4002
        %v4004 = vrot.slane %v3601, 4
        %v4005 = vmax.f32 %v3601, %v4004
        %v4006 = vrot.slane %v4005, 2
        %v4007 = vmax.f32 %v4005, %v4006
        %v4008 = vrot.slane %v4007, 1
        %v4009 = vmax.f32 %v4007, %v4008
        %v4010 = vrot.slane %v3602, 4
        %v4011 = vmax.f32 %v3602, %v4010
        %v4012 = vrot.slane %v4011, 2
        %v4013 = vmax.f32 %v4011, %v4012
        %v4014 = vrot.slane %v4013, 1
        %v4015 = vmax.f32 %v4013, %v4014
        %v4016 = vrot.slane %v3603, 4
        %v4017 = vmax.f32 %v3603, %v4016
        %v4018 = vrot.slane %v4017, 2
        %v4019 = vmax.f32 %v4017, %v4018
        %v4020 = vrot.slane %v4019, 1
        %v4021 = vmax.f32 %v4019, %v4020
        %v4022 = vrot.slane %v3604, 4
        %v4023 = vmax.f32 %v3604, %v4022
        %v4024 = vrot.slane %v4023, 2
        %v4025 = vmax.f32 %v4023, %v4024
        %v4026 = vrot.slane %v4025, 1
        %v4027 = vmax.f32 %v4025, %v4026
        %v4028 = vrot.slane %v3605, 4
        %v4029 = vmax.f32 %v3605, %v4028
        %v4030 = vrot.slane %v4029, 2
        %v4031 = vmax.f32 %v4029, %v4030
        %v4032 = vrot.slane %v4031, 1
        %v4033 = vmax.f32 %v4031, %v4032
        %v4034 = vrot.slane %v3606, 4
        %v4035 = vmax.f32 %v3606, %v4034
        %v4036 = vrot.slane %v4035, 2
        %v4037 = vmax.f32 %v4035, %v4036
        %v4038 = vrot.slane %v4037, 1
        %v4039 = vmax.f32 %v4037, %v4038
        %v4040 = vrot.slane %v3607, 4
        %v4041 = vmax.f32 %v3607, %v4040
        %v4042 = vrot.slane %v4041, 2
        %v4043 = vmax.f32 %v4041, %v4042
        %v4044 = vrot.slane %v4043, 1
        %v4045 = vmax.f32 %v4043, %v4044
        %v4046 = vrot.slane %v3608, 4
        %v4047 = vmax.f32 %v3608, %v4046
        %v4048 = vrot.slane %v4047, 2
        %v4049 = vmax.f32 %v4047, %v4048
        %v4050 = vrot.slane %v4049, 1
        %v4051 = vmax.f32 %v4049, %v4050
        %v4052 = vrot.slane %v3609, 4
        %v4053 = vmax.f32 %v3609, %v4052
        %v4054 = vrot.slane %v4053, 2
        %v4055 = vmax.f32 %v4053, %v4054
        %v4056 = vrot.slane %v4055, 1
        %v4057 = vmax.f32 %v4055, %v4056
        %v4058 = vrot.slane %v3610, 4
        %v4059 = vmax.f32 %v3610, %v4058
        %v4060 = vrot.slane %v4059, 2
        %v4061 = vmax.f32 %v4059, %v4060
        %v4062 = vrot.slane %v4061, 1
        %v4063 = vmax.f32 %v4061, %v4062
        %v4064 = vrot.slane %v3611, 4
        %v4065 = vmax.f32 %v3611, %v4064
        %v4066 = vrot.slane %v4065, 2
        %v4067 = vmax.f32 %v4065, %v4066
        %v4068 = vrot.slane %v4067, 1
        %v4069 = vmax.f32 %v4067, %v4068
        %v4070 = vrot.slane %v3612, 4
        %v4071 = vmax.f32 %v3612, %v4070
        %v4072 = vrot.slane %v4071, 2
        %v4073 = vmax.f32 %v4071, %v4072
        %v4074 = vrot.slane %v4073, 1
        %v4075 = vmax.f32 %v4073, %v4074
        %v4076 = vrot.slane %v3613, 4
        %v4077 = vmax.f32 %v3613, %v4076
        %v4078 = vrot.slane %v4077, 2
        %v4079 = vmax.f32 %v4077, %v4078
        %v4080 = vrot.slane %v4079, 1
        %v4081 = vmax.f32 %v4079, %v4080
        %v4082 = vrot.slane %v3614, 4
        %v4083 = vmax.f32 %v3614, %v4082
        %v4084 = vrot.slane %v4083, 2
        %v4085 = vmax.f32 %v4083, %v4084
        %v4086 = vrot.slane %v4085, 1
        %v4087 = vmax.f32 %v4085, %v4086
        %v4088 = vrot.slane %v3615, 4
        %v4089 = vmax.f32 %v3615, %v4088
        %v4090 = vrot.slane %v4089, 2
        %v4091 = vmax.f32 %v4089, %v4090
        %v4092 = vrot.slane %v4091, 1
        %v4093 = vmax.f32 %v4091, %v4092
        %v4094 = vrot.slane %v3616, 4
        %v4095 = vmax.f32 %v3616, %v4094
        %v4096 = vrot.slane %v4095, 2
        %v4097 = vmax.f32 %v4095, %v4096
        %v4098 = vrot.slane %v4097, 1
        %v4099 = vmax.f32 %v4097, %v4098
        %v4100 = vrot.slane %v3617, 4
        %v4101 = vmax.f32 %v3617, %v4100
        %v4102 = vrot.slane %v4101, 2
        %v4103 = vmax.f32 %v4101, %v4102
        %v4104 = vrot.slane %v4103, 1
        %v4105 = vmax.f32 %v4103, %v4104
        %v4106 = vrot.slane %v3618, 4
        %v4107 = vmax.f32 %v3618, %v4106
        %v4108 = vrot.slane %v4107, 2
        %v4109 = vmax.f32 %v4107, %v4108
        %v4110 = vrot.slane %v4109, 1
        %v4111 = vmax.f32 %v4109, %v4110
        %v4112 = vrot.slane %v3619, 4
        %v4113 = vmax.f32 %v3619, %v4112
        %v4114 = vrot.slane %v4113, 2
        %v4115 = vmax.f32 %v4113, %v4114
        %v4116 = vrot.slane %v4115, 1
        %v4117 = vmax.f32 %v4115, %v4116
        %v4118 = vrot.slane %v3620, 4
        %v4119 = vmax.f32 %v3620, %v4118
        %v4120 = vrot.slane %v4119, 2
        %v4121 = vmax.f32 %v4119, %v4120
        %v4122 = vrot.slane %v4121, 1
        %v4123 = vmax.f32 %v4121, %v4122
        %v4124 = vrot.slane %v3621, 4
        %v4125 = vmax.f32 %v3621, %v4124
        %v4126 = vrot.slane %v4125, 2
        %v4127 = vmax.f32 %v4125, %v4126
        %v4128 = vrot.slane %v4127, 1
        %v4129 = vmax.f32 %v4127, %v4128
        %v4130 = vrot.slane %v3622, 4
        %v4131 = vmax.f32 %v3622, %v4130
        %v4132 = vrot.slane %v4131, 2
        %v4133 = vmax.f32 %v4131, %v4132
        %v4134 = vrot.slane %v4133, 1
        %v4135 = vmax.f32 %v4133, %v4134
        %v4136 = vrot.slane %v3623, 4
        %v4137 = vmax.f32 %v3623, %v4136
        %v4138 = vrot.slane %v4137, 2
        %v4139 = vmax.f32 %v4137, %v4138
        %v4140 = vrot.slane %v4139, 1
        %v4141 = vmax.f32 %v4139, %v4140
        %v4142 = vrot.slane %v3624, 4
        %v4143 = vmax.f32 %v3624, %v4142
        %v4144 = vrot.slane %v4143, 2
        %v4145 = vmax.f32 %v4143, %v4144
        %v4146 = vrot.slane %v4145, 1
        %v4147 = vmax.f32 %v4145, %v4146
        %v4148 = vrot.slane %v3625, 4
        %v4149 = vmax.f32 %v3625, %v4148
        %v4150 = vrot.slane %v4149, 2
        %v4151 = vmax.f32 %v4149, %v4150
        %v4152 = vrot.slane %v4151, 1
        %v4153 = vmax.f32 %v4151, %v4152
        %v4154 = vrot.slane %v3626, 4
        %v4155 = vmax.f32 %v3626, %v4154
        %v4156 = vrot.slane %v4155, 2
        %v4157 = vmax.f32 %v4155, %v4156
        %v4158 = vrot.slane %v4157, 1
        %v4159 = vmax.f32 %v4157, %v4158
        %v4160 = vrot.slane %v3627, 4
        %v4161 = vmax.f32 %v3627, %v4160
        %v4162 = vrot.slane %v4161, 2
        %v4163 = vmax.f32 %v4161, %v4162
        %v4164 = vrot.slane %v4163, 1
        %v4165 = vmax.f32 %v4163, %v4164
        %v4166 = vrot.slane %v3628, 4
        %v4167 = vmax.f32 %v3628, %v4166
        %v4168 = vrot.slane %v4167, 2
        %v4169 = vmax.f32 %v4167, %v4168
        %v4170 = vrot.slane %v4169, 1
        %v4171 = vmax.f32 %v4169, %v4170
        %v4172 = vrot.slane %v3629, 4
        %v4173 = vmax.f32 %v3629, %v4172
        %v4174 = vrot.slane %v4173, 2
        %v4175 = vmax.f32 %v4173, %v4174
        %v4176 = vrot.slane %v4175, 1
        %v4177 = vmax.f32 %v4175, %v4176
        %v4178 = vrot.slane %v3630, 4
        %v4179 = vmax.f32 %v3630, %v4178
        %v4180 = vrot.slane %v4179, 2
        %v4181 = vmax.f32 %v4179, %v4180
        %v4182 = vrot.slane %v4181, 1
        %v4183 = vmax.f32 %v4181, %v4182
        %v4184 = vrot.slane %v3631, 4
        %v4185 = vmax.f32 %v3631, %v4184
        %v4186 = vrot.slane %v4185, 2
        %v4187 = vmax.f32 %v4185, %v4186
        %v4188 = vrot.slane %v4187, 1
        %v4189 = vmax.f32 %v4187, %v4188
        %v4190 = vrot.slane %v3632, 4
        %v4191 = vmax.f32 %v3632, %v4190
        %v4192 = vrot.slane %v4191, 2
        %v4193 = vmax.f32 %v4191, %v4192
        %v4194 = vrot.slane %v4193, 1
        %v4195 = vmax.f32 %v4193, %v4194
        %v4196 = vrot.slane %v3633, 4
        %v4197 = vmax.f32 %v3633, %v4196
        %v4198 = vrot.slane %v4197, 2
        %v4199 = vmax.f32 %v4197, %v4198
        %v4200 = vrot.slane %v4199, 1
        %v4201 = vmax.f32 %v4199, %v4200
        %v4202 = vrot.slane %v3634, 4
        %v4203 = vmax.f32 %v3634, %v4202
        %v4204 = vrot.slane %v4203, 2
        %v4205 = vmax.f32 %v4203, %v4204
        %v4206 = vrot.slane %v4205, 1
        %v4207 = vmax.f32 %v4205, %v4206
        %v4208 = vrot.slane %v3635, 4
        %v4209 = vmax.f32 %v3635, %v4208
        %v4210 = vrot.slane %v4209, 2
        %v4211 = vmax.f32 %v4209, %v4210
        %v4212 = vrot.slane %v4211, 1
        %v4213 = vmax.f32 %v4211, %v4212
        %v4214 = vrot.slane %v3636, 4
        %v4215 = vmax.f32 %v3636, %v4214
        %v4216 = vrot.slane %v4215, 2
        %v4217 = vmax.f32 %v4215, %v4216
        %v4218 = vrot.slane %v4217, 1
        %v4219 = vmax.f32 %v4217, %v4218
        %v4220 = vrot.slane %v3637, 4
        %v4221 = vmax.f32 %v3637, %v4220
        %v4222 = vrot.slane %v4221, 2
        %v4223 = vmax.f32 %v4221, %v4222
        %v4224 = vrot.slane %v4223, 1
        %v4225 = vmax.f32 %v4223, %v4224
        %v4226 = vrot.slane %v3638, 4
        %v4227 = vmax.f32 %v3638, %v4226
        %v4228 = vrot.slane %v4227, 2
        %v4229 = vmax.f32 %v4227, %v4228
        %v4230 = vrot.slane %v4229, 1
        %v4231 = vmax.f32 %v4229, %v4230
        %v4232 = vrot.slane %v3639, 4
        %v4233 = vmax.f32 %v3639, %v4232
        %v4234 = vrot.slane %v4233, 2
        %v4235 = vmax.f32 %v4233, %v4234
        %v4236 = vrot.slane %v4235, 1
        %v4237 = vmax.f32 %v4235, %v4236
        %v4238 = vrot.slane %v3640, 4
        %v4239 = vmax.f32 %v3640, %v4238
        %v4240 = vrot.slane %v4239, 2
        %v4241 = vmax.f32 %v4239, %v4240
        %v4242 = vrot.slane %v4241, 1
        %v4243 = vmax.f32 %v4241, %v4242
        %v4244 = vrot.slane %v3641, 4
        %v4245 = vmax.f32 %v3641, %v4244
        %v4246 = vrot.slane %v4245, 2
        %v4247 = vmax.f32 %v4245, %v4246
        %v4248 = vrot.slane %v4247, 1
        %v4249 = vmax.f32 %v4247, %v4248
        %v4250 = vrot.slane %v3642, 4
        %v4251 = vmax.f32 %v3642, %v4250
        %v4252 = vrot.slane %v4251, 2
        %v4253 = vmax.f32 %v4251, %v4252
        %v4254 = vrot.slane %v4253, 1
        %v4255 = vmax.f32 %v4253, %v4254
        %v4256 = vrot.slane %v3643, 4
        %v4257 = vmax.f32 %v3643, %v4256
        %v4258 = vrot.slane %v4257, 2
        %v4259 = vmax.f32 %v4257, %v4258
        %v4260 = vrot.slane %v4259, 1
        %v4261 = vmax.f32 %v4259, %v4260
        %v4262 = vrot.slane %v3644, 4
        %v4263 = vmax.f32 %v3644, %v4262
        %v4264 = vrot.slane %v4263, 2
        %v4265 = vmax.f32 %v4263, %v4264
        %v4266 = vrot.slane %v4265, 1
        %v4267 = vmax.f32 %v4265, %v4266
        %v4268 = vrot.slane %v3645, 4
        %v4269 = vmax.f32 %v3645, %v4268
        %v4270 = vrot.slane %v4269, 2
        %v4271 = vmax.f32 %v4269, %v4270
        %v4272 = vrot.slane %v4271, 1
        %v4273 = vmax.f32 %v4271, %v4272
        %v4274 = vrot.slane %v3646, 4
        %v4275 = vmax.f32 %v3646, %v4274
        %v4276 = vrot.slane %v4275, 2
        %v4277 = vmax.f32 %v4275, %v4276
        %v4278 = vrot.slane %v4277, 1
        %v4279 = vmax.f32 %v4277, %v4278
        %v4280 = vrot.slane %v3647, 4
        %v4281 = vmax.f32 %v3647, %v4280
        %v4282 = vrot.slane %v4281, 2
        %v4283 = vmax.f32 %v4281, %v4282
        %v4284 = vrot.slane %v4283, 1
        %v4285 = vmax.f32 %v4283, %v4284
        %v4286 = vrot.slane %v3648, 4
        %v4287 = vmax.f32 %v3648, %v4286
        %v4288 = vrot.slane %v4287, 2
        %v4289 = vmax.f32 %v4287, %v4288
        %v4290 = vrot.slane %v4289, 1
        %v4291 = vmax.f32 %v4289, %v4290
        %v4292 = vrot.slane %v3649, 4
        %v4293 = vmax.f32 %v3649, %v4292
        %v4294 = vrot.slane %v4293, 2
        %v4295 = vmax.f32 %v4293, %v4294
        %v4296 = vrot.slane %v4295, 1
        %v4297 = vmax.f32 %v4295, %v4296
        %v4298 = vrot.slane %v3650, 4
        %v4299 = vmax.f32 %v3650, %v4298
        %v4300 = vrot.slane %v4299, 2
        %v4301 = vmax.f32 %v4299, %v4300
        %v4302 = vrot.slane %v4301, 1
        %v4303 = vmax.f32 %v4301, %v4302
        %v4304 = vrot.slane %v3651, 4
        %v4305 = vmax.f32 %v3651, %v4304
        %v4306 = vrot.slane %v4305, 2
        %v4307 = vmax.f32 %v4305, %v4306
        %v4308 = vrot.slane %v4307, 1
        %v4309 = vmax.f32 %v4307, %v4308
        %v4310 = vrot.slane %v3652, 4
        %v4311 = vmax.f32 %v3652, %v4310
        %v4312 = vrot.slane %v4311, 2
        %v4313 = vmax.f32 %v4311, %v4312
        %v4314 = vrot.slane %v4313, 1
        %v4315 = vmax.f32 %v4313, %v4314
        %v4316 = vrot.slane %v3653, 4
        %v4317 = vmax.f32 %v3653, %v4316
        %v4318 = vrot.slane %v4317, 2
        %v4319 = vmax.f32 %v4317, %v4318
        %v4320 = vrot.slane %v4319, 1
        %v4321 = vmax.f32 %v4319, %v4320
        %v4322 = vrot.slane %v3654, 4
        %v4323 = vmax.f32 %v3654, %v4322
        %v4324 = vrot.slane %v4323, 2
        %v4325 = vmax.f32 %v4323, %v4324
        %v4326 = vrot.slane %v4325, 1
        %v4327 = vmax.f32 %v4325, %v4326
        %v4328 = vrot.slane %v3655, 4
        %v4329 = vmax.f32 %v3655, %v4328
        %v4330 = vrot.slane %v4329, 2
        %v4331 = vmax.f32 %v4329, %v4330
        %v4332 = vrot.slane %v4331, 1
        %v4333 = vmax.f32 %v4331, %v4332
        %v4334 = vrot.slane %v3656, 4
        %v4335 = vmax.f32 %v3656, %v4334
        %v4336 = vrot.slane %v4335, 2
        %v4337 = vmax.f32 %v4335, %v4336
        %v4338 = vrot.slane %v4337, 1
        %v4339 = vmax.f32 %v4337, %v4338
        %v4340 = vrot.slane %v3657, 4
        %v4341 = vmax.f32 %v3657, %v4340
        %v4342 = vrot.slane %v4341, 2
        %v4343 = vmax.f32 %v4341, %v4342
        %v4344 = vrot.slane %v4343, 1
        %v4345 = vmax.f32 %v4343, %v4344
        %v4346 = vrot.slane %v3658, 4
        %v4347 = vmax.f32 %v3658, %v4346
        %v4348 = vrot.slane %v4347, 2
        %v4349 = vmax.f32 %v4347, %v4348
        %v4350 = vrot.slane %v4349, 1
        %v4351 = vmax.f32 %v4349, %v4350
        %v4352 = vrot.slane %v3659, 4
        %v4353 = vmax.f32 %v3659, %v4352
        %v4354 = vrot.slane %v4353, 2
        %v4355 = vmax.f32 %v4353, %v4354
        %v4356 = vrot.slane %v4355, 1
        %v4357 = vmax.f32 %v4355, %v4356
        %v4358 = vrot.slane %v3660, 4
        %v4359 = vmax.f32 %v3660, %v4358
        %v4360 = vrot.slane %v4359, 2
        %v4361 = vmax.f32 %v4359, %v4360
        %v4362 = vrot.slane %v4361, 1
        %v4363 = vmax.f32 %v4361, %v4362
        %v4364 = vrot.slane %v3661, 4
        %v4365 = vmax.f32 %v3661, %v4364
        %v4366 = vrot.slane %v4365, 2
        %v4367 = vmax.f32 %v4365, %v4366
        %v4368 = vrot.slane %v4367, 1
        %v4369 = vmax.f32 %v4367, %v4368
        %v4370 = vrot.slane %v3662, 4
        %v4371 = vmax.f32 %v3662, %v4370
        %v4372 = vrot.slane %v4371, 2
        %v4373 = vmax.f32 %v4371, %v4372
        %v4374 = vrot.slane %v4373, 1
        %v4375 = vmax.f32 %v4373, %v4374
        %v4376 = vrot.slane %v3663, 4
        %v4377 = vmax.f32 %v3663, %v4376
        %v4378 = vrot.slane %v4377, 2
        %v4379 = vmax.f32 %v4377, %v4378
        %v4380 = vrot.slane %v4379, 1
        %v4381 = vmax.f32 %v4379, %v4380
        %v4382 = vrot.slane %v3664, 4
        %v4383 = vmax.f32 %v3664, %v4382
        %v4384 = vrot.slane %v4383, 2
        %v4385 = vmax.f32 %v4383, %v4384
        %v4386 = vrot.slane %v4385, 1
        %v4387 = vmax.f32 %v4385, %v4386
        %v4388 = vrot.slane %v3665, 4
        %v4389 = vmax.f32 %v3665, %v4388
        %v4390 = vrot.slane %v4389, 2
        %v4391 = vmax.f32 %v4389, %v4390
        %v4392 = vrot.slane %v4391, 1
        %v4393 = vmax.f32 %v4391, %v4392
        %v4394 = vrot.slane %v3666, 4
        %v4395 = vmax.f32 %v3666, %v4394
        %v4396 = vrot.slane %v4395, 2
        %v4397 = vmax.f32 %v4395, %v4396
        %v4398 = vrot.slane %v4397, 1
        %v4399 = vmax.f32 %v4397, %v4398
        %v4400 = vrot.slane %v3667, 4
        %v4401 = vmax.f32 %v3667, %v4400
        %v4402 = vrot.slane %v4401, 2
        %v4403 = vmax.f32 %v4401, %v4402
        %v4404 = vrot.slane %v4403, 1
        %v4405 = vmax.f32 %v4403, %v4404
        %v4406 = vrot.slane %v3668, 4
        %v4407 = vmax.f32 %v3668, %v4406
        %v4408 = vrot.slane %v4407, 2
        %v4409 = vmax.f32 %v4407, %v4408
        %v4410 = vrot.slane %v4409, 1
        %v4411 = vmax.f32 %v4409, %v4410
        %v4412 = vrot.slane %v3669, 4
        %v4413 = vmax.f32 %v3669, %v4412
        %v4414 = vrot.slane %v4413, 2
        %v4415 = vmax.f32 %v4413, %v4414
        %v4416 = vrot.slane %v4415, 1
        %v4417 = vmax.f32 %v4415, %v4416
        %v4418 = vrot.slane %v3670, 4
        %v4419 = vmax.f32 %v3670, %v4418
        %v4420 = vrot.slane %v4419, 2
        %v4421 = vmax.f32 %v4419, %v4420
        %v4422 = vrot.slane %v4421, 1
        %v4423 = vmax.f32 %v4421, %v4422
        %v4424 = vrot.slane %v3671, 4
        %v4425 = vmax.f32 %v3671, %v4424
        %v4426 = vrot.slane %v4425, 2
        %v4427 = vmax.f32 %v4425, %v4426
        %v4428 = vrot.slane %v4427, 1
        %v4429 = vmax.f32 %v4427, %v4428
        %v4430 = vrot.slane %v3672, 4
        %v4431 = vmax.f32 %v3672, %v4430
        %v4432 = vrot.slane %v4431, 2
        %v4433 = vmax.f32 %v4431, %v4432
        %v4434 = vrot.slane %v4433, 1
        %v4435 = vmax.f32 %v4433, %v4434
        %v4436 = vrot.slane %v3673, 4
        %v4437 = vmax.f32 %v3673, %v4436
        %v4438 = vrot.slane %v4437, 2
        %v4439 = vmax.f32 %v4437, %v4438
        %v4440 = vrot.slane %v4439, 1
        %v4441 = vmax.f32 %v4439, %v4440
        %v4442 = vld [vmem:[%s3] sm:$0x1]
        %v4444 = vperm.slane %v4442, 0
        %v4446 = vadd.f32 %v3679, %v4444
        %v4447 = vadd.f32 %v3685, %v4444
        %v4448 = vadd.f32 %v3691, %v4444
        %v4449 = vadd.f32 %v3697, %v4444
        %v4450 = vadd.f32 %v3703, %v4444
        %v4451 = vadd.f32 %v3709, %v4444
        %v4452 = vadd.f32 %v3715, %v4444
        %v4453 = vadd.f32 %v3721, %v4444
        %v4454 = vadd.f32 %v3727, %v4444
        %v4455 = vadd.f32 %v3733, %v4444
        %v4456 = vadd.f32 %v3739, %v4444
        %v4457 = vadd.f32 %v3745, %v4444
        %v4458 = vadd.f32 %v3751, %v4444
        %v4459 = vadd.f32 %v3757, %v4444
        %v4460 = vadd.f32 %v3763, %v4444
        %v4461 = vadd.f32 %v3769, %v4444
        %v4462 = vadd.f32 %v3775, %v4444
        %v4463 = vadd.f32 %v3781, %v4444
        %v4464 = vadd.f32 %v3787, %v4444
        %v4465 = vadd.f32 %v3793, %v4444
        %v4466 = vadd.f32 %v3799, %v4444
        %v4467 = vadd.f32 %v3805, %v4444
        %v4468 = vadd.f32 %v3811, %v4444
        %v4469 = vadd.f32 %v3817, %v4444
        %v4470 = vadd.f32 %v3823, %v4444
        %v4471 = vadd.f32 %v3829, %v4444
        %v4472 = vadd.f32 %v3835, %v4444
        %v4473 = vadd.f32 %v3841, %v4444
        %v4474 = vadd.f32 %v3847, %v4444
        %v4475 = vadd.f32 %v3853, %v4444
        %v4476 = vadd.f32 %v3859, %v4444
        %v4477 = vadd.f32 %v3865, %v4444
        %v4478 = vadd.f32 %v3871, %v4444
        %v4479 = vadd.f32 %v3877, %v4444
        %v4480 = vadd.f32 %v3883, %v4444
        %v4481 = vadd.f32 %v3889, %v4444
        %v4482 = vadd.f32 %v3895, %v4444
        %v4483 = vadd.f32 %v3901, %v4444
        %v4484 = vadd.f32 %v3907, %v4444
        %v4485 = vadd.f32 %v3913, %v4444
        %v4486 = vadd.f32 %v3919, %v4444
        %v4487 = vadd.f32 %v3925, %v4444
        %v4488 = vadd.f32 %v3931, %v4444
        %v4489 = vadd.f32 %v3937, %v4444
        %v4490 = vadd.f32 %v3943, %v4444
        %v4491 = vadd.f32 %v3949, %v4444
        %v4492 = vadd.f32 %v3955, %v4444
        %v4493 = vadd.f32 %v3961, %v4444
        %v4494 = vadd.f32 %v3967, %v4444
        %v4495 = vadd.f32 %v3973, %v4444
        %v4496 = vadd.f32 %v3979, %v4444
        %v4497 = vadd.f32 %v3985, %v4444
        %v4498 = vadd.f32 %v3991, %v4444
        %v4499 = vadd.f32 %v3997, %v4444
        %v4500 = vadd.f32 %v4003, %v4444
        %v4501 = vadd.f32 %v4009, %v4444
        %v4502 = vadd.f32 %v4015, %v4444
        %v4503 = vadd.f32 %v4021, %v4444
        %v4504 = vadd.f32 %v4027, %v4444
        %v4505 = vadd.f32 %v4033, %v4444
        %v4506 = vadd.f32 %v4039, %v4444
        %v4507 = vadd.f32 %v4045, %v4444
        %v4508 = vadd.f32 %v4051, %v4444
        %v4509 = vadd.f32 %v4057, %v4444
        %v4510 = vadd.f32 %v4063, %v4444
        %v4511 = vadd.f32 %v4069, %v4444
        %v4512 = vadd.f32 %v4075, %v4444
        %v4513 = vadd.f32 %v4081, %v4444
        %v4514 = vadd.f32 %v4087, %v4444
        %v4515 = vadd.f32 %v4093, %v4444
        %v4516 = vadd.f32 %v4099, %v4444
        %v4517 = vadd.f32 %v4105, %v4444
        %v4518 = vadd.f32 %v4111, %v4444
        %v4519 = vadd.f32 %v4117, %v4444
        %v4520 = vadd.f32 %v4123, %v4444
        %v4521 = vadd.f32 %v4129, %v4444
        %v4522 = vadd.f32 %v4135, %v4444
        %v4523 = vadd.f32 %v4141, %v4444
        %v4524 = vadd.f32 %v4147, %v4444
        %v4525 = vadd.f32 %v4153, %v4444
        %v4526 = vadd.f32 %v4159, %v4444
        %v4527 = vadd.f32 %v4165, %v4444
        %v4528 = vadd.f32 %v4171, %v4444
        %v4529 = vadd.f32 %v4177, %v4444
        %v4530 = vadd.f32 %v4183, %v4444
        %v4531 = vadd.f32 %v4189, %v4444
        %v4532 = vadd.f32 %v4195, %v4444
        %v4533 = vadd.f32 %v4201, %v4444
        %v4534 = vadd.f32 %v4207, %v4444
        %v4535 = vadd.f32 %v4213, %v4444
        %v4536 = vadd.f32 %v4219, %v4444
        %v4537 = vadd.f32 %v4225, %v4444
        %v4538 = vadd.f32 %v4231, %v4444
        %v4539 = vadd.f32 %v4237, %v4444
        %v4540 = vadd.f32 %v4243, %v4444
        %v4541 = vadd.f32 %v4249, %v4444
        %v4542 = vadd.f32 %v4255, %v4444
        %v4543 = vadd.f32 %v4261, %v4444
        %v4544 = vadd.f32 %v4267, %v4444
        %v4545 = vadd.f32 %v4273, %v4444
        %v4546 = vadd.f32 %v4279, %v4444
        %v4547 = vadd.f32 %v4285, %v4444
        %v4548 = vadd.f32 %v4291, %v4444
        %v4549 = vadd.f32 %v4297, %v4444
        %v4550 = vadd.f32 %v4303, %v4444
        %v4551 = vadd.f32 %v4309, %v4444
        %v4552 = vadd.f32 %v4315, %v4444
        %v4553 = vadd.f32 %v4321, %v4444
        %v4554 = vadd.f32 %v4327, %v4444
        %v4555 = vadd.f32 %v4333, %v4444
        %v4556 = vadd.f32 %v4339, %v4444
        %v4557 = vadd.f32 %v4345, %v4444
        %v4558 = vadd.f32 %v4351, %v4444
        %v4559 = vadd.f32 %v4357, %v4444
        %v4560 = vadd.f32 %v4363, %v4444
        %v4561 = vadd.f32 %v4369, %v4444
        %v4562 = vadd.f32 %v4375, %v4444
        %v4563 = vadd.f32 %v4381, %v4444
        %v4564 = vadd.f32 %v4387, %v4444
        %v4565 = vadd.f32 %v4393, %v4444
        %v4566 = vadd.f32 %v4399, %v4444
        %v4567 = vadd.f32 %v4405, %v4444
        %v4568 = vadd.f32 %v4411, %v4444
        %v4569 = vadd.f32 %v4417, %v4444
        %v4570 = vadd.f32 %v4423, %v4444
        %v4571 = vadd.f32 %v4429, %v4444
        %v4572 = vadd.f32 %v4435, %v4444
        %v4573 = vadd.f32 %v4441, %v4444
        %v4574 = vmax.f32 %v4446, 0.0
        %v4575 = vmax.f32 %v4447, 0.0
        %v4576 = vmax.f32 %v4448, 0.0
        %v4577 = vmax.f32 %v4449, 0.0
        %v4578 = vmax.f32 %v4450, 0.0
        %v4579 = vmax.f32 %v4451, 0.0
        %v4580 = vmax.f32 %v4452, 0.0
        %v4581 = vmax.f32 %v4453, 0.0
        %v4582 = vmax.f32 %v4454, 0.0
        %v4583 = vmax.f32 %v4455, 0.0
        %v4584 = vmax.f32 %v4456, 0.0
        %v4585 = vmax.f32 %v4457, 0.0
        %v4586 = vmax.f32 %v4458, 0.0
        %v4587 = vmax.f32 %v4459, 0.0
        %v4588 = vmax.f32 %v4460, 0.0
        %v4589 = vmax.f32 %v4461, 0.0
        %v4590 = vmax.f32 %v4462, 0.0
        %v4591 = vmax.f32 %v4463, 0.0
        %v4592 = vmax.f32 %v4464, 0.0
        %v4593 = vmax.f32 %v4465, 0.0
        %v4594 = vmax.f32 %v4466, 0.0
        %v4595 = vmax.f32 %v4467, 0.0
        %v4596 = vmax.f32 %v4468, 0.0
        %v4597 = vmax.f32 %v4469, 0.0
        %v4598 = vmax.f32 %v4470, 0.0
        %v4599 = vmax.f32 %v4471, 0.0
        %v4600 = vmax.f32 %v4472, 0.0
        %v4601 = vmax.f32 %v4473, 0.0
        %v4602 = vmax.f32 %v4474, 0.0
        %v4603 = vmax.f32 %v4475, 0.0
        %v4604 = vmax.f32 %v4476, 0.0
        %v4605 = vmax.f32 %v4477, 0.0
        %v4606 = vmax.f32 %v4478, 0.0
        %v4607 = vmax.f32 %v4479, 0.0
        %v4608 = vmax.f32 %v4480, 0.0
        %v4609 = vmax.f32 %v4481, 0.0
        %v4610 = vmax.f32 %v4482, 0.0
        %v4611 = vmax.f32 %v4483, 0.0
        %v4612 = vmax.f32 %v4484, 0.0
        %v4613 = vmax.f32 %v4485, 0.0
        %v4614 = vmax.f32 %v4486, 0.0
        %v4615 = vmax.f32 %v4487, 0.0
        %v4616 = vmax.f32 %v4488, 0.0
        %v4617 = vmax.f32 %v4489, 0.0
        %v4618 = vmax.f32 %v4490, 0.0
        %v4619 = vmax.f32 %v4491, 0.0
        %v4620 = vmax.f32 %v4492, 0.0
        %v4621 = vmax.f32 %v4493, 0.0
        %v4622 = vmax.f32 %v4494, 0.0
        %v4623 = vmax.f32 %v4495, 0.0
        %v4624 = vmax.f32 %v4496, 0.0
        %v4625 = vmax.f32 %v4497, 0.0
        %v4626 = vmax.f32 %v4498, 0.0
        %v4627 = vmax.f32 %v4499, 0.0
        %v4628 = vmax.f32 %v4500, 0.0
        %v4629 = vmax.f32 %v4501, 0.0
        %v4630 = vmax.f32 %v4502, 0.0
        %v4631 = vmax.f32 %v4503, 0.0
        %v4632 = vmax.f32 %v4504, 0.0
        %v4633 = vmax.f32 %v4505, 0.0
        %v4634 = vmax.f32 %v4506, 0.0
        %v4635 = vmax.f32 %v4507, 0.0
        %v4636 = vmax.f32 %v4508, 0.0
        %v4637 = vmax.f32 %v4509, 0.0
        %v4638 = vmax.f32 %v4510, 0.0
        %v4639 = vmax.f32 %v4511, 0.0
        %v4640 = vmax.f32 %v4512, 0.0
        %v4641 = vmax.f32 %v4513, 0.0
        %v4642 = vmax.f32 %v4514, 0.0
        %v4643 = vmax.f32 %v4515, 0.0
        %v4644 = vmax.f32 %v4516, 0.0
        %v4645 = vmax.f32 %v4517, 0.0
        %v4646 = vmax.f32 %v4518, 0.0
        %v4647 = vmax.f32 %v4519, 0.0
        %v4648 = vmax.f32 %v4520, 0.0
        %v4649 = vmax.f32 %v4521, 0.0
        %v4650 = vmax.f32 %v4522, 0.0
        %v4651 = vmax.f32 %v4523, 0.0
        %v4652 = vmax.f32 %v4524, 0.0
        %v4653 = vmax.f32 %v4525, 0.0
        %v4654 = vmax.f32 %v4526, 0.0
        %v4655 = vmax.f32 %v4527, 0.0
        %v4656 = vmax.f32 %v4528, 0.0
        %v4657 = vmax.f32 %v4529, 0.0
        %v4658 = vmax.f32 %v4530, 0.0
        %v4659 = vmax.f32 %v4531, 0.0
        %v4660 = vmax.f32 %v4532, 0.0
        %v4661 = vmax.f32 %v4533, 0.0
        %v4662 = vmax.f32 %v4534, 0.0
        %v4663 = vmax.f32 %v4535, 0.0
        %v4664 = vmax.f32 %v4536, 0.0
        %v4665 = vmax.f32 %v4537, 0.0
        %v4666 = vmax.f32 %v4538, 0.0
        %v4667 = vmax.f32 %v4539, 0.0
        %v4668 = vmax.f32 %v4540, 0.0
        %v4669 = vmax.f32 %v4541, 0.0
        %v4670 = vmax.f32 %v4542, 0.0
        %v4671 = vmax.f32 %v4543, 0.0
        %v4672 = vmax.f32 %v4544, 0.0
        %v4673 = vmax.f32 %v4545, 0.0
        %v4674 = vmax.f32 %v4546, 0.0
        %v4675 = vmax.f32 %v4547, 0.0
        %v4676 = vmax.f32 %v4548, 0.0
        %v4677 = vmax.f32 %v4549, 0.0
        %v4678 = vmax.f32 %v4550, 0.0
        %v4679 = vmax.f32 %v4551, 0.0
        %v4680 = vmax.f32 %v4552, 0.0
        %v4681 = vmax.f32 %v4553, 0.0
        %v4682 = vmax.f32 %v4554, 0.0
        %v4683 = vmax.f32 %v4555, 0.0
        %v4684 = vmax.f32 %v4556, 0.0
        %v4685 = vmax.f32 %v4557, 0.0
        %v4686 = vmax.f32 %v4558, 0.0
        %v4687 = vmax.f32 %v4559, 0.0
        %v4688 = vmax.f32 %v4560, 0.0
        %v4689 = vmax.f32 %v4561, 0.0
        %v4690 = vmax.f32 %v4562, 0.0
        %v4691 = vmax.f32 %v4563, 0.0
        %v4692 = vmax.f32 %v4564, 0.0
        %v4693 = vmax.f32 %v4565, 0.0
        %v4694 = vmax.f32 %v4566, 0.0
        %v4695 = vmax.f32 %v4567, 0.0
        %v4696 = vmax.f32 %v4568, 0.0
        %v4697 = vmax.f32 %v4569, 0.0
        %v4698 = vmax.f32 %v4570, 0.0
        %v4699 = vmax.f32 %v4571, 0.0
        %v4700 = vmax.f32 %v4572, 0.0
        %v4701 = vmax.f32 %v4573, 0.0
        %v4702 = vpack.c.bf16 %v4574, %v4574
        %v4703 = vpack.c.bf16 %v4575, %v4575
        %v4704 = vpack.c.bf16 %v4576, %v4576
        %v4705 = vpack.c.bf16 %v4577, %v4577
        %v4706 = vpack.c.bf16 %v4578, %v4578
        %v4707 = vpack.c.bf16 %v4579, %v4579
        %v4708 = vpack.c.bf16 %v4580, %v4580
        %v4709 = vpack.c.bf16 %v4581, %v4581
        %v4710 = vpack.c.bf16 %v4582, %v4582
        %v4711 = vpack.c.bf16 %v4583, %v4583
        %v4712 = vpack.c.bf16 %v4584, %v4584
        %v4713 = vpack.c.bf16 %v4585, %v4585
        %v4714 = vpack.c.bf16 %v4586, %v4586
        %v4715 = vpack.c.bf16 %v4587, %v4587
        %v4716 = vpack.c.bf16 %v4588, %v4588
        %v4717 = vpack.c.bf16 %v4589, %v4589
        %v4718 = vpack.c.bf16 %v4590, %v4590
        %v4719 = vpack.c.bf16 %v4591, %v4591
        %v4720 = vpack.c.bf16 %v4592, %v4592
        %v4721 = vpack.c.bf16 %v4593, %v4593
        %v4722 = vpack.c.bf16 %v4594, %v4594
        %v4723 = vpack.c.bf16 %v4595, %v4595
        %v4724 = vpack.c.bf16 %v4596, %v4596
        %v4725 = vpack.c.bf16 %v4597, %v4597
        %v4726 = vpack.c.bf16 %v4598, %v4598
        %v4727 = vpack.c.bf16 %v4599, %v4599
        %v4728 = vpack.c.bf16 %v4600, %v4600
        %v4729 = vpack.c.bf16 %v4601, %v4601
        %v4730 = vpack.c.bf16 %v4602, %v4602
        %v4731 = vpack.c.bf16 %v4603, %v4603
        %v4732 = vpack.c.bf16 %v4604, %v4604
        %v4733 = vpack.c.bf16 %v4605, %v4605
        %v4734 = vpack.c.bf16 %v4606, %v4606
        %v4735 = vpack.c.bf16 %v4607, %v4607
        %v4736 = vpack.c.bf16 %v4608, %v4608
        %v4737 = vpack.c.bf16 %v4609, %v4609
        %v4738 = vpack.c.bf16 %v4610, %v4610
        %v4739 = vpack.c.bf16 %v4611, %v4611
        %v4740 = vpack.c.bf16 %v4612, %v4612
        %v4741 = vpack.c.bf16 %v4613, %v4613
        %v4742 = vpack.c.bf16 %v4614, %v4614
        %v4743 = vpack.c.bf16 %v4615, %v4615
        %v4744 = vpack.c.bf16 %v4616, %v4616
        %v4745 = vpack.c.bf16 %v4617, %v4617
        %v4746 = vpack.c.bf16 %v4618, %v4618
        %v4747 = vpack.c.bf16 %v4619, %v4619
        %v4748 = vpack.c.bf16 %v4620, %v4620
        %v4749 = vpack.c.bf16 %v4621, %v4621
        %v4750 = vpack.c.bf16 %v4622, %v4622
        %v4751 = vpack.c.bf16 %v4623, %v4623
        %v4752 = vpack.c.bf16 %v4624, %v4624
        %v4753 = vpack.c.bf16 %v4625, %v4625
        %v4754 = vpack.c.bf16 %v4626, %v4626
        %v4755 = vpack.c.bf16 %v4627, %v4627
        %v4756 = vpack.c.bf16 %v4628, %v4628
        %v4757 = vpack.c.bf16 %v4629, %v4629
        %v4758 = vpack.c.bf16 %v4630, %v4630
        %v4759 = vpack.c.bf16 %v4631, %v4631
        %v4760 = vpack.c.bf16 %v4632, %v4632
        %v4761 = vpack.c.bf16 %v4633, %v4633
        %v4762 = vpack.c.bf16 %v4634, %v4634
        %v4763 = vpack.c.bf16 %v4635, %v4635
        %v4764 = vpack.c.bf16 %v4636, %v4636
        %v4765 = vpack.c.bf16 %v4637, %v4637
        %v4766 = vpack.c.bf16 %v4638, %v4638
        %v4767 = vpack.c.bf16 %v4639, %v4639
        %v4768 = vpack.c.bf16 %v4640, %v4640
        %v4769 = vpack.c.bf16 %v4641, %v4641
        %v4770 = vpack.c.bf16 %v4642, %v4642
        %v4771 = vpack.c.bf16 %v4643, %v4643
        %v4772 = vpack.c.bf16 %v4644, %v4644
        %v4773 = vpack.c.bf16 %v4645, %v4645
        %v4774 = vpack.c.bf16 %v4646, %v4646
        %v4775 = vpack.c.bf16 %v4647, %v4647
        %v4776 = vpack.c.bf16 %v4648, %v4648
        %v4777 = vpack.c.bf16 %v4649, %v4649
        %v4778 = vpack.c.bf16 %v4650, %v4650
        %v4779 = vpack.c.bf16 %v4651, %v4651
        %v4780 = vpack.c.bf16 %v4652, %v4652
        %v4781 = vpack.c.bf16 %v4653, %v4653
        %v4782 = vpack.c.bf16 %v4654, %v4654
        %v4783 = vpack.c.bf16 %v4655, %v4655
        %v4784 = vpack.c.bf16 %v4656, %v4656
        %v4785 = vpack.c.bf16 %v4657, %v4657
        %v4786 = vpack.c.bf16 %v4658, %v4658
        %v4787 = vpack.c.bf16 %v4659, %v4659
        %v4788 = vpack.c.bf16 %v4660, %v4660
        %v4789 = vpack.c.bf16 %v4661, %v4661
        %v4790 = vpack.c.bf16 %v4662, %v4662
        %v4791 = vpack.c.bf16 %v4663, %v4663
        %v4792 = vpack.c.bf16 %v4664, %v4664
        %v4793 = vpack.c.bf16 %v4665, %v4665
        %v4794 = vpack.c.bf16 %v4666, %v4666
        %v4795 = vpack.c.bf16 %v4667, %v4667
        %v4796 = vpack.c.bf16 %v4668, %v4668
        %v4797 = vpack.c.bf16 %v4669, %v4669
        %v4798 = vpack.c.bf16 %v4670, %v4670
        %v4799 = vpack.c.bf16 %v4671, %v4671
        %v4800 = vpack.c.bf16 %v4672, %v4672
        %v4801 = vpack.c.bf16 %v4673, %v4673
        %v4802 = vpack.c.bf16 %v4674, %v4674
        %v4803 = vpack.c.bf16 %v4675, %v4675
        %v4804 = vpack.c.bf16 %v4676, %v4676
        %v4805 = vpack.c.bf16 %v4677, %v4677
        %v4806 = vpack.c.bf16 %v4678, %v4678
        %v4807 = vpack.c.bf16 %v4679, %v4679
        %v4808 = vpack.c.bf16 %v4680, %v4680
        %v4809 = vpack.c.bf16 %v4681, %v4681
        %v4810 = vpack.c.bf16 %v4682, %v4682
        %v4811 = vpack.c.bf16 %v4683, %v4683
        %v4812 = vpack.c.bf16 %v4684, %v4684
        %v4813 = vpack.c.bf16 %v4685, %v4685
        %v4814 = vpack.c.bf16 %v4686, %v4686
        %v4815 = vpack.c.bf16 %v4687, %v4687
        %v4816 = vpack.c.bf16 %v4688, %v4688
        %v4817 = vpack.c.bf16 %v4689, %v4689
        %v4818 = vpack.c.bf16 %v4690, %v4690
        %v4819 = vpack.c.bf16 %v4691, %v4691
        %v4820 = vpack.c.bf16 %v4692, %v4692
        %v4821 = vpack.c.bf16 %v4693, %v4693
        %v4822 = vpack.c.bf16 %v4694, %v4694
        %v4823 = vpack.c.bf16 %v4695, %v4695
        %v4824 = vpack.c.bf16 %v4696, %v4696
        %v4825 = vpack.c.bf16 %v4697, %v4697
        %v4826 = vpack.c.bf16 %v4698, %v4698
        %v4827 = vpack.c.bf16 %v4699, %v4699
        %v4828 = vpack.c.bf16 %v4700, %v4700
        %v4829 = vpack.c.bf16 %v4701, %v4701
        %v4830 = vld [vmem:[%s4] sm:$0xff]
        %v4831 = vld [vmem:[%s4 + $0x8] sm:$0xff]
        %v4832 = vld [vmem:[%s4 + $0x10] sm:$0xff]
        %v4833 = vld [vmem:[%s4 + $0x18] sm:$0xff]
        %v4834 = vld [vmem:[%s4 + $0x20] sm:$0xff]
        %v4835 = vld [vmem:[%s4 + $0x28] sm:$0xff]
        %v4836 = vld [vmem:[%s4 + $0x30] sm:$0xff]
        %v4837 = vld [vmem:[%s4 + $0x38] sm:$0xff]
        %v4838 = vld [vmem:[%s4 + $0x40] sm:$0xff]
        %v4839 = vld [vmem:[%s4 + $0x48] sm:$0xff]
        %v4840 = vld [vmem:[%s4 + $0x50] sm:$0xff]
        %v4841 = vld [vmem:[%s4 + $0x58] sm:$0xff]
        %v4842 = vld [vmem:[%s4 + $0x60] sm:$0xff]
        %v4843 = vld [vmem:[%s4 + $0x68] sm:$0xff]
        %v4844 = vld [vmem:[%s4 + $0x70] sm:$0xff]
        %v4845 = vld [vmem:[%s4 + $0x78] sm:$0xff]
        %v4846 = vld [vmem:[%s5] sm:$0x3]
        %v4848 = vperm.slane %v4846, 0
        %v4849 = vperm.slane %v4846, 1
        %v4980 = vunpack.c.l.b16 %v4702
        %v4981 = vunpack.c.l.b16 %v4703
        %v4982 = vunpack.c.l.b16 %v4704
        %v4983 = vunpack.c.l.b16 %v4705
        %v4984 = vunpack.c.l.b16 %v4706
        %v4985 = vunpack.c.l.b16 %v4707
        %v4986 = vunpack.c.l.b16 %v4708
        %v4987 = vunpack.c.l.b16 %v4709
        %v4988 = vunpack.c.l.b16 %v4710
        %v4989 = vunpack.c.l.b16 %v4711
        %v4990 = vunpack.c.l.b16 %v4712
        %v4991 = vunpack.c.l.b16 %v4713
        %v4992 = vunpack.c.l.b16 %v4714
        %v4993 = vunpack.c.l.b16 %v4715
        %v4994 = vunpack.c.l.b16 %v4716
        %v4995 = vunpack.c.l.b16 %v4717
        %v4996 = vunpack.c.l.b16 %v4718
        %v4997 = vunpack.c.l.b16 %v4719
        %v4998 = vunpack.c.l.b16 %v4720
        %v4999 = vunpack.c.l.b16 %v4721
        %v5000 = vunpack.c.l.b16 %v4722
        %v5001 = vunpack.c.l.b16 %v4723
        %v5002 = vunpack.c.l.b16 %v4724
        %v5003 = vunpack.c.l.b16 %v4725
        %v5004 = vunpack.c.l.b16 %v4726
        %v5005 = vunpack.c.l.b16 %v4727
        %v5006 = vunpack.c.l.b16 %v4728
        %v5007 = vunpack.c.l.b16 %v4729
        %v5008 = vunpack.c.l.b16 %v4730
        %v5009 = vunpack.c.l.b16 %v4731
        %v5010 = vunpack.c.l.b16 %v4732
        %v5011 = vunpack.c.l.b16 %v4733
        %v5012 = vunpack.c.l.b16 %v4734
        %v5013 = vunpack.c.l.b16 %v4735
        %v5014 = vunpack.c.l.b16 %v4736
        %v5015 = vunpack.c.l.b16 %v4737
        %v5016 = vunpack.c.l.b16 %v4738
        %v5017 = vunpack.c.l.b16 %v4739
        %v5018 = vunpack.c.l.b16 %v4740
        %v5019 = vunpack.c.l.b16 %v4741
        %v5020 = vunpack.c.l.b16 %v4742
        %v5021 = vunpack.c.l.b16 %v4743
        %v5022 = vunpack.c.l.b16 %v4744
        %v5023 = vunpack.c.l.b16 %v4745
        %v5024 = vunpack.c.l.b16 %v4746
        %v5025 = vunpack.c.l.b16 %v4747
        %v5026 = vunpack.c.l.b16 %v4748
        %v5027 = vunpack.c.l.b16 %v4749
        %v5028 = vunpack.c.l.b16 %v4750
        %v5029 = vunpack.c.l.b16 %v4751
        %v5030 = vunpack.c.l.b16 %v4752
        %v5031 = vunpack.c.l.b16 %v4753
        %v5032 = vunpack.c.l.b16 %v4754
        %v5033 = vunpack.c.l.b16 %v4755
        %v5034 = vunpack.c.l.b16 %v4756
        %v5035 = vunpack.c.l.b16 %v4757
        %v5036 = vunpack.c.l.b16 %v4758
        %v5037 = vunpack.c.l.b16 %v4759
        %v5038 = vunpack.c.l.b16 %v4760
        %v5039 = vunpack.c.l.b16 %v4761
        %v5040 = vunpack.c.l.b16 %v4762
        %v5041 = vunpack.c.l.b16 %v4763
        %v5042 = vunpack.c.l.b16 %v4764
        %v5043 = vunpack.c.l.b16 %v4765
        %v5044 = vunpack.c.l.b16 %v4766
        %v5045 = vunpack.c.l.b16 %v4767
        %v5046 = vunpack.c.l.b16 %v4768
        %v5047 = vunpack.c.l.b16 %v4769
        %v5048 = vunpack.c.l.b16 %v4770
        %v5049 = vunpack.c.l.b16 %v4771
        %v5050 = vunpack.c.l.b16 %v4772
        %v5051 = vunpack.c.l.b16 %v4773
        %v5052 = vunpack.c.l.b16 %v4774
        %v5053 = vunpack.c.l.b16 %v4775
        %v5054 = vunpack.c.l.b16 %v4776
        %v5055 = vunpack.c.l.b16 %v4777
        %v5056 = vunpack.c.l.b16 %v4778
        %v5057 = vunpack.c.l.b16 %v4779
        %v5058 = vunpack.c.l.b16 %v4780
        %v5059 = vunpack.c.l.b16 %v4781
        %v5060 = vunpack.c.l.b16 %v4782
        %v5061 = vunpack.c.l.b16 %v4783
        %v5062 = vunpack.c.l.b16 %v4784
        %v5063 = vunpack.c.l.b16 %v4785
        %v5064 = vunpack.c.l.b16 %v4786
        %v5065 = vunpack.c.l.b16 %v4787
        %v5066 = vunpack.c.l.b16 %v4788
        %v5067 = vunpack.c.l.b16 %v4789
        %v5068 = vunpack.c.l.b16 %v4790
        %v5069 = vunpack.c.l.b16 %v4791
        %v5070 = vunpack.c.l.b16 %v4792
        %v5071 = vunpack.c.l.b16 %v4793
        %v5072 = vunpack.c.l.b16 %v4794
        %v5073 = vunpack.c.l.b16 %v4795
        %v5074 = vunpack.c.l.b16 %v4796
        %v5075 = vunpack.c.l.b16 %v4797
        %v5076 = vunpack.c.l.b16 %v4798
        %v5077 = vunpack.c.l.b16 %v4799
        %v5078 = vunpack.c.l.b16 %v4800
        %v5079 = vunpack.c.l.b16 %v4801
        %v5080 = vunpack.c.l.b16 %v4802
        %v5081 = vunpack.c.l.b16 %v4803
        %v5082 = vunpack.c.l.b16 %v4804
        %v5083 = vunpack.c.l.b16 %v4805
        %v5084 = vunpack.c.l.b16 %v4806
        %v5085 = vunpack.c.l.b16 %v4807
        %v5086 = vunpack.c.l.b16 %v4808
        %v5087 = vunpack.c.l.b16 %v4809
        %v5088 = vunpack.c.l.b16 %v4810
        %v5089 = vunpack.c.l.b16 %v4811
        %v5090 = vunpack.c.l.b16 %v4812
        %v5091 = vunpack.c.l.b16 %v4813
        %v5092 = vunpack.c.l.b16 %v4814
        %v5093 = vunpack.c.l.b16 %v4815
        %v5094 = vunpack.c.l.b16 %v4816
        %v5095 = vunpack.c.l.b16 %v4817
        %v5096 = vunpack.c.l.b16 %v4818
        %v5097 = vunpack.c.l.b16 %v4819
        %v5098 = vunpack.c.l.b16 %v4820
        %v5099 = vunpack.c.l.b16 %v4821
        %v5100 = vunpack.c.l.b16 %v4822
        %v5101 = vunpack.c.l.b16 %v4823
        %v5102 = vunpack.c.l.b16 %v4824
        %v5103 = vunpack.c.l.b16 %v4825
        %v5104 = vunpack.c.l.b16 %v4826
        %v5105 = vunpack.c.l.b16 %v4827
        %v5106 = vunpack.c.l.b16 %v4828
        %v5107 = vunpack.c.l.b16 %v4829
        %v5108 = vrot.slane %v4981, 7
        %vm5109 = vcmask 1041409
        %v5110 = vsel %vm5109, %v5108, %v4980
        %v5111 = vrot.slane %v4982, 6
        %vm5112 = vcmask 1042434
        %v5113 = vsel %vm5112, %v5111, %v5110
        %v5114 = vrot.slane %v4983, 5
        %vm5115 = vcmask 1043459
        %v5116 = vsel %vm5115, %v5114, %v5113
        %v5117 = vrot.slane %v4984, 4
        %vm5118 = vcmask 1044484
        %v5119 = vsel %vm5118, %v5117, %v5116
        %v5120 = vrot.slane %v4985, 3
        %vm5121 = vcmask 1045509
        %v5122 = vsel %vm5121, %v5120, %v5119
        %v5123 = vrot.slane %v4986, 2
        %vm5124 = vcmask 1046534
        %v5125 = vsel %vm5124, %v5123, %v5122
        %v5126 = vrot.slane %v4987, 1
        %vm5127 = vcmask 1047559
        %v5128 = vsel %vm5127, %v5126, %v5125
        %v5129 = vrot.slane %v4989, 7
        %v5130 = vsel %vm5109, %v5129, %v4988
        %v5131 = vrot.slane %v4990, 6
        %v5132 = vsel %vm5112, %v5131, %v5130
        %v5133 = vrot.slane %v4991, 5
        %v5134 = vsel %vm5115, %v5133, %v5132
        %v5135 = vrot.slane %v4992, 4
        %v5136 = vsel %vm5118, %v5135, %v5134
        %v5137 = vrot.slane %v4993, 3
        %v5138 = vsel %vm5121, %v5137, %v5136
        %v5139 = vrot.slane %v4994, 2
        %v5140 = vsel %vm5124, %v5139, %v5138
        %v5141 = vrot.slane %v4995, 1
        %v5142 = vsel %vm5127, %v5141, %v5140
        %v5143 = vrot.slane %v4997, 7
        %v5144 = vsel %vm5109, %v5143, %v4996
        %v5145 = vrot.slane %v4998, 6
        %v5146 = vsel %vm5112, %v5145, %v5144
        %v5147 = vrot.slane %v4999, 5
        %v5148 = vsel %vm5115, %v5147, %v5146
        %v5149 = vrot.slane %v5000, 4
        %v5150 = vsel %vm5118, %v5149, %v5148
        %v5151 = vrot.slane %v5001, 3
        %v5152 = vsel %vm5121, %v5151, %v5150
        %v5153 = vrot.slane %v5002, 2
        %v5154 = vsel %vm5124, %v5153, %v5152
        %v5155 = vrot.slane %v5003, 1
        %v5156 = vsel %vm5127, %v5155, %v5154
        %v5157 = vrot.slane %v5005, 7
        %v5158 = vsel %vm5109, %v5157, %v5004
        %v5159 = vrot.slane %v5006, 6
        %v5160 = vsel %vm5112, %v5159, %v5158
        %v5161 = vrot.slane %v5007, 5
        %v5162 = vsel %vm5115, %v5161, %v5160
        %v5163 = vrot.slane %v5008, 4
        %v5164 = vsel %vm5118, %v5163, %v5162
        %v5165 = vrot.slane %v5009, 3
        %v5166 = vsel %vm5121, %v5165, %v5164
        %v5167 = vrot.slane %v5010, 2
        %v5168 = vsel %vm5124, %v5167, %v5166
        %v5169 = vrot.slane %v5011, 1
        %v5170 = vsel %vm5127, %v5169, %v5168
        %v5171 = vrot.slane %v5013, 7
        %v5172 = vsel %vm5109, %v5171, %v5012
        %v5173 = vrot.slane %v5014, 6
        %v5174 = vsel %vm5112, %v5173, %v5172
        %v5175 = vrot.slane %v5015, 5
        %v5176 = vsel %vm5115, %v5175, %v5174
        %v5177 = vrot.slane %v5016, 4
        %v5178 = vsel %vm5118, %v5177, %v5176
        %v5179 = vrot.slane %v5017, 3
        %v5180 = vsel %vm5121, %v5179, %v5178
        %v5181 = vrot.slane %v5018, 2
        %v5182 = vsel %vm5124, %v5181, %v5180
        %v5183 = vrot.slane %v5019, 1
        %v5184 = vsel %vm5127, %v5183, %v5182
        %v5185 = vrot.slane %v5021, 7
        %v5186 = vsel %vm5109, %v5185, %v5020
        %v5187 = vrot.slane %v5022, 6
        %v5188 = vsel %vm5112, %v5187, %v5186
        %v5189 = vrot.slane %v5023, 5
        %v5190 = vsel %vm5115, %v5189, %v5188
        %v5191 = vrot.slane %v5024, 4
        %v5192 = vsel %vm5118, %v5191, %v5190
        %v5193 = vrot.slane %v5025, 3
        %v5194 = vsel %vm5121, %v5193, %v5192
        %v5195 = vrot.slane %v5026, 2
        %v5196 = vsel %vm5124, %v5195, %v5194
        %v5197 = vrot.slane %v5027, 1
        %v5198 = vsel %vm5127, %v5197, %v5196
        %v5199 = vrot.slane %v5029, 7
        %v5200 = vsel %vm5109, %v5199, %v5028
        %v5201 = vrot.slane %v5030, 6
        %v5202 = vsel %vm5112, %v5201, %v5200
        %v5203 = vrot.slane %v5031, 5
        %v5204 = vsel %vm5115, %v5203, %v5202
        %v5205 = vrot.slane %v5032, 4
        %v5206 = vsel %vm5118, %v5205, %v5204
        %v5207 = vrot.slane %v5033, 3
        %v5208 = vsel %vm5121, %v5207, %v5206
        %v5209 = vrot.slane %v5034, 2
        %v5210 = vsel %vm5124, %v5209, %v5208
        %v5211 = vrot.slane %v5035, 1
        %v5212 = vsel %vm5127, %v5211, %v5210
        %v5213 = vrot.slane %v5037, 7
        %v5214 = vsel %vm5109, %v5213, %v5036
        %v5215 = vrot.slane %v5038, 6
        %v5216 = vsel %vm5112, %v5215, %v5214
        %v5217 = vrot.slane %v5039, 5
        %v5218 = vsel %vm5115, %v5217, %v5216
        %v5219 = vrot.slane %v5040, 4
        %v5220 = vsel %vm5118, %v5219, %v5218
        %v5221 = vrot.slane %v5041, 3
        %v5222 = vsel %vm5121, %v5221, %v5220
        %v5223 = vrot.slane %v5042, 2
        %v5224 = vsel %vm5124, %v5223, %v5222
        %v5225 = vrot.slane %v5043, 1
        %v5226 = vsel %vm5127, %v5225, %v5224
        %v5227 = vrot.slane %v5045, 7
        %v5228 = vsel %vm5109, %v5227, %v5044
        %v5229 = vrot.slane %v5046, 6
        %v5230 = vsel %vm5112, %v5229, %v5228
        %v5231 = vrot.slane %v5047, 5
        %v5232 = vsel %vm5115, %v5231, %v5230
        %v5233 = vrot.slane %v5048, 4
        %v5234 = vsel %vm5118, %v5233, %v5232
        %v5235 = vrot.slane %v5049, 3
        %v5236 = vsel %vm5121, %v5235, %v5234
        %v5237 = vrot.slane %v5050, 2
        %v5238 = vsel %vm5124, %v5237, %v5236
        %v5239 = vrot.slane %v5051, 1
        %v5240 = vsel %vm5127, %v5239, %v5238
        %v5241 = vrot.slane %v5053, 7
        %v5242 = vsel %vm5109, %v5241, %v5052
        %v5243 = vrot.slane %v5054, 6
        %v5244 = vsel %vm5112, %v5243, %v5242
        %v5245 = vrot.slane %v5055, 5
        %v5246 = vsel %vm5115, %v5245, %v5244
        %v5247 = vrot.slane %v5056, 4
        %v5248 = vsel %vm5118, %v5247, %v5246
        %v5249 = vrot.slane %v5057, 3
        %v5250 = vsel %vm5121, %v5249, %v5248
        %v5251 = vrot.slane %v5058, 2
        %v5252 = vsel %vm5124, %v5251, %v5250
        %v5253 = vrot.slane %v5059, 1
        %v5254 = vsel %vm5127, %v5253, %v5252
        %v5255 = vrot.slane %v5061, 7
        %v5256 = vsel %vm5109, %v5255, %v5060
        %v5257 = vrot.slane %v5062, 6
        %v5258 = vsel %vm5112, %v5257, %v5256
        %v5259 = vrot.slane %v5063, 5
        %v5260 = vsel %vm5115, %v5259, %v5258
        %v5261 = vrot.slane %v5064, 4
        %v5262 = vsel %vm5118, %v5261, %v5260
        %v5263 = vrot.slane %v5065, 3
        %v5264 = vsel %vm5121, %v5263, %v5262
        %v5265 = vrot.slane %v5066, 2
        %v5266 = vsel %vm5124, %v5265, %v5264
        %v5267 = vrot.slane %v5067, 1
        %v5268 = vsel %vm5127, %v5267, %v5266
        %v5269 = vrot.slane %v5069, 7
        %v5270 = vsel %vm5109, %v5269, %v5068
        %v5271 = vrot.slane %v5070, 6
        %v5272 = vsel %vm5112, %v5271, %v5270
        %v5273 = vrot.slane %v5071, 5
        %v5274 = vsel %vm5115, %v5273, %v5272
        %v5275 = vrot.slane %v5072, 4
        %v5276 = vsel %vm5118, %v5275, %v5274
        %v5277 = vrot.slane %v5073, 3
        %v5278 = vsel %vm5121, %v5277, %v5276
        %v5279 = vrot.slane %v5074, 2
        %v5280 = vsel %vm5124, %v5279, %v5278
        %v5281 = vrot.slane %v5075, 1
        %v5282 = vsel %vm5127, %v5281, %v5280
        %v5283 = vrot.slane %v5077, 7
        %v5284 = vsel %vm5109, %v5283, %v5076
        %v5285 = vrot.slane %v5078, 6
        %v5286 = vsel %vm5112, %v5285, %v5284
        %v5287 = vrot.slane %v5079, 5
        %v5288 = vsel %vm5115, %v5287, %v5286
        %v5289 = vrot.slane %v5080, 4
        %v5290 = vsel %vm5118, %v5289, %v5288
        %v5291 = vrot.slane %v5081, 3
        %v5292 = vsel %vm5121, %v5291, %v5290
        %v5293 = vrot.slane %v5082, 2
        %v5294 = vsel %vm5124, %v5293, %v5292
        %v5295 = vrot.slane %v5083, 1
        %v5296 = vsel %vm5127, %v5295, %v5294
        %v5297 = vrot.slane %v5085, 7
        %v5298 = vsel %vm5109, %v5297, %v5084
        %v5299 = vrot.slane %v5086, 6
        %v5300 = vsel %vm5112, %v5299, %v5298
        %v5301 = vrot.slane %v5087, 5
        %v5302 = vsel %vm5115, %v5301, %v5300
        %v5303 = vrot.slane %v5088, 4
        %v5304 = vsel %vm5118, %v5303, %v5302
        %v5305 = vrot.slane %v5089, 3
        %v5306 = vsel %vm5121, %v5305, %v5304
        %v5307 = vrot.slane %v5090, 2
        %v5308 = vsel %vm5124, %v5307, %v5306
        %v5309 = vrot.slane %v5091, 1
        %v5310 = vsel %vm5127, %v5309, %v5308
        %v5311 = vrot.slane %v5093, 7
        %v5312 = vsel %vm5109, %v5311, %v5092
        %v5313 = vrot.slane %v5094, 6
        %v5314 = vsel %vm5112, %v5313, %v5312
        %v5315 = vrot.slane %v5095, 5
        %v5316 = vsel %vm5115, %v5315, %v5314
        %v5317 = vrot.slane %v5096, 4
        %v5318 = vsel %vm5118, %v5317, %v5316
        %v5319 = vrot.slane %v5097, 3
        %v5320 = vsel %vm5121, %v5319, %v5318
        %v5321 = vrot.slane %v5098, 2
        %v5322 = vsel %vm5124, %v5321, %v5320
        %v5323 = vrot.slane %v5099, 1
        %v5324 = vsel %vm5127, %v5323, %v5322
        %v5325 = vrot.slane %v5101, 7
        %v5326 = vsel %vm5109, %v5325, %v5100
        %v5327 = vrot.slane %v5102, 6
        %v5328 = vsel %vm5112, %v5327, %v5326
        %v5329 = vrot.slane %v5103, 5
        %v5330 = vsel %vm5115, %v5329, %v5328
        %v5331 = vrot.slane %v5104, 4
        %v5332 = vsel %vm5118, %v5331, %v5330
        %v5333 = vrot.slane %v5105, 3
        %v5334 = vsel %vm5121, %v5333, %v5332
        %v5335 = vrot.slane %v5106, 2
        %v5336 = vsel %vm5124, %v5335, %v5334
        %v5337 = vrot.slane %v5107, 1
        %v5338 = vsel %vm5127, %v5337, %v5336
        %v5339 = vpack.c.b16 %v5142, %v5128
        %v5340 = vpack.c.b16 %v5170, %v5156
        %v5341 = vpack.c.b16 %v5198, %v5184
        %v5342 = vpack.c.b16 %v5226, %v5212
        %v5343 = vpack.c.b16 %v5254, %v5240
        %v5344 = vpack.c.b16 %v5282, %v5268
        %v5345 = vpack.c.b16 %v5310, %v5296
        %v5346 = vpack.c.b16 %v5338, %v5324
        %v5371 = vunpack.c.l.b16 %v4830
        %v5372 = vunpack.c.h.b16 %v4830
        %v5373 = vunpack.c.l.b16 %v4831
        %v5374 = vunpack.c.h.b16 %v4831
        %v5375 = vunpack.c.l.b16 %v4832
        %v5376 = vunpack.c.h.b16 %v4832
        %v5377 = vunpack.c.l.b16 %v4833
        %v5378 = vunpack.c.h.b16 %v4833
        %v5379 = vunpack.c.l.b16 %v4834
        %v5380 = vunpack.c.h.b16 %v4834
        %v5381 = vunpack.c.l.b16 %v4835
        %v5382 = vunpack.c.h.b16 %v4835
        %v5383 = vunpack.c.l.b16 %v4836
        %v5384 = vunpack.c.h.b16 %v4836
        %v5385 = vunpack.c.l.b16 %v4837
        %v5386 = vunpack.c.h.b16 %v4837
        %v5387 = vunpack.c.l.b16 %v4838
        %v5388 = vunpack.c.h.b16 %v4838
        %v5389 = vunpack.c.l.b16 %v4839
        %v5390 = vunpack.c.h.b16 %v4839
        %v5391 = vunpack.c.l.b16 %v4840
        %v5392 = vunpack.c.h.b16 %v4840
        %v5393 = vunpack.c.l.b16 %v4841
        %v5394 = vunpack.c.h.b16 %v4841
        %v5395 = vunpack.c.l.b16 %v4842
        %v5396 = vunpack.c.h.b16 %v4842
        %v5397 = vunpack.c.l.b16 %v4843
        %v5398 = vunpack.c.h.b16 %v4843
        %v5399 = vunpack.c.l.b16 %v4844
        %v5400 = vunpack.c.h.b16 %v4844
        %v5401 = vunpack.c.l.b16 %v4845
        %v5402 = vunpack.c.h.b16 %v4845
        %v5403 = vpack.c.b16 %v5373, %v5371
        %v5404 = vpack.c.b16 %v5374, %v5372
        %v5405 = vpack.c.b16 %v5377, %v5375
        %v5406 = vpack.c.b16 %v5378, %v5376
        %v5407 = vpack.c.b16 %v5381, %v5379
        %v5408 = vpack.c.b16 %v5382, %v5380
        %v5409 = vpack.c.b16 %v5385, %v5383
        %v5410 = vpack.c.b16 %v5386, %v5384
        %v5411 = vpack.c.b16 %v5389, %v5387
        %v5412 = vpack.c.b16 %v5390, %v5388
        %v5413 = vpack.c.b16 %v5393, %v5391
        %v5414 = vpack.c.b16 %v5394, %v5392
        %v5415 = vpack.c.b16 %v5397, %v5395
        %v5416 = vpack.c.b16 %v5398, %v5396
        %v5417 = vpack.c.b16 %v5401, %v5399
        %v5418 = vpack.c.b16 %v5402, %v5400
        %5435 = vmatpush.bf16.msra.mxu0 %v5417
        %5436 = vmatpush.bf16.msra.mxu0 %v5415
        %5437 = vmatpush.bf16.msra.mxu0 %v5413
        %5438 = vmatpush.bf16.msra.mxu0 %v5411
        %5439 = vmatpush.bf16.msra.mxu0 %v5409
        %5440 = vmatpush.bf16.msra.mxu0 %v5407
        %5441 = vmatpush.bf16.msra.mxu0 %v5405
        %5442 = vmatpush.bf16.msra.mxu0 %v5403
        %5443 = vmatmul.bf16.gmra.mxu0 %v5339
        %v5444 = vpop.f32.mrf.mxu0
        %v5445 = vadd.f32 %v4848, %v5444
        %v5446 = vpop.f32.mrf.mxu0
        %v5447 = vadd.f32 %v4848, %v5446
        %5448 = vmatmul.bf16.gmra.mxu0 %v5340
        %v5449 = vpop.f32.mrf.mxu0
        %v5450 = vadd.f32 %v4848, %v5449
        %v5451 = vpop.f32.mrf.mxu0
        %v5452 = vadd.f32 %v4848, %v5451
        %5453 = vmatmul.bf16.gmra.mxu0 %v5341
        %v5454 = vpop.f32.mrf.mxu0
        %v5455 = vadd.f32 %v4848, %v5454
        %v5456 = vpop.f32.mrf.mxu0
        %v5457 = vadd.f32 %v4848, %v5456
        %5458 = vmatmul.bf16.gmra.mxu0 %v5342
        %v5459 = vpop.f32.mrf.mxu0
        %v5460 = vadd.f32 %v4848, %v5459
        %v5461 = vpop.f32.mrf.mxu0
        %v5462 = vadd.f32 %v4848, %v5461
        %5463 = vmatmul.bf16.gmra.mxu0 %v5343
        %v5464 = vpop.f32.mrf.mxu0
        %v5465 = vadd.f32 %v4848, %v5464
        %v5466 = vpop.f32.mrf.mxu0
        %v5467 = vadd.f32 %v4848, %v5466
        %5468 = vmatmul.bf16.gmra.mxu0 %v5344
        %v5469 = vpop.f32.mrf.mxu0
        %v5470 = vadd.f32 %v4848, %v5469
        %v5471 = vpop.f32.mrf.mxu0
        %v5472 = vadd.f32 %v4848, %v5471
        %5473 = vmatmul.bf16.gmra.mxu0 %v5345
        %v5474 = vpop.f32.mrf.mxu0
        %v5475 = vadd.f32 %v4848, %v5474
        %v5476 = vpop.f32.mrf.mxu0
        %v5477 = vadd.f32 %v4848, %v5476
        %5478 = vmatmul.bf16.gmra.mxu0 %v5346
        %v5479 = vpop.f32.mrf.mxu0
        %v5480 = vadd.f32 %v4848, %v5479
        %v5481 = vpop.f32.mrf.mxu0
        %v5482 = vadd.f32 %v4848, %v5481
        %5483 = vdwg.mxu0
        %5484 = vmatpush.bf16.msra.mxu0 %v5418
        %5485 = vmatpush.bf16.msra.mxu0 %v5416
        %5486 = vmatpush.bf16.msra.mxu0 %v5414
        %5487 = vmatpush.bf16.msra.mxu0 %v5412
        %5488 = vmatpush.bf16.msra.mxu0 %v5410
        %5489 = vmatpush.bf16.msra.mxu0 %v5408
        %5490 = vmatpush.bf16.msra.mxu0 %v5406
        %5491 = vmatpush.bf16.msra.mxu0 %v5404
        %5492 = vmatmul.bf16.gmra.mxu0 %v5339
        %v5493 = vpop.f32.mrf.mxu0
        %v5494 = vadd.f32 %v4849, %v5493
        %v5495 = vpop.f32.mrf.mxu0
        %v5496 = vadd.f32 %v4849, %v5495
        %5497 = vmatmul.bf16.gmra.mxu0 %v5340
        %v5498 = vpop.f32.mrf.mxu0
        %v5499 = vadd.f32 %v4849, %v5498
        %v5500 = vpop.f32.mrf.mxu0
        %v5501 = vadd.f32 %v4849, %v5500
        %5502 = vmatmul.bf16.gmra.mxu0 %v5341
        %v5503 = vpop.f32.mrf.mxu0
        %v5504 = vadd.f32 %v4849, %v5503
        %v5505 = vpop.f32.mrf.mxu0
        %v5506 = vadd.f32 %v4849, %v5505
        %5507 = vmatmul.bf16.gmra.mxu0 %v5342
        %v5508 = vpop.f32.mrf.mxu0
        %v5509 = vadd.f32 %v4849, %v5508
        %v5510 = vpop.f32.mrf.mxu0
        %v5511 = vadd.f32 %v4849, %v5510
        %5512 = vmatmul.bf16.gmra.mxu0 %v5343
        %v5513 = vpop.f32.mrf.mxu0
        %v5514 = vadd.f32 %v4849, %v5513
        %v5515 = vpop.f32.mrf.mxu0
        %v5516 = vadd.f32 %v4849, %v5515
        %5517 = vmatmul.bf16.gmra.mxu0 %v5344
        %v5518 = vpop.f32.mrf.mxu0
        %v5519 = vadd.f32 %v4849, %v5518
        %v5520 = vpop.f32.mrf.mxu0
        %v5521 = vadd.f32 %v4849, %v5520
        %5522 = vmatmul.bf16.gmra.mxu0 %v5345
        %v5523 = vpop.f32.mrf.mxu0
        %v5524 = vadd.f32 %v4849, %v5523
        %v5525 = vpop.f32.mrf.mxu0
        %v5526 = vadd.f32 %v4849, %v5525
        %5527 = vmatmul.bf16.gmra.mxu0 %v5346
        %v5528 = vpop.f32.mrf.mxu0
        %v5529 = vadd.f32 %v4849, %v5528
        %v5530 = vpop.f32.mrf.mxu0
        %v5531 = vadd.f32 %v4849, %v5530
        %5532 = vdwg.mxu0
        %v5533 = vxor.u32 %v5445, 2147483648
        %v5534 = vxor.u32 %v5447, 2147483648
        %v5535 = vxor.u32 %v5450, 2147483648
        %v5536 = vxor.u32 %v5452, 2147483648
        %v5537 = vxor.u32 %v5455, 2147483648
        %v5538 = vxor.u32 %v5457, 2147483648
        %v5539 = vxor.u32 %v5460, 2147483648
        %v5540 = vxor.u32 %v5462, 2147483648
        %v5541 = vxor.u32 %v5465, 2147483648
        %v5542 = vxor.u32 %v5467, 2147483648
        %v5543 = vxor.u32 %v5470, 2147483648
        %v5544 = vxor.u32 %v5472, 2147483648
        %v5545 = vxor.u32 %v5475, 2147483648
        %v5546 = vxor.u32 %v5477, 2147483648
        %v5547 = vxor.u32 %v5480, 2147483648
        %v5548 = vxor.u32 %v5482, 2147483648
        %v5549 = vmul.f32 %v5533, 1.442695
        %v5550 = vpow.pop %v5549
        %v5551 = vmul.f32 %v5534, 1.442695
        %v5552 = vpow.pop %v5551
        %v5553 = vmul.f32 %v5535, 1.442695
        %v5554 = vpow.pop %v5553
        %v5555 = vmul.f32 %v5536, 1.442695
        %v5556 = vpow.pop %v5555
        %v5557 = vmul.f32 %v5537, 1.442695
        %v5558 = vpow.pop %v5557
        %v5559 = vmul.f32 %v5538, 1.442695
        %v5560 = vpow.pop %v5559
        %v5561 = vmul.f32 %v5539, 1.442695
        %v5562 = vpow.pop %v5561
        %v5563 = vmul.f32 %v5540, 1.442695
        %v5564 = vpow.pop %v5563
        %v5565 = vmul.f32 %v5541, 1.442695
        %v5566 = vpow.pop %v5565
        %v5567 = vmul.f32 %v5542, 1.442695
        %v5568 = vpow.pop %v5567
        %v5569 = vmul.f32 %v5543, 1.442695
        %v5570 = vpow.pop %v5569
        %v5571 = vmul.f32 %v5544, 1.442695
        %v5572 = vpow.pop %v5571
        %v5573 = vmul.f32 %v5545, 1.442695
        %v5574 = vpow.pop %v5573
        %v5575 = vmul.f32 %v5546, 1.442695
        %v5576 = vpow.pop %v5575
        %v5577 = vmul.f32 %v5547, 1.442695
        %v5578 = vpow.pop %v5577
        %v5579 = vmul.f32 %v5548, 1.442695
        %v5580 = vpow.pop %v5579
        %v5581 = vadd.f32 %v5550, 1.0
        %v5582 = vadd.f32 %v5552, 1.0
        %v5583 = vadd.f32 %v5554, 1.0
        %v5584 = vadd.f32 %v5556, 1.0
        %v5585 = vadd.f32 %v5558, 1.0
        %v5586 = vadd.f32 %v5560, 1.0
        %v5587 = vadd.f32 %v5562, 1.0
        %v5588 = vadd.f32 %v5564, 1.0
        %v5589 = vadd.f32 %v5566, 1.0
        %v5590 = vadd.f32 %v5568, 1.0
        %v5591 = vadd.f32 %v5570, 1.0
        %v5592 = vadd.f32 %v5572, 1.0
        %v5593 = vadd.f32 %v5574, 1.0
        %v5594 = vadd.f32 %v5576, 1.0
        %v5595 = vadd.f32 %v5578, 1.0
        %v5596 = vadd.f32 %v5580, 1.0
        %v5597 = vrcp.pop %v5581
        %v5598 = vmul.f32 %v5581, %v5597
        %v5599 = vsub.f32 1.0, %v5598
        %v5600 = vmul.f32 %v5597, %v5599
        %v5601 = vadd.f32 %v5597, %v5600
        %vm5602 = vweird.f32 %v5581
        %vm5603 = vweird.f32 %v5597
        %vm5604 = vmor %vm5602, %vm5603
        %v5605 = vsel %vm5604, %v5597, %v5601
        %v5606 = vand.u32 2147483647, %v5581
        %vm5607 = vcmp.eq.f32.partialorder %v5606, 8.507059e+37
        %v5608 = vand.u32 %v5581, 2147483648
        %v5609 = vor.u32 1.1754944e-38, %v5608
        %v5610 = vsel %vm5607, %v5609, %v5605
        %v5611 = vmul.f32 1.0, %v5610
        %v5612 = vrcp.pop %v5582
        %v5613 = vmul.f32 %v5582, %v5612
        %v5614 = vsub.f32 1.0, %v5613
        %v5615 = vmul.f32 %v5612, %v5614
        %v5616 = vadd.f32 %v5612, %v5615
        %vm5617 = vweird.f32 %v5582
        %vm5618 = vweird.f32 %v5612
        %vm5619 = vmor %vm5617, %vm5618
        %v5620 = vsel %vm5619, %v5612, %v5616
        %v5621 = vand.u32 2147483647, %v5582
        %vm5622 = vcmp.eq.f32.partialorder %v5621, 8.507059e+37
        %v5623 = vand.u32 %v5582, 2147483648
        %v5624 = vor.u32 1.1754944e-38, %v5623
        %v5625 = vsel %vm5622, %v5624, %v5620
        %v5626 = vmul.f32 1.0, %v5625
        %v5627 = vrcp.pop %v5583
        %v5628 = vmul.f32 %v5583, %v5627
        %v5629 = vsub.f32 1.0, %v5628
        %v5630 = vmul.f32 %v5627, %v5629
        %v5631 = vadd.f32 %v5627, %v5630
        %vm5632 = vweird.f32 %v5583
        %vm5633 = vweird.f32 %v5627
        %vm5634 = vmor %vm5632, %vm5633
        %v5635 = vsel %vm5634, %v5627, %v5631
        %v5636 = vand.u32 2147483647, %v5583
        %vm5637 = vcmp.eq.f32.partialorder %v5636, 8.507059e+37
        %v5638 = vand.u32 %v5583, 2147483648
        %v5639 = vor.u32 1.1754944e-38, %v5638
        %v5640 = vsel %vm5637, %v5639, %v5635
        %v5641 = vmul.f32 1.0, %v5640
        %v5642 = vrcp.pop %v5584
        %v5643 = vmul.f32 %v5584, %v5642
        %v5644 = vsub.f32 1.0, %v5643
        %v5645 = vmul.f32 %v5642, %v5644
        %v5646 = vadd.f32 %v5642, %v5645
        %vm5647 = vweird.f32 %v5584
        %vm5648 = vweird.f32 %v5642
        %vm5649 = vmor %vm5647, %vm5648
        %v5650 = vsel %vm5649, %v5642, %v5646
        %v5651 = vand.u32 2147483647, %v5584
        %vm5652 = vcmp.eq.f32.partialorder %v5651, 8.507059e+37
        %v5653 = vand.u32 %v5584, 2147483648
        %v5654 = vor.u32 1.1754944e-38, %v5653
        %v5655 = vsel %vm5652, %v5654, %v5650
        %v5656 = vmul.f32 1.0, %v5655
        %v5657 = vrcp.pop %v5585
        %v5658 = vmul.f32 %v5585, %v5657
        %v5659 = vsub.f32 1.0, %v5658
        %v5660 = vmul.f32 %v5657, %v5659
        %v5661 = vadd.f32 %v5657, %v5660
        %vm5662 = vweird.f32 %v5585
        %vm5663 = vweird.f32 %v5657
        %vm5664 = vmor %vm5662, %vm5663
        %v5665 = vsel %vm5664, %v5657, %v5661
        %v5666 = vand.u32 2147483647, %v5585
        %vm5667 = vcmp.eq.f32.partialorder %v5666, 8.507059e+37
        %v5668 = vand.u32 %v5585, 2147483648
        %v5669 = vor.u32 1.1754944e-38, %v5668
        %v5670 = vsel %vm5667, %v5669, %v5665
        %v5671 = vmul.f32 1.0, %v5670
        %v5672 = vrcp.pop %v5586
        %v5673 = vmul.f32 %v5586, %v5672
        %v5674 = vsub.f32 1.0, %v5673
        %v5675 = vmul.f32 %v5672, %v5674
        %v5676 = vadd.f32 %v5672, %v5675
        %vm5677 = vweird.f32 %v5586
        %vm5678 = vweird.f32 %v5672
        %vm5679 = vmor %vm5677, %vm5678
        %v5680 = vsel %vm5679, %v5672, %v5676
        %v5681 = vand.u32 2147483647, %v5586
        %vm5682 = vcmp.eq.f32.partialorder %v5681, 8.507059e+37
        %v5683 = vand.u32 %v5586, 2147483648
        %v5684 = vor.u32 1.1754944e-38, %v5683
        %v5685 = vsel %vm5682, %v5684, %v5680
        %v5686 = vmul.f32 1.0, %v5685
        %v5687 = vrcp.pop %v5587
        %v5688 = vmul.f32 %v5587, %v5687
        %v5689 = vsub.f32 1.0, %v5688
        %v5690 = vmul.f32 %v5687, %v5689
        %v5691 = vadd.f32 %v5687, %v5690
        %vm5692 = vweird.f32 %v5587
        %vm5693 = vweird.f32 %v5687
        %vm5694 = vmor %vm5692, %vm5693
        %v5695 = vsel %vm5694, %v5687, %v5691
        %v5696 = vand.u32 2147483647, %v5587
        %vm5697 = vcmp.eq.f32.partialorder %v5696, 8.507059e+37
        %v5698 = vand.u32 %v5587, 2147483648
        %v5699 = vor.u32 1.1754944e-38, %v5698
        %v5700 = vsel %vm5697, %v5699, %v5695
        %v5701 = vmul.f32 1.0, %v5700
        %v5702 = vrcp.pop %v5588
        %v5703 = vmul.f32 %v5588, %v5702
        %v5704 = vsub.f32 1.0, %v5703
        %v5705 = vmul.f32 %v5702, %v5704
        %v5706 = vadd.f32 %v5702, %v5705
        %vm5707 = vweird.f32 %v5588
        %vm5708 = vweird.f32 %v5702
        %vm5709 = vmor %vm5707, %vm5708
        %v5710 = vsel %vm5709, %v5702, %v5706
        %v5711 = vand.u32 2147483647, %v5588
        %vm5712 = vcmp.eq.f32.partialorder %v5711, 8.507059e+37
        %v5713 = vand.u32 %v5588, 2147483648
        %v5714 = vor.u32 1.1754944e-38, %v5713
        %v5715 = vsel %vm5712, %v5714, %v5710
        %v5716 = vmul.f32 1.0, %v5715
        %v5717 = vrcp.pop %v5589
        %v5718 = vmul.f32 %v5589, %v5717
        %v5719 = vsub.f32 1.0, %v5718
        %v5720 = vmul.f32 %v5717, %v5719
        %v5721 = vadd.f32 %v5717, %v5720
        %vm5722 = vweird.f32 %v5589
        %vm5723 = vweird.f32 %v5717
        %vm5724 = vmor %vm5722, %vm5723
        %v5725 = vsel %vm5724, %v5717, %v5721
        %v5726 = vand.u32 2147483647, %v5589
        %vm5727 = vcmp.eq.f32.partialorder %v5726, 8.507059e+37
        %v5728 = vand.u32 %v5589, 2147483648
        %v5729 = vor.u32 1.1754944e-38, %v5728
        %v5730 = vsel %vm5727, %v5729, %v5725
        %v5731 = vmul.f32 1.0, %v5730
        %v5732 = vrcp.pop %v5590
        %v5733 = vmul.f32 %v5590, %v5732
        %v5734 = vsub.f32 1.0, %v5733
        %v5735 = vmul.f32 %v5732, %v5734
        %v5736 = vadd.f32 %v5732, %v5735
        %vm5737 = vweird.f32 %v5590
        %vm5738 = vweird.f32 %v5732
        %vm5739 = vmor %vm5737, %vm5738
        %v5740 = vsel %vm5739, %v5732, %v5736
        %v5741 = vand.u32 2147483647, %v5590
        %vm5742 = vcmp.eq.f32.partialorder %v5741, 8.507059e+37
        %v5743 = vand.u32 %v5590, 2147483648
        %v5744 = vor.u32 1.1754944e-38, %v5743
        %v5745 = vsel %vm5742, %v5744, %v5740
        %v5746 = vmul.f32 1.0, %v5745
        %v5747 = vrcp.pop %v5591
        %v5748 = vmul.f32 %v5591, %v5747
        %v5749 = vsub.f32 1.0, %v5748
        %v5750 = vmul.f32 %v5747, %v5749
        %v5751 = vadd.f32 %v5747, %v5750
        %vm5752 = vweird.f32 %v5591
        %vm5753 = vweird.f32 %v5747
        %vm5754 = vmor %vm5752, %vm5753
        %v5755 = vsel %vm5754, %v5747, %v5751
        %v5756 = vand.u32 2147483647, %v5591
        %vm5757 = vcmp.eq.f32.partialorder %v5756, 8.507059e+37
        %v5758 = vand.u32 %v5591, 2147483648
        %v5759 = vor.u32 1.1754944e-38, %v5758
        %v5760 = vsel %vm5757, %v5759, %v5755
        %v5761 = vmul.f32 1.0, %v5760
        %v5762 = vrcp.pop %v5592
        %v5763 = vmul.f32 %v5592, %v5762
        %v5764 = vsub.f32 1.0, %v5763
        %v5765 = vmul.f32 %v5762, %v5764
        %v5766 = vadd.f32 %v5762, %v5765
        %vm5767 = vweird.f32 %v5592
        %vm5768 = vweird.f32 %v5762
        %vm5769 = vmor %vm5767, %vm5768
        %v5770 = vsel %vm5769, %v5762, %v5766
        %v5771 = vand.u32 2147483647, %v5592
        %vm5772 = vcmp.eq.f32.partialorder %v5771, 8.507059e+37
        %v5773 = vand.u32 %v5592, 2147483648
        %v5774 = vor.u32 1.1754944e-38, %v5773
        %v5775 = vsel %vm5772, %v5774, %v5770
        %v5776 = vmul.f32 1.0, %v5775
        %v5777 = vrcp.pop %v5593
        %v5778 = vmul.f32 %v5593, %v5777
        %v5779 = vsub.f32 1.0, %v5778
        %v5780 = vmul.f32 %v5777, %v5779
        %v5781 = vadd.f32 %v5777, %v5780
        %vm5782 = vweird.f32 %v5593
        %vm5783 = vweird.f32 %v5777
        %vm5784 = vmor %vm5782, %vm5783
        %v5785 = vsel %vm5784, %v5777, %v5781
        %v5786 = vand.u32 2147483647, %v5593
        %vm5787 = vcmp.eq.f32.partialorder %v5786, 8.507059e+37
        %v5788 = vand.u32 %v5593, 2147483648
        %v5789 = vor.u32 1.1754944e-38, %v5788
        %v5790 = vsel %vm5787, %v5789, %v5785
        %v5791 = vmul.f32 1.0, %v5790
        %v5792 = vrcp.pop %v5594
        %v5793 = vmul.f32 %v5594, %v5792
        %v5794 = vsub.f32 1.0, %v5793
        %v5795 = vmul.f32 %v5792, %v5794
        %v5796 = vadd.f32 %v5792, %v5795
        %vm5797 = vweird.f32 %v5594
        %vm5798 = vweird.f32 %v5792
        %vm5799 = vmor %vm5797, %vm5798
        %v5800 = vsel %vm5799, %v5792, %v5796
        %v5801 = vand.u32 2147483647, %v5594
        %vm5802 = vcmp.eq.f32.partialorder %v5801, 8.507059e+37
        %v5803 = vand.u32 %v5594, 2147483648
        %v5804 = vor.u32 1.1754944e-38, %v5803
        %v5805 = vsel %vm5802, %v5804, %v5800
        %v5806 = vmul.f32 1.0, %v5805
        %v5807 = vrcp.pop %v5595
        %v5808 = vmul.f32 %v5595, %v5807
        %v5809 = vsub.f32 1.0, %v5808
        %v5810 = vmul.f32 %v5807, %v5809
        %v5811 = vadd.f32 %v5807, %v5810
        %vm5812 = vweird.f32 %v5595
        %vm5813 = vweird.f32 %v5807
        %vm5814 = vmor %vm5812, %vm5813
        %v5815 = vsel %vm5814, %v5807, %v5811
        %v5816 = vand.u32 2147483647, %v5595
        %vm5817 = vcmp.eq.f32.partialorder %v5816, 8.507059e+37
        %v5818 = vand.u32 %v5595, 2147483648
        %v5819 = vor.u32 1.1754944e-38, %v5818
        %v5820 = vsel %vm5817, %v5819, %v5815
        %v5821 = vmul.f32 1.0, %v5820
        %v5822 = vrcp.pop %v5596
        %v5823 = vmul.f32 %v5596, %v5822
        %v5824 = vsub.f32 1.0, %v5823
        %v5825 = vmul.f32 %v5822, %v5824
        %v5826 = vadd.f32 %v5822, %v5825
        %vm5827 = vweird.f32 %v5596
        %vm5828 = vweird.f32 %v5822
        %vm5829 = vmor %vm5827, %vm5828
        %v5830 = vsel %vm5829, %v5822, %v5826
        %v5831 = vand.u32 2147483647, %v5596
        %vm5832 = vcmp.eq.f32.partialorder %v5831, 8.507059e+37
        %v5833 = vand.u32 %v5596, 2147483648
        %v5834 = vor.u32 1.1754944e-38, %v5833
        %v5835 = vsel %vm5832, %v5834, %v5830
        %v5836 = vmul.f32 1.0, %v5835
        %v5837 = vmax.f32 %v5494, 0.0
        %v5838 = vmax.f32 %v5496, 0.0
        %v5839 = vmax.f32 %v5499, 0.0
        %v5840 = vmax.f32 %v5501, 0.0
        %v5841 = vmax.f32 %v5504, 0.0
        %v5842 = vmax.f32 %v5506, 0.0
        %v5843 = vmax.f32 %v5509, 0.0
        %v5844 = vmax.f32 %v5511, 0.0
        %v5845 = vmax.f32 %v5514, 0.0
        %v5846 = vmax.f32 %v5516, 0.0
        %v5847 = vmax.f32 %v5519, 0.0
        %v5848 = vmax.f32 %v5521, 0.0
        %v5849 = vmax.f32 %v5524, 0.0
        %v5850 = vmax.f32 %v5526, 0.0
        %v5851 = vmax.f32 %v5529, 0.0
        %v5852 = vmax.f32 %v5531, 0.0
        %v5981 = vrot.slane %v4575, 7
        %v5982 = vsel %vm5109, %v5981, %v4574
        %v5983 = vrot.slane %v4576, 6
        %v5984 = vsel %vm5112, %v5983, %v5982
        %v5985 = vrot.slane %v4577, 5
        %v5986 = vsel %vm5115, %v5985, %v5984
        %v5987 = vrot.slane %v4578, 4
        %v5988 = vsel %vm5118, %v5987, %v5986
        %v5989 = vrot.slane %v4579, 3
        %v5990 = vsel %vm5121, %v5989, %v5988
        %v5991 = vrot.slane %v4580, 2
        %v5992 = vsel %vm5124, %v5991, %v5990
        %v5993 = vrot.slane %v4581, 1
        %v5994 = vsel %vm5127, %v5993, %v5992
        %v5995 = vrot.slane %v4583, 7
        %v5996 = vsel %vm5109, %v5995, %v4582
        %v5997 = vrot.slane %v4584, 6
        %v5998 = vsel %vm5112, %v5997, %v5996
        %v5999 = vrot.slane %v4585, 5
        %v6000 = vsel %vm5115, %v5999, %v5998
        %v6001 = vrot.slane %v4586, 4
        %v6002 = vsel %vm5118, %v6001, %v6000
        %v6003 = vrot.slane %v4587, 3
        %v6004 = vsel %vm5121, %v6003, %v6002
        %v6005 = vrot.slane %v4588, 2
        %v6006 = vsel %vm5124, %v6005, %v6004
        %v6007 = vrot.slane %v4589, 1
        %v6008 = vsel %vm5127, %v6007, %v6006
        %v6009 = vrot.slane %v4591, 7
        %v6010 = vsel %vm5109, %v6009, %v4590
        %v6011 = vrot.slane %v4592, 6
        %v6012 = vsel %vm5112, %v6011, %v6010
        %v6013 = vrot.slane %v4593, 5
        %v6014 = vsel %vm5115, %v6013, %v6012
        %v6015 = vrot.slane %v4594, 4
        %v6016 = vsel %vm5118, %v6015, %v6014
        %v6017 = vrot.slane %v4595, 3
        %v6018 = vsel %vm5121, %v6017, %v6016
        %v6019 = vrot.slane %v4596, 2
        %v6020 = vsel %vm5124, %v6019, %v6018
        %v6021 = vrot.slane %v4597, 1
        %v6022 = vsel %vm5127, %v6021, %v6020
        %v6023 = vrot.slane %v4599, 7
        %v6024 = vsel %vm5109, %v6023, %v4598
        %v6025 = vrot.slane %v4600, 6
        %v6026 = vsel %vm5112, %v6025, %v6024
        %v6027 = vrot.slane %v4601, 5
        %v6028 = vsel %vm5115, %v6027, %v6026
        %v6029 = vrot.slane %v4602, 4
        %v6030 = vsel %vm5118, %v6029, %v6028
        %v6031 = vrot.slane %v4603, 3
        %v6032 = vsel %vm5121, %v6031, %v6030
        %v6033 = vrot.slane %v4604, 2
        %v6034 = vsel %vm5124, %v6033, %v6032
        %v6035 = vrot.slane %v4605, 1
        %v6036 = vsel %vm5127, %v6035, %v6034
        %v6037 = vrot.slane %v4607, 7
        %v6038 = vsel %vm5109, %v6037, %v4606
        %v6039 = vrot.slane %v4608, 6
        %v6040 = vsel %vm5112, %v6039, %v6038
        %v6041 = vrot.slane %v4609, 5
        %v6042 = vsel %vm5115, %v6041, %v6040
        %v6043 = vrot.slane %v4610, 4
        %v6044 = vsel %vm5118, %v6043, %v6042
        %v6045 = vrot.slane %v4611, 3
        %v6046 = vsel %vm5121, %v6045, %v6044
        %v6047 = vrot.slane %v4612, 2
        %v6048 = vsel %vm5124, %v6047, %v6046
        %v6049 = vrot.slane %v4613, 1
        %v6050 = vsel %vm5127, %v6049, %v6048
        %v6051 = vrot.slane %v4615, 7
        %v6052 = vsel %vm5109, %v6051, %v4614
        %v6053 = vrot.slane %v4616, 6
        %v6054 = vsel %vm5112, %v6053, %v6052
        %v6055 = vrot.slane %v4617, 5
        %v6056 = vsel %vm5115, %v6055, %v6054
        %v6057 = vrot.slane %v4618, 4
        %v6058 = vsel %vm5118, %v6057, %v6056
        %v6059 = vrot.slane %v4619, 3
        %v6060 = vsel %vm5121, %v6059, %v6058
        %v6061 = vrot.slane %v4620, 2
        %v6062 = vsel %vm5124, %v6061, %v6060
        %v6063 = vrot.slane %v4621, 1
        %v6064 = vsel %vm5127, %v6063, %v6062
        %v6065 = vrot.slane %v4623, 7
        %v6066 = vsel %vm5109, %v6065, %v4622
        %v6067 = vrot.slane %v4624, 6
        %v6068 = vsel %vm5112, %v6067, %v6066
        %v6069 = vrot.slane %v4625, 5
        %v6070 = vsel %vm5115, %v6069, %v6068
        %v6071 = vrot.slane %v4626, 4
        %v6072 = vsel %vm5118, %v6071, %v6070
        %v6073 = vrot.slane %v4627, 3
        %v6074 = vsel %vm5121, %v6073, %v6072
        %v6075 = vrot.slane %v4628, 2
        %v6076 = vsel %vm5124, %v6075, %v6074
        %v6077 = vrot.slane %v4629, 1
        %v6078 = vsel %vm5127, %v6077, %v6076
        %v6079 = vrot.slane %v4631, 7
        %v6080 = vsel %vm5109, %v6079, %v4630
        %v6081 = vrot.slane %v4632, 6
        %v6082 = vsel %vm5112, %v6081, %v6080
        %v6083 = vrot.slane %v4633, 5
        %v6084 = vsel %vm5115, %v6083, %v6082
        %v6085 = vrot.slane %v4634, 4
        %v6086 = vsel %vm5118, %v6085, %v6084
        %v6087 = vrot.slane %v4635, 3
        %v6088 = vsel %vm5121, %v6087, %v6086
        %v6089 = vrot.slane %v4636, 2
        %v6090 = vsel %vm5124, %v6089, %v6088
        %v6091 = vrot.slane %v4637, 1
        %v6092 = vsel %vm5127, %v6091, %v6090
        %v6093 = vrot.slane %v4639, 7
        %v6094 = vsel %vm5109, %v6093, %v4638
        %v6095 = vrot.slane %v4640, 6
        %v6096 = vsel %vm5112, %v6095, %v6094
        %v6097 = vrot.slane %v4641, 5
        %v6098 = vsel %vm5115, %v6097, %v6096
        %v6099 = vrot.slane %v4642, 4
        %v6100 = vsel %vm5118, %v6099, %v6098
        %v6101 = vrot.slane %v4643, 3
        %v6102 = vsel %vm5121, %v6101, %v6100
        %v6103 = vrot.slane %v4644, 2
        %v6104 = vsel %vm5124, %v6103, %v6102
        %v6105 = vrot.slane %v4645, 1
        %v6106 = vsel %vm5127, %v6105, %v6104
        %v6107 = vrot.slane %v4647, 7
        %v6108 = vsel %vm5109, %v6107, %v4646
        %v6109 = vrot.slane %v4648, 6
        %v6110 = vsel %vm5112, %v6109, %v6108
        %v6111 = vrot.slane %v4649, 5
        %v6112 = vsel %vm5115, %v6111, %v6110
        %v6113 = vrot.slane %v4650, 4
        %v6114 = vsel %vm5118, %v6113, %v6112
        %v6115 = vrot.slane %v4651, 3
        %v6116 = vsel %vm5121, %v6115, %v6114
        %v6117 = vrot.slane %v4652, 2
        %v6118 = vsel %vm5124, %v6117, %v6116
        %v6119 = vrot.slane %v4653, 1
        %v6120 = vsel %vm5127, %v6119, %v6118
        %v6121 = vrot.slane %v4655, 7
        %v6122 = vsel %vm5109, %v6121, %v4654
        %v6123 = vrot.slane %v4656, 6
        %v6124 = vsel %vm5112, %v6123, %v6122
        %v6125 = vrot.slane %v4657, 5
        %v6126 = vsel %vm5115, %v6125, %v6124
        %v6127 = vrot.slane %v4658, 4
        %v6128 = vsel %vm5118, %v6127, %v6126
        %v6129 = vrot.slane %v4659, 3
        %v6130 = vsel %vm5121, %v6129, %v6128
        %v6131 = vrot.slane %v4660, 2
        %v6132 = vsel %vm5124, %v6131, %v6130
        %v6133 = vrot.slane %v4661, 1
        %v6134 = vsel %vm5127, %v6133, %v6132
        %v6135 = vrot.slane %v4663, 7
        %v6136 = vsel %vm5109, %v6135, %v4662
        %v6137 = vrot.slane %v4664, 6
        %v6138 = vsel %vm5112, %v6137, %v6136
        %v6139 = vrot.slane %v4665, 5
        %v6140 = vsel %vm5115, %v6139, %v6138
        %v6141 = vrot.slane %v4666, 4
        %v6142 = vsel %vm5118, %v6141, %v6140
        %v6143 = vrot.slane %v4667, 3
        %v6144 = vsel %vm5121, %v6143, %v6142
        %v6145 = vrot.slane %v4668, 2
        %v6146 = vsel %vm5124, %v6145, %v6144
        %v6147 = vrot.slane %v4669, 1
        %v6148 = vsel %vm5127, %v6147, %v6146
        %v6149 = vrot.slane %v4671, 7
        %v6150 = vsel %vm5109, %v6149, %v4670
        %v6151 = vrot.slane %v4672, 6
        %v6152 = vsel %vm5112, %v6151, %v6150
        %v6153 = vrot.slane %v4673, 5
        %v6154 = vsel %vm5115, %v6153, %v6152
        %v6155 = vrot.slane %v4674, 4
        %v6156 = vsel %vm5118, %v6155, %v6154
        %v6157 = vrot.slane %v4675, 3
        %v6158 = vsel %vm5121, %v6157, %v6156
        %v6159 = vrot.slane %v4676, 2
        %v6160 = vsel %vm5124, %v6159, %v6158
        %v6161 = vrot.slane %v4677, 1
        %v6162 = vsel %vm5127, %v6161, %v6160
        %v6163 = vrot.slane %v4679, 7
        %v6164 = vsel %vm5109, %v6163, %v4678
        %v6165 = vrot.slane %v4680, 6
        %v6166 = vsel %vm5112, %v6165, %v6164
        %v6167 = vrot.slane %v4681, 5
        %v6168 = vsel %vm5115, %v6167, %v6166
        %v6169 = vrot.slane %v4682, 4
        %v6170 = vsel %vm5118, %v6169, %v6168
        %v6171 = vrot.slane %v4683, 3
        %v6172 = vsel %vm5121, %v6171, %v6170
        %v6173 = vrot.slane %v4684, 2
        %v6174 = vsel %vm5124, %v6173, %v6172
        %v6175 = vrot.slane %v4685, 1
        %v6176 = vsel %vm5127, %v6175, %v6174
        %v6177 = vrot.slane %v4687, 7
        %v6178 = vsel %vm5109, %v6177, %v4686
        %v6179 = vrot.slane %v4688, 6
        %v6180 = vsel %vm5112, %v6179, %v6178
        %v6181 = vrot.slane %v4689, 5
        %v6182 = vsel %vm5115, %v6181, %v6180
        %v6183 = vrot.slane %v4690, 4
        %v6184 = vsel %vm5118, %v6183, %v6182
        %v6185 = vrot.slane %v4691, 3
        %v6186 = vsel %vm5121, %v6185, %v6184
        %v6187 = vrot.slane %v4692, 2
        %v6188 = vsel %vm5124, %v6187, %v6186
        %v6189 = vrot.slane %v4693, 1
        %v6190 = vsel %vm5127, %v6189, %v6188
        %v6191 = vrot.slane %v4695, 7
        %v6192 = vsel %vm5109, %v6191, %v4694
        %v6193 = vrot.slane %v4696, 6
        %v6194 = vsel %vm5112, %v6193, %v6192
        %v6195 = vrot.slane %v4697, 5
        %v6196 = vsel %vm5115, %v6195, %v6194
        %v6197 = vrot.slane %v4698, 4
        %v6198 = vsel %vm5118, %v6197, %v6196
        %v6199 = vrot.slane %v4699, 3
        %v6200 = vsel %vm5121, %v6199, %v6198
        %v6201 = vrot.slane %v4700, 2
        %v6202 = vsel %vm5124, %v6201, %v6200
        %v6203 = vrot.slane %v4701, 1
        %v6204 = vsel %vm5127, %v6203, %v6202
        %v6221 = vsub.f32 %v5837, %v5994
        %v6222 = vsub.f32 %v5838, %v6008
        %v6223 = vsub.f32 %v5839, %v6022
        %v6224 = vsub.f32 %v5840, %v6036
        %v6225 = vsub.f32 %v5841, %v6050
        %v6226 = vsub.f32 %v5842, %v6064
        %v6227 = vsub.f32 %v5843, %v6078
        %v6228 = vsub.f32 %v5844, %v6092
        %v6229 = vsub.f32 %v5845, %v6106
        %v6230 = vsub.f32 %v5846, %v6120
        %v6231 = vsub.f32 %v5847, %v6134
        %v6232 = vsub.f32 %v5848, %v6148
        %v6233 = vsub.f32 %v5849, %v6162
        %v6234 = vsub.f32 %v5850, %v6176
        %v6235 = vsub.f32 %v5851, %v6190
        %v6236 = vsub.f32 %v5852, %v6204
        %v6237 = vmul.f32 %v5611, %v6221
        %v6238 = vmul.f32 %v5626, %v6222
        %v6239 = vmul.f32 %v5641, %v6223
        %v6240 = vmul.f32 %v5656, %v6224
        %v6241 = vmul.f32 %v5671, %v6225
        %v6242 = vmul.f32 %v5686, %v6226
        %v6243 = vmul.f32 %v5701, %v6227
        %v6244 = vmul.f32 %v5716, %v6228
        %v6245 = vmul.f32 %v5731, %v6229
        %v6246 = vmul.f32 %v5746, %v6230
        %v6247 = vmul.f32 %v5761, %v6231
        %v6248 = vmul.f32 %v5776, %v6232
        %v6249 = vmul.f32 %v5791, %v6233
        %v6250 = vmul.f32 %v5806, %v6234
        %v6251 = vmul.f32 %v5821, %v6235
        %v6252 = vmul.f32 %v5836, %v6236
        %v6269 = vrot.slane %v6237, 1
        %v6270 = vrot.slane %v6237, 2
        %v6271 = vrot.slane %v6237, 3
        %v6272 = vrot.slane %v6237, 4
        %v6273 = vrot.slane %v6237, 5
        %v6274 = vrot.slane %v6237, 6
        %v6275 = vrot.slane %v6237, 7
        %v6276 = vrot.slane %v6238, 1
        %v6277 = vrot.slane %v6238, 2
        %v6278 = vrot.slane %v6238, 3
        %v6279 = vrot.slane %v6238, 4
        %v6280 = vrot.slane %v6238, 5
        %v6281 = vrot.slane %v6238, 6
        %v6282 = vrot.slane %v6238, 7
        %v6283 = vrot.slane %v6239, 1
        %v6284 = vrot.slane %v6239, 2
        %v6285 = vrot.slane %v6239, 3
        %v6286 = vrot.slane %v6239, 4
        %v6287 = vrot.slane %v6239, 5
        %v6288 = vrot.slane %v6239, 6
        %v6289 = vrot.slane %v6239, 7
        %v6290 = vrot.slane %v6240, 1
        %v6291 = vrot.slane %v6240, 2
        %v6292 = vrot.slane %v6240, 3
        %v6293 = vrot.slane %v6240, 4
        %v6294 = vrot.slane %v6240, 5
        %v6295 = vrot.slane %v6240, 6
        %v6296 = vrot.slane %v6240, 7
        %v6297 = vrot.slane %v6241, 1
        %v6298 = vrot.slane %v6241, 2
        %v6299 = vrot.slane %v6241, 3
        %v6300 = vrot.slane %v6241, 4
        %v6301 = vrot.slane %v6241, 5
        %v6302 = vrot.slane %v6241, 6
        %v6303 = vrot.slane %v6241, 7
        %v6304 = vrot.slane %v6242, 1
        %v6305 = vrot.slane %v6242, 2
        %v6306 = vrot.slane %v6242, 3
        %v6307 = vrot.slane %v6242, 4
        %v6308 = vrot.slane %v6242, 5
        %v6309 = vrot.slane %v6242, 6
        %v6310 = vrot.slane %v6242, 7
        %v6311 = vrot.slane %v6243, 1
        %v6312 = vrot.slane %v6243, 2
        %v6313 = vrot.slane %v6243, 3
        %v6314 = vrot.slane %v6243, 4
        %v6315 = vrot.slane %v6243, 5
        %v6316 = vrot.slane %v6243, 6
        %v6317 = vrot.slane %v6243, 7
        %v6318 = vrot.slane %v6244, 1
        %v6319 = vrot.slane %v6244, 2
        %v6320 = vrot.slane %v6244, 3
        %v6321 = vrot.slane %v6244, 4
        %v6322 = vrot.slane %v6244, 5
        %v6323 = vrot.slane %v6244, 6
        %v6324 = vrot.slane %v6244, 7
        %v6325 = vrot.slane %v6245, 1
        %v6326 = vrot.slane %v6245, 2
        %v6327 = vrot.slane %v6245, 3
        %v6328 = vrot.slane %v6245, 4
        %v6329 = vrot.slane %v6245, 5
        %v6330 = vrot.slane %v6245, 6
        %v6331 = vrot.slane %v6245, 7
        %v6332 = vrot.slane %v6246, 1
        %v6333 = vrot.slane %v6246, 2
        %v6334 = vrot.slane %v6246, 3
        %v6335 = vrot.slane %v6246, 4
        %v6336 = vrot.slane %v6246, 5
        %v6337 = vrot.slane %v6246, 6
        %v6338 = vrot.slane %v6246, 7
        %v6339 = vrot.slane %v6247, 1
        %v6340 = vrot.slane %v6247, 2
        %v6341 = vrot.slane %v6247, 3
        %v6342 = vrot.slane %v6247, 4
        %v6343 = vrot.slane %v6247, 5
        %v6344 = vrot.slane %v6247, 6
        %v6345 = vrot.slane %v6247, 7
        %v6346 = vrot.slane %v6248, 1
        %v6347 = vrot.slane %v6248, 2
        %v6348 = vrot.slane %v6248, 3
        %v6349 = vrot.slane %v6248, 4
        %v6350 = vrot.slane %v6248, 5
        %v6351 = vrot.slane %v6248, 6
        %v6352 = vrot.slane %v6248, 7
        %v6353 = vrot.slane %v6249, 1
        %v6354 = vrot.slane %v6249, 2
        %v6355 = vrot.slane %v6249, 3
        %v6356 = vrot.slane %v6249, 4
        %v6357 = vrot.slane %v6249, 5
        %v6358 = vrot.slane %v6249, 6
        %v6359 = vrot.slane %v6249, 7
        %v6360 = vrot.slane %v6250, 1
        %v6361 = vrot.slane %v6250, 2
        %v6362 = vrot.slane %v6250, 3
        %v6363 = vrot.slane %v6250, 4
        %v6364 = vrot.slane %v6250, 5
        %v6365 = vrot.slane %v6250, 6
        %v6366 = vrot.slane %v6250, 7
        %v6367 = vrot.slane %v6251, 1
        %v6368 = vrot.slane %v6251, 2
        %v6369 = vrot.slane %v6251, 3
        %v6370 = vrot.slane %v6251, 4
        %v6371 = vrot.slane %v6251, 5
        %v6372 = vrot.slane %v6251, 6
        %v6373 = vrot.slane %v6251, 7
        %v6374 = vrot.slane %v6252, 1
        %v6375 = vrot.slane %v6252, 2
        %v6376 = vrot.slane %v6252, 3
        %v6377 = vrot.slane %v6252, 4
        %v6378 = vrot.slane %v6252, 5
        %v6379 = vrot.slane %v6252, 6
        %v6380 = vrot.slane %v6252, 7
        %v6509 = vadd.f32 %v4574, %v6237
        %v6510 = vadd.f32 %v4575, %v6269
        %v6511 = vadd.f32 %v4576, %v6270
        %v6512 = vadd.f32 %v4577, %v6271
        %v6513 = vadd.f32 %v4578, %v6272
        %v6514 = vadd.f32 %v4579, %v6273
        %v6515 = vadd.f32 %v4580, %v6274
        %v6516 = vadd.f32 %v4581, %v6275
        %v6517 = vadd.f32 %v4582, %v6238
        %v6518 = vadd.f32 %v4583, %v6276
        %v6519 = vadd.f32 %v4584, %v6277
        %v6520 = vadd.f32 %v4585, %v6278
        %v6521 = vadd.f32 %v4586, %v6279
        %v6522 = vadd.f32 %v4587, %v6280
        %v6523 = vadd.f32 %v4588, %v6281
        %v6524 = vadd.f32 %v4589, %v6282
        %v6525 = vadd.f32 %v4590, %v6239
        %v6526 = vadd.f32 %v4591, %v6283
        %v6527 = vadd.f32 %v4592, %v6284
        %v6528 = vadd.f32 %v4593, %v6285
        %v6529 = vadd.f32 %v4594, %v6286
        %v6530 = vadd.f32 %v4595, %v6287
        %v6531 = vadd.f32 %v4596, %v6288
        %v6532 = vadd.f32 %v4597, %v6289
        %v6533 = vadd.f32 %v4598, %v6240
        %v6534 = vadd.f32 %v4599, %v6290
        %v6535 = vadd.f32 %v4600, %v6291
        %v6536 = vadd.f32 %v4601, %v6292
        %v6537 = vadd.f32 %v4602, %v6293
        %v6538 = vadd.f32 %v4603, %v6294
        %v6539 = vadd.f32 %v4604, %v6295
        %v6540 = vadd.f32 %v4605, %v6296
        %v6541 = vadd.f32 %v4606, %v6241
        %v6542 = vadd.f32 %v4607, %v6297
        %v6543 = vadd.f32 %v4608, %v6298
        %v6544 = vadd.f32 %v4609, %v6299
        %v6545 = vadd.f32 %v4610, %v6300
        %v6546 = vadd.f32 %v4611, %v6301
        %v6547 = vadd.f32 %v4612, %v6302
        %v6548 = vadd.f32 %v4613, %v6303
        %v6549 = vadd.f32 %v4614, %v6242
        %v6550 = vadd.f32 %v4615, %v6304
        %v6551 = vadd.f32 %v4616, %v6305
        %v6552 = vadd.f32 %v4617, %v6306
        %v6553 = vadd.f32 %v4618, %v6307
        %v6554 = vadd.f32 %v4619, %v6308
        %v6555 = vadd.f32 %v4620, %v6309
        %v6556 = vadd.f32 %v4621, %v6310
        %v6557 = vadd.f32 %v4622, %v6243
        %v6558 = vadd.f32 %v4623, %v6311
        %v6559 = vadd.f32 %v4624, %v6312
        %v6560 = vadd.f32 %v4625, %v6313
        %v6561 = vadd.f32 %v4626, %v6314
        %v6562 = vadd.f32 %v4627, %v6315
        %v6563 = vadd.f32 %v4628, %v6316
        %v6564 = vadd.f32 %v4629, %v6317
        %v6565 = vadd.f32 %v4630, %v6244
        %v6566 = vadd.f32 %v4631, %v6318
        %v6567 = vadd.f32 %v4632, %v6319
        %v6568 = vadd.f32 %v4633, %v6320
        %v6569 = vadd.f32 %v4634, %v6321
        %v6570 = vadd.f32 %v4635, %v6322
        %v6571 = vadd.f32 %v4636, %v6323
        %v6572 = vadd.f32 %v4637, %v6324
        %v6573 = vadd.f32 %v4638, %v6245
        %v6574 = vadd.f32 %v4639, %v6325
        %v6575 = vadd.f32 %v4640, %v6326
        %v6576 = vadd.f32 %v4641, %v6327
        %v6577 = vadd.f32 %v4642, %v6328
        %v6578 = vadd.f32 %v4643, %v6329
        %v6579 = vadd.f32 %v4644, %v6330
        %v6580 = vadd.f32 %v4645, %v6331
        %v6581 = vadd.f32 %v4646, %v6246
        %v6582 = vadd.f32 %v4647, %v6332
        %v6583 = vadd.f32 %v4648, %v6333
        %v6584 = vadd.f32 %v4649, %v6334
        %v6585 = vadd.f32 %v4650, %v6335
        %v6586 = vadd.f32 %v4651, %v6336
        %v6587 = vadd.f32 %v4652, %v6337
        %v6588 = vadd.f32 %v4653, %v6338
        %v6589 = vadd.f32 %v4654, %v6247
        %v6590 = vadd.f32 %v4655, %v6339
        %v6591 = vadd.f32 %v4656, %v6340
        %v6592 = vadd.f32 %v4657, %v6341
        %v6593 = vadd.f32 %v4658, %v6342
        %v6594 = vadd.f32 %v4659, %v6343
        %v6595 = vadd.f32 %v4660, %v6344
        %v6596 = vadd.f32 %v4661, %v6345
        %v6597 = vadd.f32 %v4662, %v6248
        %v6598 = vadd.f32 %v4663, %v6346
        %v6599 = vadd.f32 %v4664, %v6347
        %v6600 = vadd.f32 %v4665, %v6348
        %v6601 = vadd.f32 %v4666, %v6349
        %v6602 = vadd.f32 %v4667, %v6350
        %v6603 = vadd.f32 %v4668, %v6351
        %v6604 = vadd.f32 %v4669, %v6352
        %v6605 = vadd.f32 %v4670, %v6249
        %v6606 = vadd.f32 %v4671, %v6353
        %v6607 = vadd.f32 %v4672, %v6354
        %v6608 = vadd.f32 %v4673, %v6355
        %v6609 = vadd.f32 %v4674, %v6356
        %v6610 = vadd.f32 %v4675, %v6357
        %v6611 = vadd.f32 %v4676, %v6358
        %v6612 = vadd.f32 %v4677, %v6359
        %v6613 = vadd.f32 %v4678, %v6250
        %v6614 = vadd.f32 %v4679, %v6360
        %v6615 = vadd.f32 %v4680, %v6361
        %v6616 = vadd.f32 %v4681, %v6362
        %v6617 = vadd.f32 %v4682, %v6363
        %v6618 = vadd.f32 %v4683, %v6364
        %v6619 = vadd.f32 %v4684, %v6365
        %v6620 = vadd.f32 %v4685, %v6366
        %v6621 = vadd.f32 %v4686, %v6251
        %v6622 = vadd.f32 %v4687, %v6367
        %v6623 = vadd.f32 %v4688, %v6368
        %v6624 = vadd.f32 %v4689, %v6369
        %v6625 = vadd.f32 %v4690, %v6370
        %v6626 = vadd.f32 %v4691, %v6371
        %v6627 = vadd.f32 %v4692, %v6372
        %v6628 = vadd.f32 %v4693, %v6373
        %v6629 = vadd.f32 %v4694, %v6252
        %v6630 = vadd.f32 %v4695, %v6374
        %v6631 = vadd.f32 %v4696, %v6375
        %v6632 = vadd.f32 %v4697, %v6376
        %v6633 = vadd.f32 %v4698, %v6377
        %v6634 = vadd.f32 %v4699, %v6378
        %v6635 = vadd.f32 %v4700, %v6379
        %v6636 = vadd.f32 %v4701, %v6380
        %v6637 = vpack.c.bf16 %v6509, %v6509
        %v6638 = vpack.c.bf16 %v6510, %v6510
        %v6639 = vpack.c.bf16 %v6511, %v6511
        %v6640 = vpack.c.bf16 %v6512, %v6512
        %v6641 = vpack.c.bf16 %v6513, %v6513
        %v6642 = vpack.c.bf16 %v6514, %v6514
        %v6643 = vpack.c.bf16 %v6515, %v6515
        %v6644 = vpack.c.bf16 %v6516, %v6516
        %v6645 = vpack.c.bf16 %v6517, %v6517
        %v6646 = vpack.c.bf16 %v6518, %v6518
        %v6647 = vpack.c.bf16 %v6519, %v6519
        %v6648 = vpack.c.bf16 %v6520, %v6520
        %v6649 = vpack.c.bf16 %v6521, %v6521
        %v6650 = vpack.c.bf16 %v6522, %v6522
        %v6651 = vpack.c.bf16 %v6523, %v6523
        %v6652 = vpack.c.bf16 %v6524, %v6524
        %v6653 = vpack.c.bf16 %v6525, %v6525
        %v6654 = vpack.c.bf16 %v6526, %v6526
        %v6655 = vpack.c.bf16 %v6527, %v6527
        %v6656 = vpack.c.bf16 %v6528, %v6528
        %v6657 = vpack.c.bf16 %v6529, %v6529
        %v6658 = vpack.c.bf16 %v6530, %v6530
        %v6659 = vpack.c.bf16 %v6531, %v6531
        %v6660 = vpack.c.bf16 %v6532, %v6532
        %v6661 = vpack.c.bf16 %v6533, %v6533
        %v6662 = vpack.c.bf16 %v6534, %v6534
        %v6663 = vpack.c.bf16 %v6535, %v6535
        %v6664 = vpack.c.bf16 %v6536, %v6536
        %v6665 = vpack.c.bf16 %v6537, %v6537
        %v6666 = vpack.c.bf16 %v6538, %v6538
        %v6667 = vpack.c.bf16 %v6539, %v6539
        %v6668 = vpack.c.bf16 %v6540, %v6540
        %v6669 = vpack.c.bf16 %v6541, %v6541
        %v6670 = vpack.c.bf16 %v6542, %v6542
        %v6671 = vpack.c.bf16 %v6543, %v6543
        %v6672 = vpack.c.bf16 %v6544, %v6544
        %v6673 = vpack.c.bf16 %v6545, %v6545
        %v6674 = vpack.c.bf16 %v6546, %v6546
        %v6675 = vpack.c.bf16 %v6547, %v6547
        %v6676 = vpack.c.bf16 %v6548, %v6548
        %v6677 = vpack.c.bf16 %v6549, %v6549
        %v6678 = vpack.c.bf16 %v6550, %v6550
        %v6679 = vpack.c.bf16 %v6551, %v6551
        %v6680 = vpack.c.bf16 %v6552, %v6552
        %v6681 = vpack.c.bf16 %v6553, %v6553
        %v6682 = vpack.c.bf16 %v6554, %v6554
        %v6683 = vpack.c.bf16 %v6555, %v6555
        %v6684 = vpack.c.bf16 %v6556, %v6556
        %v6685 = vpack.c.bf16 %v6557, %v6557
        %v6686 = vpack.c.bf16 %v6558, %v6558
        %v6687 = vpack.c.bf16 %v6559, %v6559
        %v6688 = vpack.c.bf16 %v6560, %v6560
        %v6689 = vpack.c.bf16 %v6561, %v6561
        %v6690 = vpack.c.bf16 %v6562, %v6562
        %v6691 = vpack.c.bf16 %v6563, %v6563
        %v6692 = vpack.c.bf16 %v6564, %v6564
        %v6693 = vpack.c.bf16 %v6565, %v6565
        %v6694 = vpack.c.bf16 %v6566, %v6566
        %v6695 = vpack.c.bf16 %v6567, %v6567
        %v6696 = vpack.c.bf16 %v6568, %v6568
        %v6697 = vpack.c.bf16 %v6569, %v6569
        %v6698 = vpack.c.bf16 %v6570, %v6570
        %v6699 = vpack.c.bf16 %v6571, %v6571
        %v6700 = vpack.c.bf16 %v6572, %v6572
        %v6701 = vpack.c.bf16 %v6573, %v6573
        %v6702 = vpack.c.bf16 %v6574, %v6574
        %v6703 = vpack.c.bf16 %v6575, %v6575
        %v6704 = vpack.c.bf16 %v6576, %v6576
        %v6705 = vpack.c.bf16 %v6577, %v6577
        %v6706 = vpack.c.bf16 %v6578, %v6578
        %v6707 = vpack.c.bf16 %v6579, %v6579
        %v6708 = vpack.c.bf16 %v6580, %v6580
        %v6709 = vpack.c.bf16 %v6581, %v6581
        %v6710 = vpack.c.bf16 %v6582, %v6582
        %v6711 = vpack.c.bf16 %v6583, %v6583
        %v6712 = vpack.c.bf16 %v6584, %v6584
        %v6713 = vpack.c.bf16 %v6585, %v6585
        %v6714 = vpack.c.bf16 %v6586, %v6586
        %v6715 = vpack.c.bf16 %v6587, %v6587
        %v6716 = vpack.c.bf16 %v6588, %v6588
        %v6717 = vpack.c.bf16 %v6589, %v6589
        %v6718 = vpack.c.bf16 %v6590, %v6590
        %v6719 = vpack.c.bf16 %v6591, %v6591
        %v6720 = vpack.c.bf16 %v6592, %v6592
        %v6721 = vpack.c.bf16 %v6593, %v6593
        %v6722 = vpack.c.bf16 %v6594, %v6594
        %v6723 = vpack.c.bf16 %v6595, %v6595
        %v6724 = vpack.c.bf16 %v6596, %v6596
        %v6725 = vpack.c.bf16 %v6597, %v6597
        %v6726 = vpack.c.bf16 %v6598, %v6598
        %v6727 = vpack.c.bf16 %v6599, %v6599
        %v6728 = vpack.c.bf16 %v6600, %v6600
        %v6729 = vpack.c.bf16 %v6601, %v6601
        %v6730 = vpack.c.bf16 %v6602, %v6602
        %v6731 = vpack.c.bf16 %v6603, %v6603
        %v6732 = vpack.c.bf16 %v6604, %v6604
        %v6733 = vpack.c.bf16 %v6605, %v6605
        %v6734 = vpack.c.bf16 %v6606, %v6606
        %v6735 = vpack.c.bf16 %v6607, %v6607
        %v6736 = vpack.c.bf16 %v6608, %v6608
        %v6737 = vpack.c.bf16 %v6609, %v6609
        %v6738 = vpack.c.bf16 %v6610, %v6610
        %v6739 = vpack.c.bf16 %v6611, %v6611
        %v6740 = vpack.c.bf16 %v6612, %v6612
        %v6741 = vpack.c.bf16 %v6613, %v6613
        %v6742 = vpack.c.bf16 %v6614, %v6614
        %v6743 = vpack.c.bf16 %v6615, %v6615
        %v6744 = vpack.c.bf16 %v6616, %v6616
        %v6745 = vpack.c.bf16 %v6617, %v6617
        %v6746 = vpack.c.bf16 %v6618, %v6618
        %v6747 = vpack.c.bf16 %v6619, %v6619
        %v6748 = vpack.c.bf16 %v6620, %v6620
        %v6749 = vpack.c.bf16 %v6621, %v6621
        %v6750 = vpack.c.bf16 %v6622, %v6622
        %v6751 = vpack.c.bf16 %v6623, %v6623
        %v6752 = vpack.c.bf16 %v6624, %v6624
        %v6753 = vpack.c.bf16 %v6625, %v6625
        %v6754 = vpack.c.bf16 %v6626, %v6626
        %v6755 = vpack.c.bf16 %v6627, %v6627
        %v6756 = vpack.c.bf16 %v6628, %v6628
        %v6757 = vpack.c.bf16 %v6629, %v6629
        %v6758 = vpack.c.bf16 %v6630, %v6630
        %v6759 = vpack.c.bf16 %v6631, %v6631
        %v6760 = vpack.c.bf16 %v6632, %v6632
        %v6761 = vpack.c.bf16 %v6633, %v6633
        %v6762 = vpack.c.bf16 %v6634, %v6634
        %v6763 = vpack.c.bf16 %v6635, %v6635
        %v6764 = vpack.c.bf16 %v6636, %v6636
        %s6765 = scalar_lea.vmem %s4, 128
        %v6766 = vld [vmem:[%s6765] sm:$0xff]
        %v6767 = vld [vmem:[%s6765 + $0x8] sm:$0xff]
        %v6768 = vld [vmem:[%s6765 + $0x10] sm:$0xff]
        %v6769 = vld [vmem:[%s6765 + $0x18] sm:$0xff]
        %v6770 = vld [vmem:[%s6765 + $0x20] sm:$0xff]
        %v6771 = vld [vmem:[%s6765 + $0x28] sm:$0xff]
        %v6772 = vld [vmem:[%s6765 + $0x30] sm:$0xff]
        %v6773 = vld [vmem:[%s6765 + $0x38] sm:$0xff]
        %v6774 = vld [vmem:[%s6765 + $0x40] sm:$0xff]
        %v6775 = vld [vmem:[%s6765 + $0x48] sm:$0xff]
        %v6776 = vld [vmem:[%s6765 + $0x50] sm:$0xff]
        %v6777 = vld [vmem:[%s6765 + $0x58] sm:$0xff]
        %v6778 = vld [vmem:[%s6765 + $0x60] sm:$0xff]
        %v6779 = vld [vmem:[%s6765 + $0x68] sm:$0xff]
        %v6780 = vld [vmem:[%s6765 + $0x70] sm:$0xff]
        %v6781 = vld [vmem:[%s6765 + $0x78] sm:$0xff]
        %s6782 = scalar_lea.vmem %s5, 2
        %v6783 = vld [vmem:[%s6782] sm:$0x3]
        %v6785 = vperm.slane %v6783, 0
        %v6786 = vperm.slane %v6783, 1
        %v6917 = vunpack.c.l.b16 %v6637
        %v6918 = vunpack.c.l.b16 %v6638
        %v6919 = vunpack.c.l.b16 %v6639
        %v6920 = vunpack.c.l.b16 %v6640
        %v6921 = vunpack.c.l.b16 %v6641
        %v6922 = vunpack.c.l.b16 %v6642
        %v6923 = vunpack.c.l.b16 %v6643
        %v6924 = vunpack.c.l.b16 %v6644
        %v6925 = vunpack.c.l.b16 %v6645
        %v6926 = vunpack.c.l.b16 %v6646
        %v6927 = vunpack.c.l.b16 %v6647
        %v6928 = vunpack.c.l.b16 %v6648
        %v6929 = vunpack.c.l.b16 %v6649
        %v6930 = vunpack.c.l.b16 %v6650
        %v6931 = vunpack.c.l.b16 %v6651
        %v6932 = vunpack.c.l.b16 %v6652
        %v6933 = vunpack.c.l.b16 %v6653
        %v6934 = vunpack.c.l.b16 %v6654
        %v6935 = vunpack.c.l.b16 %v6655
        %v6936 = vunpack.c.l.b16 %v6656
        %v6937 = vunpack.c.l.b16 %v6657
        %v6938 = vunpack.c.l.b16 %v6658
        %v6939 = vunpack.c.l.b16 %v6659
        %v6940 = vunpack.c.l.b16 %v6660
        %v6941 = vunpack.c.l.b16 %v6661
        %v6942 = vunpack.c.l.b16 %v6662
        %v6943 = vunpack.c.l.b16 %v6663
        %v6944 = vunpack.c.l.b16 %v6664
        %v6945 = vunpack.c.l.b16 %v6665
        %v6946 = vunpack.c.l.b16 %v6666
        %v6947 = vunpack.c.l.b16 %v6667
        %v6948 = vunpack.c.l.b16 %v6668
        %v6949 = vunpack.c.l.b16 %v6669
        %v6950 = vunpack.c.l.b16 %v6670
        %v6951 = vunpack.c.l.b16 %v6671
        %v6952 = vunpack.c.l.b16 %v6672
        %v6953 = vunpack.c.l.b16 %v6673
        %v6954 = vunpack.c.l.b16 %v6674
        %v6955 = vunpack.c.l.b16 %v6675
        %v6956 = vunpack.c.l.b16 %v6676
        %v6957 = vunpack.c.l.b16 %v6677
        %v6958 = vunpack.c.l.b16 %v6678
        %v6959 = vunpack.c.l.b16 %v6679
        %v6960 = vunpack.c.l.b16 %v6680
        %v6961 = vunpack.c.l.b16 %v6681
        %v6962 = vunpack.c.l.b16 %v6682
        %v6963 = vunpack.c.l.b16 %v6683
        %v6964 = vunpack.c.l.b16 %v6684
        %v6965 = vunpack.c.l.b16 %v6685
        %v6966 = vunpack.c.l.b16 %v6686
        %v6967 = vunpack.c.l.b16 %v6687
        %v6968 = vunpack.c.l.b16 %v6688
        %v6969 = vunpack.c.l.b16 %v6689
        %v6970 = vunpack.c.l.b16 %v6690
        %v6971 = vunpack.c.l.b16 %v6691
        %v6972 = vunpack.c.l.b16 %v6692
        %v6973 = vunpack.c.l.b16 %v6693
        %v6974 = vunpack.c.l.b16 %v6694
        %v6975 = vunpack.c.l.b16 %v6695
        %v6976 = vunpack.c.l.b16 %v6696
        %v6977 = vunpack.c.l.b16 %v6697
        %v6978 = vunpack.c.l.b16 %v6698
        %v6979 = vunpack.c.l.b16 %v6699
        %v6980 = vunpack.c.l.b16 %v6700
        %v6981 = vunpack.c.l.b16 %v6701
        %v6982 = vunpack.c.l.b16 %v6702
        %v6983 = vunpack.c.l.b16 %v6703
        %v6984 = vunpack.c.l.b16 %v6704
        %v6985 = vunpack.c.l.b16 %v6705
        %v6986 = vunpack.c.l.b16 %v6706
        %v6987 = vunpack.c.l.b16 %v6707
        %v6988 = vunpack.c.l.b16 %v6708
        %v6989 = vunpack.c.l.b16 %v6709
        %v6990 = vunpack.c.l.b16 %v6710
        %v6991 = vunpack.c.l.b16 %v6711
        %v6992 = vunpack.c.l.b16 %v6712
        %v6993 = vunpack.c.l.b16 %v6713
        %v6994 = vunpack.c.l.b16 %v6714
        %v6995 = vunpack.c.l.b16 %v6715
        %v6996 = vunpack.c.l.b16 %v6716
        %v6997 = vunpack.c.l.b16 %v6717
        %v6998 = vunpack.c.l.b16 %v6718
        %v6999 = vunpack.c.l.b16 %v6719
        %v7000 = vunpack.c.l.b16 %v6720
        %v7001 = vunpack.c.l.b16 %v6721
        %v7002 = vunpack.c.l.b16 %v6722
        %v7003 = vunpack.c.l.b16 %v6723
        %v7004 = vunpack.c.l.b16 %v6724
        %v7005 = vunpack.c.l.b16 %v6725
        %v7006 = vunpack.c.l.b16 %v6726
        %v7007 = vunpack.c.l.b16 %v6727
        %v7008 = vunpack.c.l.b16 %v6728
        %v7009 = vunpack.c.l.b16 %v6729
        %v7010 = vunpack.c.l.b16 %v6730
        %v7011 = vunpack.c.l.b16 %v6731
        %v7012 = vunpack.c.l.b16 %v6732
        %v7013 = vunpack.c.l.b16 %v6733
        %v7014 = vunpack.c.l.b16 %v6734
        %v7015 = vunpack.c.l.b16 %v6735
        %v7016 = vunpack.c.l.b16 %v6736
        %v7017 = vunpack.c.l.b16 %v6737
        %v7018 = vunpack.c.l.b16 %v6738
        %v7019 = vunpack.c.l.b16 %v6739
        %v7020 = vunpack.c.l.b16 %v6740
        %v7021 = vunpack.c.l.b16 %v6741
        %v7022 = vunpack.c.l.b16 %v6742
        %v7023 = vunpack.c.l.b16 %v6743
        %v7024 = vunpack.c.l.b16 %v6744
        %v7025 = vunpack.c.l.b16 %v6745
        %v7026 = vunpack.c.l.b16 %v6746
        %v7027 = vunpack.c.l.b16 %v6747
        %v7028 = vunpack.c.l.b16 %v6748
        %v7029 = vunpack.c.l.b16 %v6749
        %v7030 = vunpack.c.l.b16 %v6750
        %v7031 = vunpack.c.l.b16 %v6751
        %v7032 = vunpack.c.l.b16 %v6752
        %v7033 = vunpack.c.l.b16 %v6753
        %v7034 = vunpack.c.l.b16 %v6754
        %v7035 = vunpack.c.l.b16 %v6755
        %v7036 = vunpack.c.l.b16 %v6756
        %v7037 = vunpack.c.l.b16 %v6757
        %v7038 = vunpack.c.l.b16 %v6758
        %v7039 = vunpack.c.l.b16 %v6759
        %v7040 = vunpack.c.l.b16 %v6760
        %v7041 = vunpack.c.l.b16 %v6761
        %v7042 = vunpack.c.l.b16 %v6762
        %v7043 = vunpack.c.l.b16 %v6763
        %v7044 = vunpack.c.l.b16 %v6764
        %v7045 = vrot.slane %v6918, 7
        %v7046 = vsel %vm5109, %v7045, %v6917
        %v7047 = vrot.slane %v6919, 6
        %v7048 = vsel %vm5112, %v7047, %v7046
        %v7049 = vrot.slane %v6920, 5
        %v7050 = vsel %vm5115, %v7049, %v7048
        %v7051 = vrot.slane %v6921, 4
        %v7052 = vsel %vm5118, %v7051, %v7050
        %v7053 = vrot.slane %v6922, 3
        %v7054 = vsel %vm5121, %v7053, %v7052
        %v7055 = vrot.slane %v6923, 2
        %v7056 = vsel %vm5124, %v7055, %v7054
        %v7057 = vrot.slane %v6924, 1
        %v7058 = vsel %vm5127, %v7057, %v7056
        %v7059 = vrot.slane %v6926, 7
        %v7060 = vsel %vm5109, %v7059, %v6925
        %v7061 = vrot.slane %v6927, 6
        %v7062 = vsel %vm5112, %v7061, %v7060
        %v7063 = vrot.slane %v6928, 5
        %v7064 = vsel %vm5115, %v7063, %v7062
        %v7065 = vrot.slane %v6929, 4
        %v7066 = vsel %vm5118, %v7065, %v7064
        %v7067 = vrot.slane %v6930, 3
        %v7068 = vsel %vm5121, %v7067, %v7066
        %v7069 = vrot.slane %v6931, 2
        %v7070 = vsel %vm5124, %v7069, %v7068
        %v7071 = vrot.slane %v6932, 1
        %v7072 = vsel %vm5127, %v7071, %v7070
        %v7073 = vrot.slane %v6934, 7
        %v7074 = vsel %vm5109, %v7073, %v6933
        %v7075 = vrot.slane %v6935, 6
        %v7076 = vsel %vm5112, %v7075, %v7074
        %v7077 = vrot.slane %v6936, 5
        %v7078 = vsel %vm5115, %v7077, %v7076
        %v7079 = vrot.slane %v6937, 4
        %v7080 = vsel %vm5118, %v7079, %v7078
        %v7081 = vrot.slane %v6938, 3
        %v7082 = vsel %vm5121, %v7081, %v7080
        %v7083 = vrot.slane %v6939, 2
        %v7084 = vsel %vm5124, %v7083, %v7082
        %v7085 = vrot.slane %v6940, 1
        %v7086 = vsel %vm5127, %v7085, %v7084
        %v7087 = vrot.slane %v6942, 7
        %v7088 = vsel %vm5109, %v7087, %v6941
        %v7089 = vrot.slane %v6943, 6
        %v7090 = vsel %vm5112, %v7089, %v7088
        %v7091 = vrot.slane %v6944, 5
        %v7092 = vsel %vm5115, %v7091, %v7090
        %v7093 = vrot.slane %v6945, 4
        %v7094 = vsel %vm5118, %v7093, %v7092
        %v7095 = vrot.slane %v6946, 3
        %v7096 = vsel %vm5121, %v7095, %v7094
        %v7097 = vrot.slane %v6947, 2
        %v7098 = vsel %vm5124, %v7097, %v7096
        %v7099 = vrot.slane %v6948, 1
        %v7100 = vsel %vm5127, %v7099, %v7098
        %v7101 = vrot.slane %v6950, 7
        %v7102 = vsel %vm5109, %v7101, %v6949
        %v7103 = vrot.slane %v6951, 6
        %v7104 = vsel %vm5112, %v7103, %v7102
        %v7105 = vrot.slane %v6952, 5
        %v7106 = vsel %vm5115, %v7105, %v7104
        %v7107 = vrot.slane %v6953, 4
        %v7108 = vsel %vm5118, %v7107, %v7106
        %v7109 = vrot.slane %v6954, 3
        %v7110 = vsel %vm5121, %v7109, %v7108
        %v7111 = vrot.slane %v6955, 2
        %v7112 = vsel %vm5124, %v7111, %v7110
        %v7113 = vrot.slane %v6956, 1
        %v7114 = vsel %vm5127, %v7113, %v7112
        %v7115 = vrot.slane %v6958, 7
        %v7116 = vsel %vm5109, %v7115, %v6957
        %v7117 = vrot.slane %v6959, 6
        %v7118 = vsel %vm5112, %v7117, %v7116
        %v7119 = vrot.slane %v6960, 5
        %v7120 = vsel %vm5115, %v7119, %v7118
        %v7121 = vrot.slane %v6961, 4
        %v7122 = vsel %vm5118, %v7121, %v7120
        %v7123 = vrot.slane %v6962, 3
        %v7124 = vsel %vm5121, %v7123, %v7122
        %v7125 = vrot.slane %v6963, 2
        %v7126 = vsel %vm5124, %v7125, %v7124
        %v7127 = vrot.slane %v6964, 1
        %v7128 = vsel %vm5127, %v7127, %v7126
        %v7129 = vrot.slane %v6966, 7
        %v7130 = vsel %vm5109, %v7129, %v6965
        %v7131 = vrot.slane %v6967, 6
        %v7132 = vsel %vm5112, %v7131, %v7130
        %v7133 = vrot.slane %v6968, 5
        %v7134 = vsel %vm5115, %v7133, %v7132
        %v7135 = vrot.slane %v6969, 4
        %v7136 = vsel %vm5118, %v7135, %v7134
        %v7137 = vrot.slane %v6970, 3
        %v7138 = vsel %vm5121, %v7137, %v7136
        %v7139 = vrot.slane %v6971, 2
        %v7140 = vsel %vm5124, %v7139, %v7138
        %v7141 = vrot.slane %v6972, 1
        %v7142 = vsel %vm5127, %v7141, %v7140
        %v7143 = vrot.slane %v6974, 7
        %v7144 = vsel %vm5109, %v7143, %v6973
        %v7145 = vrot.slane %v6975, 6
        %v7146 = vsel %vm5112, %v7145, %v7144
        %v7147 = vrot.slane %v6976, 5
        %v7148 = vsel %vm5115, %v7147, %v7146
        %v7149 = vrot.slane %v6977, 4
        %v7150 = vsel %vm5118, %v7149, %v7148
        %v7151 = vrot.slane %v6978, 3
        %v7152 = vsel %vm5121, %v7151, %v7150
        %v7153 = vrot.slane %v6979, 2
        %v7154 = vsel %vm5124, %v7153, %v7152
        %v7155 = vrot.slane %v6980, 1
        %v7156 = vsel %vm5127, %v7155, %v7154
        %v7157 = vrot.slane %v6982, 7
        %v7158 = vsel %vm5109, %v7157, %v6981
        %v7159 = vrot.slane %v6983, 6
        %v7160 = vsel %vm5112, %v7159, %v7158
        %v7161 = vrot.slane %v6984, 5
        %v7162 = vsel %vm5115, %v7161, %v7160
        %v7163 = vrot.slane %v6985, 4
        %v7164 = vsel %vm5118, %v7163, %v7162
        %v7165 = vrot.slane %v6986, 3
        %v7166 = vsel %vm5121, %v7165, %v7164
        %v7167 = vrot.slane %v6987, 2
        %v7168 = vsel %vm5124, %v7167, %v7166
        %v7169 = vrot.slane %v6988, 1
        %v7170 = vsel %vm5127, %v7169, %v7168
        %v7171 = vrot.slane %v6990, 7
        %v7172 = vsel %vm5109, %v7171, %v6989
        %v7173 = vrot.slane %v6991, 6
        %v7174 = vsel %vm5112, %v7173, %v7172
        %v7175 = vrot.slane %v6992, 5
        %v7176 = vsel %vm5115, %v7175, %v7174
        %v7177 = vrot.slane %v6993, 4
        %v7178 = vsel %vm5118, %v7177, %v7176
        %v7179 = vrot.slane %v6994, 3
        %v7180 = vsel %vm5121, %v7179, %v7178
        %v7181 = vrot.slane %v6995, 2
        %v7182 = vsel %vm5124, %v7181, %v7180
        %v7183 = vrot.slane %v6996, 1
        %v7184 = vsel %vm5127, %v7183, %v7182
        %v7185 = vrot.slane %v6998, 7
        %v7186 = vsel %vm5109, %v7185, %v6997
        %v7187 = vrot.slane %v6999, 6
        %v7188 = vsel %vm5112, %v7187, %v7186
        %v7189 = vrot.slane %v7000, 5
        %v7190 = vsel %vm5115, %v7189, %v7188
        %v7191 = vrot.slane %v7001, 4
        %v7192 = vsel %vm5118, %v7191, %v7190
        %v7193 = vrot.slane %v7002, 3
        %v7194 = vsel %vm5121, %v7193, %v7192
        %v7195 = vrot.slane %v7003, 2
        %v7196 = vsel %vm5124, %v7195, %v7194
        %v7197 = vrot.slane %v7004, 1
        %v7198 = vsel %vm5127, %v7197, %v7196
        %v7199 = vrot.slane %v7006, 7
        %v7200 = vsel %vm5109, %v7199, %v7005
        %v7201 = vrot.slane %v7007, 6
        %v7202 = vsel %vm5112, %v7201, %v7200
        %v7203 = vrot.slane %v7008, 5
        %v7204 = vsel %vm5115, %v7203, %v7202
        %v7205 = vrot.slane %v7009, 4
        %v7206 = vsel %vm5118, %v7205, %v7204
        %v7207 = vrot.slane %v7010, 3
        %v7208 = vsel %vm5121, %v7207, %v7206
        %v7209 = vrot.slane %v7011, 2
        %v7210 = vsel %vm5124, %v7209, %v7208
        %v7211 = vrot.slane %v7012, 1
        %v7212 = vsel %vm5127, %v7211, %v7210
        %v7213 = vrot.slane %v7014, 7
        %v7214 = vsel %vm5109, %v7213, %v7013
        %v7215 = vrot.slane %v7015, 6
        %v7216 = vsel %vm5112, %v7215, %v7214
        %v7217 = vrot.slane %v7016, 5
        %v7218 = vsel %vm5115, %v7217, %v7216
        %v7219 = vrot.slane %v7017, 4
        %v7220 = vsel %vm5118, %v7219, %v7218
        %v7221 = vrot.slane %v7018, 3
        %v7222 = vsel %vm5121, %v7221, %v7220
        %v7223 = vrot.slane %v7019, 2
        %v7224 = vsel %vm5124, %v7223, %v7222
        %v7225 = vrot.slane %v7020, 1
        %v7226 = vsel %vm5127, %v7225, %v7224
        %v7227 = vrot.slane %v7022, 7
        %v7228 = vsel %vm5109, %v7227, %v7021
        %v7229 = vrot.slane %v7023, 6
        %v7230 = vsel %vm5112, %v7229, %v7228
        %v7231 = vrot.slane %v7024, 5
        %v7232 = vsel %vm5115, %v7231, %v7230
        %v7233 = vrot.slane %v7025, 4
        %v7234 = vsel %vm5118, %v7233, %v7232
        %v7235 = vrot.slane %v7026, 3
        %v7236 = vsel %vm5121, %v7235, %v7234
        %v7237 = vrot.slane %v7027, 2
        %v7238 = vsel %vm5124, %v7237, %v7236
        %v7239 = vrot.slane %v7028, 1
        %v7240 = vsel %vm5127, %v7239, %v7238
        %v7241 = vrot.slane %v7030, 7
        %v7242 = vsel %vm5109, %v7241, %v7029
        %v7243 = vrot.slane %v7031, 6
        %v7244 = vsel %vm5112, %v7243, %v7242
        %v7245 = vrot.slane %v7032, 5
        %v7246 = vsel %vm5115, %v7245, %v7244
        %v7247 = vrot.slane %v7033, 4
        %v7248 = vsel %vm5118, %v7247, %v7246
        %v7249 = vrot.slane %v7034, 3
        %v7250 = vsel %vm5121, %v7249, %v7248
        %v7251 = vrot.slane %v7035, 2
        %v7252 = vsel %vm5124, %v7251, %v7250
        %v7253 = vrot.slane %v7036, 1
        %v7254 = vsel %vm5127, %v7253, %v7252
        %v7255 = vrot.slane %v7038, 7
        %v7256 = vsel %vm5109, %v7255, %v7037
        %v7257 = vrot.slane %v7039, 6
        %v7258 = vsel %vm5112, %v7257, %v7256
        %v7259 = vrot.slane %v7040, 5
        %v7260 = vsel %vm5115, %v7259, %v7258
        %v7261 = vrot.slane %v7041, 4
        %v7262 = vsel %vm5118, %v7261, %v7260
        %v7263 = vrot.slane %v7042, 3
        %v7264 = vsel %vm5121, %v7263, %v7262
        %v7265 = vrot.slane %v7043, 2
        %v7266 = vsel %vm5124, %v7265, %v7264
        %v7267 = vrot.slane %v7044, 1
        %v7268 = vsel %vm5127, %v7267, %v7266
        %v7269 = vpack.c.b16 %v7072, %v7058
        %v7270 = vpack.c.b16 %v7100, %v7086
        %v7271 = vpack.c.b16 %v7128, %v7114
        %v7272 = vpack.c.b16 %v7156, %v7142
        %v7273 = vpack.c.b16 %v7184, %v7170
        %v7274 = vpack.c.b16 %v7212, %v7198
        %v7275 = vpack.c.b16 %v7240, %v7226
        %v7276 = vpack.c.b16 %v7268, %v7254
        %v7301 = vunpack.c.l.b16 %v6766
        %v7302 = vunpack.c.h.b16 %v6766
        %v7303 = vunpack.c.l.b16 %v6767
        %v7304 = vunpack.c.h.b16 %v6767
        %v7305 = vunpack.c.l.b16 %v6768
        %v7306 = vunpack.c.h.b16 %v6768
        %v7307 = vunpack.c.l.b16 %v6769
        %v7308 = vunpack.c.h.b16 %v6769
        %v7309 = vunpack.c.l.b16 %v6770
        %v7310 = vunpack.c.h.b16 %v6770
        %v7311 = vunpack.c.l.b16 %v6771
        %v7312 = vunpack.c.h.b16 %v6771
        %v7313 = vunpack.c.l.b16 %v6772
        %v7314 = vunpack.c.h.b16 %v6772
        %v7315 = vunpack.c.l.b16 %v6773
        %v7316 = vunpack.c.h.b16 %v6773
        %v7317 = vunpack.c.l.b16 %v6774
        %v7318 = vunpack.c.h.b16 %v6774
        %v7319 = vunpack.c.l.b16 %v6775
        %v7320 = vunpack.c.h.b16 %v6775
        %v7321 = vunpack.c.l.b16 %v6776
        %v7322 = vunpack.c.h.b16 %v6776
        %v7323 = vunpack.c.l.b16 %v6777
        %v7324 = vunpack.c.h.b16 %v6777
        %v7325 = vunpack.c.l.b16 %v6778
        %v7326 = vunpack.c.h.b16 %v6778
        %v7327 = vunpack.c.l.b16 %v6779
        %v7328 = vunpack.c.h.b16 %v6779
        %v7329 = vunpack.c.l.b16 %v6780
        %v7330 = vunpack.c.h.b16 %v6780
        %v7331 = vunpack.c.l.b16 %v6781
        %v7332 = vunpack.c.h.b16 %v6781
        %v7333 = vpack.c.b16 %v7303, %v7301
        %v7334 = vpack.c.b16 %v7304, %v7302
        %v7335 = vpack.c.b16 %v7307, %v7305
        %v7336 = vpack.c.b16 %v7308, %v7306
        %v7337 = vpack.c.b16 %v7311, %v7309
        %v7338 = vpack.c.b16 %v7312, %v7310
        %v7339 = vpack.c.b16 %v7315, %v7313
        %v7340 = vpack.c.b16 %v7316, %v7314
        %v7341 = vpack.c.b16 %v7319, %v7317
        %v7342 = vpack.c.b16 %v7320, %v7318
        %v7343 = vpack.c.b16 %v7323, %v7321
        %v7344 = vpack.c.b16 %v7324, %v7322
        %v7345 = vpack.c.b16 %v7327, %v7325
        %v7346 = vpack.c.b16 %v7328, %v7326
        %v7347 = vpack.c.b16 %v7331, %v7329
        %v7348 = vpack.c.b16 %v7332, %v7330
        %7365 = vmatpush.bf16.msra.mxu0 %v7347
        %7366 = vmatpush.bf16.msra.mxu0 %v7345
        %7367 = vmatpush.bf16.msra.mxu0 %v7343
        %7368 = vmatpush.bf16.msra.mxu0 %v7341
        %7369 = vmatpush.bf16.msra.mxu0 %v7339
        %7370 = vmatpush.bf16.msra.mxu0 %v7337
        %7371 = vmatpush.bf16.msra.mxu0 %v7335
        %7372 = vmatpush.bf16.msra.mxu0 %v7333
        %7373 = vmatmul.bf16.gmra.mxu0 %v7269
        %v7374 = vpop.f32.mrf.mxu0
        %v7375 = vadd.f32 %v6785, %v7374
        %v7376 = vpop.f32.mrf.mxu0
        %v7377 = vadd.f32 %v6785, %v7376
        %7378 = vmatmul.bf16.gmra.mxu0 %v7270
        %v7379 = vpop.f32.mrf.mxu0
        %v7380 = vadd.f32 %v6785, %v7379
        %v7381 = vpop.f32.mrf.mxu0
        %v7382 = vadd.f32 %v6785, %v7381
        %7383 = vmatmul.bf16.gmra.mxu0 %v7271
        %v7384 = vpop.f32.mrf.mxu0
        %v7385 = vadd.f32 %v6785, %v7384
        %v7386 = vpop.f32.mrf.mxu0
        %v7387 = vadd.f32 %v6785, %v7386
        %7388 = vmatmul.bf16.gmra.mxu0 %v7272
        %v7389 = vpop.f32.mrf.mxu0
        %v7390 = vadd.f32 %v6785, %v7389
        %v7391 = vpop.f32.mrf.mxu0
        %v7392 = vadd.f32 %v6785, %v7391
        %7393 = vmatmul.bf16.gmra.mxu0 %v7273
        %v7394 = vpop.f32.mrf.mxu0
        %v7395 = vadd.f32 %v6785, %v7394
        %v7396 = vpop.f32.mrf.mxu0
        %v7397 = vadd.f32 %v6785, %v7396
        %7398 = vmatmul.bf16.gmra.mxu0 %v7274
        %v7399 = vpop.f32.mrf.mxu0
        %v7400 = vadd.f32 %v6785, %v7399
        %v7401 = vpop.f32.mrf.mxu0
        %v7402 = vadd.f32 %v6785, %v7401
        %7403 = vmatmul.bf16.gmra.mxu0 %v7275
        %v7404 = vpop.f32.mrf.mxu0
        %v7405 = vadd.f32 %v6785, %v7404
        %v7406 = vpop.f32.mrf.mxu0
        %v7407 = vadd.f32 %v6785, %v7406
        %7408 = vmatmul.bf16.gmra.mxu0 %v7276
        %v7409 = vpop.f32.mrf.mxu0
        %v7410 = vadd.f32 %v6785, %v7409
        %v7411 = vpop.f32.mrf.mxu0
        %v7412 = vadd.f32 %v6785, %v7411
        %7413 = vdwg.mxu0
        %7414 = vmatpush.bf16.msra.mxu0 %v7348
        %7415 = vmatpush.bf16.msra.mxu0 %v7346
        %7416 = vmatpush.bf16.msra.mxu0 %v7344
        %7417 = vmatpush.bf16.msra.mxu0 %v7342
        %7418 = vmatpush.bf16.msra.mxu0 %v7340
        %7419 = vmatpush.bf16.msra.mxu0 %v7338
        %7420 = vmatpush.bf16.msra.mxu0 %v7336
        %7421 = vmatpush.bf16.msra.mxu0 %v7334
        %7422 = vmatmul.bf16.gmra.mxu0 %v7269
        %v7423 = vpop.f32.mrf.mxu0
        %v7424 = vadd.f32 %v6786, %v7423
        %v7425 = vpop.f32.mrf.mxu0
        %v7426 = vadd.f32 %v6786, %v7425
        %7427 = vmatmul.bf16.gmra.mxu0 %v7270
        %v7428 = vpop.f32.mrf.mxu0
        %v7429 = vadd.f32 %v6786, %v7428
        %v7430 = vpop.f32.mrf.mxu0
        %v7431 = vadd.f32 %v6786, %v7430
        %7432 = vmatmul.bf16.gmra.mxu0 %v7271
        %v7433 = vpop.f32.mrf.mxu0
        %v7434 = vadd.f32 %v6786, %v7433
        %v7435 = vpop.f32.mrf.mxu0
        %v7436 = vadd.f32 %v6786, %v7435
        %7437 = vmatmul.bf16.gmra.mxu0 %v7272
        %v7438 = vpop.f32.mrf.mxu0
        %v7439 = vadd.f32 %v6786, %v7438
        %v7440 = vpop.f32.mrf.mxu0
        %v7441 = vadd.f32 %v6786, %v7440
        %7442 = vmatmul.bf16.gmra.mxu0 %v7273
        %v7443 = vpop.f32.mrf.mxu0
        %v7444 = vadd.f32 %v6786, %v7443
        %v7445 = vpop.f32.mrf.mxu0
        %v7446 = vadd.f32 %v6786, %v7445
        %7447 = vmatmul.bf16.gmra.mxu0 %v7274
        %v7448 = vpop.f32.mrf.mxu0
        %v7449 = vadd.f32 %v6786, %v7448
        %v7450 = vpop.f32.mrf.mxu0
        %v7451 = vadd.f32 %v6786, %v7450
        %7452 = vmatmul.bf16.gmra.mxu0 %v7275
        %v7453 = vpop.f32.mrf.mxu0
        %v7454 = vadd.f32 %v6786, %v7453
        %v7455 = vpop.f32.mrf.mxu0
        %v7456 = vadd.f32 %v6786, %v7455
        %7457 = vmatmul.bf16.gmra.mxu0 %v7276
        %v7458 = vpop.f32.mrf.mxu0
        %v7459 = vadd.f32 %v6786, %v7458
        %v7460 = vpop.f32.mrf.mxu0
        %v7461 = vadd.f32 %v6786, %v7460
        %7462 = vdwg.mxu0
        %v7463 = vxor.u32 %v7375, 2147483648
        %v7464 = vxor.u32 %v7377, 2147483648
        %v7465 = vxor.u32 %v7380, 2147483648
        %v7466 = vxor.u32 %v7382, 2147483648
        %v7467 = vxor.u32 %v7385, 2147483648
        %v7468 = vxor.u32 %v7387, 2147483648
        %v7469 = vxor.u32 %v7390, 2147483648
        %v7470 = vxor.u32 %v7392, 2147483648
        %v7471 = vxor.u32 %v7395, 2147483648
        %v7472 = vxor.u32 %v7397, 2147483648
        %v7473 = vxor.u32 %v7400, 2147483648
        %v7474 = vxor.u32 %v7402, 2147483648
        %v7475 = vxor.u32 %v7405, 2147483648
        %v7476 = vxor.u32 %v7407, 2147483648
        %v7477 = vxor.u32 %v7410, 2147483648
        %v7478 = vxor.u32 %v7412, 2147483648
        %v7479 = vmul.f32 %v7463, 1.442695
        %v7480 = vpow.pop %v7479
        %v7481 = vmul.f32 %v7464, 1.442695
        %v7482 = vpow.pop %v7481
        %v7483 = vmul.f32 %v7465, 1.442695
        %v7484 = vpow.pop %v7483
        %v7485 = vmul.f32 %v7466, 1.442695
        %v7486 = vpow.pop %v7485
        %v7487 = vmul.f32 %v7467, 1.442695
        %v7488 = vpow.pop %v7487
        %v7489 = vmul.f32 %v7468, 1.442695
        %v7490 = vpow.pop %v7489
        %v7491 = vmul.f32 %v7469, 1.442695
        %v7492 = vpow.pop %v7491
        %v7493 = vmul.f32 %v7470, 1.442695
        %v7494 = vpow.pop %v7493
        %v7495 = vmul.f32 %v7471, 1.442695
        %v7496 = vpow.pop %v7495
        %v7497 = vmul.f32 %v7472, 1.442695
        %v7498 = vpow.pop %v7497
        %v7499 = vmul.f32 %v7473, 1.442695
        %v7500 = vpow.pop %v7499
        %v7501 = vmul.f32 %v7474, 1.442695
        %v7502 = vpow.pop %v7501
        %v7503 = vmul.f32 %v7475, 1.442695
        %v7504 = vpow.pop %v7503
        %v7505 = vmul.f32 %v7476, 1.442695
        %v7506 = vpow.pop %v7505
        %v7507 = vmul.f32 %v7477, 1.442695
        %v7508 = vpow.pop %v7507
        %v7509 = vmul.f32 %v7478, 1.442695
        %v7510 = vpow.pop %v7509
        %v7511 = vadd.f32 %v7480, 1.0
        %v7512 = vadd.f32 %v7482, 1.0
        %v7513 = vadd.f32 %v7484, 1.0
        %v7514 = vadd.f32 %v7486, 1.0
        %v7515 = vadd.f32 %v7488, 1.0
        %v7516 = vadd.f32 %v7490, 1.0
        %v7517 = vadd.f32 %v7492, 1.0
        %v7518 = vadd.f32 %v7494, 1.0
        %v7519 = vadd.f32 %v7496, 1.0
        %v7520 = vadd.f32 %v7498, 1.0
        %v7521 = vadd.f32 %v7500, 1.0
        %v7522 = vadd.f32 %v7502, 1.0
        %v7523 = vadd.f32 %v7504, 1.0
        %v7524 = vadd.f32 %v7506, 1.0
        %v7525 = vadd.f32 %v7508, 1.0
        %v7526 = vadd.f32 %v7510, 1.0
        %v7527 = vrcp.pop %v7511
        %v7528 = vmul.f32 %v7511, %v7527
        %v7529 = vsub.f32 1.0, %v7528
        %v7530 = vmul.f32 %v7527, %v7529
        %v7531 = vadd.f32 %v7527, %v7530
        %vm7532 = vweird.f32 %v7511
        %vm7533 = vweird.f32 %v7527
        %vm7534 = vmor %vm7532, %vm7533
        %v7535 = vsel %vm7534, %v7527, %v7531
        %v7536 = vand.u32 2147483647, %v7511
        %vm7537 = vcmp.eq.f32.partialorder %v7536, 8.507059e+37
        %v7538 = vand.u32 %v7511, 2147483648
        %v7539 = vor.u32 1.1754944e-38, %v7538
        %v7540 = vsel %vm7537, %v7539, %v7535
        %v7541 = vmul.f32 1.0, %v7540
        %v7542 = vrcp.pop %v7512
        %v7543 = vmul.f32 %v7512, %v7542
        %v7544 = vsub.f32 1.0, %v7543
        %v7545 = vmul.f32 %v7542, %v7544
        %v7546 = vadd.f32 %v7542, %v7545
        %vm7547 = vweird.f32 %v7512
        %vm7548 = vweird.f32 %v7542
        %vm7549 = vmor %vm7547, %vm7548
        %v7550 = vsel %vm7549, %v7542, %v7546
        %v7551 = vand.u32 2147483647, %v7512
        %vm7552 = vcmp.eq.f32.partialorder %v7551, 8.507059e+37
        %v7553 = vand.u32 %v7512, 2147483648
        %v7554 = vor.u32 1.1754944e-38, %v7553
        %v7555 = vsel %vm7552, %v7554, %v7550
        %v7556 = vmul.f32 1.0, %v7555
        %v7557 = vrcp.pop %v7513
        %v7558 = vmul.f32 %v7513, %v7557
        %v7559 = vsub.f32 1.0, %v7558
        %v7560 = vmul.f32 %v7557, %v7559
        %v7561 = vadd.f32 %v7557, %v7560
        %vm7562 = vweird.f32 %v7513
        %vm7563 = vweird.f32 %v7557
        %vm7564 = vmor %vm7562, %vm7563
        %v7565 = vsel %vm7564, %v7557, %v7561
        %v7566 = vand.u32 2147483647, %v7513
        %vm7567 = vcmp.eq.f32.partialorder %v7566, 8.507059e+37
        %v7568 = vand.u32 %v7513, 2147483648
        %v7569 = vor.u32 1.1754944e-38, %v7568
        %v7570 = vsel %vm7567, %v7569, %v7565
        %v7571 = vmul.f32 1.0, %v7570
        %v7572 = vrcp.pop %v7514
        %v7573 = vmul.f32 %v7514, %v7572
        %v7574 = vsub.f32 1.0, %v7573
        %v7575 = vmul.f32 %v7572, %v7574
        %v7576 = vadd.f32 %v7572, %v7575
        %vm7577 = vweird.f32 %v7514
        %vm7578 = vweird.f32 %v7572
        %vm7579 = vmor %vm7577, %vm7578
        %v7580 = vsel %vm7579, %v7572, %v7576
        %v7581 = vand.u32 2147483647, %v7514
        %vm7582 = vcmp.eq.f32.partialorder %v7581, 8.507059e+37
        %v7583 = vand.u32 %v7514, 2147483648
        %v7584 = vor.u32 1.1754944e-38, %v7583
        %v7585 = vsel %vm7582, %v7584, %v7580
        %v7586 = vmul.f32 1.0, %v7585
        %v7587 = vrcp.pop %v7515
        %v7588 = vmul.f32 %v7515, %v7587
        %v7589 = vsub.f32 1.0, %v7588
        %v7590 = vmul.f32 %v7587, %v7589
        %v7591 = vadd.f32 %v7587, %v7590
        %vm7592 = vweird.f32 %v7515
        %vm7593 = vweird.f32 %v7587
        %vm7594 = vmor %vm7592, %vm7593
        %v7595 = vsel %vm7594, %v7587, %v7591
        %v7596 = vand.u32 2147483647, %v7515
        %vm7597 = vcmp.eq.f32.partialorder %v7596, 8.507059e+37
        %v7598 = vand.u32 %v7515, 2147483648
        %v7599 = vor.u32 1.1754944e-38, %v7598
        %v7600 = vsel %vm7597, %v7599, %v7595
        %v7601 = vmul.f32 1.0, %v7600
        %v7602 = vrcp.pop %v7516
        %v7603 = vmul.f32 %v7516, %v7602
        %v7604 = vsub.f32 1.0, %v7603
        %v7605 = vmul.f32 %v7602, %v7604
        %v7606 = vadd.f32 %v7602, %v7605
        %vm7607 = vweird.f32 %v7516
        %vm7608 = vweird.f32 %v7602
        %vm7609 = vmor %vm7607, %vm7608
        %v7610 = vsel %vm7609, %v7602, %v7606
        %v7611 = vand.u32 2147483647, %v7516
        %vm7612 = vcmp.eq.f32.partialorder %v7611, 8.507059e+37
        %v7613 = vand.u32 %v7516, 2147483648
        %v7614 = vor.u32 1.1754944e-38, %v7613
        %v7615 = vsel %vm7612, %v7614, %v7610
        %v7616 = vmul.f32 1.0, %v7615
        %v7617 = vrcp.pop %v7517
        %v7618 = vmul.f32 %v7517, %v7617
        %v7619 = vsub.f32 1.0, %v7618
        %v7620 = vmul.f32 %v7617, %v7619
        %v7621 = vadd.f32 %v7617, %v7620
        %vm7622 = vweird.f32 %v7517
        %vm7623 = vweird.f32 %v7617
        %vm7624 = vmor %vm7622, %vm7623
        %v7625 = vsel %vm7624, %v7617, %v7621
        %v7626 = vand.u32 2147483647, %v7517
        %vm7627 = vcmp.eq.f32.partialorder %v7626, 8.507059e+37
        %v7628 = vand.u32 %v7517, 2147483648
        %v7629 = vor.u32 1.1754944e-38, %v7628
        %v7630 = vsel %vm7627, %v7629, %v7625
        %v7631 = vmul.f32 1.0, %v7630
        %v7632 = vrcp.pop %v7518
        %v7633 = vmul.f32 %v7518, %v7632
        %v7634 = vsub.f32 1.0, %v7633
        %v7635 = vmul.f32 %v7632, %v7634
        %v7636 = vadd.f32 %v7632, %v7635
        %vm7637 = vweird.f32 %v7518
        %vm7638 = vweird.f32 %v7632
        %vm7639 = vmor %vm7637, %vm7638
        %v7640 = vsel %vm7639, %v7632, %v7636
        %v7641 = vand.u32 2147483647, %v7518
        %vm7642 = vcmp.eq.f32.partialorder %v7641, 8.507059e+37
        %v7643 = vand.u32 %v7518, 2147483648
        %v7644 = vor.u32 1.1754944e-38, %v7643
        %v7645 = vsel %vm7642, %v7644, %v7640
        %v7646 = vmul.f32 1.0, %v7645
        %v7647 = vrcp.pop %v7519
        %v7648 = vmul.f32 %v7519, %v7647
        %v7649 = vsub.f32 1.0, %v7648
        %v7650 = vmul.f32 %v7647, %v7649
        %v7651 = vadd.f32 %v7647, %v7650
        %vm7652 = vweird.f32 %v7519
        %vm7653 = vweird.f32 %v7647
        %vm7654 = vmor %vm7652, %vm7653
        %v7655 = vsel %vm7654, %v7647, %v7651
        %v7656 = vand.u32 2147483647, %v7519
        %vm7657 = vcmp.eq.f32.partialorder %v7656, 8.507059e+37
        %v7658 = vand.u32 %v7519, 2147483648
        %v7659 = vor.u32 1.1754944e-38, %v7658
        %v7660 = vsel %vm7657, %v7659, %v7655
        %v7661 = vmul.f32 1.0, %v7660
        %v7662 = vrcp.pop %v7520
        %v7663 = vmul.f32 %v7520, %v7662
        %v7664 = vsub.f32 1.0, %v7663
        %v7665 = vmul.f32 %v7662, %v7664
        %v7666 = vadd.f32 %v7662, %v7665
        %vm7667 = vweird.f32 %v7520
        %vm7668 = vweird.f32 %v7662
        %vm7669 = vmor %vm7667, %vm7668
        %v7670 = vsel %vm7669, %v7662, %v7666
        %v7671 = vand.u32 2147483647, %v7520
        %vm7672 = vcmp.eq.f32.partialorder %v7671, 8.507059e+37
        %v7673 = vand.u32 %v7520, 2147483648
        %v7674 = vor.u32 1.1754944e-38, %v7673
        %v7675 = vsel %vm7672, %v7674, %v7670
        %v7676 = vmul.f32 1.0, %v7675
        %v7677 = vrcp.pop %v7521
        %v7678 = vmul.f32 %v7521, %v7677
        %v7679 = vsub.f32 1.0, %v7678
        %v7680 = vmul.f32 %v7677, %v7679
        %v7681 = vadd.f32 %v7677, %v7680
        %vm7682 = vweird.f32 %v7521
        %vm7683 = vweird.f32 %v7677
        %vm7684 = vmor %vm7682, %vm7683
        %v7685 = vsel %vm7684, %v7677, %v7681
        %v7686 = vand.u32 2147483647, %v7521
        %vm7687 = vcmp.eq.f32.partialorder %v7686, 8.507059e+37
        %v7688 = vand.u32 %v7521, 2147483648
        %v7689 = vor.u32 1.1754944e-38, %v7688
        %v7690 = vsel %vm7687, %v7689, %v7685
        %v7691 = vmul.f32 1.0, %v7690
        %v7692 = vrcp.pop %v7522
        %v7693 = vmul.f32 %v7522, %v7692
        %v7694 = vsub.f32 1.0, %v7693
        %v7695 = vmul.f32 %v7692, %v7694
        %v7696 = vadd.f32 %v7692, %v7695
        %vm7697 = vweird.f32 %v7522
        %vm7698 = vweird.f32 %v7692
        %vm7699 = vmor %vm7697, %vm7698
        %v7700 = vsel %vm7699, %v7692, %v7696
        %v7701 = vand.u32 2147483647, %v7522
        %vm7702 = vcmp.eq.f32.partialorder %v7701, 8.507059e+37
        %v7703 = vand.u32 %v7522, 2147483648
        %v7704 = vor.u32 1.1754944e-38, %v7703
        %v7705 = vsel %vm7702, %v7704, %v7700
        %v7706 = vmul.f32 1.0, %v7705
        %v7707 = vrcp.pop %v7523
        %v7708 = vmul.f32 %v7523, %v7707
        %v7709 = vsub.f32 1.0, %v7708
        %v7710 = vmul.f32 %v7707, %v7709
        %v7711 = vadd.f32 %v7707, %v7710
        %vm7712 = vweird.f32 %v7523
        %vm7713 = vweird.f32 %v7707
        %vm7714 = vmor %vm7712, %vm7713
        %v7715 = vsel %vm7714, %v7707, %v7711
        %v7716 = vand.u32 2147483647, %v7523
        %vm7717 = vcmp.eq.f32.partialorder %v7716, 8.507059e+37
        %v7718 = vand.u32 %v7523, 2147483648
        %v7719 = vor.u32 1.1754944e-38, %v7718
        %v7720 = vsel %vm7717, %v7719, %v7715
        %v7721 = vmul.f32 1.0, %v7720
        %v7722 = vrcp.pop %v7524
        %v7723 = vmul.f32 %v7524, %v7722
        %v7724 = vsub.f32 1.0, %v7723
        %v7725 = vmul.f32 %v7722, %v7724
        %v7726 = vadd.f32 %v7722, %v7725
        %vm7727 = vweird.f32 %v7524
        %vm7728 = vweird.f32 %v7722
        %vm7729 = vmor %vm7727, %vm7728
        %v7730 = vsel %vm7729, %v7722, %v7726
        %v7731 = vand.u32 2147483647, %v7524
        %vm7732 = vcmp.eq.f32.partialorder %v7731, 8.507059e+37
        %v7733 = vand.u32 %v7524, 2147483648
        %v7734 = vor.u32 1.1754944e-38, %v7733
        %v7735 = vsel %vm7732, %v7734, %v7730
        %v7736 = vmul.f32 1.0, %v7735
        %v7737 = vrcp.pop %v7525
        %v7738 = vmul.f32 %v7525, %v7737
        %v7739 = vsub.f32 1.0, %v7738
        %v7740 = vmul.f32 %v7737, %v7739
        %v7741 = vadd.f32 %v7737, %v7740
        %vm7742 = vweird.f32 %v7525
        %vm7743 = vweird.f32 %v7737
        %vm7744 = vmor %vm7742, %vm7743
        %v7745 = vsel %vm7744, %v7737, %v7741
        %v7746 = vand.u32 2147483647, %v7525
        %vm7747 = vcmp.eq.f32.partialorder %v7746, 8.507059e+37
        %v7748 = vand.u32 %v7525, 2147483648
        %v7749 = vor.u32 1.1754944e-38, %v7748
        %v7750 = vsel %vm7747, %v7749, %v7745
        %v7751 = vmul.f32 1.0, %v7750
        %v7752 = vrcp.pop %v7526
        %v7753 = vmul.f32 %v7526, %v7752
        %v7754 = vsub.f32 1.0, %v7753
        %v7755 = vmul.f32 %v7752, %v7754
        %v7756 = vadd.f32 %v7752, %v7755
        %vm7757 = vweird.f32 %v7526
        %vm7758 = vweird.f32 %v7752
        %vm7759 = vmor %vm7757, %vm7758
        %v7760 = vsel %vm7759, %v7752, %v7756
        %v7761 = vand.u32 2147483647, %v7526
        %vm7762 = vcmp.eq.f32.partialorder %v7761, 8.507059e+37
        %v7763 = vand.u32 %v7526, 2147483648
        %v7764 = vor.u32 1.1754944e-38, %v7763
        %v7765 = vsel %vm7762, %v7764, %v7760
        %v7766 = vmul.f32 1.0, %v7765
        %v7767 = vmax.f32 %v7424, 0.0
        %v7768 = vmax.f32 %v7426, 0.0
        %v7769 = vmax.f32 %v7429, 0.0
        %v7770 = vmax.f32 %v7431, 0.0
        %v7771 = vmax.f32 %v7434, 0.0
        %v7772 = vmax.f32 %v7436, 0.0
        %v7773 = vmax.f32 %v7439, 0.0
        %v7774 = vmax.f32 %v7441, 0.0
        %v7775 = vmax.f32 %v7444, 0.0
        %v7776 = vmax.f32 %v7446, 0.0
        %v7777 = vmax.f32 %v7449, 0.0
        %v7778 = vmax.f32 %v7451, 0.0
        %v7779 = vmax.f32 %v7454, 0.0
        %v7780 = vmax.f32 %v7456, 0.0
        %v7781 = vmax.f32 %v7459, 0.0
        %v7782 = vmax.f32 %v7461, 0.0
        %v7911 = vrot.slane %v6510, 7
        %v7912 = vsel %vm5109, %v7911, %v6509
        %v7913 = vrot.slane %v6511, 6
        %v7914 = vsel %vm5112, %v7913, %v7912
        %v7915 = vrot.slane %v6512, 5
        %v7916 = vsel %vm5115, %v7915, %v7914
        %v7917 = vrot.slane %v6513, 4
        %v7918 = vsel %vm5118, %v7917, %v7916
        %v7919 = vrot.slane %v6514, 3
        %v7920 = vsel %vm5121, %v7919, %v7918
        %v7921 = vrot.slane %v6515, 2
        %v7922 = vsel %vm5124, %v7921, %v7920
        %v7923 = vrot.slane %v6516, 1
        %v7924 = vsel %vm5127, %v7923, %v7922
        %v7925 = vrot.slane %v6518, 7
        %v7926 = vsel %vm5109, %v7925, %v6517
        %v7927 = vrot.slane %v6519, 6
        %v7928 = vsel %vm5112, %v7927, %v7926
        %v7929 = vrot.slane %v6520, 5
        %v7930 = vsel %vm5115, %v7929, %v7928
        %v7931 = vrot.slane %v6521, 4
        %v7932 = vsel %vm5118, %v7931, %v7930
        %v7933 = vrot.slane %v6522, 3
        %v7934 = vsel %vm5121, %v7933, %v7932
        %v7935 = vrot.slane %v6523, 2
        %v7936 = vsel %vm5124, %v7935, %v7934
        %v7937 = vrot.slane %v6524, 1
        %v7938 = vsel %vm5127, %v7937, %v7936
        %v7939 = vrot.slane %v6526, 7
        %v7940 = vsel %vm5109, %v7939, %v6525
        %v7941 = vrot.slane %v6527, 6
        %v7942 = vsel %vm5112, %v7941, %v7940
        %v7943 = vrot.slane %v6528, 5
        %v7944 = vsel %vm5115, %v7943, %v7942
        %v7945 = vrot.slane %v6529, 4
        %v7946 = vsel %vm5118, %v7945, %v7944
        %v7947 = vrot.slane %v6530, 3
        %v7948 = vsel %vm5121, %v7947, %v7946
        %v7949 = vrot.slane %v6531, 2
        %v7950 = vsel %vm5124, %v7949, %v7948
        %v7951 = vrot.slane %v6532, 1
        %v7952 = vsel %vm5127, %v7951, %v7950
        %v7953 = vrot.slane %v6534, 7
        %v7954 = vsel %vm5109, %v7953, %v6533
        %v7955 = vrot.slane %v6535, 6
        %v7956 = vsel %vm5112, %v7955, %v7954
        %v7957 = vrot.slane %v6536, 5
        %v7958 = vsel %vm5115, %v7957, %v7956
        %v7959 = vrot.slane %v6537, 4
        %v7960 = vsel %vm5118, %v7959, %v7958
        %v7961 = vrot.slane %v6538, 3
        %v7962 = vsel %vm5121, %v7961, %v7960
        %v7963 = vrot.slane %v6539, 2
        %v7964 = vsel %vm5124, %v7963, %v7962
        %v7965 = vrot.slane %v6540, 1
        %v7966 = vsel %vm5127, %v7965, %v7964
        %v7967 = vrot.slane %v6542, 7
        %v7968 = vsel %vm5109, %v7967, %v6541
        %v7969 = vrot.slane %v6543, 6
        %v7970 = vsel %vm5112, %v7969, %v7968
        %v7971 = vrot.slane %v6544, 5
        %v7972 = vsel %vm5115, %v7971, %v7970
        %v7973 = vrot.slane %v6545, 4
        %v7974 = vsel %vm5118, %v7973, %v7972
        %v7975 = vrot.slane %v6546, 3
        %v7976 = vsel %vm5121, %v7975, %v7974
        %v7977 = vrot.slane %v6547, 2
        %v7978 = vsel %vm5124, %v7977, %v7976
        %v7979 = vrot.slane %v6548, 1
        %v7980 = vsel %vm5127, %v7979, %v7978
        %v7981 = vrot.slane %v6550, 7
        %v7982 = vsel %vm5109, %v7981, %v6549
        %v7983 = vrot.slane %v6551, 6
        %v7984 = vsel %vm5112, %v7983, %v7982
        %v7985 = vrot.slane %v6552, 5
        %v7986 = vsel %vm5115, %v7985, %v7984
        %v7987 = vrot.slane %v6553, 4
        %v7988 = vsel %vm5118, %v7987, %v7986
        %v7989 = vrot.slane %v6554, 3
        %v7990 = vsel %vm5121, %v7989, %v7988
        %v7991 = vrot.slane %v6555, 2
        %v7992 = vsel %vm5124, %v7991, %v7990
        %v7993 = vrot.slane %v6556, 1
        %v7994 = vsel %vm5127, %v7993, %v7992
        %v7995 = vrot.slane %v6558, 7
        %v7996 = vsel %vm5109, %v7995, %v6557
        %v7997 = vrot.slane %v6559, 6
        %v7998 = vsel %vm5112, %v7997, %v7996
        %v7999 = vrot.slane %v6560, 5
        %v8000 = vsel %vm5115, %v7999, %v7998
        %v8001 = vrot.slane %v6561, 4
        %v8002 = vsel %vm5118, %v8001, %v8000
        %v8003 = vrot.slane %v6562, 3
        %v8004 = vsel %vm5121, %v8003, %v8002
        %v8005 = vrot.slane %v6563, 2
        %v8006 = vsel %vm5124, %v8005, %v8004
        %v8007 = vrot.slane %v6564, 1
        %v8008 = vsel %vm5127, %v8007, %v8006
        %v8009 = vrot.slane %v6566, 7
        %v8010 = vsel %vm5109, %v8009, %v6565
        %v8011 = vrot.slane %v6567, 6
        %v8012 = vsel %vm5112, %v8011, %v8010
        %v8013 = vrot.slane %v6568, 5
        %v8014 = vsel %vm5115, %v8013, %v8012
        %v8015 = vrot.slane %v6569, 4
        %v8016 = vsel %vm5118, %v8015, %v8014
        %v8017 = vrot.slane %v6570, 3
        %v8018 = vsel %vm5121, %v8017, %v8016
        %v8019 = vrot.slane %v6571, 2
        %v8020 = vsel %vm5124, %v8019, %v8018
        %v8021 = vrot.slane %v6572, 1
        %v8022 = vsel %vm5127, %v8021, %v8020
        %v8023 = vrot.slane %v6574, 7
        %v8024 = vsel %vm5109, %v8023, %v6573
        %v8025 = vrot.slane %v6575, 6
        %v8026 = vsel %vm5112, %v8025, %v8024
        %v8027 = vrot.slane %v6576, 5
        %v8028 = vsel %vm5115, %v8027, %v8026
        %v8029 = vrot.slane %v6577, 4
        %v8030 = vsel %vm5118, %v8029, %v8028
        %v8031 = vrot.slane %v6578, 3
        %v8032 = vsel %vm5121, %v8031, %v8030
        %v8033 = vrot.slane %v6579, 2
        %v8034 = vsel %vm5124, %v8033, %v8032
        %v8035 = vrot.slane %v6580, 1
        %v8036 = vsel %vm5127, %v8035, %v8034
        %v8037 = vrot.slane %v6582, 7
        %v8038 = vsel %vm5109, %v8037, %v6581
        %v8039 = vrot.slane %v6583, 6
        %v8040 = vsel %vm5112, %v8039, %v8038
        %v8041 = vrot.slane %v6584, 5
        %v8042 = vsel %vm5115, %v8041, %v8040
        %v8043 = vrot.slane %v6585, 4
        %v8044 = vsel %vm5118, %v8043, %v8042
        %v8045 = vrot.slane %v6586, 3
        %v8046 = vsel %vm5121, %v8045, %v8044
        %v8047 = vrot.slane %v6587, 2
        %v8048 = vsel %vm5124, %v8047, %v8046
        %v8049 = vrot.slane %v6588, 1
        %v8050 = vsel %vm5127, %v8049, %v8048
        %v8051 = vrot.slane %v6590, 7
        %v8052 = vsel %vm5109, %v8051, %v6589
        %v8053 = vrot.slane %v6591, 6
        %v8054 = vsel %vm5112, %v8053, %v8052
        %v8055 = vrot.slane %v6592, 5
        %v8056 = vsel %vm5115, %v8055, %v8054
        %v8057 = vrot.slane %v6593, 4
        %v8058 = vsel %vm5118, %v8057, %v8056
        %v8059 = vrot.slane %v6594, 3
        %v8060 = vsel %vm5121, %v8059, %v8058
        %v8061 = vrot.slane %v6595, 2
        %v8062 = vsel %vm5124, %v8061, %v8060
        %v8063 = vrot.slane %v6596, 1
        %v8064 = vsel %vm5127, %v8063, %v8062
        %v8065 = vrot.slane %v6598, 7
        %v8066 = vsel %vm5109, %v8065, %v6597
        %v8067 = vrot.slane %v6599, 6
        %v8068 = vsel %vm5112, %v8067, %v8066
        %v8069 = vrot.slane %v6600, 5
        %v8070 = vsel %vm5115, %v8069, %v8068
        %v8071 = vrot.slane %v6601, 4
        %v8072 = vsel %vm5118, %v8071, %v8070
        %v8073 = vrot.slane %v6602, 3
        %v8074 = vsel %vm5121, %v8073, %v8072
        %v8075 = vrot.slane %v6603, 2
        %v8076 = vsel %vm5124, %v8075, %v8074
        %v8077 = vrot.slane %v6604, 1
        %v8078 = vsel %vm5127, %v8077, %v8076
        %v8079 = vrot.slane %v6606, 7
        %v8080 = vsel %vm5109, %v8079, %v6605
        %v8081 = vrot.slane %v6607, 6
        %v8082 = vsel %vm5112, %v8081, %v8080
        %v8083 = vrot.slane %v6608, 5
        %v8084 = vsel %vm5115, %v8083, %v8082
        %v8085 = vrot.slane %v6609, 4
        %v8086 = vsel %vm5118, %v8085, %v8084
        %v8087 = vrot.slane %v6610, 3
        %v8088 = vsel %vm5121, %v8087, %v8086
        %v8089 = vrot.slane %v6611, 2
        %v8090 = vsel %vm5124, %v8089, %v8088
        %v8091 = vrot.slane %v6612, 1
        %v8092 = vsel %vm5127, %v8091, %v8090
        %v8093 = vrot.slane %v6614, 7
        %v8094 = vsel %vm5109, %v8093, %v6613
        %v8095 = vrot.slane %v6615, 6
        %v8096 = vsel %vm5112, %v8095, %v8094
        %v8097 = vrot.slane %v6616, 5
        %v8098 = vsel %vm5115, %v8097, %v8096
        %v8099 = vrot.slane %v6617, 4
        %v8100 = vsel %vm5118, %v8099, %v8098
        %v8101 = vrot.slane %v6618, 3
        %v8102 = vsel %vm5121, %v8101, %v8100
        %v8103 = vrot.slane %v6619, 2
        %v8104 = vsel %vm5124, %v8103, %v8102
        %v8105 = vrot.slane %v6620, 1
        %v8106 = vsel %vm5127, %v8105, %v8104
        %v8107 = vrot.slane %v6622, 7
        %v8108 = vsel %vm5109, %v8107, %v6621
        %v8109 = vrot.slane %v6623, 6
        %v8110 = vsel %vm5112, %v8109, %v8108
        %v8111 = vrot.slane %v6624, 5
        %v8112 = vsel %vm5115, %v8111, %v8110
        %v8113 = vrot.slane %v6625, 4
        %v8114 = vsel %vm5118, %v8113, %v8112
        %v8115 = vrot.slane %v6626, 3
        %v8116 = vsel %vm5121, %v8115, %v8114
        %v8117 = vrot.slane %v6627, 2
        %v8118 = vsel %vm5124, %v8117, %v8116
        %v8119 = vrot.slane %v6628, 1
        %v8120 = vsel %vm5127, %v8119, %v8118
        %v8121 = vrot.slane %v6630, 7
        %v8122 = vsel %vm5109, %v8121, %v6629
        %v8123 = vrot.slane %v6631, 6
        %v8124 = vsel %vm5112, %v8123, %v8122
        %v8125 = vrot.slane %v6632, 5
        %v8126 = vsel %vm5115, %v8125, %v8124
        %v8127 = vrot.slane %v6633, 4
        %v8128 = vsel %vm5118, %v8127, %v8126
        %v8129 = vrot.slane %v6634, 3
        %v8130 = vsel %vm5121, %v8129, %v8128
        %v8131 = vrot.slane %v6635, 2
        %v8132 = vsel %vm5124, %v8131, %v8130
        %v8133 = vrot.slane %v6636, 1
        %v8134 = vsel %vm5127, %v8133, %v8132
        %v8151 = vsub.f32 %v7767, %v7924
        %v8152 = vsub.f32 %v7768, %v7938
        %v8153 = vsub.f32 %v7769, %v7952
        %v8154 = vsub.f32 %v7770, %v7966
        %v8155 = vsub.f32 %v7771, %v7980
        %v8156 = vsub.f32 %v7772, %v7994
        %v8157 = vsub.f32 %v7773, %v8008
        %v8158 = vsub.f32 %v7774, %v8022
        %v8159 = vsub.f32 %v7775, %v8036
        %v8160 = vsub.f32 %v7776, %v8050
        %v8161 = vsub.f32 %v7777, %v8064
        %v8162 = vsub.f32 %v7778, %v8078
        %v8163 = vsub.f32 %v7779, %v8092
        %v8164 = vsub.f32 %v7780, %v8106
        %v8165 = vsub.f32 %v7781, %v8120
        %v8166 = vsub.f32 %v7782, %v8134
        %v8167 = vmul.f32 %v7541, %v8151
        %v8168 = vmul.f32 %v7556, %v8152
        %v8169 = vmul.f32 %v7571, %v8153
        %v8170 = vmul.f32 %v7586, %v8154
        %v8171 = vmul.f32 %v7601, %v8155
        %v8172 = vmul.f32 %v7616, %v8156
        %v8173 = vmul.f32 %v7631, %v8157
        %v8174 = vmul.f32 %v7646, %v8158
        %v8175 = vmul.f32 %v7661, %v8159
        %v8176 = vmul.f32 %v7676, %v8160
        %v8177 = vmul.f32 %v7691, %v8161
        %v8178 = vmul.f32 %v7706, %v8162
        %v8179 = vmul.f32 %v7721, %v8163
        %v8180 = vmul.f32 %v7736, %v8164
        %v8181 = vmul.f32 %v7751, %v8165
        %v8182 = vmul.f32 %v7766, %v8166
        %v8199 = vrot.slane %v8167, 1
        %v8200 = vrot.slane %v8167, 2
        %v8201 = vrot.slane %v8167, 3
        %v8202 = vrot.slane %v8167, 4
        %v8203 = vrot.slane %v8167, 5
        %v8204 = vrot.slane %v8167, 6
        %v8205 = vrot.slane %v8167, 7
        %v8206 = vrot.slane %v8168, 1
        %v8207 = vrot.slane %v8168, 2
        %v8208 = vrot.slane %v8168, 3
        %v8209 = vrot.slane %v8168, 4
        %v8210 = vrot.slane %v8168, 5
        %v8211 = vrot.slane %v8168, 6
        %v8212 = vrot.slane %v8168, 7
        %v8213 = vrot.slane %v8169, 1
        %v8214 = vrot.slane %v8169, 2
        %v8215 = vrot.slane %v8169, 3
        %v8216 = vrot.slane %v8169, 4
        %v8217 = vrot.slane %v8169, 5
        %v8218 = vrot.slane %v8169, 6
        %v8219 = vrot.slane %v8169, 7
        %v8220 = vrot.slane %v8170, 1
        %v8221 = vrot.slane %v8170, 2
        %v8222 = vrot.slane %v8170, 3
        %v8223 = vrot.slane %v8170, 4
        %v8224 = vrot.slane %v8170, 5
        %v8225 = vrot.slane %v8170, 6
        %v8226 = vrot.slane %v8170, 7
        %v8227 = vrot.slane %v8171, 1
        %v8228 = vrot.slane %v8171, 2
        %v8229 = vrot.slane %v8171, 3
        %v8230 = vrot.slane %v8171, 4
        %v8231 = vrot.slane %v8171, 5
        %v8232 = vrot.slane %v8171, 6
        %v8233 = vrot.slane %v8171, 7
        %v8234 = vrot.slane %v8172, 1
        %v8235 = vrot.slane %v8172, 2
        %v8236 = vrot.slane %v8172, 3
        %v8237 = vrot.slane %v8172, 4
        %v8238 = vrot.slane %v8172, 5
        %v8239 = vrot.slane %v8172, 6
        %v8240 = vrot.slane %v8172, 7
        %v8241 = vrot.slane %v8173, 1
        %v8242 = vrot.slane %v8173, 2
        %v8243 = vrot.slane %v8173, 3
        %v8244 = vrot.slane %v8173, 4
        %v8245 = vrot.slane %v8173, 5
        %v8246 = vrot.slane %v8173, 6
        %v8247 = vrot.slane %v8173, 7
        %v8248 = vrot.slane %v8174, 1
        %v8249 = vrot.slane %v8174, 2
        %v8250 = vrot.slane %v8174, 3
        %v8251 = vrot.slane %v8174, 4
        %v8252 = vrot.slane %v8174, 5
        %v8253 = vrot.slane %v8174, 6
        %v8254 = vrot.slane %v8174, 7
        %v8255 = vrot.slane %v8175, 1
        %v8256 = vrot.slane %v8175, 2
        %v8257 = vrot.slane %v8175, 3
        %v8258 = vrot.slane %v8175, 4
        %v8259 = vrot.slane %v8175, 5
        %v8260 = vrot.slane %v8175, 6
        %v8261 = vrot.slane %v8175, 7
        %v8262 = vrot.slane %v8176, 1
        %v8263 = vrot.slane %v8176, 2
        %v8264 = vrot.slane %v8176, 3
        %v8265 = vrot.slane %v8176, 4
        %v8266 = vrot.slane %v8176, 5
        %v8267 = vrot.slane %v8176, 6
        %v8268 = vrot.slane %v8176, 7
        %v8269 = vrot.slane %v8177, 1
        %v8270 = vrot.slane %v8177, 2
        %v8271 = vrot.slane %v8177, 3
        %v8272 = vrot.slane %v8177, 4
        %v8273 = vrot.slane %v8177, 5
        %v8274 = vrot.slane %v8177, 6
        %v8275 = vrot.slane %v8177, 7
        %v8276 = vrot.slane %v8178, 1
        %v8277 = vrot.slane %v8178, 2
        %v8278 = vrot.slane %v8178, 3
        %v8279 = vrot.slane %v8178, 4
        %v8280 = vrot.slane %v8178, 5
        %v8281 = vrot.slane %v8178, 6
        %v8282 = vrot.slane %v8178, 7
        %v8283 = vrot.slane %v8179, 1
        %v8284 = vrot.slane %v8179, 2
        %v8285 = vrot.slane %v8179, 3
        %v8286 = vrot.slane %v8179, 4
        %v8287 = vrot.slane %v8179, 5
        %v8288 = vrot.slane %v8179, 6
        %v8289 = vrot.slane %v8179, 7
        %v8290 = vrot.slane %v8180, 1
        %v8291 = vrot.slane %v8180, 2
        %v8292 = vrot.slane %v8180, 3
        %v8293 = vrot.slane %v8180, 4
        %v8294 = vrot.slane %v8180, 5
        %v8295 = vrot.slane %v8180, 6
        %v8296 = vrot.slane %v8180, 7
        %v8297 = vrot.slane %v8181, 1
        %v8298 = vrot.slane %v8181, 2
        %v8299 = vrot.slane %v8181, 3
        %v8300 = vrot.slane %v8181, 4
        %v8301 = vrot.slane %v8181, 5
        %v8302 = vrot.slane %v8181, 6
        %v8303 = vrot.slane %v8181, 7
        %v8304 = vrot.slane %v8182, 1
        %v8305 = vrot.slane %v8182, 2
        %v8306 = vrot.slane %v8182, 3
        %v8307 = vrot.slane %v8182, 4
        %v8308 = vrot.slane %v8182, 5
        %v8309 = vrot.slane %v8182, 6
        %v8310 = vrot.slane %v8182, 7
        %v8439 = vadd.f32 %v6509, %v8167
        %v8440 = vadd.f32 %v6510, %v8199
        %v8441 = vadd.f32 %v6511, %v8200
        %v8442 = vadd.f32 %v6512, %v8201
        %v8443 = vadd.f32 %v6513, %v8202
        %v8444 = vadd.f32 %v6514, %v8203
        %v8445 = vadd.f32 %v6515, %v8204
        %v8446 = vadd.f32 %v6516, %v8205
        %v8447 = vadd.f32 %v6517, %v8168
        %v8448 = vadd.f32 %v6518, %v8206
        %v8449 = vadd.f32 %v6519, %v8207
        %v8450 = vadd.f32 %v6520, %v8208
        %v8451 = vadd.f32 %v6521, %v8209
        %v8452 = vadd.f32 %v6522, %v8210
        %v8453 = vadd.f32 %v6523, %v8211
        %v8454 = vadd.f32 %v6524, %v8212
        %v8455 = vadd.f32 %v6525, %v8169
        %v8456 = vadd.f32 %v6526, %v8213
        %v8457 = vadd.f32 %v6527, %v8214
        %v8458 = vadd.f32 %v6528, %v8215
        %v8459 = vadd.f32 %v6529, %v8216
        %v8460 = vadd.f32 %v6530, %v8217
        %v8461 = vadd.f32 %v6531, %v8218
        %v8462 = vadd.f32 %v6532, %v8219
        %v8463 = vadd.f32 %v6533, %v8170
        %v8464 = vadd.f32 %v6534, %v8220
        %v8465 = vadd.f32 %v6535, %v8221
        %v8466 = vadd.f32 %v6536, %v8222
        %v8467 = vadd.f32 %v6537, %v8223
        %v8468 = vadd.f32 %v6538, %v8224
        %v8469 = vadd.f32 %v6539, %v8225
        %v8470 = vadd.f32 %v6540, %v8226
        %v8471 = vadd.f32 %v6541, %v8171
        %v8472 = vadd.f32 %v6542, %v8227
        %v8473 = vadd.f32 %v6543, %v8228
        %v8474 = vadd.f32 %v6544, %v8229
        %v8475 = vadd.f32 %v6545, %v8230
        %v8476 = vadd.f32 %v6546, %v8231
        %v8477 = vadd.f32 %v6547, %v8232
        %v8478 = vadd.f32 %v6548, %v8233
        %v8479 = vadd.f32 %v6549, %v8172
        %v8480 = vadd.f32 %v6550, %v8234
        %v8481 = vadd.f32 %v6551, %v8235
        %v8482 = vadd.f32 %v6552, %v8236
        %v8483 = vadd.f32 %v6553, %v8237
        %v8484 = vadd.f32 %v6554, %v8238
        %v8485 = vadd.f32 %v6555, %v8239
        %v8486 = vadd.f32 %v6556, %v8240
        %v8487 = vadd.f32 %v6557, %v8173
        %v8488 = vadd.f32 %v6558, %v8241
        %v8489 = vadd.f32 %v6559, %v8242
        %v8490 = vadd.f32 %v6560, %v8243
        %v8491 = vadd.f32 %v6561, %v8244
        %v8492 = vadd.f32 %v6562, %v8245
        %v8493 = vadd.f32 %v6563, %v8246
        %v8494 = vadd.f32 %v6564, %v8247
        %v8495 = vadd.f32 %v6565, %v8174
        %v8496 = vadd.f32 %v6566, %v8248
        %v8497 = vadd.f32 %v6567, %v8249
        %v8498 = vadd.f32 %v6568, %v8250
        %v8499 = vadd.f32 %v6569, %v8251
        %v8500 = vadd.f32 %v6570, %v8252
        %v8501 = vadd.f32 %v6571, %v8253
        %v8502 = vadd.f32 %v6572, %v8254
        %v8503 = vadd.f32 %v6573, %v8175
        %v8504 = vadd.f32 %v6574, %v8255
        %v8505 = vadd.f32 %v6575, %v8256
        %v8506 = vadd.f32 %v6576, %v8257
        %v8507 = vadd.f32 %v6577, %v8258
        %v8508 = vadd.f32 %v6578, %v8259
        %v8509 = vadd.f32 %v6579, %v8260
        %v8510 = vadd.f32 %v6580, %v8261
        %v8511 = vadd.f32 %v6581, %v8176
        %v8512 = vadd.f32 %v6582, %v8262
        %v8513 = vadd.f32 %v6583, %v8263
        %v8514 = vadd.f32 %v6584, %v8264
        %v8515 = vadd.f32 %v6585, %v8265
        %v8516 = vadd.f32 %v6586, %v8266
        %v8517 = vadd.f32 %v6587, %v8267
        %v8518 = vadd.f32 %v6588, %v8268
        %v8519 = vadd.f32 %v6589, %v8177
        %v8520 = vadd.f32 %v6590, %v8269
        %v8521 = vadd.f32 %v6591, %v8270
        %v8522 = vadd.f32 %v6592, %v8271
        %v8523 = vadd.f32 %v6593, %v8272
        %v8524 = vadd.f32 %v6594, %v8273
        %v8525 = vadd.f32 %v6595, %v8274
        %v8526 = vadd.f32 %v6596, %v8275
        %v8527 = vadd.f32 %v6597, %v8178
        %v8528 = vadd.f32 %v6598, %v8276
        %v8529 = vadd.f32 %v6599, %v8277
        %v8530 = vadd.f32 %v6600, %v8278
        %v8531 = vadd.f32 %v6601, %v8279
        %v8532 = vadd.f32 %v6602, %v8280
        %v8533 = vadd.f32 %v6603, %v8281
        %v8534 = vadd.f32 %v6604, %v8282
        %v8535 = vadd.f32 %v6605, %v8179
        %v8536 = vadd.f32 %v6606, %v8283
        %v8537 = vadd.f32 %v6607, %v8284
        %v8538 = vadd.f32 %v6608, %v8285
        %v8539 = vadd.f32 %v6609, %v8286
        %v8540 = vadd.f32 %v6610, %v8287
        %v8541 = vadd.f32 %v6611, %v8288
        %v8542 = vadd.f32 %v6612, %v8289
        %v8543 = vadd.f32 %v6613, %v8180
        %v8544 = vadd.f32 %v6614, %v8290
        %v8545 = vadd.f32 %v6615, %v8291
        %v8546 = vadd.f32 %v6616, %v8292
        %v8547 = vadd.f32 %v6617, %v8293
        %v8548 = vadd.f32 %v6618, %v8294
        %v8549 = vadd.f32 %v6619, %v8295
        %v8550 = vadd.f32 %v6620, %v8296
        %v8551 = vadd.f32 %v6621, %v8181
        %v8552 = vadd.f32 %v6622, %v8297
        %v8553 = vadd.f32 %v6623, %v8298
        %v8554 = vadd.f32 %v6624, %v8299
        %v8555 = vadd.f32 %v6625, %v8300
        %v8556 = vadd.f32 %v6626, %v8301
        %v8557 = vadd.f32 %v6627, %v8302
        %v8558 = vadd.f32 %v6628, %v8303
        %v8559 = vadd.f32 %v6629, %v8182
        %v8560 = vadd.f32 %v6630, %v8304
        %v8561 = vadd.f32 %v6631, %v8305
        %v8562 = vadd.f32 %v6632, %v8306
        %v8563 = vadd.f32 %v6633, %v8307
        %v8564 = vadd.f32 %v6634, %v8308
        %v8565 = vadd.f32 %v6635, %v8309
        %v8566 = vadd.f32 %v6636, %v8310
        %v8567 = vpack.c.bf16 %v8439, %v8439
        %v8568 = vpack.c.bf16 %v8440, %v8440
        %v8569 = vpack.c.bf16 %v8441, %v8441
        %v8570 = vpack.c.bf16 %v8442, %v8442
        %v8571 = vpack.c.bf16 %v8443, %v8443
        %v8572 = vpack.c.bf16 %v8444, %v8444
        %v8573 = vpack.c.bf16 %v8445, %v8445
        %v8574 = vpack.c.bf16 %v8446, %v8446
        %v8575 = vpack.c.bf16 %v8447, %v8447
        %v8576 = vpack.c.bf16 %v8448, %v8448
        %v8577 = vpack.c.bf16 %v8449, %v8449
        %v8578 = vpack.c.bf16 %v8450, %v8450
        %v8579 = vpack.c.bf16 %v8451, %v8451
        %v8580 = vpack.c.bf16 %v8452, %v8452
        %v8581 = vpack.c.bf16 %v8453, %v8453
        %v8582 = vpack.c.bf16 %v8454, %v8454
        %v8583 = vpack.c.bf16 %v8455, %v8455
        %v8584 = vpack.c.bf16 %v8456, %v8456
        %v8585 = vpack.c.bf16 %v8457, %v8457
        %v8586 = vpack.c.bf16 %v8458, %v8458
        %v8587 = vpack.c.bf16 %v8459, %v8459
        %v8588 = vpack.c.bf16 %v8460, %v8460
        %v8589 = vpack.c.bf16 %v8461, %v8461
        %v8590 = vpack.c.bf16 %v8462, %v8462
        %v8591 = vpack.c.bf16 %v8463, %v8463
        %v8592 = vpack.c.bf16 %v8464, %v8464
        %v8593 = vpack.c.bf16 %v8465, %v8465
        %v8594 = vpack.c.bf16 %v8466, %v8466
        %v8595 = vpack.c.bf16 %v8467, %v8467
        %v8596 = vpack.c.bf16 %v8468, %v8468
        %v8597 = vpack.c.bf16 %v8469, %v8469
        %v8598 = vpack.c.bf16 %v8470, %v8470
        %v8599 = vpack.c.bf16 %v8471, %v8471
        %v8600 = vpack.c.bf16 %v8472, %v8472
        %v8601 = vpack.c.bf16 %v8473, %v8473
        %v8602 = vpack.c.bf16 %v8474, %v8474
        %v8603 = vpack.c.bf16 %v8475, %v8475
        %v8604 = vpack.c.bf16 %v8476, %v8476
        %v8605 = vpack.c.bf16 %v8477, %v8477
        %v8606 = vpack.c.bf16 %v8478, %v8478
        %v8607 = vpack.c.bf16 %v8479, %v8479
        %v8608 = vpack.c.bf16 %v8480, %v8480
        %v8609 = vpack.c.bf16 %v8481, %v8481
        %v8610 = vpack.c.bf16 %v8482, %v8482
        %v8611 = vpack.c.bf16 %v8483, %v8483
        %v8612 = vpack.c.bf16 %v8484, %v8484
        %v8613 = vpack.c.bf16 %v8485, %v8485
        %v8614 = vpack.c.bf16 %v8486, %v8486
        %v8615 = vpack.c.bf16 %v8487, %v8487
        %v8616 = vpack.c.bf16 %v8488, %v8488
        %v8617 = vpack.c.bf16 %v8489, %v8489
        %v8618 = vpack.c.bf16 %v8490, %v8490
        %v8619 = vpack.c.bf16 %v8491, %v8491
        %v8620 = vpack.c.bf16 %v8492, %v8492
        %v8621 = vpack.c.bf16 %v8493, %v8493
        %v8622 = vpack.c.bf16 %v8494, %v8494
        %v8623 = vpack.c.bf16 %v8495, %v8495
        %v8624 = vpack.c.bf16 %v8496, %v8496
        %v8625 = vpack.c.bf16 %v8497, %v8497
        %v8626 = vpack.c.bf16 %v8498, %v8498
        %v8627 = vpack.c.bf16 %v8499, %v8499
        %v8628 = vpack.c.bf16 %v8500, %v8500
        %v8629 = vpack.c.bf16 %v8501, %v8501
        %v8630 = vpack.c.bf16 %v8502, %v8502
        %v8631 = vpack.c.bf16 %v8503, %v8503
        %v8632 = vpack.c.bf16 %v8504, %v8504
        %v8633 = vpack.c.bf16 %v8505, %v8505
        %v8634 = vpack.c.bf16 %v8506, %v8506
        %v8635 = vpack.c.bf16 %v8507, %v8507
        %v8636 = vpack.c.bf16 %v8508, %v8508
        %v8637 = vpack.c.bf16 %v8509, %v8509
        %v8638 = vpack.c.bf16 %v8510, %v8510
        %v8639 = vpack.c.bf16 %v8511, %v8511
        %v8640 = vpack.c.bf16 %v8512, %v8512
        %v8641 = vpack.c.bf16 %v8513, %v8513
        %v8642 = vpack.c.bf16 %v8514, %v8514
        %v8643 = vpack.c.bf16 %v8515, %v8515
        %v8644 = vpack.c.bf16 %v8516, %v8516
        %v8645 = vpack.c.bf16 %v8517, %v8517
        %v8646 = vpack.c.bf16 %v8518, %v8518
        %v8647 = vpack.c.bf16 %v8519, %v8519
        %v8648 = vpack.c.bf16 %v8520, %v8520
        %v8649 = vpack.c.bf16 %v8521, %v8521
        %v8650 = vpack.c.bf16 %v8522, %v8522
        %v8651 = vpack.c.bf16 %v8523, %v8523
        %v8652 = vpack.c.bf16 %v8524, %v8524
        %v8653 = vpack.c.bf16 %v8525, %v8525
        %v8654 = vpack.c.bf16 %v8526, %v8526
        %v8655 = vpack.c.bf16 %v8527, %v8527
        %v8656 = vpack.c.bf16 %v8528, %v8528
        %v8657 = vpack.c.bf16 %v8529, %v8529
        %v8658 = vpack.c.bf16 %v8530, %v8530
        %v8659 = vpack.c.bf16 %v8531, %v8531
        %v8660 = vpack.c.bf16 %v8532, %v8532
        %v8661 = vpack.c.bf16 %v8533, %v8533
        %v8662 = vpack.c.bf16 %v8534, %v8534
        %v8663 = vpack.c.bf16 %v8535, %v8535
        %v8664 = vpack.c.bf16 %v8536, %v8536
        %v8665 = vpack.c.bf16 %v8537, %v8537
        %v8666 = vpack.c.bf16 %v8538, %v8538
        %v8667 = vpack.c.bf16 %v8539, %v8539
        %v8668 = vpack.c.bf16 %v8540, %v8540
        %v8669 = vpack.c.bf16 %v8541, %v8541
        %v8670 = vpack.c.bf16 %v8542, %v8542
        %v8671 = vpack.c.bf16 %v8543, %v8543
        %v8672 = vpack.c.bf16 %v8544, %v8544
        %v8673 = vpack.c.bf16 %v8545, %v8545
        %v8674 = vpack.c.bf16 %v8546, %v8546
        %v8675 = vpack.c.bf16 %v8547, %v8547
        %v8676 = vpack.c.bf16 %v8548, %v8548
        %v8677 = vpack.c.bf16 %v8549, %v8549
        %v8678 = vpack.c.bf16 %v8550, %v8550
        %v8679 = vpack.c.bf16 %v8551, %v8551
        %v8680 = vpack.c.bf16 %v8552, %v8552
        %v8681 = vpack.c.bf16 %v8553, %v8553
        %v8682 = vpack.c.bf16 %v8554, %v8554
        %v8683 = vpack.c.bf16 %v8555, %v8555
        %v8684 = vpack.c.bf16 %v8556, %v8556
        %v8685 = vpack.c.bf16 %v8557, %v8557
        %v8686 = vpack.c.bf16 %v8558, %v8558
        %v8687 = vpack.c.bf16 %v8559, %v8559
        %v8688 = vpack.c.bf16 %v8560, %v8560
        %v8689 = vpack.c.bf16 %v8561, %v8561
        %v8690 = vpack.c.bf16 %v8562, %v8562
        %v8691 = vpack.c.bf16 %v8563, %v8563
        %v8692 = vpack.c.bf16 %v8564, %v8564
        %v8693 = vpack.c.bf16 %v8565, %v8565
        %v8694 = vpack.c.bf16 %v8566, %v8566
        %v8695 = vld [vmem:[%s6] sm:$0xf]
        %v8696 = vld [vmem:[%s6 + $0x4] sm:$0xf]
        %v8697 = vld [vmem:[%s6 + $0x8] sm:$0xf]
        %v8698 = vld [vmem:[%s6 + $0xc] sm:$0xf]
        %v8699 = vld [vmem:[%s6 + $0x10] sm:$0xf]
        %v8700 = vld [vmem:[%s6 + $0x14] sm:$0xf]
        %v8701 = vld [vmem:[%s6 + $0x18] sm:$0xf]
        %v8702 = vld [vmem:[%s6 + $0x1c] sm:$0xf]
        %v8703 = vld [vmem:[%s6 + $0x20] sm:$0xf]
        %v8704 = vld [vmem:[%s6 + $0x24] sm:$0xf]
        %v8705 = vld [vmem:[%s6 + $0x28] sm:$0xf]
        %v8706 = vld [vmem:[%s6 + $0x2c] sm:$0xf]
        %v8707 = vld [vmem:[%s6 + $0x30] sm:$0xf]
        %v8708 = vld [vmem:[%s6 + $0x34] sm:$0xf]
        %v8709 = vld [vmem:[%s6 + $0x38] sm:$0xf]
        %v8710 = vld [vmem:[%s6 + $0x3c] sm:$0xf]
        %v8711 = vld [vmem:[%s7] sm:$0x1]
        %v8713 = vperm.slane %v8711, 0
        %v8843 = vunpack.c.l.b16 %v8567
        %v8844 = vunpack.c.l.b16 %v8568
        %v8845 = vunpack.c.l.b16 %v8569
        %v8846 = vunpack.c.l.b16 %v8570
        %v8847 = vunpack.c.l.b16 %v8571
        %v8848 = vunpack.c.l.b16 %v8572
        %v8849 = vunpack.c.l.b16 %v8573
        %v8850 = vunpack.c.l.b16 %v8574
        %v8851 = vunpack.c.l.b16 %v8575
        %v8852 = vunpack.c.l.b16 %v8576
        %v8853 = vunpack.c.l.b16 %v8577
        %v8854 = vunpack.c.l.b16 %v8578
        %v8855 = vunpack.c.l.b16 %v8579
        %v8856 = vunpack.c.l.b16 %v8580
        %v8857 = vunpack.c.l.b16 %v8581
        %v8858 = vunpack.c.l.b16 %v8582
        %v8859 = vunpack.c.l.b16 %v8583
        %v8860 = vunpack.c.l.b16 %v8584
        %v8861 = vunpack.c.l.b16 %v8585
        %v8862 = vunpack.c.l.b16 %v8586
        %v8863 = vunpack.c.l.b16 %v8587
        %v8864 = vunpack.c.l.b16 %v8588
        %v8865 = vunpack.c.l.b16 %v8589
        %v8866 = vunpack.c.l.b16 %v8590
        %v8867 = vunpack.c.l.b16 %v8591
        %v8868 = vunpack.c.l.b16 %v8592
        %v8869 = vunpack.c.l.b16 %v8593
        %v8870 = vunpack.c.l.b16 %v8594
        %v8871 = vunpack.c.l.b16 %v8595
        %v8872 = vunpack.c.l.b16 %v8596
        %v8873 = vunpack.c.l.b16 %v8597
        %v8874 = vunpack.c.l.b16 %v8598
        %v8875 = vunpack.c.l.b16 %v8599
        %v8876 = vunpack.c.l.b16 %v8600
        %v8877 = vunpack.c.l.b16 %v8601
        %v8878 = vunpack.c.l.b16 %v8602
        %v8879 = vunpack.c.l.b16 %v8603
        %v8880 = vunpack.c.l.b16 %v8604
        %v8881 = vunpack.c.l.b16 %v8605
        %v8882 = vunpack.c.l.b16 %v8606
        %v8883 = vunpack.c.l.b16 %v8607
        %v8884 = vunpack.c.l.b16 %v8608
        %v8885 = vunpack.c.l.b16 %v8609
        %v8886 = vunpack.c.l.b16 %v8610
        %v8887 = vunpack.c.l.b16 %v8611
        %v8888 = vunpack.c.l.b16 %v8612
        %v8889 = vunpack.c.l.b16 %v8613
        %v8890 = vunpack.c.l.b16 %v8614
        %v8891 = vunpack.c.l.b16 %v8615
        %v8892 = vunpack.c.l.b16 %v8616
        %v8893 = vunpack.c.l.b16 %v8617
        %v8894 = vunpack.c.l.b16 %v8618
        %v8895 = vunpack.c.l.b16 %v8619
        %v8896 = vunpack.c.l.b16 %v8620
        %v8897 = vunpack.c.l.b16 %v8621
        %v8898 = vunpack.c.l.b16 %v8622
        %v8899 = vunpack.c.l.b16 %v8623
        %v8900 = vunpack.c.l.b16 %v8624
        %v8901 = vunpack.c.l.b16 %v8625
        %v8902 = vunpack.c.l.b16 %v8626
        %v8903 = vunpack.c.l.b16 %v8627
        %v8904 = vunpack.c.l.b16 %v8628
        %v8905 = vunpack.c.l.b16 %v8629
        %v8906 = vunpack.c.l.b16 %v8630
        %v8907 = vunpack.c.l.b16 %v8631
        %v8908 = vunpack.c.l.b16 %v8632
        %v8909 = vunpack.c.l.b16 %v8633
        %v8910 = vunpack.c.l.b16 %v8634
        %v8911 = vunpack.c.l.b16 %v8635
        %v8912 = vunpack.c.l.b16 %v8636
        %v8913 = vunpack.c.l.b16 %v8637
        %v8914 = vunpack.c.l.b16 %v8638
        %v8915 = vunpack.c.l.b16 %v8639
        %v8916 = vunpack.c.l.b16 %v8640
        %v8917 = vunpack.c.l.b16 %v8641
        %v8918 = vunpack.c.l.b16 %v8642
        %v8919 = vunpack.c.l.b16 %v8643
        %v8920 = vunpack.c.l.b16 %v8644
        %v8921 = vunpack.c.l.b16 %v8645
        %v8922 = vunpack.c.l.b16 %v8646
        %v8923 = vunpack.c.l.b16 %v8647
        %v8924 = vunpack.c.l.b16 %v8648
        %v8925 = vunpack.c.l.b16 %v8649
        %v8926 = vunpack.c.l.b16 %v8650
        %v8927 = vunpack.c.l.b16 %v8651
        %v8928 = vunpack.c.l.b16 %v8652
        %v8929 = vunpack.c.l.b16 %v8653
        %v8930 = vunpack.c.l.b16 %v8654
        %v8931 = vunpack.c.l.b16 %v8655
        %v8932 = vunpack.c.l.b16 %v8656
        %v8933 = vunpack.c.l.b16 %v8657
        %v8934 = vunpack.c.l.b16 %v8658
        %v8935 = vunpack.c.l.b16 %v8659
        %v8936 = vunpack.c.l.b16 %v8660
        %v8937 = vunpack.c.l.b16 %v8661
        %v8938 = vunpack.c.l.b16 %v8662
        %v8939 = vunpack.c.l.b16 %v8663
        %v8940 = vunpack.c.l.b16 %v8664
        %v8941 = vunpack.c.l.b16 %v8665
        %v8942 = vunpack.c.l.b16 %v8666
        %v8943 = vunpack.c.l.b16 %v8667
        %v8944 = vunpack.c.l.b16 %v8668
        %v8945 = vunpack.c.l.b16 %v8669
        %v8946 = vunpack.c.l.b16 %v8670
        %v8947 = vunpack.c.l.b16 %v8671
        %v8948 = vunpack.c.l.b16 %v8672
        %v8949 = vunpack.c.l.b16 %v8673
        %v8950 = vunpack.c.l.b16 %v8674
        %v8951 = vunpack.c.l.b16 %v8675
        %v8952 = vunpack.c.l.b16 %v8676
        %v8953 = vunpack.c.l.b16 %v8677
        %v8954 = vunpack.c.l.b16 %v8678
        %v8955 = vunpack.c.l.b16 %v8679
        %v8956 = vunpack.c.l.b16 %v8680
        %v8957 = vunpack.c.l.b16 %v8681
        %v8958 = vunpack.c.l.b16 %v8682
        %v8959 = vunpack.c.l.b16 %v8683
        %v8960 = vunpack.c.l.b16 %v8684
        %v8961 = vunpack.c.l.b16 %v8685
        %v8962 = vunpack.c.l.b16 %v8686
        %v8963 = vunpack.c.l.b16 %v8687
        %v8964 = vunpack.c.l.b16 %v8688
        %v8965 = vunpack.c.l.b16 %v8689
        %v8966 = vunpack.c.l.b16 %v8690
        %v8967 = vunpack.c.l.b16 %v8691
        %v8968 = vunpack.c.l.b16 %v8692
        %v8969 = vunpack.c.l.b16 %v8693
        %v8970 = vunpack.c.l.b16 %v8694
        %v8971 = vrot.slane %v8844, 7
        %v8972 = vsel %vm5109, %v8971, %v8843
        %v8973 = vrot.slane %v8845, 6
        %v8974 = vsel %vm5112, %v8973, %v8972
        %v8975 = vrot.slane %v8846, 5
        %v8976 = vsel %vm5115, %v8975, %v8974
        %v8977 = vrot.slane %v8847, 4
        %v8978 = vsel %vm5118, %v8977, %v8976
        %v8979 = vrot.slane %v8848, 3
        %v8980 = vsel %vm5121, %v8979, %v8978
        %v8981 = vrot.slane %v8849, 2
        %v8982 = vsel %vm5124, %v8981, %v8980
        %v8983 = vrot.slane %v8850, 1
        %v8984 = vsel %vm5127, %v8983, %v8982
        %v8985 = vrot.slane %v8852, 7
        %v8986 = vsel %vm5109, %v8985, %v8851
        %v8987 = vrot.slane %v8853, 6
        %v8988 = vsel %vm5112, %v8987, %v8986
        %v8989 = vrot.slane %v8854, 5
        %v8990 = vsel %vm5115, %v8989, %v8988
        %v8991 = vrot.slane %v8855, 4
        %v8992 = vsel %vm5118, %v8991, %v8990
        %v8993 = vrot.slane %v8856, 3
        %v8994 = vsel %vm5121, %v8993, %v8992
        %v8995 = vrot.slane %v8857, 2
        %v8996 = vsel %vm5124, %v8995, %v8994
        %v8997 = vrot.slane %v8858, 1
        %v8998 = vsel %vm5127, %v8997, %v8996
        %v8999 = vrot.slane %v8860, 7
        %v9000 = vsel %vm5109, %v8999, %v8859
        %v9001 = vrot.slane %v8861, 6
        %v9002 = vsel %vm5112, %v9001, %v9000
        %v9003 = vrot.slane %v8862, 5
        %v9004 = vsel %vm5115, %v9003, %v9002
        %v9005 = vrot.slane %v8863, 4
        %v9006 = vsel %vm5118, %v9005, %v9004
        %v9007 = vrot.slane %v8864, 3
        %v9008 = vsel %vm5121, %v9007, %v9006
        %v9009 = vrot.slane %v8865, 2
        %v9010 = vsel %vm5124, %v9009, %v9008
        %v9011 = vrot.slane %v8866, 1
        %v9012 = vsel %vm5127, %v9011, %v9010
        %v9013 = vrot.slane %v8868, 7
        %v9014 = vsel %vm5109, %v9013, %v8867
        %v9015 = vrot.slane %v8869, 6
        %v9016 = vsel %vm5112, %v9015, %v9014
        %v9017 = vrot.slane %v8870, 5
        %v9018 = vsel %vm5115, %v9017, %v9016
        %v9019 = vrot.slane %v8871, 4
        %v9020 = vsel %vm5118, %v9019, %v9018
        %v9021 = vrot.slane %v8872, 3
        %v9022 = vsel %vm5121, %v9021, %v9020
        %v9023 = vrot.slane %v8873, 2
        %v9024 = vsel %vm5124, %v9023, %v9022
        %v9025 = vrot.slane %v8874, 1
        %v9026 = vsel %vm5127, %v9025, %v9024
        %v9027 = vrot.slane %v8876, 7
        %v9028 = vsel %vm5109, %v9027, %v8875
        %v9029 = vrot.slane %v8877, 6
        %v9030 = vsel %vm5112, %v9029, %v9028
        %v9031 = vrot.slane %v8878, 5
        %v9032 = vsel %vm5115, %v9031, %v9030
        %v9033 = vrot.slane %v8879, 4
        %v9034 = vsel %vm5118, %v9033, %v9032
        %v9035 = vrot.slane %v8880, 3
        %v9036 = vsel %vm5121, %v9035, %v9034
        %v9037 = vrot.slane %v8881, 2
        %v9038 = vsel %vm5124, %v9037, %v9036
        %v9039 = vrot.slane %v8882, 1
        %v9040 = vsel %vm5127, %v9039, %v9038
        %v9041 = vrot.slane %v8884, 7
        %v9042 = vsel %vm5109, %v9041, %v8883
        %v9043 = vrot.slane %v8885, 6
        %v9044 = vsel %vm5112, %v9043, %v9042
        %v9045 = vrot.slane %v8886, 5
        %v9046 = vsel %vm5115, %v9045, %v9044
        %v9047 = vrot.slane %v8887, 4
        %v9048 = vsel %vm5118, %v9047, %v9046
        %v9049 = vrot.slane %v8888, 3
        %v9050 = vsel %vm5121, %v9049, %v9048
        %v9051 = vrot.slane %v8889, 2
        %v9052 = vsel %vm5124, %v9051, %v9050
        %v9053 = vrot.slane %v8890, 1
        %v9054 = vsel %vm5127, %v9053, %v9052
        %v9055 = vrot.slane %v8892, 7
        %v9056 = vsel %vm5109, %v9055, %v8891
        %v9057 = vrot.slane %v8893, 6
        %v9058 = vsel %vm5112, %v9057, %v9056
        %v9059 = vrot.slane %v8894, 5
        %v9060 = vsel %vm5115, %v9059, %v9058
        %v9061 = vrot.slane %v8895, 4
        %v9062 = vsel %vm5118, %v9061, %v9060
        %v9063 = vrot.slane %v8896, 3
        %v9064 = vsel %vm5121, %v9063, %v9062
        %v9065 = vrot.slane %v8897, 2
        %v9066 = vsel %vm5124, %v9065, %v9064
        %v9067 = vrot.slane %v8898, 1
        %v9068 = vsel %vm5127, %v9067, %v9066
        %v9069 = vrot.slane %v8900, 7
        %v9070 = vsel %vm5109, %v9069, %v8899
        %v9071 = vrot.slane %v8901, 6
        %v9072 = vsel %vm5112, %v9071, %v9070
        %v9073 = vrot.slane %v8902, 5
        %v9074 = vsel %vm5115, %v9073, %v9072
        %v9075 = vrot.slane %v8903, 4
        %v9076 = vsel %vm5118, %v9075, %v9074
        %v9077 = vrot.slane %v8904, 3
        %v9078 = vsel %vm5121, %v9077, %v9076
        %v9079 = vrot.slane %v8905, 2
        %v9080 = vsel %vm5124, %v9079, %v9078
        %v9081 = vrot.slane %v8906, 1
        %v9082 = vsel %vm5127, %v9081, %v9080
        %v9083 = vrot.slane %v8908, 7
        %v9084 = vsel %vm5109, %v9083, %v8907
        %v9085 = vrot.slane %v8909, 6
        %v9086 = vsel %vm5112, %v9085, %v9084
        %v9087 = vrot.slane %v8910, 5
        %v9088 = vsel %vm5115, %v9087, %v9086
        %v9089 = vrot.slane %v8911, 4
        %v9090 = vsel %vm5118, %v9089, %v9088
        %v9091 = vrot.slane %v8912, 3
        %v9092 = vsel %vm5121, %v9091, %v9090
        %v9093 = vrot.slane %v8913, 2
        %v9094 = vsel %vm5124, %v9093, %v9092
        %v9095 = vrot.slane %v8914, 1
        %v9096 = vsel %vm5127, %v9095, %v9094
        %v9097 = vrot.slane %v8916, 7
        %v9098 = vsel %vm5109, %v9097, %v8915
        %v9099 = vrot.slane %v8917, 6
        %v9100 = vsel %vm5112, %v9099, %v9098
        %v9101 = vrot.slane %v8918, 5
        %v9102 = vsel %vm5115, %v9101, %v9100
        %v9103 = vrot.slane %v8919, 4
        %v9104 = vsel %vm5118, %v9103, %v9102
        %v9105 = vrot.slane %v8920, 3
        %v9106 = vsel %vm5121, %v9105, %v9104
        %v9107 = vrot.slane %v8921, 2
        %v9108 = vsel %vm5124, %v9107, %v9106
        %v9109 = vrot.slane %v8922, 1
        %v9110 = vsel %vm5127, %v9109, %v9108
        %v9111 = vrot.slane %v8924, 7
        %v9112 = vsel %vm5109, %v9111, %v8923
        %v9113 = vrot.slane %v8925, 6
        %v9114 = vsel %vm5112, %v9113, %v9112
        %v9115 = vrot.slane %v8926, 5
        %v9116 = vsel %vm5115, %v9115, %v9114
        %v9117 = vrot.slane %v8927, 4
        %v9118 = vsel %vm5118, %v9117, %v9116
        %v9119 = vrot.slane %v8928, 3
        %v9120 = vsel %vm5121, %v9119, %v9118
        %v9121 = vrot.slane %v8929, 2
        %v9122 = vsel %vm5124, %v9121, %v9120
        %v9123 = vrot.slane %v8930, 1
        %v9124 = vsel %vm5127, %v9123, %v9122
        %v9125 = vrot.slane %v8932, 7
        %v9126 = vsel %vm5109, %v9125, %v8931
        %v9127 = vrot.slane %v8933, 6
        %v9128 = vsel %vm5112, %v9127, %v9126
        %v9129 = vrot.slane %v8934, 5
        %v9130 = vsel %vm5115, %v9129, %v9128
        %v9131 = vrot.slane %v8935, 4
        %v9132 = vsel %vm5118, %v9131, %v9130
        %v9133 = vrot.slane %v8936, 3
        %v9134 = vsel %vm5121, %v9133, %v9132
        %v9135 = vrot.slane %v8937, 2
        %v9136 = vsel %vm5124, %v9135, %v9134
        %v9137 = vrot.slane %v8938, 1
        %v9138 = vsel %vm5127, %v9137, %v9136
        %v9139 = vrot.slane %v8940, 7
        %v9140 = vsel %vm5109, %v9139, %v8939
        %v9141 = vrot.slane %v8941, 6
        %v9142 = vsel %vm5112, %v9141, %v9140
        %v9143 = vrot.slane %v8942, 5
        %v9144 = vsel %vm5115, %v9143, %v9142
        %v9145 = vrot.slane %v8943, 4
        %v9146 = vsel %vm5118, %v9145, %v9144
        %v9147 = vrot.slane %v8944, 3
        %v9148 = vsel %vm5121, %v9147, %v9146
        %v9149 = vrot.slane %v8945, 2
        %v9150 = vsel %vm5124, %v9149, %v9148
        %v9151 = vrot.slane %v8946, 1
        %v9152 = vsel %vm5127, %v9151, %v9150
        %v9153 = vrot.slane %v8948, 7
        %v9154 = vsel %vm5109, %v9153, %v8947
        %v9155 = vrot.slane %v8949, 6
        %v9156 = vsel %vm5112, %v9155, %v9154
        %v9157 = vrot.slane %v8950, 5
        %v9158 = vsel %vm5115, %v9157, %v9156
        %v9159 = vrot.slane %v8951, 4
        %v9160 = vsel %vm5118, %v9159, %v9158
        %v9161 = vrot.slane %v8952, 3
        %v9162 = vsel %vm5121, %v9161, %v9160
        %v9163 = vrot.slane %v8953, 2
        %v9164 = vsel %vm5124, %v9163, %v9162
        %v9165 = vrot.slane %v8954, 1
        %v9166 = vsel %vm5127, %v9165, %v9164
        %v9167 = vrot.slane %v8956, 7
        %v9168 = vsel %vm5109, %v9167, %v8955
        %v9169 = vrot.slane %v8957, 6
        %v9170 = vsel %vm5112, %v9169, %v9168
        %v9171 = vrot.slane %v8958, 5
        %v9172 = vsel %vm5115, %v9171, %v9170
        %v9173 = vrot.slane %v8959, 4
        %v9174 = vsel %vm5118, %v9173, %v9172
        %v9175 = vrot.slane %v8960, 3
        %v9176 = vsel %vm5121, %v9175, %v9174
        %v9177 = vrot.slane %v8961, 2
        %v9178 = vsel %vm5124, %v9177, %v9176
        %v9179 = vrot.slane %v8962, 1
        %v9180 = vsel %vm5127, %v9179, %v9178
        %v9181 = vrot.slane %v8964, 7
        %v9182 = vsel %vm5109, %v9181, %v8963
        %v9183 = vrot.slane %v8965, 6
        %v9184 = vsel %vm5112, %v9183, %v9182
        %v9185 = vrot.slane %v8966, 5
        %v9186 = vsel %vm5115, %v9185, %v9184
        %v9187 = vrot.slane %v8967, 4
        %v9188 = vsel %vm5118, %v9187, %v9186
        %v9189 = vrot.slane %v8968, 3
        %v9190 = vsel %vm5121, %v9189, %v9188
        %v9191 = vrot.slane %v8969, 2
        %v9192 = vsel %vm5124, %v9191, %v9190
        %v9193 = vrot.slane %v8970, 1
        %v9194 = vsel %vm5127, %v9193, %v9192
        %v9195 = vpack.c.b16 %v8998, %v8984
        %v9196 = vpack.c.b16 %v9026, %v9012
        %v9197 = vpack.c.b16 %v9054, %v9040
        %v9198 = vpack.c.b16 %v9082, %v9068
        %v9199 = vpack.c.b16 %v9110, %v9096
        %v9200 = vpack.c.b16 %v9138, %v9124
        %v9201 = vpack.c.b16 %v9166, %v9152
        %v9202 = vpack.c.b16 %v9194, %v9180
        %v9227 = vunpack.c.l.b16 %v8695
        %v9228 = vunpack.c.l.b16 %v8696
        %v9229 = vunpack.c.l.b16 %v8697
        %v9230 = vunpack.c.l.b16 %v8698
        %v9231 = vunpack.c.l.b16 %v8699
        %v9232 = vunpack.c.l.b16 %v8700
        %v9233 = vunpack.c.l.b16 %v8701
        %v9234 = vunpack.c.l.b16 %v8702
        %v9235 = vunpack.c.l.b16 %v8703
        %v9236 = vunpack.c.l.b16 %v8704
        %v9237 = vunpack.c.l.b16 %v8705
        %v9238 = vunpack.c.l.b16 %v8706
        %v9239 = vunpack.c.l.b16 %v8707
        %v9240 = vunpack.c.l.b16 %v8708
        %v9241 = vunpack.c.l.b16 %v8709
        %v9242 = vunpack.c.l.b16 %v8710
        %v9243 = vpack.c.b16 %v9228, %v9227
        %v9244 = vpack.c.b16 %v9230, %v9229
        %v9245 = vpack.c.b16 %v9232, %v9231
        %v9246 = vpack.c.b16 %v9234, %v9233
        %v9247 = vpack.c.b16 %v9236, %v9235
        %v9248 = vpack.c.b16 %v9238, %v9237
        %v9249 = vpack.c.b16 %v9240, %v9239
        %v9250 = vpack.c.b16 %v9242, %v9241
        %9259 = vmatpush.bf16.msra.mxu0 %v9250
        %9260 = vmatpush.bf16.msra.mxu0 %v9249
        %9261 = vmatpush.bf16.msra.mxu0 %v9248
        %9262 = vmatpush.bf16.msra.mxu0 %v9247
        %9263 = vmatpush.bf16.msra.mxu0 %v9246
        %9264 = vmatpush.bf16.msra.mxu0 %v9245
        %9265 = vmatpush.bf16.msra.mxu0 %v9244
        %9266 = vmatpush.bf16.msra.mxu0 %v9243
        %9267 = vmatmul.bf16.gmra.mxu0 %v9195
        %v9268 = vpop.f32.mrf.mxu0
        %v9269 = vadd.f32 %v8713, %v9268
        %v9270 = vpop.f32.mrf.mxu0
        %v9271 = vadd.f32 %v8713, %v9270
        %9272 = vmatmul.bf16.gmra.mxu0 %v9196
        %v9273 = vpop.f32.mrf.mxu0
        %v9274 = vadd.f32 %v8713, %v9273
        %v9275 = vpop.f32.mrf.mxu0
        %v9276 = vadd.f32 %v8713, %v9275
        %9277 = vmatmul.bf16.gmra.mxu0 %v9197
        %v9278 = vpop.f32.mrf.mxu0
        %v9279 = vadd.f32 %v8713, %v9278
        %v9280 = vpop.f32.mrf.mxu0
        %v9281 = vadd.f32 %v8713, %v9280
        %9282 = vmatmul.bf16.gmra.mxu0 %v9198
        %v9283 = vpop.f32.mrf.mxu0
        %v9284 = vadd.f32 %v8713, %v9283
        %v9285 = vpop.f32.mrf.mxu0
        %v9286 = vadd.f32 %v8713, %v9285
        %9287 = vmatmul.bf16.gmra.mxu0 %v9199
        %v9288 = vpop.f32.mrf.mxu0
        %v9289 = vadd.f32 %v8713, %v9288
        %v9290 = vpop.f32.mrf.mxu0
        %v9291 = vadd.f32 %v8713, %v9290
        %9292 = vmatmul.bf16.gmra.mxu0 %v9200
        %v9293 = vpop.f32.mrf.mxu0
        %v9294 = vadd.f32 %v8713, %v9293
        %v9295 = vpop.f32.mrf.mxu0
        %v9296 = vadd.f32 %v8713, %v9295
        %9297 = vmatmul.bf16.gmra.mxu0 %v9201
        %v9298 = vpop.f32.mrf.mxu0
        %v9299 = vadd.f32 %v8713, %v9298
        %v9300 = vpop.f32.mrf.mxu0
        %v9301 = vadd.f32 %v8713, %v9300
        %9302 = vmatmul.bf16.gmra.mxu0 %v9202
        %v9303 = vpop.f32.mrf.mxu0
        %v9304 = vadd.f32 %v8713, %v9303
        %v9305 = vpop.f32.mrf.mxu0
        %v9306 = vadd.f32 %v8713, %v9305
        %9307 = vdwg.mxu0
        %9308 = vst [vmem:[%s299] sm:$0xff] %v9269
        %9309 = vst [vmem:[%s299 + $0x8] sm:$0xff] %v9271
        %9310 = vst [vmem:[%s299 + $0x10] sm:$0xff] %v9274
        %9311 = vst [vmem:[%s299 + $0x18] sm:$0xff] %v9276
        %9312 = vst [vmem:[%s299 + $0x20] sm:$0xff] %v9279
        %9313 = vst [vmem:[%s299 + $0x28] sm:$0xff] %v9281
        %9314 = vst [vmem:[%s299 + $0x30] sm:$0xff] %v9284
        %9315 = vst [vmem:[%s299 + $0x38] sm:$0xff] %v9286
        %9316 = vst [vmem:[%s299 + $0x40] sm:$0xff] %v9289
        %9317 = vst [vmem:[%s299 + $0x48] sm:$0xff] %v9291
        %9318 = vst [vmem:[%s299 + $0x50] sm:$0xff] %v9294
        %9319 = vst [vmem:[%s299 + $0x58] sm:$0xff] %v9296
        %9320 = vst [vmem:[%s299 + $0x60] sm:$0xff] %v9299
        %9321 = vst [vmem:[%s299 + $0x68] sm:$0xff] %v9301
        %9322 = vst [vmem:[%s299 + $0x70] sm:$0xff] %v9304
        %9323 = vst [vmem:[%s299 + $0x78] sm:$0xff] %v9306
        %s9324 = sand.u32 %s203, 1
        %s9325 = scalar_lea.sflag [#allocation3], %s9324
        %s9326 = sand.u32 %s203, 1
        %s9327 = smul.addr %s9326, 128
        %s9328 = scalar_lea.vmem [#allocation2], %s9327
        // Predicated region
        $region53: #{char_embedding_forward.1} parent=51 // pred_check
          %p9329 = pneg %p213
        $region54: #{char_embedding_forward.1} parent=51 // pred_check_branch
          %9331 = sbr.rel (%p9329) target = $region56
        $region55: #{char_embedding_forward.1} parent=51 // pred_region
          %s9332 = smul.u32 16, %s22
          %9334 = vsyncadd %s9325, 0
          %s9335 = smul.addr %s9332, 8
          %s9336 = scalar_lea.hbm %s8, %s9335
          %s9337 = sshll.u32 %s9328, 4
          %s9338 = int_to_ptr.vmem [resolvable:$true] %s9337
          %s9339 = sshll.u32 %s9336, 4
          %s9340 = int_to_ptr.hbm [resolvable:$true] %s9339
          %9345 = dma.vmem_to_hbm [thread:$0]  %s9338, 2048, %s9340, %s9325, 128, 128, 8
        $region56: #{char_embedding_forward.1} parent=51 // pred_fallthru
          _
      $region52: #{char_embedding_forward.1} parent=5 // pred_fallthru
        _
      %p9346 = scmp.le.s32.totalorder 2, %s17
      // Predicated region
      $region57: #{char_embedding_forward.1} parent=5 // pred_check
        %p9347 = pneg %p9346
      $region58: #{char_embedding_forward.1} parent=5 // pred_check_branch
        %9349 = sbr.rel (%p9347) target = $region60
      $region59: #{char_embedding_forward.1} parent=5 // pred_region
        %s9350 = ssub.s32 %s17, 2
        // Predicated region
        $region61: #{char_embedding_forward.1} parent=59 // pred_check
          %p9351 = pneg %p219
        $region62: #{char_embedding_forward.1} parent=59 // pred_check_branch
          %9353 = sbr.rel (%p9351) target = $region64
        $region63: #{char_embedding_forward.1} parent=59 // pred_region
          %s9354 = sand.u32 %s204, 1
          %s9355 = scalar_lea.sflag [#allocation3], %s9354
          %s9356 = sand.u32 %s204, 1
          %s9357 = smul.addr %s9356, 128
          %s9358 = scalar_lea.vmem [#allocation2], %s9357
          %9360 = dma.done %s9355, 2048
        $region64: #{char_embedding_forward.1} parent=59 // pred_fallthru
          _
      $region60: #{char_embedding_forward.1} parent=5 // pred_fallthru
        _
    $region6: #{char_embedding_forward.1} parent=1 // loop_footer
      %s21 = sadd.s32 1, %s17
    $region7: #{char_embedding_forward.1} parent=1 // loop_footer_branch
      %16 = sbr.rel target = $region3
    $region8: #{char_embedding_forward.1} parent=1 // loop_exit
      _
    %9361 = vsyncpa [#allocation3], 1
    %s9362 = scalar_lea.sflag [#allocation3], 1
    %9363 = vsyncpa %s9362, 1

</llo_original>
